<compile_context>
chip_gen: v5e
topology: v5e:2x2
jax: 0.10.0
libtpu: 0.0.40
codegen_flags: <defaults>
</compile_context>

<pallas_src>
import jax
import jax.numpy as jnp
from jax.experimental import pallas as pl
from jax.experimental.pallas import tpu as pltpu

BN_EPS = 1e-5

# Architecture constants for the pinned config.
N1 = 5            # image input channels
N2 = 5            # distance features
KERN = (8, 8, 16, 16)
FC0_OUT = 64
CONV_KERN = 14
PAD0 = 3
STRIDE0 = 2
IMG = 34          # input spatial size
H = 14            # spatial size after conv1 (and through all blocks)
HP = H + 2        # padded rows / column groups in the 2-D activation layout (16)
POOL = 7
HPOOL = H - POOL + 1            # 8
FLAT = KERN[3] * HPOOL * HPOOL  # 1024 == fcs[0]
STEM_RAW = CONV_KERN * (IMG + 2 * PAD0) * N1          # 2800
STEM_K = ((STEM_RAW + 127) // 128) * 128              # 2816 (lane aligned)

_WEIGHT_ORDER = ("t0", "b0",
                 "t11", "b11", "t12", "b12",
                 "t2d", "b2d", "t21", "b21", "t22", "b22",
                 "t31", "b31", "t32", "b32",
                 "g", "w0d", "fc0_b", "wfh", "wfd", "fc_b")


# --------------------------------------------------------------------------- #
# PyTorch-style parameters (conv OIHW weights, BN folded to scale/shift, FCs)  #
# --------------------------------------------------------------------------- #

def init_params(key):
    keys = iter(jax.random.split(key, 64))

    def conv_w(shape):
        return 0.05 * jax.random.normal(next(keys), shape, jnp.float32)

    def bn_fold(c):
        gamma = 1.0 + 0.1 * jax.random.normal(next(keys), (c,), jnp.float32)
        beta = 0.1 * jax.random.normal(next(keys), (c,), jnp.float32)
        rmean = 0.1 * jax.random.normal(next(keys), (c,), jnp.float32)
        rvar = 1.0 + 0.1 * jnp.abs(jax.random.normal(next(keys), (c,), jnp.float32))
        scale = gamma / jnp.sqrt(rvar + BN_EPS)
        return scale, beta - rmean * scale

    def block_params(cin, cout, stride):
        bp = {"stride": stride}
        bp["w1"] = conv_w((cout, cin, 3, 3))
        bp["s1"], bp["b1"] = bn_fold(cout)
        bp["w2"] = conv_w((cout, cout, 3, 3))
        bp["s2"], bp["b2"] = bn_fold(cout)
        if stride != 1 or cin != cout:
            bp["wd"] = conv_w((cout, cin, 1, 1))
            bp["sd"], bp["bd"] = bn_fold(cout)
        return bp

    p = {}
    p["conv1_w"] = conv_w((KERN[0], N1, CONV_KERN, CONV_KERN))
    p["bn1_s"], p["bn1_b"] = bn_fold(KERN[0])
    p["layer1"] = block_params(KERN[0], KERN[1], 1)
    p["layer2"] = block_params(KERN[1], KERN[2], 1)
    p["layer3"] = block_params(KERN[2], KERN[3], 1)
    p["fc0_w"] = 0.05 * jax.random.normal(next(keys), (FC0_OUT, FLAT + N2), jnp.float32)
    p["fc0_b"] = 0.05 * jax.random.normal(next(keys), (FC0_OUT,), jnp.float32)
    p["fc_w"] = 0.05 * jax.random.normal(next(keys), (1, FC0_OUT + N2), jnp.float32)
    p["fc_b"] = 0.05 * jax.random.normal(next(keys), (1,), jnp.float32)
    return p


# --------------------------------------------------------------------------- #
# Parameter prep: fold BN / pooling / flatten into lane-dense weight matrices  #
# --------------------------------------------------------------------------- #

def _bias_row(bias, wp=HP):
    """(1, wp*C) bias row in the padded layout (zeros at padding col groups)."""
    c = bias.shape[0]
    row = jnp.zeros((wp, c), jnp.float32)
    row = row.at[1:wp - 1, :].set(jnp.broadcast_to(bias, (wp - 2, c)))
    return row.reshape(1, wp * c)


def _toeplitz3(w_oihw, scale):
    """3x3 conv (stride 1, pad 1) as 3 matrices T_di of shape (HP*Cin, HP*Cout).

    Activation layout: rows = padded image rows, lanes = (padded col group)*C + c.
    Output lane groups 0 and HP-1 are all-zero columns (built-in column padding).
    """
    cout, cin, kh, kw = w_oihw.shape
    ws = w_oihw * scale[:, None, None, None]                 # fold BN scale
    jj = jnp.arange(HP)[:, None, None]                       # source padded col group
    j = jnp.arange(H)[None, :, None]                         # output col (0..13)
    dj = jnp.arange(kw)[None, None, :]
    sel = (jj - j == dj).astype(jnp.float32)                 # (HP, H, kw)
    t = jnp.einsum("Jjd,oced->eJcjo", sel, ws)               # (kh, HP, Cin, H, Cout)
    t = jnp.pad(t, ((0, 0), (0, 0), (0, 0), (1, 1), (0, 0)))  # pad output cols -> HP
    return t.reshape(kh, HP * cin, HP * cout).astype(jnp.bfloat16)


def _toeplitz_stem(w_oihw, scale):
    """conv1 (14x14, stride 2, pad 3) as 14 matrices (40*N1, HP*K0)."""
    cout, cin, kh, kw = w_oihw.shape
    wp_in = IMG + 2 * PAD0                                   # 40
    ws = w_oihw * scale[:, None, None, None]
    jj = jnp.arange(wp_in)[:, None, None]
    j = jnp.arange(H)[None, :, None]
    dj = jnp.arange(kw)[None, None, :]
    sel = (jj - STRIDE0 * j == dj).astype(jnp.float32)       # (40, 14, 14)
    t = jnp.einsum("Jjd,oced->eJcjo", sel, ws)               # (14, 40, N1, 14, K0)
    t = jnp.pad(t, ((0, 0), (0, 0), (0, 0), (1, 1), (0, 0)))
    return t.reshape(kh, wp_in * cin, HP * cout).astype(jnp.bfloat16)


def _toeplitz_ds(w_oihw, scale):
    """1x1 downsample conv as one block-diagonal matrix (HP*Cin, HP*Cout)."""
    cout, cin = w_oihw.shape[0], w_oihw.shape[1]
    ws = w_oihw[:, :, 0, 0] * scale[:, None]                 # (Cout, Cin)
    eye = jnp.eye(HP, dtype=jnp.float32)
    t = jnp.einsum("Jj,oc->Jcjo", eye, ws)                   # (HP, Cin, HP, Cout)
    return t.reshape(HP * cin, HP * cout).astype(jnp.bfloat16)


def _fc0_img_weights(fc0_w):
    """Fold avgpool column pass (+1/49), NCHW flatten and fc0 image weights.

    Returns g of shape (HPOOL, HP*C3, FC0_OUT):
      fc0_img = sum_i rowsum[i, :] @ g[i]   with rowsum = 7-row sums of the
      padded layer3 activation.
    """
    c3 = KERN[3]
    wimg = fc0_w[:, :FLAT].reshape(FC0_OUT, c3, HPOOL, HPOOL)     # [o, c, i, j]
    jj = jnp.arange(HP)[:, None]                                  # padded col group
    j = jnp.arange(HPOOL)[None, :]                                # pooled output col
    sel = ((jj >= j + 1) & (jj <= j + POOL)).astype(jnp.float32)  # (HP, HPOOL)
    g = jnp.einsum("Jj,ocij->iJco", sel, wimg) / float(POOL * POOL)
    return g.reshape(HPOOL, HP * c3, FC0_OUT).astype(jnp.bfloat16)


def prepare_kernel_params(params):
    l1, l2, l3 = params["layer1"], params["layer2"], params["layer3"]
    kp = {}

    # Stem: stack the 14 kernel-row matrices along K -> one (2816, 128) matrix.
    t0 = _toeplitz_stem(params["conv1_w"], params["bn1_s"])   # (14, 200, 128)
    t0 = t0.reshape(STEM_RAW, HP * KERN[0])
    kp["t0"] = jnp.pad(t0, ((0, STEM_K - STEM_RAW), (0, 0)))
    kp["b0"] = _bias_row(params["bn1_b"])

    def fused3(w, s):
        # Stack T_0|T_1|T_2 along K for the single-dot 3x3 conv.
        t = _toeplitz3(w, s)                                  # (3, HP*Cin, HP*Cout)
        return t.reshape(t.shape[0] * t.shape[1], t.shape[2])

    kp["t11"] = fused3(l1["w1"], l1["s1"]); kp["b11"] = _bias_row(l1["b1"])
    kp["t12"] = fused3(l1["w2"], l1["s2"]); kp["b12"] = _bias_row(l1["b2"])
    kp["t2d"] = _toeplitz_ds(l2["wd"], l2["sd"]); kp["b2d"] = _bias_row(l2["bd"])
    kp["t21"] = fused3(l2["w1"], l2["s1"]); kp["b21"] = _bias_row(l2["b1"])
    kp["t22"] = fused3(l2["w2"], l2["s2"]); kp["b22"] = _bias_row(l2["b2"])
    kp["t31"] = fused3(l3["w1"], l3["s1"]); kp["b31"] = _bias_row(l3["b1"])
    kp["t32"] = fused3(l3["w2"], l3["s2"]); kp["b32"] = _bias_row(l3["b2"])
    kp["g"] = _fc0_img_weights(params["fc0_w"])
    kp["w0d"] = params["fc0_w"][:, FLAT:].T.astype(jnp.bfloat16)        # (N2, 64)
    kp["fc0_b"] = params["fc0_b"].reshape(1, FC0_OUT).astype(jnp.float32)
    kp["wfh"] = params["fc_w"][:, :FC0_OUT].astype(jnp.float32)         # (1, 64)
    kp["wfd"] = params["fc_w"][:, FC0_OUT:].astype(jnp.float32)         # (1, N2)
    kp["fc_b"] = params["fc_b"].reshape(1, 1).astype(jnp.float32)
    return kp


# --------------------------------------------------------------------------- #
# The fused Pallas kernel (B_TILE images per grid step, stacked into M)        #
# --------------------------------------------------------------------------- #

def _odn_kernel(xim_ref,
                t0_ref, b0_ref,
                t11_ref, b11_ref, t12_ref, b12_ref,
                t2d_ref, b2d_ref, t21_ref, b21_ref, t22_ref, b22_ref,
                t31_ref, b31_ref, t32_ref, b32_ref,
                g_ref, w0d_ref, fc0b_ref, wfh_ref, wfd_ref, fcb_ref,
                out_ref):
    f32, bf16 = jnp.float32, jnp.bfloat16
    m = xim_ref.shape[0]              # B_TILE * HP  (stacked padded rows)
    bt = out_ref.shape[0]             # B_TILE

    # Row mask: zero the per-image padded rows 0 and HP-1 (they carry garbage
    # conv outputs / the stashed distance row).  HP is a power of two.
    rid = jax.lax.broadcasted_iota(jnp.int32, (m, 1), 0)
    sub = jnp.bitwise_and(rid, HP - 1)
    mask = ((sub != 0) & (sub != HP - 1)).astype(f32)         # (m, 1)

    def shift(x, d):
        """y[r] = x[r + d]; vacated rows are zero (consumers mask them)."""
        if d == 0:
            return x
        z = jnp.zeros((abs(d), x.shape[1]), x.dtype)
        if d > 0:
            return jnp.concatenate([x[d:, :], z], axis=0)
        return jnp.concatenate([z, x[:d, :]], axis=0)

    def conv3x3(a, t_ref, b_ref):
        # One fused MXU dot: operands [a[r-1] | a[r] | a[r+1]] along lanes,
        # weights T_0|T_1|T_2 stacked along K (built at prep time).
        cat = jnp.concatenate([shift(a, -1), a, shift(a, 1)], axis=1)
        return jnp.dot(cat.astype(bf16), t_ref[...],
                       preferred_element_type=f32) + b_ref[...]

    def basic_block(a, t1_ref, b1_ref, t2_ref, b2_ref, ds=None):
        if ds is None:
            idn = a
        else:
            td_ref, bd_ref = ds
            idn = jnp.dot(a.astype(bf16), td_ref[...],
                          preferred_element_type=f32) + bd_ref[...]
        mid = jnp.maximum(conv3x3(a, t1_ref, b1_ref), 0.0) * mask
        return jnp.maximum(conv3x3(mid, t2_ref, b2_ref) + idn, 0.0) * mask

    # ---- stem: conv1 (14x14, stride 2, pad 3) + BN + ReLU as ONE dot ---------
    xim = xim_ref[...]                                        # (m, 2816) bf16
    a = jnp.dot(xim, t0_ref[...], preferred_element_type=f32) + b0_ref[...]
    a = jnp.maximum(a, 0.0) * mask                            # (m, 128)

    # ---- residual blocks ------------------------------------------------------
    a = basic_block(a, t11_ref, b11_ref, t12_ref, b12_ref)                  # 8->8
    a = basic_block(a, t21_ref, b21_ref, t22_ref, b22_ref,
                    ds=(t2d_ref, b2d_ref))                                  # 8->16
    a = basic_block(a, t31_ref, b31_ref, t32_ref, b32_ref)                  # 16->16
    # a: (m, 256) padded activation of the last block.

    # ---- avgpool(7, stride 1) row pass: shifted adds --------------------------
    rowsum = shift(a, 1)
    for d in range(2, POOL + 1):
        rowsum = rowsum + shift(a, d)          # rows 0..7 of each image are valid

    # ---- fc0 image part: col pooling + NCHW flatten + weights folded into g ---
    h_full = jnp.dot(rowsum.astype(bf16), g_ref[0], preferred_element_type=f32)
    for i in range(1, HPOOL):
        h_full = h_full + jnp.dot(shift(rowsum, i).astype(bf16), g_ref[i],
                                  preferred_element_type=f32)
    # h_full (m, 64); only rows r == 16*b are meaningful.

    # ---- extract per-image rows (r = 16*b) with a tiny selection matmul -------
    sel_r = jax.lax.broadcasted_iota(jnp.int32, (bt, m), 0)
    sel_c = jax.lax.broadcasted_iota(jnp.int32, (bt, m), 1)
    sel = (sel_c == sel_r * HP).astype(f32)                   # (bt, m)
    h = jnp.dot(sel, h_full, preferred_element_type=f32)      # (bt, 64)
    # distances were stashed in row 0 (lanes 0..N2-1) of each image's im2col slab
    dist = jnp.dot(sel, xim[:, :N2].astype(f32), preferred_element_type=f32)

    # ---- fc0 distance part + bias + ReLU ---------------------------------------
    h = jnp.maximum(h + jnp.dot(dist.astype(bf16), w0d_ref[...],
                                preferred_element_type=f32) + fc0b_ref[...], 0.0)

    # ---- final fc (split matmul as lane reductions) ----------------------------
    out = (jnp.sum(h * wfh_ref[...], axis=1, keepdims=True)
           + jnp.sum(dist * wfd_ref[...], axis=1, keepdims=True)
           + fcb_ref[...])                                    # (bt, 1)
    out_ref[...] = out.astype(out_ref.dtype)


# --------------------------------------------------------------------------- #
# Wrapper: layout plumbing + pallas_call                                       #
# --------------------------------------------------------------------------- #

def _choose_b_tile(batch, max_tile=8):
    """Batch tile: large enough to fill the MXU M axis, but keep >= 2 grid steps
    when the batch allows it (so ("parallel",) spreads work over v7x's 2 TCs).
    On single-TC chips (v5e/v6e) max_tile can be raised to put more of the batch
    in one step."""
    if batch <= 1:
        return 1
    return max(1, min(max_tile, -(-batch // 2)))


def _prep_inputs(x_nchw, y_nchw, b_tile):
    """NCHW -> per-image im2col slab (HP, STEM_K) bf16; distances stashed in the
    otherwise-unused padding row 0 so the kernel needs a single input DMA."""
    b = x_nchw.shape[0]
    assert x_nchw.shape[1:] == (N1, IMG, IMG), x_nchw.shape
    assert y_nchw.shape[0] == b and y_nchw.shape[1] == N2, y_nchw.shape

    x = jnp.transpose(x_nchw, (0, 2, 3, 1)).astype(jnp.float32)       # (B,34,34,5)
    xp = jnp.pad(x, ((0, 0), (PAD0, PAD0), (PAD0, PAD0), (0, 0)))     # (B,40,40,5)
    wp = IMG + 2 * PAD0
    xp = xp.reshape(b, wp, wp * N1)                                   # (B,40,200)
    rows = STRIDE0 * jnp.arange(H)[:, None] + jnp.arange(CONV_KERN)[None, :]
    xim = xp[:, rows, :].reshape(b, H, STEM_RAW)                      # (B,14,2800)

    dist = y_nchw[:, :, 0, 0].astype(jnp.float32)                     # (B,5)
    row0 = jnp.zeros((b, 1, STEM_RAW), jnp.float32).at[:, 0, :N2].set(dist)
    rowl = jnp.zeros((b, 1, STEM_RAW), jnp.float32)
    xim = jnp.concatenate([row0, xim, rowl], axis=1)                  # (B,16,2800)
    xim = jnp.pad(xim, ((0, 0), (0, 0), (0, STEM_K - STEM_RAW)))      # lane align

    b_pad = ((b + b_tile - 1) // b_tile) * b_tile
    if b_pad != b:
        xim = jnp.pad(xim, ((0, b_pad - b), (0, 0), (0, 0)))
    return xim.reshape(b_pad * HP, STEM_K).astype(jnp.bfloat16), b_pad


def odn_forward(kernel_params, x_nchw, y_nchw, b_tile_max=8):
    b = x_nchw.shape[0]
    b_tile = _choose_b_tile(b, b_tile_max)
    xim, b_pad = _prep_inputs(x_nchw, y_nchw, b_tile)
    steps = b_pad // b_tile
    m_blk = b_tile * HP
    weights = [kernel_params[name] for name in _WEIGHT_ORDER]

    def wspec(w):
        # Constant index map -> weights are DMA'd once and stay VMEM-resident.
        return pl.BlockSpec(w.shape, lambda i, nd=w.ndim: (0,) * nd)

    in_specs = ([pl.BlockSpec((m_blk, STEM_K), lambda i: (i, 0))]
                + [wspec(w) for w in weights])
    out = pl.pallas_call(
        _odn_kernel,
        out_shape=jax.ShapeDtypeStruct((steps, b_tile, 1), jnp.float32),
        grid=(steps,),
        in_specs=in_specs,
        out_specs=pl.BlockSpec((None, b_tile, 1), lambda i: (i, 0, 0)),
        compiler_params=pltpu.CompilerParams(
            dimension_semantics=("parallel",),          # megacore on v7x
            vmem_limit_bytes=32 * 1024 * 1024),
    )(xim, *weights)
    return out.reshape(b_pad, 1)[:b]


# --------------------------------------------------------------------------- #
# Plain-JAX reference (mirrors the PyTorch module, bf16 matmul operands)       #
# --------------------------------------------------------------------------- #

def _conv_bn_ref(x, w, stride, pad, scale, bias):
    ws = (w * scale[:, None, None, None]).astype(jnp.bfloat16)
    out = jax.lax.conv_general_dilated(
        x.astype(jnp.bfloat16), ws,
        window_strides=(stride, stride),
        padding=[(pad, pad), (pad, pad)],
        dimension_numbers=("NHWC", "OIHW", "NHWC"),
        preferred_element_type=jnp.float32)
    return out + bias[None, None, None, :]


def _block_ref(x, bp):
    idn = x
    if "wd" in bp:
        idn = _conv_bn_ref(x, bp["wd"], bp["stride"], 0, bp["sd"], bp["bd"])
    out = jax.nn.relu(_conv_bn_ref(x, bp["w1"], bp["stride"], 1, bp["s1"], bp["b1"]))
    out = _conv_bn_ref(out, bp["w2"], 1, 1, bp["s2"], bp["b2"])
    return jax.nn.relu(out + idn)


def odn_reference(params, x_nchw, y_nchw):
    x = jnp.transpose(x_nchw, (0, 2, 3, 1)).astype(jnp.float32)
    x = jax.nn.relu(_conv_bn_ref(x, params["conv1_w"], STRIDE0, PAD0,
                                 params["bn1_s"], params["bn1_b"]))
    x = _block_ref(x, params["layer1"])
    x = _block_ref(x, params["layer2"])
    x = _block_ref(x, params["layer3"])
    x = jax.lax.reduce_window(x, 0.0, jax.lax.add,
                              (1, POOL, POOL, 1), (1, 1, 1, 1),
                              "VALID") / float(POOL * POOL)
    b = x.shape[0]
    x = jnp.transpose(x, (0, 3, 1, 2)).reshape(b, -1)          # NCHW flatten order
    dist = y_nchw[:, :, 0, 0].astype(jnp.float32)
    cat = jnp.concatenate([x, dist], axis=1)
    h = jnp.dot(cat.astype(jnp.bfloat16), params["fc0_w"].T.astype(jnp.bfloat16),
                preferred_element_type=jnp.float32) + params["fc0_b"]
    h = jax.nn.relu(h)
    cat = jnp.concatenate([h, dist], axis=1)
    return jnp.dot(cat, params["fc_w"].T) + params["fc_b"]


# --------------------------------------------------------------------------- #

if __name__ == "__main__":
    key = jax.random.PRNGKey(0)
    kparam_key, kx, ky = jax.random.split(key, 3)
    params = init_params(kparam_key)
    batch = 4
    # 34x34 inputs: conv1 -> 14x14, avgpool(7, stride 1) -> 8x8, 16*8*8 = 1024.
    x = jax.random.normal(kx, (batch, N1, IMG, IMG), jnp.float32)
    y = jax.random.normal(ky, (batch, N2, IMG, IMG), jnp.float32)

    kernel_params = prepare_kernel_params(params)
    fwd = jax.jit(odn_forward)
    out = jax.block_until_ready(fwd(kernel_params, x, y))

    assert out.shape == (batch, 1), out.shape
    assert bool(jnp.all(jnp.isfinite(out)))

    ref = jax.block_until_ready(odn_reference(params, x, y))
    max_abs = float(jnp.max(jnp.abs(out - ref)))
    scale = float(jnp.max(jnp.abs(ref)))
    assert max_abs < 5e-2 + 5e-2 * scale, (max_abs, out, ref)

    print("KERNEL_OK")
</pallas_src>

<mosaic_0001>
module attributes {stable_mosaic.version = 11 : i64} {
  func.func @_odn_kernel(%arg0: i32, %arg1: memref<32x2816xbf16, #tpu.memory_space<vmem>>, %arg2: memref<2816x128xbf16, #tpu.memory_space<vmem>>, %arg3: memref<1x128xf32, #tpu.memory_space<vmem>>, %arg4: memref<384x128xbf16, #tpu.memory_space<vmem>>, %arg5: memref<1x128xf32, #tpu.memory_space<vmem>>, %arg6: memref<384x128xbf16, #tpu.memory_space<vmem>>, %arg7: memref<1x128xf32, #tpu.memory_space<vmem>>, %arg8: memref<128x256xbf16, #tpu.memory_space<vmem>>, %arg9: memref<1x256xf32, #tpu.memory_space<vmem>>, %arg10: memref<384x256xbf16, #tpu.memory_space<vmem>>, %arg11: memref<1x256xf32, #tpu.memory_space<vmem>>, %arg12: memref<768x256xbf16, #tpu.memory_space<vmem>>, %arg13: memref<1x256xf32, #tpu.memory_space<vmem>>, %arg14: memref<768x256xbf16, #tpu.memory_space<vmem>>, %arg15: memref<1x256xf32, #tpu.memory_space<vmem>>, %arg16: memref<768x256xbf16, #tpu.memory_space<vmem>>, %arg17: memref<1x256xf32, #tpu.memory_space<vmem>>, %arg18: memref<8x256x64xbf16, #tpu.memory_space<vmem>>, %arg19: memref<5x64xbf16, #tpu.memory_space<vmem>>, %arg20: memref<1x64xf32, #tpu.memory_space<vmem>>, %arg21: memref<1x64xf32, #tpu.memory_space<vmem>>, %arg22: memref<1x5xf32, #tpu.memory_space<vmem>>, %arg23: memref<1x1xf32, #tpu.memory_space<vmem>>, %arg24: memref<1x2x1xf32, #tpu.memory_space<vmem>>) attributes {dimension_semantics = [#tpu.dimension_semantics<parallel>], iteration_bounds = array<i64: 2>, scalar_prefetch = 0 : i64, scratch_operands = 0 : i64, tpu.core_type = #tpu.core_type<tc>, window_params = [{transform_indices = @transform_0, window_bounds = array<i64: 32, 2816>}, {pipeline_mode = #tpu.pipeline_mode<synchronous>, transform_indices = @transform_1, window_bounds = array<i64: 2816, 128>}, {pipeline_mode = #tpu.pipeline_mode<synchronous>, transform_indices = @transform_2, window_bounds = array<i64: 1, 128>}, {pipeline_mode = #tpu.pipeline_mode<synchronous>, transform_indices = @transform_3, window_bounds = array<i64: 384, 128>}, {pipeline_mode = #tpu.pipeline_mode<synchronous>, transform_indices = @transform_4, window_bounds = array<i64: 1, 128>}, {pipeline_mode = #tpu.pipeline_mode<synchronous>, transform_indices = @transform_5, window_bounds = array<i64: 384, 128>}, {pipeline_mode = #tpu.pipeline_mode<synchronous>, transform_indices = @transform_6, window_bounds = array<i64: 1, 128>}, {pipeline_mode = #tpu.pipeline_mode<synchronous>, transform_indices = @transform_7, window_bounds = array<i64: 128, 256>}, {pipeline_mode = #tpu.pipeline_mode<synchronous>, transform_indices = @transform_8, window_bounds = array<i64: 1, 256>}, {pipeline_mode = #tpu.pipeline_mode<synchronous>, transform_indices = @transform_9, window_bounds = array<i64: 384, 256>}, {pipeline_mode = #tpu.pipeline_mode<synchronous>, transform_indices = @transform_10, window_bounds = array<i64: 1, 256>}, {pipeline_mode = #tpu.pipeline_mode<synchronous>, transform_indices = @transform_11, window_bounds = array<i64: 768, 256>}, {pipeline_mode = #tpu.pipeline_mode<synchronous>, transform_indices = @transform_12, window_bounds = array<i64: 1, 256>}, {pipeline_mode = #tpu.pipeline_mode<synchronous>, transform_indices = @transform_13, window_bounds = array<i64: 768, 256>}, {pipeline_mode = #tpu.pipeline_mode<synchronous>, transform_indices = @transform_14, window_bounds = array<i64: 1, 256>}, {pipeline_mode = #tpu.pipeline_mode<synchronous>, transform_indices = @transform_15, window_bounds = array<i64: 768, 256>}, {pipeline_mode = #tpu.pipeline_mode<synchronous>, transform_indices = @transform_16, window_bounds = array<i64: 1, 256>}, {pipeline_mode = #tpu.pipeline_mode<synchronous>, transform_indices = @transform_17, window_bounds = array<i64: 8, 256, 64>}, {pipeline_mode = #tpu.pipeline_mode<synchronous>, transform_indices = @transform_18, window_bounds = array<i64: 5, 64>}, {pipeline_mode = #tpu.pipeline_mode<synchronous>, transform_indices = @transform_19, window_bounds = array<i64: 1, 64>}, {pipeline_mode = #tpu.pipeline_mode<synchronous>, transform_indices = @transform_20, window_bounds = array<i64: 1, 64>}, {pipeline_mode = #tpu.pipeline_mode<synchronous>, transform_indices = @transform_21, window_bounds = array<i64: 1, 5>}, {pipeline_mode = #tpu.pipeline_mode<synchronous>, transform_indices = @transform_22, window_bounds = array<i64: 1, 1>}, {transform_indices = @transform_23, window_bounds = array<i64: 1, 2, 1>}]} {
    %0 = tpu.iota {dimensions = array<i32: 0>} : vector<32x1xi32>
    %c15_i32 = arith.constant 15 : i32
    %1 = vector.broadcast %c15_i32 : i32 to vector<32x1xi32>
    %2 = arith.andi %0, %1 : vector<32x1xi32>
    %c0_i32 = arith.constant 0 : i32
    %3 = vector.broadcast %c0_i32 : i32 to vector<32x1xi32>
    %4 = arith.cmpi ne, %2, %3 : vector<32x1xi32>
    %c15_i32_0 = arith.constant 15 : i32
    %5 = vector.broadcast %c15_i32_0 : i32 to vector<32x1xi32>
    %6 = arith.cmpi ne, %2, %5 : vector<32x1xi32>
    %7 = arith.andi %4, %6 : vector<32x1xi1>
    %8 = arith.extui %7 : vector<32x1xi1> to vector<32x1xi32>
    %9 = arith.sitofp %8 : vector<32x1xi32> to vector<32x1xf32>
    %c0 = arith.constant 0 : index
    %c0_1 = arith.constant 0 : index
    %10 = vector.load %arg1[%c0, %c0_1] : memref<32x2816xbf16, #tpu.memory_space<vmem>>, vector<32x2816xbf16>
    %c0_2 = arith.constant 0 : index
    %c0_3 = arith.constant 0 : index
    %11 = vector.load %arg2[%c0_2, %c0_3] : memref<2816x128xbf16, #tpu.memory_space<vmem>>, vector<2816x128xbf16>
    %cst = arith.constant dense<0.000000e+00> : vector<32x128xf32>
    %12 = tpu.matmul %10, %11, %cst {dimension_numbers = #tpu.dot_dimension_numbers<[1], [0], [0], [1], [0, 0, 1, 1], [], []>} : vector<32x2816xbf16>, vector<2816x128xbf16>, vector<32x128xf32> -> vector<32x128xf32>
    %c0_4 = arith.constant 0 : index
    %c0_5 = arith.constant 0 : index
    %13 = vector.load %arg3[%c0_4, %c0_5] : memref<1x128xf32, #tpu.memory_space<vmem>>, vector<1x128xf32>
    %14 = vector.broadcast %13 : vector<1x128xf32> to vector<32x128xf32>
    %15 = arith.addf %12, %14 : vector<32x128xf32>
    %cst_6 = arith.constant 0.000000e+00 : f32
    %16 = vector.broadcast %cst_6 : f32 to vector<32x128xf32>
    %17 = arith.maximumf %15, %16 : vector<32x128xf32>
    %18 = vector.broadcast %9 : vector<32x1xf32> to vector<32x128xf32>
    %19 = arith.mulf %17, %18 : vector<32x128xf32>
    %cst_7 = arith.constant 0.000000e+00 : f32
    %20 = vector.broadcast %cst_7 : f32 to vector<1x128xf32>
    %21 = vector.extract_strided_slice %19 {offsets = [0, 0], sizes = [31, 128], strides = [1, 1]} : vector<32x128xf32> to vector<31x128xf32>
    %22 = tpu.concatenate %20, %21 in 0 : vector<1x128xf32>, vector<31x128xf32> -> vector<32x128xf32>
    %cst_8 = arith.constant 0.000000e+00 : f32
    %23 = vector.broadcast %cst_8 : f32 to vector<1x128xf32>
    %24 = vector.extract_strided_slice %19 {offsets = [1, 0], sizes = [31, 128], strides = [1, 1]} : vector<32x128xf32> to vector<31x128xf32>
    %25 = tpu.concatenate %24, %23 in 0 : vector<31x128xf32>, vector<1x128xf32> -> vector<32x128xf32>
    %26 = tpu.concatenate %22, %19, %25 in 1 : vector<32x128xf32>, vector<32x128xf32>, vector<32x128xf32> -> vector<32x384xf32>
    %27 = arith.truncf %26 : vector<32x384xf32> to vector<32x384xbf16>
    %c0_9 = arith.constant 0 : index
    %c0_10 = arith.constant 0 : index
    %28 = vector.load %arg4[%c0_9, %c0_10] : memref<384x128xbf16, #tpu.memory_space<vmem>>, vector<384x128xbf16>
    %cst_11 = arith.constant dense<0.000000e+00> : vector<32x128xf32>
    %29 = tpu.matmul %27, %28, %cst_11 {dimension_numbers = #tpu.dot_dimension_numbers<[1], [0], [0], [1], [0, 0, 1, 1], [], []>} : vector<32x384xbf16>, vector<384x128xbf16>, vector<32x128xf32> -> vector<32x128xf32>
    %c0_12 = arith.constant 0 : index
    %c0_13 = arith.constant 0 : index
    %30 = vector.load %arg5[%c0_12, %c0_13] : memref<1x128xf32, #tpu.memory_space<vmem>>, vector<1x128xf32>
    %31 = vector.broadcast %30 : vector<1x128xf32> to vector<32x128xf32>
    %32 = arith.addf %29, %31 : vector<32x128xf32>
    %cst_14 = arith.constant 0.000000e+00 : f32
    %33 = vector.broadcast %cst_14 : f32 to vector<32x128xf32>
    %34 = arith.maximumf %32, %33 : vector<32x128xf32>
    %35 = vector.broadcast %9 : vector<32x1xf32> to vector<32x128xf32>
    %36 = arith.mulf %34, %35 : vector<32x128xf32>
    %cst_15 = arith.constant 0.000000e+00 : f32
    %37 = vector.broadcast %cst_15 : f32 to vector<1x128xf32>
    %38 = vector.extract_strided_slice %36 {offsets = [0, 0], sizes = [31, 128], strides = [1, 1]} : vector<32x128xf32> to vector<31x128xf32>
    %39 = tpu.concatenate %37, %38 in 0 : vector<1x128xf32>, vector<31x128xf32> -> vector<32x128xf32>
    %cst_16 = arith.constant 0.000000e+00 : f32
    %40 = vector.broadcast %cst_16 : f32 to vector<1x128xf32>
    %41 = vector.extract_strided_slice %36 {offsets = [1, 0], sizes = [31, 128], strides = [1, 1]} : vector<32x128xf32> to vector<31x128xf32>
    %42 = tpu.concatenate %41, %40 in 0 : vector<31x128xf32>, vector<1x128xf32> -> vector<32x128xf32>
    %43 = tpu.concatenate %39, %36, %42 in 1 : vector<32x128xf32>, vector<32x128xf32>, vector<32x128xf32> -> vector<32x384xf32>
    %44 = arith.truncf %43 : vector<32x384xf32> to vector<32x384xbf16>
    %c0_17 = arith.constant 0 : index
    %c0_18 = arith.constant 0 : index
    %45 = vector.load %arg6[%c0_17, %c0_18] : memref<384x128xbf16, #tpu.memory_space<vmem>>, vector<384x128xbf16>
    %cst_19 = arith.constant dense<0.000000e+00> : vector<32x128xf32>
    %46 = tpu.matmul %44, %45, %cst_19 {dimension_numbers = #tpu.dot_dimension_numbers<[1], [0], [0], [1], [0, 0, 1, 1], [], []>} : vector<32x384xbf16>, vector<384x128xbf16>, vector<32x128xf32> -> vector<32x128xf32>
    %c0_20 = arith.constant 0 : index
    %c0_21 = arith.constant 0 : index
    %47 = vector.load %arg7[%c0_20, %c0_21] : memref<1x128xf32, #tpu.memory_space<vmem>>, vector<1x128xf32>
    %48 = vector.broadcast %47 : vector<1x128xf32> to vector<32x128xf32>
    %49 = arith.addf %46, %48 : vector<32x128xf32>
    %50 = arith.addf %49, %19 : vector<32x128xf32>
    %cst_22 = arith.constant 0.000000e+00 : f32
    %51 = vector.broadcast %cst_22 : f32 to vector<32x128xf32>
    %52 = arith.maximumf %50, %51 : vector<32x128xf32>
    %53 = vector.broadcast %9 : vector<32x1xf32> to vector<32x128xf32>
    %54 = arith.mulf %52, %53 : vector<32x128xf32>
    %55 = arith.truncf %54 : vector<32x128xf32> to vector<32x128xbf16>
    %c0_23 = arith.constant 0 : index
    %c0_24 = arith.constant 0 : index
    %56 = vector.load %arg8[%c0_23, %c0_24] : memref<128x256xbf16, #tpu.memory_space<vmem>>, vector<128x256xbf16>
    %cst_25 = arith.constant dense<0.000000e+00> : vector<32x256xf32>
    %57 = tpu.matmul %55, %56, %cst_25 {dimension_numbers = #tpu.dot_dimension_numbers<[1], [0], [0], [1], [0, 0, 1, 1], [], []>} : vector<32x128xbf16>, vector<128x256xbf16>, vector<32x256xf32> -> vector<32x256xf32>
    %c0_26 = arith.constant 0 : index
    %c0_27 = arith.constant 0 : index
    %58 = vector.load %arg9[%c0_26, %c0_27] : memref<1x256xf32, #tpu.memory_space<vmem>>, vector<1x256xf32>
    %59 = vector.broadcast %58 : vector<1x256xf32> to vector<32x256xf32>
    %60 = arith.addf %57, %59 : vector<32x256xf32>
    %cst_28 = arith.constant 0.000000e+00 : f32
    %61 = vector.broadcast %cst_28 : f32 to vector<1x128xf32>
    %62 = vector.extract_strided_slice %54 {offsets = [0, 0], sizes = [31, 128], strides = [1, 1]} : vector<32x128xf32> to vector<31x128xf32>
    %63 = tpu.concatenate %61, %62 in 0 : vector<1x128xf32>, vector<31x128xf32> -> vector<32x128xf32>
    %cst_29 = arith.constant 0.000000e+00 : f32
    %64 = vector.broadcast %cst_29 : f32 to vector<1x128xf32>
    %65 = vector.extract_strided_slice %54 {offsets = [1, 0], sizes = [31, 128], strides = [1, 1]} : vector<32x128xf32> to vector<31x128xf32>
    %66 = tpu.concatenate %65, %64 in 0 : vector<31x128xf32>, vector<1x128xf32> -> vector<32x128xf32>
    %67 = tpu.concatenate %63, %54, %66 in 1 : vector<32x128xf32>, vector<32x128xf32>, vector<32x128xf32> -> vector<32x384xf32>
    %68 = arith.truncf %67 : vector<32x384xf32> to vector<32x384xbf16>
    %c0_30 = arith.constant 0 : index
    %c0_31 = arith.constant 0 : index
    %69 = vector.load %arg10[%c0_30, %c0_31] : memref<384x256xbf16, #tpu.memory_space<vmem>>, vector<384x256xbf16>
    %cst_32 = arith.constant dense<0.000000e+00> : vector<32x256xf32>
    %70 = tpu.matmul %68, %69, %cst_32 {dimension_numbers = #tpu.dot_dimension_numbers<[1], [0], [0], [1], [0, 0, 1, 1], [], []>} : vector<32x384xbf16>, vector<384x256xbf16>, vector<32x256xf32> -> vector<32x256xf32>
    %c0_33 = arith.constant 0 : index
    %c0_34 = arith.constant 0 : index
    %71 = vector.load %arg11[%c0_33, %c0_34] : memref<1x256xf32, #tpu.memory_space<vmem>>, vector<1x256xf32>
    %72 = vector.broadcast %71 : vector<1x256xf32> to vector<32x256xf32>
    %73 = arith.addf %70, %72 : vector<32x256xf32>
    %cst_35 = arith.constant 0.000000e+00 : f32
    %74 = vector.broadcast %cst_35 : f32 to vector<32x256xf32>
    %75 = arith.maximumf %73, %74 : vector<32x256xf32>
    %76 = vector.broadcast %9 : vector<32x1xf32> to vector<32x256xf32>
    %77 = arith.mulf %75, %76 : vector<32x256xf32>
    %cst_36 = arith.constant 0.000000e+00 : f32
    %78 = vector.broadcast %cst_36 : f32 to vector<1x256xf32>
    %79 = vector.extract_strided_slice %77 {offsets = [0, 0], sizes = [31, 256], strides = [1, 1]} : vector<32x256xf32> to vector<31x256xf32>
    %80 = tpu.concatenate %78, %79 in 0 : vector<1x256xf32>, vector<31x256xf32> -> vector<32x256xf32>
    %cst_37 = arith.constant 0.000000e+00 : f32
    %81 = vector.broadcast %cst_37 : f32 to vector<1x256xf32>
    %82 = vector.extract_strided_slice %77 {offsets = [1, 0], sizes = [31, 256], strides = [1, 1]} : vector<32x256xf32> to vector<31x256xf32>
    %83 = tpu.concatenate %82, %81 in 0 : vector<31x256xf32>, vector<1x256xf32> -> vector<32x256xf32>
    %84 = tpu.concatenate %80, %77, %83 in 1 : vector<32x256xf32>, vector<32x256xf32>, vector<32x256xf32> -> vector<32x768xf32>
    %85 = arith.truncf %84 : vector<32x768xf32> to vector<32x768xbf16>
    %c0_38 = arith.constant 0 : index
    %c0_39 = arith.constant 0 : index
    %86 = vector.load %arg12[%c0_38, %c0_39] : memref<768x256xbf16, #tpu.memory_space<vmem>>, vector<768x256xbf16>
    %cst_40 = arith.constant dense<0.000000e+00> : vector<32x256xf32>
    %87 = tpu.matmul %85, %86, %cst_40 {dimension_numbers = #tpu.dot_dimension_numbers<[1], [0], [0], [1], [0, 0, 1, 1], [], []>} : vector<32x768xbf16>, vector<768x256xbf16>, vector<32x256xf32> -> vector<32x256xf32>
    %c0_41 = arith.constant 0 : index
    %c0_42 = arith.constant 0 : index
    %88 = vector.load %arg13[%c0_41, %c0_42] : memref<1x256xf32, #tpu.memory_space<vmem>>, vector<1x256xf32>
    %89 = vector.broadcast %88 : vector<1x256xf32> to vector<32x256xf32>
    %90 = arith.addf %87, %89 : vector<32x256xf32>
    %91 = arith.addf %90, %60 : vector<32x256xf32>
    %cst_43 = arith.constant 0.000000e+00 : f32
    %92 = vector.broadcast %cst_43 : f32 to vector<32x256xf32>
    %93 = arith.maximumf %91, %92 : vector<32x256xf32>
    %94 = vector.broadcast %9 : vector<32x1xf32> to vector<32x256xf32>
    %95 = arith.mulf %93, %94 : vector<32x256xf32>
    %cst_44 = arith.constant 0.000000e+00 : f32
    %96 = vector.broadcast %cst_44 : f32 to vector<1x256xf32>
    %97 = vector.extract_strided_slice %95 {offsets = [0, 0], sizes = [31, 256], strides = [1, 1]} : vector<32x256xf32> to vector<31x256xf32>
    %98 = tpu.concatenate %96, %97 in 0 : vector<1x256xf32>, vector<31x256xf32> -> vector<32x256xf32>
    %cst_45 = arith.constant 0.000000e+00 : f32
    %99 = vector.broadcast %cst_45 : f32 to vector<1x256xf32>
    %100 = vector.extract_strided_slice %95 {offsets = [1, 0], sizes = [31, 256], strides = [1, 1]} : vector<32x256xf32> to vector<31x256xf32>
    %101 = tpu.concatenate %100, %99 in 0 : vector<31x256xf32>, vector<1x256xf32> -> vector<32x256xf32>
    %102 = tpu.concatenate %98, %95, %101 in 1 : vector<32x256xf32>, vector<32x256xf32>, vector<32x256xf32> -> vector<32x768xf32>
    %103 = arith.truncf %102 : vector<32x768xf32> to vector<32x768xbf16>
    %c0_46 = arith.constant 0 : index
    %c0_47 = arith.constant 0 : index
    %104 = vector.load %arg14[%c0_46, %c0_47] : memref<768x256xbf16, #tpu.memory_space<vmem>>, vector<768x256xbf16>
    %cst_48 = arith.constant dense<0.000000e+00> : vector<32x256xf32>
    %105 = tpu.matmul %103, %104, %cst_48 {dimension_numbers = #tpu.dot_dimension_numbers<[1], [0], [0], [1], [0, 0, 1, 1], [], []>} : vector<32x768xbf16>, vector<768x256xbf16>, vector<32x256xf32> -> vector<32x256xf32>
    %c0_49 = arith.constant 0 : index
    %c0_50 = arith.constant 0 : index
    %106 = vector.load %arg15[%c0_49, %c0_50] : memref<1x256xf32, #tpu.memory_space<vmem>>, vector<1x256xf32>
    %107 = vector.broadcast %106 : vector<1x256xf32> to vector<32x256xf32>
    %108 = arith.addf %105, %107 : vector<32x256xf32>
    %cst_51 = arith.constant 0.000000e+00 : f32
    %109 = vector.broadcast %cst_51 : f32 to vector<32x256xf32>
    %110 = arith.maximumf %108, %109 : vector<32x256xf32>
    %111 = vector.broadcast %9 : vector<32x1xf32> to vector<32x256xf32>
    %112 = arith.mulf %110, %111 : vector<32x256xf32>
    %cst_52 = arith.constant 0.000000e+00 : f32
    %113 = vector.broadcast %cst_52 : f32 to vector<1x256xf32>
    %114 = vector.extract_strided_slice %112 {offsets = [0, 0], sizes = [31, 256], strides = [1, 1]} : vector<32x256xf32> to vector<31x256xf32>
    %115 = tpu.concatenate %113, %114 in 0 : vector<1x256xf32>, vector<31x256xf32> -> vector<32x256xf32>
    %cst_53 = arith.constant 0.000000e+00 : f32
    %116 = vector.broadcast %cst_53 : f32 to vector<1x256xf32>
    %117 = vector.extract_strided_slice %112 {offsets = [1, 0], sizes = [31, 256], strides = [1, 1]} : vector<32x256xf32> to vector<31x256xf32>
    %118 = tpu.concatenate %117, %116 in 0 : vector<31x256xf32>, vector<1x256xf32> -> vector<32x256xf32>
    %119 = tpu.concatenate %115, %112, %118 in 1 : vector<32x256xf32>, vector<32x256xf32>, vector<32x256xf32> -> vector<32x768xf32>
    %120 = arith.truncf %119 : vector<32x768xf32> to vector<32x768xbf16>
    %c0_54 = arith.constant 0 : index
    %c0_55 = arith.constant 0 : index
    %121 = vector.load %arg16[%c0_54, %c0_55] : memref<768x256xbf16, #tpu.memory_space<vmem>>, vector<768x256xbf16>
    %cst_56 = arith.constant dense<0.000000e+00> : vector<32x256xf32>
    %122 = tpu.matmul %120, %121, %cst_56 {dimension_numbers = #tpu.dot_dimension_numbers<[1], [0], [0], [1], [0, 0, 1, 1], [], []>} : vector<32x768xbf16>, vector<768x256xbf16>, vector<32x256xf32> -> vector<32x256xf32>
    %c0_57 = arith.constant 0 : index
    %c0_58 = arith.constant 0 : index
    %123 = vector.load %arg17[%c0_57, %c0_58] : memref<1x256xf32, #tpu.memory_space<vmem>>, vector<1x256xf32>
    %124 = vector.broadcast %123 : vector<1x256xf32> to vector<32x256xf32>
    %125 = arith.addf %122, %124 : vector<32x256xf32>
    %126 = arith.addf %125, %95 : vector<32x256xf32>
    %cst_59 = arith.constant 0.000000e+00 : f32
    %127 = vector.broadcast %cst_59 : f32 to vector<32x256xf32>
    %128 = arith.maximumf %126, %127 : vector<32x256xf32>
    %129 = vector.broadcast %9 : vector<32x1xf32> to vector<32x256xf32>
    %130 = arith.mulf %128, %129 : vector<32x256xf32>
    %cst_60 = arith.constant 0.000000e+00 : f32
    %131 = vector.broadcast %cst_60 : f32 to vector<1x256xf32>
    %132 = vector.extract_strided_slice %130 {offsets = [1, 0], sizes = [31, 256], strides = [1, 1]} : vector<32x256xf32> to vector<31x256xf32>
    %133 = tpu.concatenate %132, %131 in 0 : vector<31x256xf32>, vector<1x256xf32> -> vector<32x256xf32>
    %cst_61 = arith.constant 0.000000e+00 : f32
    %134 = vector.broadcast %cst_61 : f32 to vector<2x256xf32>
    %135 = vector.extract_strided_slice %130 {offsets = [2, 0], sizes = [30, 256], strides = [1, 1]} : vector<32x256xf32> to vector<30x256xf32>
    %136 = tpu.concatenate %135, %134 in 0 : vector<30x256xf32>, vector<2x256xf32> -> vector<32x256xf32>
    %137 = arith.addf %133, %136 : vector<32x256xf32>
    %cst_62 = arith.constant 0.000000e+00 : f32
    %138 = vector.broadcast %cst_62 : f32 to vector<3x256xf32>
    %139 = vector.extract_strided_slice %130 {offsets = [3, 0], sizes = [29, 256], strides = [1, 1]} : vector<32x256xf32> to vector<29x256xf32>
    %140 = tpu.concatenate %139, %138 in 0 : vector<29x256xf32>, vector<3x256xf32> -> vector<32x256xf32>
    %141 = arith.addf %137, %140 : vector<32x256xf32>
    %cst_63 = arith.constant 0.000000e+00 : f32
    %142 = vector.broadcast %cst_63 : f32 to vector<4x256xf32>
    %143 = vector.extract_strided_slice %130 {offsets = [4, 0], sizes = [28, 256], strides = [1, 1]} : vector<32x256xf32> to vector<28x256xf32>
    %144 = tpu.concatenate %143, %142 in 0 : vector<28x256xf32>, vector<4x256xf32> -> vector<32x256xf32>
    %145 = arith.addf %141, %144 : vector<32x256xf32>
    %cst_64 = arith.constant 0.000000e+00 : f32
    %146 = vector.broadcast %cst_64 : f32 to vector<5x256xf32>
    %147 = vector.extract_strided_slice %130 {offsets = [5, 0], sizes = [27, 256], strides = [1, 1]} : vector<32x256xf32> to vector<27x256xf32>
    %148 = tpu.concatenate %147, %146 in 0 : vector<27x256xf32>, vector<5x256xf32> -> vector<32x256xf32>
    %149 = arith.addf %145, %148 : vector<32x256xf32>
    %cst_65 = arith.constant 0.000000e+00 : f32
    %150 = vector.broadcast %cst_65 : f32 to vector<6x256xf32>
    %151 = vector.extract_strided_slice %130 {offsets = [6, 0], sizes = [26, 256], strides = [1, 1]} : vector<32x256xf32> to vector<26x256xf32>
    %152 = tpu.concatenate %151, %150 in 0 : vector<26x256xf32>, vector<6x256xf32> -> vector<32x256xf32>
    %153 = arith.addf %149, %152 : vector<32x256xf32>
    %cst_66 = arith.constant 0.000000e+00 : f32
    %154 = vector.broadcast %cst_66 : f32 to vector<7x256xf32>
    %155 = vector.extract_strided_slice %130 {offsets = [7, 0], sizes = [25, 256], strides = [1, 1]} : vector<32x256xf32> to vector<25x256xf32>
    %156 = tpu.concatenate %155, %154 in 0 : vector<25x256xf32>, vector<7x256xf32> -> vector<32x256xf32>
    %157 = arith.addf %153, %156 : vector<32x256xf32>
    %158 = arith.truncf %157 : vector<32x256xf32> to vector<32x256xbf16>
    %c0_67 = arith.constant 0 : index
    %c0_68 = arith.constant 0 : index
    %c0_69 = arith.constant 0 : index
    %159 = vector.load %arg18[%c0_67, %c0_68, %c0_69] : memref<8x256x64xbf16, #tpu.memory_space<vmem>>, vector<1x256x64xbf16>
    %160 = vector.shape_cast %159 : vector<1x256x64xbf16> to vector<256x64xbf16>
    %cst_70 = arith.constant dense<0.000000e+00> : vector<32x64xf32>
    %161 = tpu.matmul %158, %160, %cst_70 {dimension_numbers = #tpu.dot_dimension_numbers<[1], [0], [0], [1], [0, 0, 1, 1], [], []>} : vector<32x256xbf16>, vector<256x64xbf16>, vector<32x64xf32> -> vector<32x64xf32>
    %cst_71 = arith.constant 0.000000e+00 : f32
    %162 = vector.broadcast %cst_71 : f32 to vector<1x256xf32>
    %163 = vector.extract_strided_slice %157 {offsets = [1, 0], sizes = [31, 256], strides = [1, 1]} : vector<32x256xf32> to vector<31x256xf32>
    %164 = tpu.concatenate %163, %162 in 0 : vector<31x256xf32>, vector<1x256xf32> -> vector<32x256xf32>
    %165 = arith.truncf %164 : vector<32x256xf32> to vector<32x256xbf16>
    %c1 = arith.constant 1 : index
    %c0_72 = arith.constant 0 : index
    %c0_73 = arith.constant 0 : index
    %166 = vector.load %arg18[%c1, %c0_72, %c0_73] : memref<8x256x64xbf16, #tpu.memory_space<vmem>>, vector<1x256x64xbf16>
    %167 = vector.shape_cast %166 : vector<1x256x64xbf16> to vector<256x64xbf16>
    %cst_74 = arith.constant dense<0.000000e+00> : vector<32x64xf32>
    %168 = tpu.matmul %165, %167, %cst_74 {dimension_numbers = #tpu.dot_dimension_numbers<[1], [0], [0], [1], [0, 0, 1, 1], [], []>} : vector<32x256xbf16>, vector<256x64xbf16>, vector<32x64xf32> -> vector<32x64xf32>
    %169 = arith.addf %161, %168 : vector<32x64xf32>
    %cst_75 = arith.constant 0.000000e+00 : f32
    %170 = vector.broadcast %cst_75 : f32 to vector<2x256xf32>
    %171 = vector.extract_strided_slice %157 {offsets = [2, 0], sizes = [30, 256], strides = [1, 1]} : vector<32x256xf32> to vector<30x256xf32>
    %172 = tpu.concatenate %171, %170 in 0 : vector<30x256xf32>, vector<2x256xf32> -> vector<32x256xf32>
    %173 = arith.truncf %172 : vector<32x256xf32> to vector<32x256xbf16>
    %c2 = arith.constant 2 : index
    %c0_76 = arith.constant 0 : index
    %c0_77 = arith.constant 0 : index
    %174 = vector.load %arg18[%c2, %c0_76, %c0_77] : memref<8x256x64xbf16, #tpu.memory_space<vmem>>, vector<1x256x64xbf16>
    %175 = vector.shape_cast %174 : vector<1x256x64xbf16> to vector<256x64xbf16>
    %cst_78 = arith.constant dense<0.000000e+00> : vector<32x64xf32>
    %176 = tpu.matmul %173, %175, %cst_78 {dimension_numbers = #tpu.dot_dimension_numbers<[1], [0], [0], [1], [0, 0, 1, 1], [], []>} : vector<32x256xbf16>, vector<256x64xbf16>, vector<32x64xf32> -> vector<32x64xf32>
    %177 = arith.addf %169, %176 : vector<32x64xf32>
    %cst_79 = arith.constant 0.000000e+00 : f32
    %178 = vector.broadcast %cst_79 : f32 to vector<3x256xf32>
    %179 = vector.extract_strided_slice %157 {offsets = [3, 0], sizes = [29, 256], strides = [1, 1]} : vector<32x256xf32> to vector<29x256xf32>
    %180 = tpu.concatenate %179, %178 in 0 : vector<29x256xf32>, vector<3x256xf32> -> vector<32x256xf32>
    %181 = arith.truncf %180 : vector<32x256xf32> to vector<32x256xbf16>
    %c3 = arith.constant 3 : index
    %c0_80 = arith.constant 0 : index
    %c0_81 = arith.constant 0 : index
    %182 = vector.load %arg18[%c3, %c0_80, %c0_81] : memref<8x256x64xbf16, #tpu.memory_space<vmem>>, vector<1x256x64xbf16>
    %183 = vector.shape_cast %182 : vector<1x256x64xbf16> to vector<256x64xbf16>
    %cst_82 = arith.constant dense<0.000000e+00> : vector<32x64xf32>
    %184 = tpu.matmul %181, %183, %cst_82 {dimension_numbers = #tpu.dot_dimension_numbers<[1], [0], [0], [1], [0, 0, 1, 1], [], []>} : vector<32x256xbf16>, vector<256x64xbf16>, vector<32x64xf32> -> vector<32x64xf32>
    %185 = arith.addf %177, %184 : vector<32x64xf32>
    %cst_83 = arith.constant 0.000000e+00 : f32
    %186 = vector.broadcast %cst_83 : f32 to vector<4x256xf32>
    %187 = vector.extract_strided_slice %157 {offsets = [4, 0], sizes = [28, 256], strides = [1, 1]} : vector<32x256xf32> to vector<28x256xf32>
    %188 = tpu.concatenate %187, %186 in 0 : vector<28x256xf32>, vector<4x256xf32> -> vector<32x256xf32>
    %189 = arith.truncf %188 : vector<32x256xf32> to vector<32x256xbf16>
    %c4 = arith.constant 4 : index
    %c0_84 = arith.constant 0 : index
    %c0_85 = arith.constant 0 : index
    %190 = vector.load %arg18[%c4, %c0_84, %c0_85] : memref<8x256x64xbf16, #tpu.memory_space<vmem>>, vector<1x256x64xbf16>
    %191 = vector.shape_cast %190 : vector<1x256x64xbf16> to vector<256x64xbf16>
    %cst_86 = arith.constant dense<0.000000e+00> : vector<32x64xf32>
    %192 = tpu.matmul %189, %191, %cst_86 {dimension_numbers = #tpu.dot_dimension_numbers<[1], [0], [0], [1], [0, 0, 1, 1], [], []>} : vector<32x256xbf16>, vector<256x64xbf16>, vector<32x64xf32> -> vector<32x64xf32>
    %193 = arith.addf %185, %192 : vector<32x64xf32>
    %cst_87 = arith.constant 0.000000e+00 : f32
    %194 = vector.broadcast %cst_87 : f32 to vector<5x256xf32>
    %195 = vector.extract_strided_slice %157 {offsets = [5, 0], sizes = [27, 256], strides = [1, 1]} : vector<32x256xf32> to vector<27x256xf32>
    %196 = tpu.concatenate %195, %194 in 0 : vector<27x256xf32>, vector<5x256xf32> -> vector<32x256xf32>
    %197 = arith.truncf %196 : vector<32x256xf32> to vector<32x256xbf16>
    %c5 = arith.constant 5 : index
    %c0_88 = arith.constant 0 : index
    %c0_89 = arith.constant 0 : index
    %198 = vector.load %arg18[%c5, %c0_88, %c0_89] : memref<8x256x64xbf16, #tpu.memory_space<vmem>>, vector<1x256x64xbf16>
    %199 = vector.shape_cast %198 : vector<1x256x64xbf16> to vector<256x64xbf16>
    %cst_90 = arith.constant dense<0.000000e+00> : vector<32x64xf32>
    %200 = tpu.matmul %197, %199, %cst_90 {dimension_numbers = #tpu.dot_dimension_numbers<[1], [0], [0], [1], [0, 0, 1, 1], [], []>} : vector<32x256xbf16>, vector<256x64xbf16>, vector<32x64xf32> -> vector<32x64xf32>
    %201 = arith.addf %193, %200 : vector<32x64xf32>
    %cst_91 = arith.constant 0.000000e+00 : f32
    %202 = vector.broadcast %cst_91 : f32 to vector<6x256xf32>
    %203 = vector.extract_strided_slice %157 {offsets = [6, 0], sizes = [26, 256], strides = [1, 1]} : vector<32x256xf32> to vector<26x256xf32>
    %204 = tpu.concatenate %203, %202 in 0 : vector<26x256xf32>, vector<6x256xf32> -> vector<32x256xf32>
    %205 = arith.truncf %204 : vector<32x256xf32> to vector<32x256xbf16>
    %c6 = arith.constant 6 : index
    %c0_92 = arith.constant 0 : index
    %c0_93 = arith.constant 0 : index
    %206 = vector.load %arg18[%c6, %c0_92, %c0_93] : memref<8x256x64xbf16, #tpu.memory_space<vmem>>, vector<1x256x64xbf16>
    %207 = vector.shape_cast %206 : vector<1x256x64xbf16> to vector<256x64xbf16>
    %cst_94 = arith.constant dense<0.000000e+00> : vector<32x64xf32>
    %208 = tpu.matmul %205, %207, %cst_94 {dimension_numbers = #tpu.dot_dimension_numbers<[1], [0], [0], [1], [0, 0, 1, 1], [], []>} : vector<32x256xbf16>, vector<256x64xbf16>, vector<32x64xf32> -> vector<32x64xf32>
    %209 = arith.addf %201, %208 : vector<32x64xf32>
    %cst_95 = arith.constant 0.000000e+00 : f32
    %210 = vector.broadcast %cst_95 : f32 to vector<7x256xf32>
    %211 = vector.extract_strided_slice %157 {offsets = [7, 0], sizes = [25, 256], strides = [1, 1]} : vector<32x256xf32> to vector<25x256xf32>
    %212 = tpu.concatenate %211, %210 in 0 : vector<25x256xf32>, vector<7x256xf32> -> vector<32x256xf32>
    %213 = arith.truncf %212 : vector<32x256xf32> to vector<32x256xbf16>
    %c7 = arith.constant 7 : index
    %c0_96 = arith.constant 0 : index
    %c0_97 = arith.constant 0 : index
    %214 = vector.load %arg18[%c7, %c0_96, %c0_97] : memref<8x256x64xbf16, #tpu.memory_space<vmem>>, vector<1x256x64xbf16>
    %215 = vector.shape_cast %214 : vector<1x256x64xbf16> to vector<256x64xbf16>
    %cst_98 = arith.constant dense<0.000000e+00> : vector<32x64xf32>
    %216 = tpu.matmul %213, %215, %cst_98 {dimension_numbers = #tpu.dot_dimension_numbers<[1], [0], [0], [1], [0, 0, 1, 1], [], []>} : vector<32x256xbf16>, vector<256x64xbf16>, vector<32x64xf32> -> vector<32x64xf32>
    %217 = arith.addf %209, %216 : vector<32x64xf32>
    %218 = tpu.iota {dimensions = array<i32: 0>} : vector<2x32xi32>
    %219 = tpu.iota {dimensions = array<i32: 1>} : vector<2x32xi32>
    %c16_i32 = arith.constant 16 : i32
    %220 = vector.broadcast %c16_i32 : i32 to vector<2x32xi32>
    %221 = arith.muli %218, %220 : vector<2x32xi32>
    %222 = arith.cmpi eq, %219, %221 : vector<2x32xi32>
    %223 = arith.extui %222 : vector<2x32xi1> to vector<2x32xi32>
    %224 = arith.sitofp %223 : vector<2x32xi32> to vector<2x32xf32>
    %cst_99 = arith.constant dense<0.000000e+00> : vector<2x64xf32>
    %225 = tpu.matmul %224, %217, %cst_99 {dimension_numbers = #tpu.dot_dimension_numbers<[1], [0], [0], [1], [0, 0, 1, 1], [], []>} : vector<2x32xf32>, vector<32x64xf32>, vector<2x64xf32> -> vector<2x64xf32>
    %226 = vector.extract_strided_slice %10 {offsets = [0, 0], sizes = [32, 5], strides = [1, 1]} : vector<32x2816xbf16> to vector<32x5xbf16>
    %227 = arith.extf %226 : vector<32x5xbf16> to vector<32x5xf32>
    %cst_100 = arith.constant dense<0.000000e+00> : vector<2x5xf32>
    %228 = tpu.matmul %224, %227, %cst_100 {dimension_numbers = #tpu.dot_dimension_numbers<[1], [0], [0], [1], [0, 0, 1, 1], [], []>} : vector<2x32xf32>, vector<32x5xf32>, vector<2x5xf32> -> vector<2x5xf32>
    %229 = arith.truncf %228 : vector<2x5xf32> to vector<2x5xbf16>
    %c0_101 = arith.constant 0 : index
    %c0_102 = arith.constant 0 : index
    %230 = vector.load %arg19[%c0_101, %c0_102] : memref<5x64xbf16, #tpu.memory_space<vmem>>, vector<5x64xbf16>
    %cst_103 = arith.constant dense<0.000000e+00> : vector<2x64xf32>
    %231 = tpu.matmul %229, %230, %cst_103 {dimension_numbers = #tpu.dot_dimension_numbers<[1], [0], [0], [1], [0, 0, 1, 1], [], []>} : vector<2x5xbf16>, vector<5x64xbf16>, vector<2x64xf32> -> vector<2x64xf32>
    %232 = arith.addf %225, %231 : vector<2x64xf32>
    %c0_104 = arith.constant 0 : index
    %c0_105 = arith.constant 0 : index
    %233 = vector.load %arg20[%c0_104, %c0_105] : memref<1x64xf32, #tpu.memory_space<vmem>>, vector<1x64xf32>
    %234 = vector.broadcast %233 : vector<1x64xf32> to vector<2x64xf32>
    %235 = arith.addf %232, %234 : vector<2x64xf32>
    %cst_106 = arith.constant 0.000000e+00 : f32
    %236 = vector.broadcast %cst_106 : f32 to vector<2x64xf32>
    %237 = arith.maximumf %235, %236 : vector<2x64xf32>
    %c0_107 = arith.constant 0 : index
    %c0_108 = arith.constant 0 : index
    %238 = vector.load %arg21[%c0_107, %c0_108] : memref<1x64xf32, #tpu.memory_space<vmem>>, vector<1x64xf32>
    %239 = vector.broadcast %238 : vector<1x64xf32> to vector<2x64xf32>
    %240 = arith.mulf %237, %239 : vector<2x64xf32>
    %cst_109 = arith.constant dense<0.000000e+00> : vector<2xf32>
    %241 = vector.multi_reduction <add>, %240, %cst_109 [1] : vector<2x64xf32> to vector<2xf32>
    %242 = vector.shape_cast %241 : vector<2xf32> to vector<2x1xf32>
    %c0_110 = arith.constant 0 : index
    %c0_111 = arith.constant 0 : index
    %243 = vector.load %arg22[%c0_110, %c0_111] : memref<1x5xf32, #tpu.memory_space<vmem>>, vector<1x5xf32>
    %244 = vector.broadcast %243 : vector<1x5xf32> to vector<2x5xf32>
    %245 = arith.mulf %228, %244 : vector<2x5xf32>
    %cst_112 = arith.constant dense<0.000000e+00> : vector<2xf32>
    %246 = vector.multi_reduction <add>, %245, %cst_112 [1] : vector<2x5xf32> to vector<2xf32>
    %247 = vector.shape_cast %246 : vector<2xf32> to vector<2x1xf32>
    %248 = arith.addf %242, %247 : vector<2x1xf32>
    %c0_113 = arith.constant 0 : index
    %c0_114 = arith.constant 0 : index
    %249 = vector.load %arg23[%c0_113, %c0_114] : memref<1x1xf32, #tpu.memory_space<vmem>>, vector<1x1xf32>
    %250 = vector.broadcast %249 : vector<1x1xf32> to vector<2x1xf32>
    %251 = arith.addf %248, %250 : vector<2x1xf32>
    %c0_115 = arith.constant 0 : index
    %c0_116 = arith.constant 0 : index
    %c0_117 = arith.constant 0 : index
    %252 = vector.load %arg24[%c0_115, %c0_116, %c0_117] : memref<1x2x1xf32, #tpu.memory_space<vmem>>, vector<1x2x1xf32>
    %253 = vector.shape_cast %252 : vector<1x2x1xf32> to vector<2x1xf32>
    %254 = vector.shape_cast %251 : vector<2x1xf32> to vector<1x2x1xf32>
    tpu.vector_store %arg24[%c0_115, %c0_116, %c0_117], %254 {strides = array<i32>} : memref<1x2x1xf32, #tpu.memory_space<vmem>>, vector<1x2x1xf32>,
    return
  }
  func.func @transform_0(%arg0: i32) -> (i32, i32) {
    %c0_i32 = arith.constant 0 : i32
    %c0_i32_0 = arith.constant 0 : i32
    return %arg0, %c0_i32 : i32, i32
  }
  func.func @transform_1(%arg0: i32) -> (i32, i32) {
    %c0_i32 = arith.constant 0 : i32
    %c0_i32_0 = arith.constant 0 : i32
    %c0_i32_1 = arith.constant 0 : i32
    return %c0_i32, %c0_i32_0 : i32, i32
  }
  func.func @transform_2(%arg0: i32) -> (i32, i32) {
    %c0_i32 = arith.constant 0 : i32
    %c0_i32_0 = arith.constant 0 : i32
    %c0_i32_1 = arith.constant 0 : i32
    return %c0_i32, %c0_i32_0 : i32, i32
  }
  func.func @transform_3(%arg0: i32) -> (i32, i32) {
    %c0_i32 = arith.constant 0 : i32
    %c0_i32_0 = arith.constant 0 : i32
    %c0_i32_1 = arith.constant 0 : i32
    return %c0_i32, %c0_i32_0 : i32, i32
  }
  func.func @transform_4(%arg0: i32) -> (i32, i32) {
    %c0_i32 = arith.constant 0 : i32
    %c0_i32_0 = arith.constant 0 : i32
    %c0_i32_1 = arith.constant 0 : i32
    return %c0_i32, %c0_i32_0 : i32, i32
  }
  func.func @transform_5(%arg0: i32) -> (i32, i32) {
    %c0_i32 = arith.constant 0 : i32
    %c0_i32_0 = arith.constant 0 : i32
    %c0_i32_1 = arith.constant 0 : i32
    return %c0_i32, %c0_i32_0 : i32, i32
  }
  func.func @transform_6(%arg0: i32) -> (i32, i32) {
    %c0_i32 = arith.constant 0 : i32
    %c0_i32_0 = arith.constant 0 : i32
    %c0_i32_1 = arith.constant 0 : i32
    return %c0_i32, %c0_i32_0 : i32, i32
  }
  func.func @transform_7(%arg0: i32) -> (i32, i32) {
    %c0_i32 = arith.constant 0 : i32
    %c0_i32_0 = arith.constant 0 : i32
    %c0_i32_1 = arith.constant 0 : i32
    return %c0_i32, %c0_i32_0 : i32, i32
  }
  func.func @transform_8(%arg0: i32) -> (i32, i32) {
    %c0_i32 = arith.constant 0 : i32
    %c0_i32_0 = arith.constant 0 : i32
    %c0_i32_1 = arith.constant 0 : i32
    return %c0_i32, %c0_i32_0 : i32, i32
  }
  func.func @transform_9(%arg0: i32) -> (i32, i32) {
    %c0_i32 = arith.constant 0 : i32
    %c0_i32_0 = arith.constant 0 : i32
    %c0_i32_1 = arith.constant 0 : i32
    return %c0_i32, %c0_i32_0 : i32, i32
  }
  func.func @transform_10(%arg0: i32) -> (i32, i32) {
    %c0_i32 = arith.constant 0 : i32
    %c0_i32_0 = arith.constant 0 : i32
    %c0_i32_1 = arith.constant 0 : i32
    return %c0_i32, %c0_i32_0 : i32, i32
  }
  func.func @transform_11(%arg0: i32) -> (i32, i32) {
    %c0_i32 = arith.constant 0 : i32
    %c0_i32_0 = arith.constant 0 : i32
    %c0_i32_1 = arith.constant 0 : i32
    return %c0_i32, %c0_i32_0 : i32, i32
  }
  func.func @transform_12(%arg0: i32) -> (i32, i32) {
    %c0_i32 = arith.constant 0 : i32
    %c0_i32_0 = arith.constant 0 : i32
    %c0_i32_1 = arith.constant 0 : i32
    return %c0_i32, %c0_i32_0 : i32, i32
  }
  func.func @transform_13(%arg0: i32) -> (i32, i32) {
    %c0_i32 = arith.constant 0 : i32
    %c0_i32_0 = arith.constant 0 : i32
    %c0_i32_1 = arith.constant 0 : i32
    return %c0_i32, %c0_i32_0 : i32, i32
  }
  func.func @transform_14(%arg0: i32) -> (i32, i32) {
    %c0_i32 = arith.constant 0 : i32
    %c0_i32_0 = arith.constant 0 : i32
    %c0_i32_1 = arith.constant 0 : i32
    return %c0_i32, %c0_i32_0 : i32, i32
  }
  func.func @transform_15(%arg0: i32) -> (i32, i32) {
    %c0_i32 = arith.constant 0 : i32
    %c0_i32_0 = arith.constant 0 : i32
    %c0_i32_1 = arith.constant 0 : i32
    return %c0_i32, %c0_i32_0 : i32, i32
  }
  func.func @transform_16(%arg0: i32) -> (i32, i32) {
    %c0_i32 = arith.constant 0 : i32
    %c0_i32_0 = arith.constant 0 : i32
    %c0_i32_1 = arith.constant 0 : i32
    return %c0_i32, %c0_i32_0 : i32, i32
  }
  func.func @transform_17(%arg0: i32) -> (i32, i32, i32) {
    %c0_i32 = arith.constant 0 : i32
    %c0_i32_0 = arith.constant 0 : i32
    %c0_i32_1 = arith.constant 0 : i32
    %c0_i32_2 = arith.constant 0 : i32
    return %c0_i32, %c0_i32_0, %c0_i32_1 : i32, i32, i32
  }
  func.func @transform_18(%arg0: i32) -> (i32, i32) {
    %c0_i32 = arith.constant 0 : i32
    %c0_i32_0 = arith.constant 0 : i32
    %c0_i32_1 = arith.constant 0 : i32
    return %c0_i32, %c0_i32_0 : i32, i32
  }
  func.func @transform_19(%arg0: i32) -> (i32, i32) {
    %c0_i32 = arith.constant 0 : i32
    %c0_i32_0 = arith.constant 0 : i32
    %c0_i32_1 = arith.constant 0 : i32
    return %c0_i32, %c0_i32_0 : i32, i32
  }
  func.func @transform_20(%arg0: i32) -> (i32, i32) {
    %c0_i32 = arith.constant 0 : i32
    %c0_i32_0 = arith.constant 0 : i32
    %c0_i32_1 = arith.constant 0 : i32
    return %c0_i32, %c0_i32_0 : i32, i32
  }
  func.func @transform_21(%arg0: i32) -> (i32, i32) {
    %c0_i32 = arith.constant 0 : i32
    %c0_i32_0 = arith.constant 0 : i32
    %c0_i32_1 = arith.constant 0 : i32
    return %c0_i32, %c0_i32_0 : i32, i32
  }
  func.func @transform_22(%arg0: i32) -> (i32, i32) {
    %c0_i32 = arith.constant 0 : i32
    %c0_i32_0 = arith.constant 0 : i32
    %c0_i32_1 = arith.constant 0 : i32
    return %c0_i32, %c0_i32_0 : i32, i32
  }
  func.func @transform_23(%arg0: i32) -> (i32, i32, i32) {
    %c0_i32 = arith.constant 0 : i32
    %c0_i32_0 = arith.constant 0 : i32
    %c0_i32_1 = arith.constant 0 : i32
    return %arg0, %c0_i32, %c0_i32_0 : i32, i32, i32
  }
}

</mosaic_0001>

<llo_original>
// kernel: odn_forward.1
$region0: #{odn_forward.1}
  #allocation0 [shape = 'u32[]', space=smem, size = 0x4, offset = 0x4, fixed_abs, tag = 'smem constant byte address 0x4 - core index']
  #allocation1 [shape = 'u32[72,128]{1,0:T(1,128)}', space=vmem, size = 0x9000, scoped, tag = 'internal scratch']
  #allocation2 [shape = 'f32[1,1]{1,0:T(1,128)S(1)}', space=vmem, size = 0x200, scoped, tag = 'scoped memory for odn_forward.1']
  %s0 = inlined_call_operand.vmem [shape: bf16[64,2816], index: 0, kind: input, shape index: {}]
  %s1 = inlined_call_operand.vmem [shape: bf16[2816,128], index: 1, kind: input, shape index: {}]
  %s2 = inlined_call_operand.vmem [shape: f32[1,128], index: 2, kind: input, shape index: {}]
  %s3 = inlined_call_operand.vmem [shape: bf16[384,128], index: 3, kind: input, shape index: {}]
  %s4 = inlined_call_operand.vmem [shape: f32[1,128], index: 4, kind: input, shape index: {}]
  %s5 = inlined_call_operand.vmem [shape: bf16[384,128], index: 5, kind: input, shape index: {}]
  %s6 = inlined_call_operand.vmem [shape: f32[1,128], index: 6, kind: input, shape index: {}]
  %s7 = inlined_call_operand.vmem [shape: bf16[128,256], index: 7, kind: input, shape index: {}]
  %s8 = inlined_call_operand.vmem [shape: f32[1,256], index: 8, kind: input, shape index: {}]
  %s9 = inlined_call_operand.vmem [shape: bf16[384,256], index: 9, kind: input, shape index: {}]
  %s10 = inlined_call_operand.vmem [shape: f32[1,256], index: 10, kind: input, shape index: {}]
  %s11 = inlined_call_operand.vmem [shape: bf16[768,256], index: 11, kind: input, shape index: {}]
  %s12 = inlined_call_operand.vmem [shape: f32[1,256], index: 12, kind: input, shape index: {}]
  %s13 = inlined_call_operand.vmem [shape: bf16[768,256], index: 13, kind: input, shape index: {}]
  %s14 = inlined_call_operand.vmem [shape: f32[1,256], index: 14, kind: input, shape index: {}]
  %s15 = inlined_call_operand.vmem [shape: bf16[768,256], index: 15, kind: input, shape index: {}]
  %s16 = inlined_call_operand.vmem [shape: f32[1,256], index: 16, kind: input, shape index: {}]
  %s17 = inlined_call_operand.vmem [shape: bf16[8,256,64], index: 17, kind: input, shape index: {}]
  %s18 = inlined_call_operand.vmem [shape: bf16[5,64], index: 18, kind: input, shape index: {}]
  %s19 = inlined_call_operand.vmem [shape: f32[1,64], index: 19, kind: input, shape index: {}]
  %s20 = inlined_call_operand.vmem [shape: f32[1,64], index: 20, kind: input, shape index: {}]
  %s21 = inlined_call_operand.vmem [shape: f32[1,5], index: 21, kind: input, shape index: {}]
  %s22 = inlined_call_operand.<no memory space> [shape: f32[1,1], index: 22, kind: input, shape index: {}]
  %s23 = inlined_call_operand.vmem [shape: f32[2,2,1], index: 23, kind: output, shape index: {}]
  %s24 = sld [smem:[#allocation0]]
  $region125: #{odn_forward.1} parent=0
    _
  %s26 = ssub.s32 1, %s24
  %s27 = scalar_select 0, %s26, %s24
  %v28 = vstv %s22
  %29 = vst [vmem:[#allocation2] sm:$0x1] %v28
  loop: start=0, step=1, limit=4
  $region2: #{odn_forward.1} parent=0 // loop_pre_header
    _
  $region3: #{odn_forward.1} parent=0 // loop_header
    %s31 = sphi 0, %s35
    %p32 = scmp.ge.s32.totalorder %s31, 4
    %s41 = sphi 0, %s43
    %s44 = sphi 0, %s41
    %s45 = sphi 0, %s44
    %s61 = sphi 0, %s45
    %s65 = sphi 0, %s65
    %s67 = sphi 0, %s65
    %s68 = sphi 0, %s67
    %s82 = sphi 0, %s68
    %s86 = sphi 0, %s86
    %s88 = sphi 0, %s86
    %s89 = sphi 0, %s88
    %s103 = sphi 0, %s89
    %s107 = sphi 0, %s107
    %s109 = sphi 0, %s107
    %s110 = sphi 0, %s109
    %s124 = sphi 0, %s110
    %s128 = sphi 0, %s128
    %s130 = sphi 0, %s128
    %s131 = sphi 0, %s130
    %s145 = sphi 0, %s131
    %s149 = sphi 0, %s149
    %s151 = sphi 0, %s149
    %s152 = sphi 0, %s151
    %s166 = sphi 0, %s152
    %s170 = sphi 0, %s170
    %s172 = sphi 0, %s170
    %s173 = sphi 0, %s172
    %s187 = sphi 0, %s173
    %s191 = sphi 0, %s191
    %s193 = sphi 0, %s191
    %s194 = sphi 0, %s193
    %s208 = sphi 0, %s194
    %s212 = sphi 0, %s212
    %s214 = sphi 0, %s212
    %s215 = sphi 0, %s214
    %s229 = sphi 0, %s215
    %s233 = sphi 0, %s233
    %s235 = sphi 0, %s233
    %s236 = sphi 0, %s235
    %s250 = sphi 0, %s236
    %s254 = sphi 0, %s254
    %s256 = sphi 0, %s254
    %s257 = sphi 0, %s256
    %s271 = sphi 0, %s257
    %s275 = sphi 0, %s275
    %s277 = sphi 0, %s275
    %s278 = sphi 0, %s277
    %s292 = sphi 0, %s278
    %s296 = sphi 0, %s296
    %s298 = sphi 0, %s296
    %s299 = sphi 0, %s298
    %s313 = sphi 0, %s299
    %s317 = sphi 0, %s317
    %s319 = sphi 0, %s317
    %s320 = sphi 0, %s319
    %s334 = sphi 0, %s320
    %s338 = sphi 0, %s338
    %s340 = sphi 0, %s338
    %s341 = sphi 0, %s340
    %s355 = sphi 0, %s341
    %s359 = sphi 0, %s359
    %s361 = sphi 0, %s359
    %s362 = sphi 0, %s361
    %s376 = sphi 0, %s362
    %s380 = sphi 0, %s380
    %s382 = sphi 0, %s380
    %s383 = sphi 0, %s382
    %s397 = sphi 0, %s383
    %s401 = sphi 0, %s401
    %s403 = sphi 0, %s401
    %s404 = sphi 0, %s403
    %s418 = sphi 0, %s404
    %s422 = sphi 0, %s422
    %s424 = sphi 0, %s422
    %s425 = sphi 0, %s424
    %s439 = sphi 0, %s425
    %s443 = sphi 0, %s443
    %s445 = sphi 0, %s443
    %s446 = sphi 0, %s445
    %s460 = sphi 0, %s446
    %s464 = sphi 0, %s464
    %s466 = sphi 0, %s464
    %s467 = sphi 0, %s466
    %s481 = sphi 0, %s467
    %s485 = sphi 0, %s485
    %s487 = sphi 0, %s485
    %s488 = sphi 0, %s487
    %s502 = sphi 0, %s488
    %s506 = sphi 0, %s506
    %s508 = sphi 0, %s506
    %s509 = sphi 0, %s508
    %s523 = sphi 0, %s509
    %s529 = sphi 0, %s531
    %s532 = sphi 0, %s529
    %s533 = sphi 0, %s532
    %s549 = sphi 0, %s533
  $region4: #{odn_forward.1} parent=0 // loop_header_branch
    %34 = sbr.rel (%p32) target = $region8
  $region5: #{odn_forward.1} parent=0 // loop_body
    %s36 = ssub.s32 %s31, 1
    %s37 = ssub.s32 %s31, 2
    %s38 = sadd.s32 %s31, 1
    %s39 = ssub.s32 %s31, %s38
    %p40 = scmp.eq.s32.totalorder %s39, 0
    %s42 = sadd.s32 %s41, 1
    %s43 = scalar_select %p40, %s41, %s42
    %p46 = pneg %p40
    %p47 = scmp.eq.s32.totalorder %s31, 1
    %p48 = por %p46, %p47
    %p49 = scmp.ne.s32.totalorder %s41, %s44
    %p50 = scmp.eq.s32.totalorder %s31, 0
    %p51 = por %p49, %p50
    %p52 = scmp.ne.s32.totalorder %s41, %s44
    %p53 = scmp.eq.s32.totalorder %s36, 1
    %p54 = por %p52, %p53
    %p55 = scmp.ne.s32.totalorder %s44, %s45
    %p56 = scmp.eq.s32.totalorder %s36, 0
    %p57 = por %p55, %p56
    %p58 = scmp.ne.s32.totalorder %s44, %s45
    %p59 = scmp.eq.s32.totalorder %s37, 1
    %p60 = por %p58, %p59
    %p62 = scmp.ne.s32.totalorder %s45, %s61
    %p63 = scmp.eq.s32.totalorder %s37, 0
    %p64 = por %p62, %p63
    %s66 = sadd.s32 %s65, 1
    %p69 = scmp.eq.s32.totalorder %s31, 1
    %p70 = scmp.ne.s32.totalorder %s65, %s67
    %p71 = scmp.eq.s32.totalorder %s31, 0
    %p72 = por %p70, %p71
    %p73 = scmp.ne.s32.totalorder %s65, %s67
    %p74 = scmp.eq.s32.totalorder %s36, 1
    %p75 = por %p73, %p74
    %p76 = scmp.ne.s32.totalorder %s67, %s68
    %p77 = scmp.eq.s32.totalorder %s36, 0
    %p78 = por %p76, %p77
    %p79 = scmp.ne.s32.totalorder %s67, %s68
    %p80 = scmp.eq.s32.totalorder %s37, 1
    %p81 = por %p79, %p80
    %p83 = scmp.ne.s32.totalorder %s68, %s82
    %p84 = scmp.eq.s32.totalorder %s37, 0
    %p85 = por %p83, %p84
    %s87 = sadd.s32 %s86, 1
    %p90 = scmp.eq.s32.totalorder %s31, 1
    %p91 = scmp.ne.s32.totalorder %s86, %s88
    %p92 = scmp.eq.s32.totalorder %s31, 0
    %p93 = por %p91, %p92
    %p94 = scmp.ne.s32.totalorder %s86, %s88
    %p95 = scmp.eq.s32.totalorder %s36, 1
    %p96 = por %p94, %p95
    %p97 = scmp.ne.s32.totalorder %s88, %s89
    %p98 = scmp.eq.s32.totalorder %s36, 0
    %p99 = por %p97, %p98
    %p100 = scmp.ne.s32.totalorder %s88, %s89
    %p101 = scmp.eq.s32.totalorder %s37, 1
    %p102 = por %p100, %p101
    %p104 = scmp.ne.s32.totalorder %s89, %s103
    %p105 = scmp.eq.s32.totalorder %s37, 0
    %p106 = por %p104, %p105
    %s108 = sadd.s32 %s107, 1
    %p111 = scmp.eq.s32.totalorder %s31, 1
    %p112 = scmp.ne.s32.totalorder %s107, %s109
    %p113 = scmp.eq.s32.totalorder %s31, 0
    %p114 = por %p112, %p113
    %p115 = scmp.ne.s32.totalorder %s107, %s109
    %p116 = scmp.eq.s32.totalorder %s36, 1
    %p117 = por %p115, %p116
    %p118 = scmp.ne.s32.totalorder %s109, %s110
    %p119 = scmp.eq.s32.totalorder %s36, 0
    %p120 = por %p118, %p119
    %p121 = scmp.ne.s32.totalorder %s109, %s110
    %p122 = scmp.eq.s32.totalorder %s37, 1
    %p123 = por %p121, %p122
    %p125 = scmp.ne.s32.totalorder %s110, %s124
    %p126 = scmp.eq.s32.totalorder %s37, 0
    %p127 = por %p125, %p126
    %s129 = sadd.s32 %s128, 1
    %p132 = scmp.eq.s32.totalorder %s31, 1
    %p133 = scmp.ne.s32.totalorder %s128, %s130
    %p134 = scmp.eq.s32.totalorder %s31, 0
    %p135 = por %p133, %p134
    %p136 = scmp.ne.s32.totalorder %s128, %s130
    %p137 = scmp.eq.s32.totalorder %s36, 1
    %p138 = por %p136, %p137
    %p139 = scmp.ne.s32.totalorder %s130, %s131
    %p140 = scmp.eq.s32.totalorder %s36, 0
    %p141 = por %p139, %p140
    %p142 = scmp.ne.s32.totalorder %s130, %s131
    %p143 = scmp.eq.s32.totalorder %s37, 1
    %p144 = por %p142, %p143
    %p146 = scmp.ne.s32.totalorder %s131, %s145
    %p147 = scmp.eq.s32.totalorder %s37, 0
    %p148 = por %p146, %p147
    %s150 = sadd.s32 %s149, 1
    %p153 = scmp.eq.s32.totalorder %s31, 1
    %p154 = scmp.ne.s32.totalorder %s149, %s151
    %p155 = scmp.eq.s32.totalorder %s31, 0
    %p156 = por %p154, %p155
    %p157 = scmp.ne.s32.totalorder %s149, %s151
    %p158 = scmp.eq.s32.totalorder %s36, 1
    %p159 = por %p157, %p158
    %p160 = scmp.ne.s32.totalorder %s151, %s152
    %p161 = scmp.eq.s32.totalorder %s36, 0
    %p162 = por %p160, %p161
    %p163 = scmp.ne.s32.totalorder %s151, %s152
    %p164 = scmp.eq.s32.totalorder %s37, 1
    %p165 = por %p163, %p164
    %p167 = scmp.ne.s32.totalorder %s152, %s166
    %p168 = scmp.eq.s32.totalorder %s37, 0
    %p169 = por %p167, %p168
    %s171 = sadd.s32 %s170, 1
    %p174 = scmp.eq.s32.totalorder %s31, 1
    %p175 = scmp.ne.s32.totalorder %s170, %s172
    %p176 = scmp.eq.s32.totalorder %s31, 0
    %p177 = por %p175, %p176
    %p178 = scmp.ne.s32.totalorder %s170, %s172
    %p179 = scmp.eq.s32.totalorder %s36, 1
    %p180 = por %p178, %p179
    %p181 = scmp.ne.s32.totalorder %s172, %s173
    %p182 = scmp.eq.s32.totalorder %s36, 0
    %p183 = por %p181, %p182
    %p184 = scmp.ne.s32.totalorder %s172, %s173
    %p185 = scmp.eq.s32.totalorder %s37, 1
    %p186 = por %p184, %p185
    %p188 = scmp.ne.s32.totalorder %s173, %s187
    %p189 = scmp.eq.s32.totalorder %s37, 0
    %p190 = por %p188, %p189
    %s192 = sadd.s32 %s191, 1
    %p195 = scmp.eq.s32.totalorder %s31, 1
    %p196 = scmp.ne.s32.totalorder %s191, %s193
    %p197 = scmp.eq.s32.totalorder %s31, 0
    %p198 = por %p196, %p197
    %p199 = scmp.ne.s32.totalorder %s191, %s193
    %p200 = scmp.eq.s32.totalorder %s36, 1
    %p201 = por %p199, %p200
    %p202 = scmp.ne.s32.totalorder %s193, %s194
    %p203 = scmp.eq.s32.totalorder %s36, 0
    %p204 = por %p202, %p203
    %p205 = scmp.ne.s32.totalorder %s193, %s194
    %p206 = scmp.eq.s32.totalorder %s37, 1
    %p207 = por %p205, %p206
    %p209 = scmp.ne.s32.totalorder %s194, %s208
    %p210 = scmp.eq.s32.totalorder %s37, 0
    %p211 = por %p209, %p210
    %s213 = sadd.s32 %s212, 1
    %p216 = scmp.eq.s32.totalorder %s31, 1
    %p217 = scmp.ne.s32.totalorder %s212, %s214
    %p218 = scmp.eq.s32.totalorder %s31, 0
    %p219 = por %p217, %p218
    %p220 = scmp.ne.s32.totalorder %s212, %s214
    %p221 = scmp.eq.s32.totalorder %s36, 1
    %p222 = por %p220, %p221
    %p223 = scmp.ne.s32.totalorder %s214, %s215
    %p224 = scmp.eq.s32.totalorder %s36, 0
    %p225 = por %p223, %p224
    %p226 = scmp.ne.s32.totalorder %s214, %s215
    %p227 = scmp.eq.s32.totalorder %s37, 1
    %p228 = por %p226, %p227
    %p230 = scmp.ne.s32.totalorder %s215, %s229
    %p231 = scmp.eq.s32.totalorder %s37, 0
    %p232 = por %p230, %p231
    %s234 = sadd.s32 %s233, 1
    %p237 = scmp.eq.s32.totalorder %s31, 1
    %p238 = scmp.ne.s32.totalorder %s233, %s235
    %p239 = scmp.eq.s32.totalorder %s31, 0
    %p240 = por %p238, %p239
    %p241 = scmp.ne.s32.totalorder %s233, %s235
    %p242 = scmp.eq.s32.totalorder %s36, 1
    %p243 = por %p241, %p242
    %p244 = scmp.ne.s32.totalorder %s235, %s236
    %p245 = scmp.eq.s32.totalorder %s36, 0
    %p246 = por %p244, %p245
    %p247 = scmp.ne.s32.totalorder %s235, %s236
    %p248 = scmp.eq.s32.totalorder %s37, 1
    %p249 = por %p247, %p248
    %p251 = scmp.ne.s32.totalorder %s236, %s250
    %p252 = scmp.eq.s32.totalorder %s37, 0
    %p253 = por %p251, %p252
    %s255 = sadd.s32 %s254, 1
    %p258 = scmp.eq.s32.totalorder %s31, 1
    %p259 = scmp.ne.s32.totalorder %s254, %s256
    %p260 = scmp.eq.s32.totalorder %s31, 0
    %p261 = por %p259, %p260
    %p262 = scmp.ne.s32.totalorder %s254, %s256
    %p263 = scmp.eq.s32.totalorder %s36, 1
    %p264 = por %p262, %p263
    %p265 = scmp.ne.s32.totalorder %s256, %s257
    %p266 = scmp.eq.s32.totalorder %s36, 0
    %p267 = por %p265, %p266
    %p268 = scmp.ne.s32.totalorder %s256, %s257
    %p269 = scmp.eq.s32.totalorder %s37, 1
    %p270 = por %p268, %p269
    %p272 = scmp.ne.s32.totalorder %s257, %s271
    %p273 = scmp.eq.s32.totalorder %s37, 0
    %p274 = por %p272, %p273
    %s276 = sadd.s32 %s275, 1
    %p279 = scmp.eq.s32.totalorder %s31, 1
    %p280 = scmp.ne.s32.totalorder %s275, %s277
    %p281 = scmp.eq.s32.totalorder %s31, 0
    %p282 = por %p280, %p281
    %p283 = scmp.ne.s32.totalorder %s275, %s277
    %p284 = scmp.eq.s32.totalorder %s36, 1
    %p285 = por %p283, %p284
    %p286 = scmp.ne.s32.totalorder %s277, %s278
    %p287 = scmp.eq.s32.totalorder %s36, 0
    %p288 = por %p286, %p287
    %p289 = scmp.ne.s32.totalorder %s277, %s278
    %p290 = scmp.eq.s32.totalorder %s37, 1
    %p291 = por %p289, %p290
    %p293 = scmp.ne.s32.totalorder %s278, %s292
    %p294 = scmp.eq.s32.totalorder %s37, 0
    %p295 = por %p293, %p294
    %s297 = sadd.s32 %s296, 1
    %p300 = scmp.eq.s32.totalorder %s31, 1
    %p301 = scmp.ne.s32.totalorder %s296, %s298
    %p302 = scmp.eq.s32.totalorder %s31, 0
    %p303 = por %p301, %p302
    %p304 = scmp.ne.s32.totalorder %s296, %s298
    %p305 = scmp.eq.s32.totalorder %s36, 1
    %p306 = por %p304, %p305
    %p307 = scmp.ne.s32.totalorder %s298, %s299
    %p308 = scmp.eq.s32.totalorder %s36, 0
    %p309 = por %p307, %p308
    %p310 = scmp.ne.s32.totalorder %s298, %s299
    %p311 = scmp.eq.s32.totalorder %s37, 1
    %p312 = por %p310, %p311
    %p314 = scmp.ne.s32.totalorder %s299, %s313
    %p315 = scmp.eq.s32.totalorder %s37, 0
    %p316 = por %p314, %p315
    %s318 = sadd.s32 %s317, 1
    %p321 = scmp.eq.s32.totalorder %s31, 1
    %p322 = scmp.ne.s32.totalorder %s317, %s319
    %p323 = scmp.eq.s32.totalorder %s31, 0
    %p324 = por %p322, %p323
    %p325 = scmp.ne.s32.totalorder %s317, %s319
    %p326 = scmp.eq.s32.totalorder %s36, 1
    %p327 = por %p325, %p326
    %p328 = scmp.ne.s32.totalorder %s319, %s320
    %p329 = scmp.eq.s32.totalorder %s36, 0
    %p330 = por %p328, %p329
    %p331 = scmp.ne.s32.totalorder %s319, %s320
    %p332 = scmp.eq.s32.totalorder %s37, 1
    %p333 = por %p331, %p332
    %p335 = scmp.ne.s32.totalorder %s320, %s334
    %p336 = scmp.eq.s32.totalorder %s37, 0
    %p337 = por %p335, %p336
    %s339 = sadd.s32 %s338, 1
    %p342 = scmp.eq.s32.totalorder %s31, 1
    %p343 = scmp.ne.s32.totalorder %s338, %s340
    %p344 = scmp.eq.s32.totalorder %s31, 0
    %p345 = por %p343, %p344
    %p346 = scmp.ne.s32.totalorder %s338, %s340
    %p347 = scmp.eq.s32.totalorder %s36, 1
    %p348 = por %p346, %p347
    %p349 = scmp.ne.s32.totalorder %s340, %s341
    %p350 = scmp.eq.s32.totalorder %s36, 0
    %p351 = por %p349, %p350
    %p352 = scmp.ne.s32.totalorder %s340, %s341
    %p353 = scmp.eq.s32.totalorder %s37, 1
    %p354 = por %p352, %p353
    %p356 = scmp.ne.s32.totalorder %s341, %s355
    %p357 = scmp.eq.s32.totalorder %s37, 0
    %p358 = por %p356, %p357
    %s360 = sadd.s32 %s359, 1
    %p363 = scmp.eq.s32.totalorder %s31, 1
    %p364 = scmp.ne.s32.totalorder %s359, %s361
    %p365 = scmp.eq.s32.totalorder %s31, 0
    %p366 = por %p364, %p365
    %p367 = scmp.ne.s32.totalorder %s359, %s361
    %p368 = scmp.eq.s32.totalorder %s36, 1
    %p369 = por %p367, %p368
    %p370 = scmp.ne.s32.totalorder %s361, %s362
    %p371 = scmp.eq.s32.totalorder %s36, 0
    %p372 = por %p370, %p371
    %p373 = scmp.ne.s32.totalorder %s361, %s362
    %p374 = scmp.eq.s32.totalorder %s37, 1
    %p375 = por %p373, %p374
    %p377 = scmp.ne.s32.totalorder %s362, %s376
    %p378 = scmp.eq.s32.totalorder %s37, 0
    %p379 = por %p377, %p378
    %s381 = sadd.s32 %s380, 1
    %p384 = scmp.eq.s32.totalorder %s31, 1
    %p385 = scmp.ne.s32.totalorder %s380, %s382
    %p386 = scmp.eq.s32.totalorder %s31, 0
    %p387 = por %p385, %p386
    %p388 = scmp.ne.s32.totalorder %s380, %s382
    %p389 = scmp.eq.s32.totalorder %s36, 1
    %p390 = por %p388, %p389
    %p391 = scmp.ne.s32.totalorder %s382, %s383
    %p392 = scmp.eq.s32.totalorder %s36, 0
    %p393 = por %p391, %p392
    %p394 = scmp.ne.s32.totalorder %s382, %s383
    %p395 = scmp.eq.s32.totalorder %s37, 1
    %p396 = por %p394, %p395
    %p398 = scmp.ne.s32.totalorder %s383, %s397
    %p399 = scmp.eq.s32.totalorder %s37, 0
    %p400 = por %p398, %p399
    %s402 = sadd.s32 %s401, 1
    %p405 = scmp.eq.s32.totalorder %s31, 1
    %p406 = scmp.ne.s32.totalorder %s401, %s403
    %p407 = scmp.eq.s32.totalorder %s31, 0
    %p408 = por %p406, %p407
    %p409 = scmp.ne.s32.totalorder %s401, %s403
    %p410 = scmp.eq.s32.totalorder %s36, 1
    %p411 = por %p409, %p410
    %p412 = scmp.ne.s32.totalorder %s403, %s404
    %p413 = scmp.eq.s32.totalorder %s36, 0
    %p414 = por %p412, %p413
    %p415 = scmp.ne.s32.totalorder %s403, %s404
    %p416 = scmp.eq.s32.totalorder %s37, 1
    %p417 = por %p415, %p416
    %p419 = scmp.ne.s32.totalorder %s404, %s418
    %p420 = scmp.eq.s32.totalorder %s37, 0
    %p421 = por %p419, %p420
    %s423 = sadd.s32 %s422, 1
    %p426 = scmp.eq.s32.totalorder %s31, 1
    %p427 = scmp.ne.s32.totalorder %s422, %s424
    %p428 = scmp.eq.s32.totalorder %s31, 0
    %p429 = por %p427, %p428
    %p430 = scmp.ne.s32.totalorder %s422, %s424
    %p431 = scmp.eq.s32.totalorder %s36, 1
    %p432 = por %p430, %p431
    %p433 = scmp.ne.s32.totalorder %s424, %s425
    %p434 = scmp.eq.s32.totalorder %s36, 0
    %p435 = por %p433, %p434
    %p436 = scmp.ne.s32.totalorder %s424, %s425
    %p437 = scmp.eq.s32.totalorder %s37, 1
    %p438 = por %p436, %p437
    %p440 = scmp.ne.s32.totalorder %s425, %s439
    %p441 = scmp.eq.s32.totalorder %s37, 0
    %p442 = por %p440, %p441
    %s444 = sadd.s32 %s443, 1
    %p447 = scmp.eq.s32.totalorder %s31, 1
    %p448 = scmp.ne.s32.totalorder %s443, %s445
    %p449 = scmp.eq.s32.totalorder %s31, 0
    %p450 = por %p448, %p449
    %p451 = scmp.ne.s32.totalorder %s443, %s445
    %p452 = scmp.eq.s32.totalorder %s36, 1
    %p453 = por %p451, %p452
    %p454 = scmp.ne.s32.totalorder %s445, %s446
    %p455 = scmp.eq.s32.totalorder %s36, 0
    %p456 = por %p454, %p455
    %p457 = scmp.ne.s32.totalorder %s445, %s446
    %p458 = scmp.eq.s32.totalorder %s37, 1
    %p459 = por %p457, %p458
    %p461 = scmp.ne.s32.totalorder %s446, %s460
    %p462 = scmp.eq.s32.totalorder %s37, 0
    %p463 = por %p461, %p462
    %s465 = sadd.s32 %s464, 1
    %p468 = scmp.eq.s32.totalorder %s31, 1
    %p469 = scmp.ne.s32.totalorder %s464, %s466
    %p470 = scmp.eq.s32.totalorder %s31, 0
    %p471 = por %p469, %p470
    %p472 = scmp.ne.s32.totalorder %s464, %s466
    %p473 = scmp.eq.s32.totalorder %s36, 1
    %p474 = por %p472, %p473
    %p475 = scmp.ne.s32.totalorder %s466, %s467
    %p476 = scmp.eq.s32.totalorder %s36, 0
    %p477 = por %p475, %p476
    %p478 = scmp.ne.s32.totalorder %s466, %s467
    %p479 = scmp.eq.s32.totalorder %s37, 1
    %p480 = por %p478, %p479
    %p482 = scmp.ne.s32.totalorder %s467, %s481
    %p483 = scmp.eq.s32.totalorder %s37, 0
    %p484 = por %p482, %p483
    %s486 = sadd.s32 %s485, 1
    %p489 = scmp.eq.s32.totalorder %s31, 1
    %p490 = scmp.ne.s32.totalorder %s485, %s487
    %p491 = scmp.eq.s32.totalorder %s31, 0
    %p492 = por %p490, %p491
    %p493 = scmp.ne.s32.totalorder %s485, %s487
    %p494 = scmp.eq.s32.totalorder %s36, 1
    %p495 = por %p493, %p494
    %p496 = scmp.ne.s32.totalorder %s487, %s488
    %p497 = scmp.eq.s32.totalorder %s36, 0
    %p498 = por %p496, %p497
    %p499 = scmp.ne.s32.totalorder %s487, %s488
    %p500 = scmp.eq.s32.totalorder %s37, 1
    %p501 = por %p499, %p500
    %p503 = scmp.ne.s32.totalorder %s488, %s502
    %p504 = scmp.eq.s32.totalorder %s37, 0
    %p505 = por %p503, %p504
    %s507 = sadd.s32 %s506, 1
    %p510 = scmp.eq.s32.totalorder %s31, 1
    %p511 = scmp.ne.s32.totalorder %s506, %s508
    %p512 = scmp.eq.s32.totalorder %s31, 0
    %p513 = por %p511, %p512
    %p514 = scmp.ne.s32.totalorder %s506, %s508
    %p515 = scmp.eq.s32.totalorder %s36, 1
    %p516 = por %p514, %p515
    %p517 = scmp.ne.s32.totalorder %s508, %s509
    %p518 = scmp.eq.s32.totalorder %s36, 0
    %p519 = por %p517, %p518
    %p520 = scmp.ne.s32.totalorder %s508, %s509
    %p521 = scmp.eq.s32.totalorder %s37, 1
    %p522 = por %p520, %p521
    %p524 = scmp.ne.s32.totalorder %s509, %s523
    %p525 = scmp.eq.s32.totalorder %s37, 0
    %p526 = por %p524, %p525
    %s527 = ssub.s32 %s31, %s38
    %p528 = scmp.eq.s32.totalorder %s527, 0
    %s530 = sadd.s32 %s529, 1
    %s531 = scalar_select %p528, %s529, %s530
    %p534 = pneg %p528
    %p535 = scmp.eq.s32.totalorder %s31, 1
    %p536 = por %p534, %p535
    %p537 = scmp.ne.s32.totalorder %s529, %s532
    %p538 = scmp.eq.s32.totalorder %s31, 0
    %p539 = por %p537, %p538
    %p540 = scmp.ne.s32.totalorder %s529, %s532
    %p541 = scmp.eq.s32.totalorder %s36, 1
    %p542 = por %p540, %p541
    %p543 = scmp.ne.s32.totalorder %s532, %s533
    %p544 = scmp.eq.s32.totalorder %s36, 0
    %p545 = por %p543, %p544
    %p546 = scmp.ne.s32.totalorder %s532, %s533
    %p547 = scmp.eq.s32.totalorder %s37, 1
    %p548 = por %p546, %p547
    %p550 = scmp.ne.s32.totalorder %s533, %s549
    %p551 = scmp.eq.s32.totalorder %s37, 0
    %p552 = por %p550, %p551
    %p553 = scmp.le.s32.totalorder 1, %s31
    %p554 = scmp.lt.s32.totalorder %s31, 3
    %p555 = pnand %p553, %p554
    %p556 = pneg %p555
    // Predicated region
    $region9: #{odn_forward.1} parent=5 // pred_check
      _
    $region10: #{odn_forward.1} parent=5 // pred_check_branch
      %558 = sbr.rel (%p555) target = $region12
    $region11: #{odn_forward.1} parent=5 // pred_region
      %s559 = ssub.s32 %s31, 1
      // Predicated region
      $region13: #{odn_forward.1} parent=11 // pred_check
        %p560 = pneg %p78
      $region14: #{odn_forward.1} parent=11 // pred_check_branch
        %562 = sbr.rel (%p560) target = $region16
      $region15: #{odn_forward.1} parent=11 // pred_region
        _
      $region16: #{odn_forward.1} parent=11 // pred_fallthru
        _
      // Predicated region
      $region17: #{odn_forward.1} parent=11 // pred_check
        %p563 = pneg %p99
      $region18: #{odn_forward.1} parent=11 // pred_check_branch
        %565 = sbr.rel (%p563) target = $region20
      $region19: #{odn_forward.1} parent=11 // pred_region
        _
      $region20: #{odn_forward.1} parent=11 // pred_fallthru
        _
      // Predicated region
      $region21: #{odn_forward.1} parent=11 // pred_check
        %p566 = pneg %p120
      $region22: #{odn_forward.1} parent=11 // pred_check_branch
        %568 = sbr.rel (%p566) target = $region24
      $region23: #{odn_forward.1} parent=11 // pred_region
        _
      $region24: #{odn_forward.1} parent=11 // pred_fallthru
        _
      // Predicated region
      $region25: #{odn_forward.1} parent=11 // pred_check
        %p569 = pneg %p141
      $region26: #{odn_forward.1} parent=11 // pred_check_branch
        %571 = sbr.rel (%p569) target = $region28
      $region27: #{odn_forward.1} parent=11 // pred_region
        _
      $region28: #{odn_forward.1} parent=11 // pred_fallthru
        _
      // Predicated region
      $region29: #{odn_forward.1} parent=11 // pred_check
        %p572 = pneg %p162
      $region30: #{odn_forward.1} parent=11 // pred_check_branch
        %574 = sbr.rel (%p572) target = $region32
      $region31: #{odn_forward.1} parent=11 // pred_region
        _
      $region32: #{odn_forward.1} parent=11 // pred_fallthru
        _
      // Predicated region
      $region33: #{odn_forward.1} parent=11 // pred_check
        %p575 = pneg %p183
      $region34: #{odn_forward.1} parent=11 // pred_check_branch
        %577 = sbr.rel (%p575) target = $region36
      $region35: #{odn_forward.1} parent=11 // pred_region
        _
      $region36: #{odn_forward.1} parent=11 // pred_fallthru
        _
      // Predicated region
      $region37: #{odn_forward.1} parent=11 // pred_check
        %p578 = pneg %p204
      $region38: #{odn_forward.1} parent=11 // pred_check_branch
        %580 = sbr.rel (%p578) target = $region40
      $region39: #{odn_forward.1} parent=11 // pred_region
        _
      $region40: #{odn_forward.1} parent=11 // pred_fallthru
        _
      // Predicated region
      $region41: #{odn_forward.1} parent=11 // pred_check
        %p581 = pneg %p225
      $region42: #{odn_forward.1} parent=11 // pred_check_branch
        %583 = sbr.rel (%p581) target = $region44
      $region43: #{odn_forward.1} parent=11 // pred_region
        _
      $region44: #{odn_forward.1} parent=11 // pred_fallthru
        _
      // Predicated region
      $region45: #{odn_forward.1} parent=11 // pred_check
        %p584 = pneg %p246
      $region46: #{odn_forward.1} parent=11 // pred_check_branch
        %586 = sbr.rel (%p584) target = $region48
      $region47: #{odn_forward.1} parent=11 // pred_region
        _
      $region48: #{odn_forward.1} parent=11 // pred_fallthru
        _
      // Predicated region
      $region49: #{odn_forward.1} parent=11 // pred_check
        %p587 = pneg %p267
      $region50: #{odn_forward.1} parent=11 // pred_check_branch
        %589 = sbr.rel (%p587) target = $region52
      $region51: #{odn_forward.1} parent=11 // pred_region
        _
      $region52: #{odn_forward.1} parent=11 // pred_fallthru
        _
      // Predicated region
      $region53: #{odn_forward.1} parent=11 // pred_check
        %p590 = pneg %p288
      $region54: #{odn_forward.1} parent=11 // pred_check_branch
        %592 = sbr.rel (%p590) target = $region56
      $region55: #{odn_forward.1} parent=11 // pred_region
        _
      $region56: #{odn_forward.1} parent=11 // pred_fallthru
        _
      // Predicated region
      $region57: #{odn_forward.1} parent=11 // pred_check
        %p593 = pneg %p309
      $region58: #{odn_forward.1} parent=11 // pred_check_branch
        %595 = sbr.rel (%p593) target = $region60
      $region59: #{odn_forward.1} parent=11 // pred_region
        _
      $region60: #{odn_forward.1} parent=11 // pred_fallthru
        _
      // Predicated region
      $region61: #{odn_forward.1} parent=11 // pred_check
        %p596 = pneg %p330
      $region62: #{odn_forward.1} parent=11 // pred_check_branch
        %598 = sbr.rel (%p596) target = $region64
      $region63: #{odn_forward.1} parent=11 // pred_region
        _
      $region64: #{odn_forward.1} parent=11 // pred_fallthru
        _
      // Predicated region
      $region65: #{odn_forward.1} parent=11 // pred_check
        %p599 = pneg %p351
      $region66: #{odn_forward.1} parent=11 // pred_check_branch
        %601 = sbr.rel (%p599) target = $region68
      $region67: #{odn_forward.1} parent=11 // pred_region
        _
      $region68: #{odn_forward.1} parent=11 // pred_fallthru
        _
      // Predicated region
      $region69: #{odn_forward.1} parent=11 // pred_check
        %p602 = pneg %p372
      $region70: #{odn_forward.1} parent=11 // pred_check_branch
        %604 = sbr.rel (%p602) target = $region72
      $region71: #{odn_forward.1} parent=11 // pred_region
        _
      $region72: #{odn_forward.1} parent=11 // pred_fallthru
        _
      // Predicated region
      $region73: #{odn_forward.1} parent=11 // pred_check
        %p605 = pneg %p393
      $region74: #{odn_forward.1} parent=11 // pred_check_branch
        %607 = sbr.rel (%p605) target = $region76
      $region75: #{odn_forward.1} parent=11 // pred_region
        _
      $region76: #{odn_forward.1} parent=11 // pred_fallthru
        _
      // Predicated region
      $region77: #{odn_forward.1} parent=11 // pred_check
        %p608 = pneg %p414
      $region78: #{odn_forward.1} parent=11 // pred_check_branch
        %610 = sbr.rel (%p608) target = $region80
      $region79: #{odn_forward.1} parent=11 // pred_region
        _
      $region80: #{odn_forward.1} parent=11 // pred_fallthru
        _
      // Predicated region
      $region81: #{odn_forward.1} parent=11 // pred_check
        %p611 = pneg %p435
      $region82: #{odn_forward.1} parent=11 // pred_check_branch
        %613 = sbr.rel (%p611) target = $region84
      $region83: #{odn_forward.1} parent=11 // pred_region
        _
      $region84: #{odn_forward.1} parent=11 // pred_fallthru
        _
      // Predicated region
      $region85: #{odn_forward.1} parent=11 // pred_check
        %p614 = pneg %p456
      $region86: #{odn_forward.1} parent=11 // pred_check_branch
        %616 = sbr.rel (%p614) target = $region88
      $region87: #{odn_forward.1} parent=11 // pred_region
        _
      $region88: #{odn_forward.1} parent=11 // pred_fallthru
        _
      // Predicated region
      $region89: #{odn_forward.1} parent=11 // pred_check
        %p617 = pneg %p477
      $region90: #{odn_forward.1} parent=11 // pred_check_branch
        %619 = sbr.rel (%p617) target = $region92
      $region91: #{odn_forward.1} parent=11 // pred_region
        _
      $region92: #{odn_forward.1} parent=11 // pred_fallthru
        _
      // Predicated region
      $region93: #{odn_forward.1} parent=11 // pred_check
        %p620 = pneg %p498
      $region94: #{odn_forward.1} parent=11 // pred_check_branch
        %622 = sbr.rel (%p620) target = $region96
      $region95: #{odn_forward.1} parent=11 // pred_region
        _
      $region96: #{odn_forward.1} parent=11 // pred_fallthru
        _
      // Predicated region
      $region97: #{odn_forward.1} parent=11 // pred_check
        %p623 = pneg %p519
      $region98: #{odn_forward.1} parent=11 // pred_check_branch
        %625 = sbr.rel (%p623) target = $region100
      $region99: #{odn_forward.1} parent=11 // pred_region
        _
      $region100: #{odn_forward.1} parent=11 // pred_fallthru
        _
    $region12: #{odn_forward.1} parent=5 // pred_fallthru
      _
    %p626 = scmp.lt.s32.totalorder %s31, 2
    // Predicated region
    $region101: #{odn_forward.1} parent=5 // pred_check
      %p627 = pneg %p626
    $region102: #{odn_forward.1} parent=5 // pred_check_branch
      %629 = sbr.rel (%p627) target = $region104
    $region103: #{odn_forward.1} parent=5 // pred_region
      // Predicated region
      $region105: #{odn_forward.1} parent=103 // pred_check
        %p630 = pneg %p51
      $region106: #{odn_forward.1} parent=103 // pred_check_branch
        %632 = sbr.rel (%p630) target = $region108
      $region107: #{odn_forward.1} parent=103 // pred_region
        %s633 = smul.u32 4, %s31
        %p634 = scmp.lt.s32.totalorder %s633, 7
        %s635 = scalar_select %p634, %s633, 7
        %s636 = smul.addr %s635, 22
        %s637 = smul.addr %s636, 4
        %s638 = scalar_lea.vmem %s0, %s637
        %s639 = smul.u32 4, %s31
      $region108: #{odn_forward.1} parent=103 // pred_fallthru
        _
    $region104: #{odn_forward.1} parent=5 // pred_fallthru
      _
    %p640 = scmp.le.s32.totalorder 1, %s31
    %p641 = scmp.lt.s32.totalorder %s31, 3
    %p642 = pnand %p640, %p641
    %p643 = pneg %p642
    // Predicated region
    $region109: #{odn_forward.1} parent=5 // pred_check
      _
    $region110: #{odn_forward.1} parent=5 // pred_check_branch
      %645 = sbr.rel (%p642) target = $region112
    $region111: #{odn_forward.1} parent=5 // pred_region
      %s646 = ssub.s32 %s31, 1
      %s647 = smul.u32 4, %s36
      %p648 = scmp.lt.s32.totalorder %s647, 7
      %s649 = scalar_select %p648, %s647, 7
      %s650 = smul.addr %s649, 22
      %s651 = smul.addr %s650, 4
      %s652 = scalar_lea.vmem %s0, %s651
      %p653 = pneg %p57
      %p654 = pneg %p54
      %p655 = pneg %p78
      %p656 = pneg %p75
      %p657 = pneg %p99
      %p658 = pneg %p96
      %p659 = pneg %p120
      %p660 = pneg %p117
      %p661 = pneg %p141
      %p662 = pneg %p138
      %p663 = pneg %p162
      %p664 = pneg %p159
      %p665 = pneg %p183
      %p666 = pneg %p180
      %p667 = pneg %p204
      %p668 = pneg %p201
      %p669 = pneg %p225
      %p670 = pneg %p222
      %p671 = pneg %p246
      %p672 = pneg %p243
      %p673 = pneg %p267
      %p674 = pneg %p264
      %p675 = pneg %p288
      %p676 = pneg %p285
      %p677 = pneg %p309
      %p678 = pneg %p306
      %p679 = pneg %p330
      %p680 = pneg %p327
      %p681 = pneg %p351
      %p682 = pneg %p348
      %p683 = pneg %p372
      %p684 = pneg %p369
      %p685 = pneg %p393
      %p686 = pneg %p390
      %p687 = pneg %p414
      %p688 = pneg %p411
      %p689 = pneg %p435
      %p690 = pneg %p432
      %p691 = pneg %p456
      %p692 = pneg %p453
      %p693 = pneg %p477
      %p694 = pneg %p474
      %p695 = pneg %p498
      %p696 = pneg %p495
      %p697 = pneg %p519
      %p698 = pneg %p516
      %p699 = pneg %p545
      %p700 = pneg %p542
      %p701 = scmp.lt.s32.totalorder %s36, 1
      %s702 = scalar_select %p701, %s36, 1
      %s703 = smul.addr %s702, 2
      %s704 = scalar_lea.vmem %s23, %s703
      %s705 = smul.u32 4, %s36
      %p706 = scmp.lt.s32.totalorder %s705, 7
      %s707 = scalar_select %p706, %s705, 7
      %s708 = smul.addr %s707, 22
      %s709 = smul.addr %s708, 4
      %s710 = scalar_lea.vmem %s0, %s709
      %s711 = smul.u32 4, %s36
      %p712 = scmp.lt.s32.totalorder %s36, 1
      %s713 = scalar_select %p712, %s36, 1
      %s714 = smul.addr %s713, 2
      %s715 = scalar_lea.vmem %s23, %s714
      %v717 = vlaneseq
      %v718 = vshrl.u32 %v717, 7
      %v719 = vadd.s32 %v718, 8
      %v720 = vadd.s32 %v718, 16
      %v721 = vadd.s32 %v718, 24
      %v722 = vand.u32 %v718, 15
      %v723 = vand.u32 %v719, 15
      %v724 = vand.u32 %v720, 15
      %v725 = vand.u32 %v721, 15
      %vm726 = vcmp.ne.s32.totalorder %v722, 0
      %vm727 = vcmp.ne.s32.totalorder %v723, 0
      %vm728 = vcmp.ne.s32.totalorder %v724, 0
      %vm729 = vcmp.ne.s32.totalorder %v725, 0
      %vm730 = vcmp.ne.s32.totalorder %v722, 15
      %vm731 = vcmp.ne.s32.totalorder %v723, 15
      %vm732 = vcmp.ne.s32.totalorder %v724, 15
      %vm733 = vcmp.ne.s32.totalorder %v725, 15
      %vm734 = vmand %vm726, %vm730
      %vm735 = vmand %vm727, %vm731
      %vm736 = vmand %vm728, %vm732
      %vm737 = vmand %vm729, %vm733
      %v738 = vsel %vm734, 1, 0
      %v739 = vsel %vm735, 1, 0
      %v740 = vsel %vm736, 1, 0
      %v741 = vsel %vm737, 1, 0
      %v742 = vcvt.s32.f32 %v738
      %v743 = vcvt.s32.f32 %v739
      %v744 = vcvt.s32.f32 %v740
      %v745 = vcvt.s32.f32 %v741
      %v746 = vld [vmem:[%s710] sm:$0xff]
      %v747 = vld [vmem:[%s710 + $0x8] sm:$0xff]
      %v748 = vld [vmem:[%s710 + $0x10] sm:$0xff]
      %v749 = vld [vmem:[%s710 + $0x18] sm:$0xff]
      %v750 = vld [vmem:[%s710 + $0x20] sm:$0xff]
      %v751 = vld [vmem:[%s710 + $0x28] sm:$0xff]
      %v752 = vld [vmem:[%s710 + $0x30] sm:$0xff]
      %v753 = vld [vmem:[%s710 + $0x38] sm:$0xff]
      %v754 = vld [vmem:[%s710 + $0x40] sm:$0xff]
      %v755 = vld [vmem:[%s710 + $0x48] sm:$0xff]
      %v756 = vld [vmem:[%s710 + $0x50] sm:$0xff]
      %v757 = vld [vmem:[%s710 + $0x58] sm:$0xff]
      %v758 = vld [vmem:[%s710 + $0x60] sm:$0xff]
      %v759 = vld [vmem:[%s710 + $0x68] sm:$0xff]
      %v760 = vld [vmem:[%s710 + $0x70] sm:$0xff]
      %v761 = vld [vmem:[%s710 + $0x78] sm:$0xff]
      %v762 = vld [vmem:[%s710 + $0x80] sm:$0xff]
      %v763 = vld [vmem:[%s710 + $0x88] sm:$0xff]
      %v764 = vld [vmem:[%s710 + $0x90] sm:$0xff]
      %v765 = vld [vmem:[%s710 + $0x98] sm:$0xff]
      %v766 = vld [vmem:[%s710 + $0xa0] sm:$0xff]
      %v767 = vld [vmem:[%s710 + $0xa8] sm:$0xff]
      %v768 = vld [vmem:[%s710 + $0xb0] sm:$0xff]
      %v769 = vld [vmem:[%s710 + $0xb8] sm:$0xff]
      %v770 = vld [vmem:[%s710 + $0xc0] sm:$0xff]
      %v771 = vld [vmem:[%s710 + $0xc8] sm:$0xff]
      %v772 = vld [vmem:[%s710 + $0xd0] sm:$0xff]
      %v773 = vld [vmem:[%s710 + $0xd8] sm:$0xff]
      %v774 = vld [vmem:[%s710 + $0xe0] sm:$0xff]
      %v775 = vld [vmem:[%s710 + $0xe8] sm:$0xff]
      %v776 = vld [vmem:[%s710 + $0xf0] sm:$0xff]
      %v777 = vld [vmem:[%s710 + $0xf8] sm:$0xff]
      %v778 = vld [vmem:[%s710 + $0x100] sm:$0xff]
      %v779 = vld [vmem:[%s710 + $0x108] sm:$0xff]
      %v780 = vld [vmem:[%s710 + $0x110] sm:$0xff]
      %v781 = vld [vmem:[%s710 + $0x118] sm:$0xff]
      %v782 = vld [vmem:[%s710 + $0x120] sm:$0xff]
      %v783 = vld [vmem:[%s710 + $0x128] sm:$0xff]
      %v784 = vld [vmem:[%s710 + $0x130] sm:$0xff]
      %v785 = vld [vmem:[%s710 + $0x138] sm:$0xff]
      %v786 = vld [vmem:[%s710 + $0x140] sm:$0xff]
      %v787 = vld [vmem:[%s710 + $0x148] sm:$0xff]
      %v788 = vld [vmem:[%s710 + $0x150] sm:$0xff]
      %v789 = vld [vmem:[%s710 + $0x158] sm:$0xff]
      %v790 = vld [vmem:[%s1] sm:$0xf]
      %v791 = vld [vmem:[%s1 + $0x4] sm:$0xf]
      %v792 = vld [vmem:[%s1 + $0x8] sm:$0xf]
      %v793 = vld [vmem:[%s1 + $0xc] sm:$0xf]
      %v794 = vld [vmem:[%s1 + $0x10] sm:$0xf]
      %v795 = vld [vmem:[%s1 + $0x14] sm:$0xf]
      %v796 = vld [vmem:[%s1 + $0x18] sm:$0xf]
      %v797 = vld [vmem:[%s1 + $0x1c] sm:$0xf]
      %v798 = vld [vmem:[%s1 + $0x20] sm:$0xf]
      %v799 = vld [vmem:[%s1 + $0x24] sm:$0xf]
      %v800 = vld [vmem:[%s1 + $0x28] sm:$0xf]
      %v801 = vld [vmem:[%s1 + $0x2c] sm:$0xf]
      %v802 = vld [vmem:[%s1 + $0x30] sm:$0xf]
      %v803 = vld [vmem:[%s1 + $0x34] sm:$0xf]
      %v804 = vld [vmem:[%s1 + $0x38] sm:$0xf]
      %v805 = vld [vmem:[%s1 + $0x3c] sm:$0xf]
      %v806 = vld [vmem:[%s1 + $0x40] sm:$0xf]
      %v807 = vld [vmem:[%s1 + $0x44] sm:$0xf]
      %v808 = vld [vmem:[%s1 + $0x48] sm:$0xf]
      %v809 = vld [vmem:[%s1 + $0x4c] sm:$0xf]
      %v810 = vld [vmem:[%s1 + $0x50] sm:$0xf]
      %v811 = vld [vmem:[%s1 + $0x54] sm:$0xf]
      %v812 = vld [vmem:[%s1 + $0x58] sm:$0xf]
      %v813 = vld [vmem:[%s1 + $0x5c] sm:$0xf]
      %v814 = vld [vmem:[%s1 + $0x60] sm:$0xf]
      %v815 = vld [vmem:[%s1 + $0x64] sm:$0xf]
      %v816 = vld [vmem:[%s1 + $0x68] sm:$0xf]
      %v817 = vld [vmem:[%s1 + $0x6c] sm:$0xf]
      %v818 = vld [vmem:[%s1 + $0x70] sm:$0xf]
      %v819 = vld [vmem:[%s1 + $0x74] sm:$0xf]
      %v820 = vld [vmem:[%s1 + $0x78] sm:$0xf]
      %v821 = vld [vmem:[%s1 + $0x7c] sm:$0xf]
      %v822 = vld [vmem:[%s1 + $0x80] sm:$0xf]
      %v823 = vld [vmem:[%s1 + $0x84] sm:$0xf]
      %v824 = vld [vmem:[%s1 + $0x88] sm:$0xf]
      %v825 = vld [vmem:[%s1 + $0x8c] sm:$0xf]
      %v826 = vld [vmem:[%s1 + $0x90] sm:$0xf]
      %v827 = vld [vmem:[%s1 + $0x94] sm:$0xf]
      %v828 = vld [vmem:[%s1 + $0x98] sm:$0xf]
      %v829 = vld [vmem:[%s1 + $0x9c] sm:$0xf]
      %v830 = vld [vmem:[%s1 + $0xa0] sm:$0xf]
      %v831 = vld [vmem:[%s1 + $0xa4] sm:$0xf]
      %v832 = vld [vmem:[%s1 + $0xa8] sm:$0xf]
      %v833 = vld [vmem:[%s1 + $0xac] sm:$0xf]
      %v834 = vld [vmem:[%s1 + $0xb0] sm:$0xf]
      %v835 = vld [vmem:[%s1 + $0xb4] sm:$0xf]
      %v836 = vld [vmem:[%s1 + $0xb8] sm:$0xf]
      %v837 = vld [vmem:[%s1 + $0xbc] sm:$0xf]
      %v838 = vld [vmem:[%s1 + $0xc0] sm:$0xf]
      %v839 = vld [vmem:[%s1 + $0xc4] sm:$0xf]
      %v840 = vld [vmem:[%s1 + $0xc8] sm:$0xf]
      %v841 = vld [vmem:[%s1 + $0xcc] sm:$0xf]
      %v842 = vld [vmem:[%s1 + $0xd0] sm:$0xf]
      %v843 = vld [vmem:[%s1 + $0xd4] sm:$0xf]
      %v844 = vld [vmem:[%s1 + $0xd8] sm:$0xf]
      %v845 = vld [vmem:[%s1 + $0xdc] sm:$0xf]
      %v846 = vld [vmem:[%s1 + $0xe0] sm:$0xf]
      %v847 = vld [vmem:[%s1 + $0xe4] sm:$0xf]
      %v848 = vld [vmem:[%s1 + $0xe8] sm:$0xf]
      %v849 = vld [vmem:[%s1 + $0xec] sm:$0xf]
      %v850 = vld [vmem:[%s1 + $0xf0] sm:$0xf]
      %v851 = vld [vmem:[%s1 + $0xf4] sm:$0xf]
      %v852 = vld [vmem:[%s1 + $0xf8] sm:$0xf]
      %v853 = vld [vmem:[%s1 + $0xfc] sm:$0xf]
      %v854 = vld [vmem:[%s1 + $0x100] sm:$0xf]
      %v855 = vld [vmem:[%s1 + $0x104] sm:$0xf]
      %v856 = vld [vmem:[%s1 + $0x108] sm:$0xf]
      %v857 = vld [vmem:[%s1 + $0x10c] sm:$0xf]
      %v858 = vld [vmem:[%s1 + $0x110] sm:$0xf]
      %v859 = vld [vmem:[%s1 + $0x114] sm:$0xf]
      %v860 = vld [vmem:[%s1 + $0x118] sm:$0xf]
      %v861 = vld [vmem:[%s1 + $0x11c] sm:$0xf]
      %v862 = vld [vmem:[%s1 + $0x120] sm:$0xf]
      %v863 = vld [vmem:[%s1 + $0x124] sm:$0xf]
      %v864 = vld [vmem:[%s1 + $0x128] sm:$0xf]
      %v865 = vld [vmem:[%s1 + $0x12c] sm:$0xf]
      %v866 = vld [vmem:[%s1 + $0x130] sm:$0xf]
      %v867 = vld [vmem:[%s1 + $0x134] sm:$0xf]
      %v868 = vld [vmem:[%s1 + $0x138] sm:$0xf]
      %v869 = vld [vmem:[%s1 + $0x13c] sm:$0xf]
      %v870 = vld [vmem:[%s1 + $0x140] sm:$0xf]
      %v871 = vld [vmem:[%s1 + $0x144] sm:$0xf]
      %v872 = vld [vmem:[%s1 + $0x148] sm:$0xf]
      %v873 = vld [vmem:[%s1 + $0x14c] sm:$0xf]
      %v874 = vld [vmem:[%s1 + $0x150] sm:$0xf]
      %v875 = vld [vmem:[%s1 + $0x154] sm:$0xf]
      %v876 = vld [vmem:[%s1 + $0x158] sm:$0xf]
      %v877 = vld [vmem:[%s1 + $0x15c] sm:$0xf]
      %v878 = vld [vmem:[%s1 + $0x160] sm:$0xf]
      %v879 = vld [vmem:[%s1 + $0x164] sm:$0xf]
      %v880 = vld [vmem:[%s1 + $0x168] sm:$0xf]
      %v881 = vld [vmem:[%s1 + $0x16c] sm:$0xf]
      %v882 = vld [vmem:[%s1 + $0x170] sm:$0xf]
      %v883 = vld [vmem:[%s1 + $0x174] sm:$0xf]
      %v884 = vld [vmem:[%s1 + $0x178] sm:$0xf]
      %v885 = vld [vmem:[%s1 + $0x17c] sm:$0xf]
      %v886 = vld [vmem:[%s1 + $0x180] sm:$0xf]
      %v887 = vld [vmem:[%s1 + $0x184] sm:$0xf]
      %v888 = vld [vmem:[%s1 + $0x188] sm:$0xf]
      %v889 = vld [vmem:[%s1 + $0x18c] sm:$0xf]
      %v890 = vld [vmem:[%s1 + $0x190] sm:$0xf]
      %v891 = vld [vmem:[%s1 + $0x194] sm:$0xf]
      %v892 = vld [vmem:[%s1 + $0x198] sm:$0xf]
      %v893 = vld [vmem:[%s1 + $0x19c] sm:$0xf]
      %v894 = vld [vmem:[%s1 + $0x1a0] sm:$0xf]
      %v895 = vld [vmem:[%s1 + $0x1a4] sm:$0xf]
      %v896 = vld [vmem:[%s1 + $0x1a8] sm:$0xf]
      %v897 = vld [vmem:[%s1 + $0x1ac] sm:$0xf]
      %v898 = vld [vmem:[%s1 + $0x1b0] sm:$0xf]
      %v899 = vld [vmem:[%s1 + $0x1b4] sm:$0xf]
      %v900 = vld [vmem:[%s1 + $0x1b8] sm:$0xf]
      %v901 = vld [vmem:[%s1 + $0x1bc] sm:$0xf]
      %v902 = vld [vmem:[%s1 + $0x1c0] sm:$0xf]
      %v903 = vld [vmem:[%s1 + $0x1c4] sm:$0xf]
      %v904 = vld [vmem:[%s1 + $0x1c8] sm:$0xf]
      %v905 = vld [vmem:[%s1 + $0x1cc] sm:$0xf]
      %v906 = vld [vmem:[%s1 + $0x1d0] sm:$0xf]
      %v907 = vld [vmem:[%s1 + $0x1d4] sm:$0xf]
      %v908 = vld [vmem:[%s1 + $0x1d8] sm:$0xf]
      %v909 = vld [vmem:[%s1 + $0x1dc] sm:$0xf]
      %v910 = vld [vmem:[%s1 + $0x1e0] sm:$0xf]
      %v911 = vld [vmem:[%s1 + $0x1e4] sm:$0xf]
      %v912 = vld [vmem:[%s1 + $0x1e8] sm:$0xf]
      %v913 = vld [vmem:[%s1 + $0x1ec] sm:$0xf]
      %v914 = vld [vmem:[%s1 + $0x1f0] sm:$0xf]
      %v915 = vld [vmem:[%s1 + $0x1f4] sm:$0xf]
      %v916 = vld [vmem:[%s1 + $0x1f8] sm:$0xf]
      %v917 = vld [vmem:[%s1 + $0x1fc] sm:$0xf]
      %v918 = vld [vmem:[%s1 + $0x200] sm:$0xf]
      %v919 = vld [vmem:[%s1 + $0x204] sm:$0xf]
      %v920 = vld [vmem:[%s1 + $0x208] sm:$0xf]
      %v921 = vld [vmem:[%s1 + $0x20c] sm:$0xf]
      %v922 = vld [vmem:[%s1 + $0x210] sm:$0xf]
      %v923 = vld [vmem:[%s1 + $0x214] sm:$0xf]
      %v924 = vld [vmem:[%s1 + $0x218] sm:$0xf]
      %v925 = vld [vmem:[%s1 + $0x21c] sm:$0xf]
      %v926 = vld [vmem:[%s1 + $0x220] sm:$0xf]
      %v927 = vld [vmem:[%s1 + $0x224] sm:$0xf]
      %v928 = vld [vmem:[%s1 + $0x228] sm:$0xf]
      %v929 = vld [vmem:[%s1 + $0x22c] sm:$0xf]
      %v930 = vld [vmem:[%s1 + $0x230] sm:$0xf]
      %v931 = vld [vmem:[%s1 + $0x234] sm:$0xf]
      %v932 = vld [vmem:[%s1 + $0x238] sm:$0xf]
      %v933 = vld [vmem:[%s1 + $0x23c] sm:$0xf]
      %v934 = vld [vmem:[%s1 + $0x240] sm:$0xf]
      %v935 = vld [vmem:[%s1 + $0x244] sm:$0xf]
      %v936 = vld [vmem:[%s1 + $0x248] sm:$0xf]
      %v937 = vld [vmem:[%s1 + $0x24c] sm:$0xf]
      %v938 = vld [vmem:[%s1 + $0x250] sm:$0xf]
      %v939 = vld [vmem:[%s1 + $0x254] sm:$0xf]
      %v940 = vld [vmem:[%s1 + $0x258] sm:$0xf]
      %v941 = vld [vmem:[%s1 + $0x25c] sm:$0xf]
      %v942 = vld [vmem:[%s1 + $0x260] sm:$0xf]
      %v943 = vld [vmem:[%s1 + $0x264] sm:$0xf]
      %v944 = vld [vmem:[%s1 + $0x268] sm:$0xf]
      %v945 = vld [vmem:[%s1 + $0x26c] sm:$0xf]
      %v946 = vld [vmem:[%s1 + $0x270] sm:$0xf]
      %v947 = vld [vmem:[%s1 + $0x274] sm:$0xf]
      %v948 = vld [vmem:[%s1 + $0x278] sm:$0xf]
      %v949 = vld [vmem:[%s1 + $0x27c] sm:$0xf]
      %v950 = vld [vmem:[%s1 + $0x280] sm:$0xf]
      %v951 = vld [vmem:[%s1 + $0x284] sm:$0xf]
      %v952 = vld [vmem:[%s1 + $0x288] sm:$0xf]
      %v953 = vld [vmem:[%s1 + $0x28c] sm:$0xf]
      %v954 = vld [vmem:[%s1 + $0x290] sm:$0xf]
      %v955 = vld [vmem:[%s1 + $0x294] sm:$0xf]
      %v956 = vld [vmem:[%s1 + $0x298] sm:$0xf]
      %v957 = vld [vmem:[%s1 + $0x29c] sm:$0xf]
      %v958 = vld [vmem:[%s1 + $0x2a0] sm:$0xf]
      %v959 = vld [vmem:[%s1 + $0x2a4] sm:$0xf]
      %v960 = vld [vmem:[%s1 + $0x2a8] sm:$0xf]
      %v961 = vld [vmem:[%s1 + $0x2ac] sm:$0xf]
      %v962 = vld [vmem:[%s1 + $0x2b0] sm:$0xf]
      %v963 = vld [vmem:[%s1 + $0x2b4] sm:$0xf]
      %v964 = vld [vmem:[%s1 + $0x2b8] sm:$0xf]
      %v965 = vld [vmem:[%s1 + $0x2bc] sm:$0xf]
      %v966 = vld [vmem:[%s1 + $0x2c0] sm:$0xf]
      %v967 = vld [vmem:[%s1 + $0x2c4] sm:$0xf]
      %v968 = vld [vmem:[%s1 + $0x2c8] sm:$0xf]
      %v969 = vld [vmem:[%s1 + $0x2cc] sm:$0xf]
      %v970 = vld [vmem:[%s1 + $0x2d0] sm:$0xf]
      %v971 = vld [vmem:[%s1 + $0x2d4] sm:$0xf]
      %v972 = vld [vmem:[%s1 + $0x2d8] sm:$0xf]
      %v973 = vld [vmem:[%s1 + $0x2dc] sm:$0xf]
      %v974 = vld [vmem:[%s1 + $0x2e0] sm:$0xf]
      %v975 = vld [vmem:[%s1 + $0x2e4] sm:$0xf]
      %v976 = vld [vmem:[%s1 + $0x2e8] sm:$0xf]
      %v977 = vld [vmem:[%s1 + $0x2ec] sm:$0xf]
      %v978 = vld [vmem:[%s1 + $0x2f0] sm:$0xf]
      %v979 = vld [vmem:[%s1 + $0x2f4] sm:$0xf]
      %v980 = vld [vmem:[%s1 + $0x2f8] sm:$0xf]
      %v981 = vld [vmem:[%s1 + $0x2fc] sm:$0xf]
      %v982 = vld [vmem:[%s1 + $0x300] sm:$0xf]
      %v983 = vld [vmem:[%s1 + $0x304] sm:$0xf]
      %v984 = vld [vmem:[%s1 + $0x308] sm:$0xf]
      %v985 = vld [vmem:[%s1 + $0x30c] sm:$0xf]
      %v986 = vld [vmem:[%s1 + $0x310] sm:$0xf]
      %v987 = vld [vmem:[%s1 + $0x314] sm:$0xf]
      %v988 = vld [vmem:[%s1 + $0x318] sm:$0xf]
      %v989 = vld [vmem:[%s1 + $0x31c] sm:$0xf]
      %v990 = vld [vmem:[%s1 + $0x320] sm:$0xf]
      %v991 = vld [vmem:[%s1 + $0x324] sm:$0xf]
      %v992 = vld [vmem:[%s1 + $0x328] sm:$0xf]
      %v993 = vld [vmem:[%s1 + $0x32c] sm:$0xf]
      %v994 = vld [vmem:[%s1 + $0x330] sm:$0xf]
      %v995 = vld [vmem:[%s1 + $0x334] sm:$0xf]
      %v996 = vld [vmem:[%s1 + $0x338] sm:$0xf]
      %v997 = vld [vmem:[%s1 + $0x33c] sm:$0xf]
      %v998 = vld [vmem:[%s1 + $0x340] sm:$0xf]
      %v999 = vld [vmem:[%s1 + $0x344] sm:$0xf]
      %v1000 = vld [vmem:[%s1 + $0x348] sm:$0xf]
      %v1001 = vld [vmem:[%s1 + $0x34c] sm:$0xf]
      %v1002 = vld [vmem:[%s1 + $0x350] sm:$0xf]
      %v1003 = vld [vmem:[%s1 + $0x354] sm:$0xf]
      %v1004 = vld [vmem:[%s1 + $0x358] sm:$0xf]
      %v1005 = vld [vmem:[%s1 + $0x35c] sm:$0xf]
      %v1006 = vld [vmem:[%s1 + $0x360] sm:$0xf]
      %v1007 = vld [vmem:[%s1 + $0x364] sm:$0xf]
      %v1008 = vld [vmem:[%s1 + $0x368] sm:$0xf]
      %v1009 = vld [vmem:[%s1 + $0x36c] sm:$0xf]
      %v1010 = vld [vmem:[%s1 + $0x370] sm:$0xf]
      %v1011 = vld [vmem:[%s1 + $0x374] sm:$0xf]
      %v1012 = vld [vmem:[%s1 + $0x378] sm:$0xf]
      %v1013 = vld [vmem:[%s1 + $0x37c] sm:$0xf]
      %v1014 = vld [vmem:[%s1 + $0x380] sm:$0xf]
      %v1015 = vld [vmem:[%s1 + $0x384] sm:$0xf]
      %v1016 = vld [vmem:[%s1 + $0x388] sm:$0xf]
      %v1017 = vld [vmem:[%s1 + $0x38c] sm:$0xf]
      %v1018 = vld [vmem:[%s1 + $0x390] sm:$0xf]
      %v1019 = vld [vmem:[%s1 + $0x394] sm:$0xf]
      %v1020 = vld [vmem:[%s1 + $0x398] sm:$0xf]
      %v1021 = vld [vmem:[%s1 + $0x39c] sm:$0xf]
      %v1022 = vld [vmem:[%s1 + $0x3a0] sm:$0xf]
      %v1023 = vld [vmem:[%s1 + $0x3a4] sm:$0xf]
      %v1024 = vld [vmem:[%s1 + $0x3a8] sm:$0xf]
      %v1025 = vld [vmem:[%s1 + $0x3ac] sm:$0xf]
      %v1026 = vld [vmem:[%s1 + $0x3b0] sm:$0xf]
      %v1027 = vld [vmem:[%s1 + $0x3b4] sm:$0xf]
      %v1028 = vld [vmem:[%s1 + $0x3b8] sm:$0xf]
      %v1029 = vld [vmem:[%s1 + $0x3bc] sm:$0xf]
      %v1030 = vld [vmem:[%s1 + $0x3c0] sm:$0xf]
      %v1031 = vld [vmem:[%s1 + $0x3c4] sm:$0xf]
      %v1032 = vld [vmem:[%s1 + $0x3c8] sm:$0xf]
      %v1033 = vld [vmem:[%s1 + $0x3cc] sm:$0xf]
      %v1034 = vld [vmem:[%s1 + $0x3d0] sm:$0xf]
      %v1035 = vld [vmem:[%s1 + $0x3d4] sm:$0xf]
      %v1036 = vld [vmem:[%s1 + $0x3d8] sm:$0xf]
      %v1037 = vld [vmem:[%s1 + $0x3dc] sm:$0xf]
      %v1038 = vld [vmem:[%s1 + $0x3e0] sm:$0xf]
      %v1039 = vld [vmem:[%s1 + $0x3e4] sm:$0xf]
      %v1040 = vld [vmem:[%s1 + $0x3e8] sm:$0xf]
      %v1041 = vld [vmem:[%s1 + $0x3ec] sm:$0xf]
      %v1042 = vld [vmem:[%s1 + $0x3f0] sm:$0xf]
      %v1043 = vld [vmem:[%s1 + $0x3f4] sm:$0xf]
      %v1044 = vld [vmem:[%s1 + $0x3f8] sm:$0xf]
      %v1045 = vld [vmem:[%s1 + $0x3fc] sm:$0xf]
      %v1046 = vld [vmem:[%s1 + $0x400] sm:$0xf]
      %v1047 = vld [vmem:[%s1 + $0x404] sm:$0xf]
      %v1048 = vld [vmem:[%s1 + $0x408] sm:$0xf]
      %v1049 = vld [vmem:[%s1 + $0x40c] sm:$0xf]
      %v1050 = vld [vmem:[%s1 + $0x410] sm:$0xf]
      %v1051 = vld [vmem:[%s1 + $0x414] sm:$0xf]
      %v1052 = vld [vmem:[%s1 + $0x418] sm:$0xf]
      %v1053 = vld [vmem:[%s1 + $0x41c] sm:$0xf]
      %v1054 = vld [vmem:[%s1 + $0x420] sm:$0xf]
      %v1055 = vld [vmem:[%s1 + $0x424] sm:$0xf]
      %v1056 = vld [vmem:[%s1 + $0x428] sm:$0xf]
      %v1057 = vld [vmem:[%s1 + $0x42c] sm:$0xf]
      %v1058 = vld [vmem:[%s1 + $0x430] sm:$0xf]
      %v1059 = vld [vmem:[%s1 + $0x434] sm:$0xf]
      %v1060 = vld [vmem:[%s1 + $0x438] sm:$0xf]
      %v1061 = vld [vmem:[%s1 + $0x43c] sm:$0xf]
      %v1062 = vld [vmem:[%s1 + $0x440] sm:$0xf]
      %v1063 = vld [vmem:[%s1 + $0x444] sm:$0xf]
      %v1064 = vld [vmem:[%s1 + $0x448] sm:$0xf]
      %v1065 = vld [vmem:[%s1 + $0x44c] sm:$0xf]
      %v1066 = vld [vmem:[%s1 + $0x450] sm:$0xf]
      %v1067 = vld [vmem:[%s1 + $0x454] sm:$0xf]
      %v1068 = vld [vmem:[%s1 + $0x458] sm:$0xf]
      %v1069 = vld [vmem:[%s1 + $0x45c] sm:$0xf]
      %v1070 = vld [vmem:[%s1 + $0x460] sm:$0xf]
      %v1071 = vld [vmem:[%s1 + $0x464] sm:$0xf]
      %v1072 = vld [vmem:[%s1 + $0x468] sm:$0xf]
      %v1073 = vld [vmem:[%s1 + $0x46c] sm:$0xf]
      %v1074 = vld [vmem:[%s1 + $0x470] sm:$0xf]
      %v1075 = vld [vmem:[%s1 + $0x474] sm:$0xf]
      %v1076 = vld [vmem:[%s1 + $0x478] sm:$0xf]
      %v1077 = vld [vmem:[%s1 + $0x47c] sm:$0xf]
      %v1078 = vld [vmem:[%s1 + $0x480] sm:$0xf]
      %v1079 = vld [vmem:[%s1 + $0x484] sm:$0xf]
      %v1080 = vld [vmem:[%s1 + $0x488] sm:$0xf]
      %v1081 = vld [vmem:[%s1 + $0x48c] sm:$0xf]
      %v1082 = vld [vmem:[%s1 + $0x490] sm:$0xf]
      %v1083 = vld [vmem:[%s1 + $0x494] sm:$0xf]
      %v1084 = vld [vmem:[%s1 + $0x498] sm:$0xf]
      %v1085 = vld [vmem:[%s1 + $0x49c] sm:$0xf]
      %v1086 = vld [vmem:[%s1 + $0x4a0] sm:$0xf]
      %v1087 = vld [vmem:[%s1 + $0x4a4] sm:$0xf]
      %v1088 = vld [vmem:[%s1 + $0x4a8] sm:$0xf]
      %v1089 = vld [vmem:[%s1 + $0x4ac] sm:$0xf]
      %v1090 = vld [vmem:[%s1 + $0x4b0] sm:$0xf]
      %v1091 = vld [vmem:[%s1 + $0x4b4] sm:$0xf]
      %v1092 = vld [vmem:[%s1 + $0x4b8] sm:$0xf]
      %v1093 = vld [vmem:[%s1 + $0x4bc] sm:$0xf]
      %v1094 = vld [vmem:[%s1 + $0x4c0] sm:$0xf]
      %v1095 = vld [vmem:[%s1 + $0x4c4] sm:$0xf]
      %v1096 = vld [vmem:[%s1 + $0x4c8] sm:$0xf]
      %v1097 = vld [vmem:[%s1 + $0x4cc] sm:$0xf]
      %v1098 = vld [vmem:[%s1 + $0x4d0] sm:$0xf]
      %v1099 = vld [vmem:[%s1 + $0x4d4] sm:$0xf]
      %v1100 = vld [vmem:[%s1 + $0x4d8] sm:$0xf]
      %v1101 = vld [vmem:[%s1 + $0x4dc] sm:$0xf]
      %v1102 = vld [vmem:[%s1 + $0x4e0] sm:$0xf]
      %v1103 = vld [vmem:[%s1 + $0x4e4] sm:$0xf]
      %v1104 = vld [vmem:[%s1 + $0x4e8] sm:$0xf]
      %v1105 = vld [vmem:[%s1 + $0x4ec] sm:$0xf]
      %v1106 = vld [vmem:[%s1 + $0x4f0] sm:$0xf]
      %v1107 = vld [vmem:[%s1 + $0x4f4] sm:$0xf]
      %v1108 = vld [vmem:[%s1 + $0x4f8] sm:$0xf]
      %v1109 = vld [vmem:[%s1 + $0x4fc] sm:$0xf]
      %v1110 = vld [vmem:[%s1 + $0x500] sm:$0xf]
      %v1111 = vld [vmem:[%s1 + $0x504] sm:$0xf]
      %v1112 = vld [vmem:[%s1 + $0x508] sm:$0xf]
      %v1113 = vld [vmem:[%s1 + $0x50c] sm:$0xf]
      %v1114 = vld [vmem:[%s1 + $0x510] sm:$0xf]
      %v1115 = vld [vmem:[%s1 + $0x514] sm:$0xf]
      %v1116 = vld [vmem:[%s1 + $0x518] sm:$0xf]
      %v1117 = vld [vmem:[%s1 + $0x51c] sm:$0xf]
      %v1118 = vld [vmem:[%s1 + $0x520] sm:$0xf]
      %v1119 = vld [vmem:[%s1 + $0x524] sm:$0xf]
      %v1120 = vld [vmem:[%s1 + $0x528] sm:$0xf]
      %v1121 = vld [vmem:[%s1 + $0x52c] sm:$0xf]
      %v1122 = vld [vmem:[%s1 + $0x530] sm:$0xf]
      %v1123 = vld [vmem:[%s1 + $0x534] sm:$0xf]
      %v1124 = vld [vmem:[%s1 + $0x538] sm:$0xf]
      %v1125 = vld [vmem:[%s1 + $0x53c] sm:$0xf]
      %v1126 = vld [vmem:[%s1 + $0x540] sm:$0xf]
      %v1127 = vld [vmem:[%s1 + $0x544] sm:$0xf]
      %v1128 = vld [vmem:[%s1 + $0x548] sm:$0xf]
      %v1129 = vld [vmem:[%s1 + $0x54c] sm:$0xf]
      %v1130 = vld [vmem:[%s1 + $0x550] sm:$0xf]
      %v1131 = vld [vmem:[%s1 + $0x554] sm:$0xf]
      %v1132 = vld [vmem:[%s1 + $0x558] sm:$0xf]
      %v1133 = vld [vmem:[%s1 + $0x55c] sm:$0xf]
      %v1134 = vld [vmem:[%s1 + $0x560] sm:$0xf]
      %v1135 = vld [vmem:[%s1 + $0x564] sm:$0xf]
      %v1136 = vld [vmem:[%s1 + $0x568] sm:$0xf]
      %v1137 = vld [vmem:[%s1 + $0x56c] sm:$0xf]
      %v1138 = vld [vmem:[%s1 + $0x570] sm:$0xf]
      %v1139 = vld [vmem:[%s1 + $0x574] sm:$0xf]
      %v1140 = vld [vmem:[%s1 + $0x578] sm:$0xf]
      %v1141 = vld [vmem:[%s1 + $0x57c] sm:$0xf]
      %v1142 = vld [vmem:[%s2] sm:$0x1]
      %v1144 = vperm.slane %v1142, 0
      %v1190 = vunpack.c.l.b16 %v746
      %v1191 = vunpack.c.h.b16 %v746
      %v1192 = vunpack.c.l.b16 %v747
      %v1193 = vunpack.c.h.b16 %v747
      %v1194 = vunpack.c.l.b16 %v748
      %v1195 = vunpack.c.h.b16 %v748
      %v1196 = vunpack.c.l.b16 %v749
      %v1197 = vunpack.c.h.b16 %v749
      %v1198 = vunpack.c.l.b16 %v750
      %v1199 = vunpack.c.h.b16 %v750
      %v1200 = vunpack.c.l.b16 %v751
      %v1201 = vunpack.c.h.b16 %v751
      %v1202 = vunpack.c.l.b16 %v752
      %v1203 = vunpack.c.h.b16 %v752
      %v1204 = vunpack.c.l.b16 %v753
      %v1205 = vunpack.c.h.b16 %v753
      %v1206 = vunpack.c.l.b16 %v754
      %v1207 = vunpack.c.h.b16 %v754
      %v1208 = vunpack.c.l.b16 %v755
      %v1209 = vunpack.c.h.b16 %v755
      %v1210 = vunpack.c.l.b16 %v756
      %v1211 = vunpack.c.h.b16 %v756
      %v1212 = vunpack.c.l.b16 %v757
      %v1213 = vunpack.c.h.b16 %v757
      %v1214 = vunpack.c.l.b16 %v758
      %v1215 = vunpack.c.h.b16 %v758
      %v1216 = vunpack.c.l.b16 %v759
      %v1217 = vunpack.c.h.b16 %v759
      %v1218 = vunpack.c.l.b16 %v760
      %v1219 = vunpack.c.h.b16 %v760
      %v1220 = vunpack.c.l.b16 %v761
      %v1221 = vunpack.c.h.b16 %v761
      %v1222 = vunpack.c.l.b16 %v762
      %v1223 = vunpack.c.h.b16 %v762
      %v1224 = vunpack.c.l.b16 %v763
      %v1225 = vunpack.c.h.b16 %v763
      %v1226 = vunpack.c.l.b16 %v764
      %v1227 = vunpack.c.h.b16 %v764
      %v1228 = vunpack.c.l.b16 %v765
      %v1229 = vunpack.c.h.b16 %v765
      %v1230 = vunpack.c.l.b16 %v766
      %v1231 = vunpack.c.h.b16 %v766
      %v1232 = vunpack.c.l.b16 %v767
      %v1233 = vunpack.c.h.b16 %v767
      %v1234 = vunpack.c.l.b16 %v768
      %v1235 = vunpack.c.h.b16 %v768
      %v1236 = vunpack.c.l.b16 %v769
      %v1237 = vunpack.c.h.b16 %v769
      %v1238 = vunpack.c.l.b16 %v770
      %v1239 = vunpack.c.h.b16 %v770
      %v1240 = vunpack.c.l.b16 %v771
      %v1241 = vunpack.c.h.b16 %v771
      %v1242 = vunpack.c.l.b16 %v772
      %v1243 = vunpack.c.h.b16 %v772
      %v1244 = vunpack.c.l.b16 %v773
      %v1245 = vunpack.c.h.b16 %v773
      %v1246 = vunpack.c.l.b16 %v774
      %v1247 = vunpack.c.h.b16 %v774
      %v1248 = vunpack.c.l.b16 %v775
      %v1249 = vunpack.c.h.b16 %v775
      %v1250 = vunpack.c.l.b16 %v776
      %v1251 = vunpack.c.h.b16 %v776
      %v1252 = vunpack.c.l.b16 %v777
      %v1253 = vunpack.c.h.b16 %v777
      %v1254 = vunpack.c.l.b16 %v778
      %v1255 = vunpack.c.h.b16 %v778
      %v1256 = vunpack.c.l.b16 %v779
      %v1257 = vunpack.c.h.b16 %v779
      %v1258 = vunpack.c.l.b16 %v780
      %v1259 = vunpack.c.h.b16 %v780
      %v1260 = vunpack.c.l.b16 %v781
      %v1261 = vunpack.c.h.b16 %v781
      %v1262 = vunpack.c.l.b16 %v782
      %v1263 = vunpack.c.h.b16 %v782
      %v1264 = vunpack.c.l.b16 %v783
      %v1265 = vunpack.c.h.b16 %v783
      %v1266 = vunpack.c.l.b16 %v784
      %v1267 = vunpack.c.h.b16 %v784
      %v1268 = vunpack.c.l.b16 %v785
      %v1269 = vunpack.c.h.b16 %v785
      %v1270 = vunpack.c.l.b16 %v786
      %v1271 = vunpack.c.h.b16 %v786
      %v1272 = vunpack.c.l.b16 %v787
      %v1273 = vunpack.c.h.b16 %v787
      %v1274 = vunpack.c.l.b16 %v788
      %v1275 = vunpack.c.h.b16 %v788
      %v1276 = vunpack.c.l.b16 %v789
      %v1277 = vunpack.c.h.b16 %v789
      %v1278 = vpack.c.b16 %v1212, %v1190
      %v1279 = vpack.c.b16 %v1213, %v1191
      %v1280 = vpack.c.b16 %v1214, %v1192
      %v1281 = vpack.c.b16 %v1215, %v1193
      %v1282 = vpack.c.b16 %v1216, %v1194
      %v1283 = vpack.c.b16 %v1217, %v1195
      %v1284 = vpack.c.b16 %v1218, %v1196
      %v1285 = vpack.c.b16 %v1219, %v1197
      %v1286 = vpack.c.b16 %v1220, %v1198
      %v1287 = vpack.c.b16 %v1221, %v1199
      %v1288 = vpack.c.b16 %v1222, %v1200
      %v1289 = vpack.c.b16 %v1223, %v1201
      %v1290 = vpack.c.b16 %v1224, %v1202
      %v1291 = vpack.c.b16 %v1225, %v1203
      %v1292 = vpack.c.b16 %v1226, %v1204
      %v1293 = vpack.c.b16 %v1227, %v1205
      %v1294 = vpack.c.b16 %v1228, %v1206
      %v1295 = vpack.c.b16 %v1229, %v1207
      %v1296 = vpack.c.b16 %v1230, %v1208
      %v1297 = vpack.c.b16 %v1231, %v1209
      %v1298 = vpack.c.b16 %v1232, %v1210
      %v1299 = vpack.c.b16 %v1233, %v1211
      %v1300 = vpack.c.b16 %v1256, %v1234
      %v1301 = vpack.c.b16 %v1257, %v1235
      %v1302 = vpack.c.b16 %v1258, %v1236
      %v1303 = vpack.c.b16 %v1259, %v1237
      %v1304 = vpack.c.b16 %v1260, %v1238
      %v1305 = vpack.c.b16 %v1261, %v1239
      %v1306 = vpack.c.b16 %v1262, %v1240
      %v1307 = vpack.c.b16 %v1263, %v1241
      %v1308 = vpack.c.b16 %v1264, %v1242
      %v1309 = vpack.c.b16 %v1265, %v1243
      %v1310 = vpack.c.b16 %v1266, %v1244
      %v1311 = vpack.c.b16 %v1267, %v1245
      %v1312 = vpack.c.b16 %v1268, %v1246
      %v1313 = vpack.c.b16 %v1269, %v1247
      %v1314 = vpack.c.b16 %v1270, %v1248
      %v1315 = vpack.c.b16 %v1271, %v1249
      %v1316 = vpack.c.b16 %v1272, %v1250
      %v1317 = vpack.c.b16 %v1273, %v1251
      %v1318 = vpack.c.b16 %v1274, %v1252
      %v1319 = vpack.c.b16 %v1275, %v1253
      %v1320 = vpack.c.b16 %v1276, %v1254
      %v1321 = vpack.c.b16 %v1277, %v1255
      %v1718 = vunpack.c.l.b16 %v790
      %v1719 = vunpack.c.l.b16 %v791
      %v1720 = vunpack.c.l.b16 %v792
      %v1721 = vunpack.c.l.b16 %v793
      %v1722 = vunpack.c.l.b16 %v794
      %v1723 = vunpack.c.l.b16 %v795
      %v1724 = vunpack.c.l.b16 %v796
      %v1725 = vunpack.c.l.b16 %v797
      %v1726 = vunpack.c.l.b16 %v798
      %v1727 = vunpack.c.l.b16 %v799
      %v1728 = vunpack.c.l.b16 %v800
      %v1729 = vunpack.c.l.b16 %v801
      %v1730 = vunpack.c.l.b16 %v802
      %v1731 = vunpack.c.l.b16 %v803
      %v1732 = vunpack.c.l.b16 %v804
      %v1733 = vunpack.c.l.b16 %v805
      %v1734 = vunpack.c.l.b16 %v806
      %v1735 = vunpack.c.l.b16 %v807
      %v1736 = vunpack.c.l.b16 %v808
      %v1737 = vunpack.c.l.b16 %v809
      %v1738 = vunpack.c.l.b16 %v810
      %v1739 = vunpack.c.l.b16 %v811
      %v1740 = vunpack.c.l.b16 %v812
      %v1741 = vunpack.c.l.b16 %v813
      %v1742 = vunpack.c.l.b16 %v814
      %v1743 = vunpack.c.l.b16 %v815
      %v1744 = vunpack.c.l.b16 %v816
      %v1745 = vunpack.c.l.b16 %v817
      %v1746 = vunpack.c.l.b16 %v818
      %v1747 = vunpack.c.l.b16 %v819
      %v1748 = vunpack.c.l.b16 %v820
      %v1749 = vunpack.c.l.b16 %v821
      %v1750 = vunpack.c.l.b16 %v822
      %v1751 = vunpack.c.l.b16 %v823
      %v1752 = vunpack.c.l.b16 %v824
      %v1753 = vunpack.c.l.b16 %v825
      %v1754 = vunpack.c.l.b16 %v826
      %v1755 = vunpack.c.l.b16 %v827
      %v1756 = vunpack.c.l.b16 %v828
      %v1757 = vunpack.c.l.b16 %v829
      %v1758 = vunpack.c.l.b16 %v830
      %v1759 = vunpack.c.l.b16 %v831
      %v1760 = vunpack.c.l.b16 %v832
      %v1761 = vunpack.c.l.b16 %v833
      %v1762 = vunpack.c.l.b16 %v834
      %v1763 = vunpack.c.l.b16 %v835
      %v1764 = vunpack.c.l.b16 %v836
      %v1765 = vunpack.c.l.b16 %v837
      %v1766 = vunpack.c.l.b16 %v838
      %v1767 = vunpack.c.l.b16 %v839
      %v1768 = vunpack.c.l.b16 %v840
      %v1769 = vunpack.c.l.b16 %v841
      %v1770 = vunpack.c.l.b16 %v842
      %v1771 = vunpack.c.l.b16 %v843
      %v1772 = vunpack.c.l.b16 %v844
      %v1773 = vunpack.c.l.b16 %v845
      %v1774 = vunpack.c.l.b16 %v846
      %v1775 = vunpack.c.l.b16 %v847
      %v1776 = vunpack.c.l.b16 %v848
      %v1777 = vunpack.c.l.b16 %v849
      %v1778 = vunpack.c.l.b16 %v850
      %v1779 = vunpack.c.l.b16 %v851
      %v1780 = vunpack.c.l.b16 %v852
      %v1781 = vunpack.c.l.b16 %v853
      %v1782 = vunpack.c.l.b16 %v854
      %v1783 = vunpack.c.l.b16 %v855
      %v1784 = vunpack.c.l.b16 %v856
      %v1785 = vunpack.c.l.b16 %v857
      %v1786 = vunpack.c.l.b16 %v858
      %v1787 = vunpack.c.l.b16 %v859
      %v1788 = vunpack.c.l.b16 %v860
      %v1789 = vunpack.c.l.b16 %v861
      %v1790 = vunpack.c.l.b16 %v862
      %v1791 = vunpack.c.l.b16 %v863
      %v1792 = vunpack.c.l.b16 %v864
      %v1793 = vunpack.c.l.b16 %v865
      %v1794 = vunpack.c.l.b16 %v866
      %v1795 = vunpack.c.l.b16 %v867
      %v1796 = vunpack.c.l.b16 %v868
      %v1797 = vunpack.c.l.b16 %v869
      %v1798 = vunpack.c.l.b16 %v870
      %v1799 = vunpack.c.l.b16 %v871
      %v1800 = vunpack.c.l.b16 %v872
      %v1801 = vunpack.c.l.b16 %v873
      %v1802 = vunpack.c.l.b16 %v874
      %v1803 = vunpack.c.l.b16 %v875
      %v1804 = vunpack.c.l.b16 %v876
      %v1805 = vunpack.c.l.b16 %v877
      %v1806 = vunpack.c.l.b16 %v878
      %v1807 = vunpack.c.l.b16 %v879
      %v1808 = vunpack.c.l.b16 %v880
      %v1809 = vunpack.c.l.b16 %v881
      %v1810 = vunpack.c.l.b16 %v882
      %v1811 = vunpack.c.l.b16 %v883
      %v1812 = vunpack.c.l.b16 %v884
      %v1813 = vunpack.c.l.b16 %v885
      %v1814 = vunpack.c.l.b16 %v886
      %v1815 = vunpack.c.l.b16 %v887
      %v1816 = vunpack.c.l.b16 %v888
      %v1817 = vunpack.c.l.b16 %v889
      %v1818 = vunpack.c.l.b16 %v890
      %v1819 = vunpack.c.l.b16 %v891
      %v1820 = vunpack.c.l.b16 %v892
      %v1821 = vunpack.c.l.b16 %v893
      %v1822 = vunpack.c.l.b16 %v894
      %v1823 = vunpack.c.l.b16 %v895
      %v1824 = vunpack.c.l.b16 %v896
      %v1825 = vunpack.c.l.b16 %v897
      %v1826 = vunpack.c.l.b16 %v898
      %v1827 = vunpack.c.l.b16 %v899
      %v1828 = vunpack.c.l.b16 %v900
      %v1829 = vunpack.c.l.b16 %v901
      %v1830 = vunpack.c.l.b16 %v902
      %v1831 = vunpack.c.l.b16 %v903
      %v1832 = vunpack.c.l.b16 %v904
      %v1833 = vunpack.c.l.b16 %v905
      %v1834 = vunpack.c.l.b16 %v906
      %v1835 = vunpack.c.l.b16 %v907
      %v1836 = vunpack.c.l.b16 %v908
      %v1837 = vunpack.c.l.b16 %v909
      %v1838 = vunpack.c.l.b16 %v910
      %v1839 = vunpack.c.l.b16 %v911
      %v1840 = vunpack.c.l.b16 %v912
      %v1841 = vunpack.c.l.b16 %v913
      %v1842 = vunpack.c.l.b16 %v914
      %v1843 = vunpack.c.l.b16 %v915
      %v1844 = vunpack.c.l.b16 %v916
      %v1845 = vunpack.c.l.b16 %v917
      %v1846 = vunpack.c.l.b16 %v918
      %v1847 = vunpack.c.l.b16 %v919
      %v1848 = vunpack.c.l.b16 %v920
      %v1849 = vunpack.c.l.b16 %v921
      %v1850 = vunpack.c.l.b16 %v922
      %v1851 = vunpack.c.l.b16 %v923
      %v1852 = vunpack.c.l.b16 %v924
      %v1853 = vunpack.c.l.b16 %v925
      %v1854 = vunpack.c.l.b16 %v926
      %v1855 = vunpack.c.l.b16 %v927
      %v1856 = vunpack.c.l.b16 %v928
      %v1857 = vunpack.c.l.b16 %v929
      %v1858 = vunpack.c.l.b16 %v930
      %v1859 = vunpack.c.l.b16 %v931
      %v1860 = vunpack.c.l.b16 %v932
      %v1861 = vunpack.c.l.b16 %v933
      %v1862 = vunpack.c.l.b16 %v934
      %v1863 = vunpack.c.l.b16 %v935
      %v1864 = vunpack.c.l.b16 %v936
      %v1865 = vunpack.c.l.b16 %v937
      %v1866 = vunpack.c.l.b16 %v938
      %v1867 = vunpack.c.l.b16 %v939
      %v1868 = vunpack.c.l.b16 %v940
      %v1869 = vunpack.c.l.b16 %v941
      %v1870 = vunpack.c.l.b16 %v942
      %v1871 = vunpack.c.l.b16 %v943
      %v1872 = vunpack.c.l.b16 %v944
      %v1873 = vunpack.c.l.b16 %v945
      %v1874 = vunpack.c.l.b16 %v946
      %v1875 = vunpack.c.l.b16 %v947
      %v1876 = vunpack.c.l.b16 %v948
      %v1877 = vunpack.c.l.b16 %v949
      %v1878 = vunpack.c.l.b16 %v950
      %v1879 = vunpack.c.l.b16 %v951
      %v1880 = vunpack.c.l.b16 %v952
      %v1881 = vunpack.c.l.b16 %v953
      %v1882 = vunpack.c.l.b16 %v954
      %v1883 = vunpack.c.l.b16 %v955
      %v1884 = vunpack.c.l.b16 %v956
      %v1885 = vunpack.c.l.b16 %v957
      %v1886 = vunpack.c.l.b16 %v958
      %v1887 = vunpack.c.l.b16 %v959
      %v1888 = vunpack.c.l.b16 %v960
      %v1889 = vunpack.c.l.b16 %v961
      %v1890 = vunpack.c.l.b16 %v962
      %v1891 = vunpack.c.l.b16 %v963
      %v1892 = vunpack.c.l.b16 %v964
      %v1893 = vunpack.c.l.b16 %v965
      %v1894 = vunpack.c.l.b16 %v966
      %v1895 = vunpack.c.l.b16 %v967
      %v1896 = vunpack.c.l.b16 %v968
      %v1897 = vunpack.c.l.b16 %v969
      %v1898 = vunpack.c.l.b16 %v970
      %v1899 = vunpack.c.l.b16 %v971
      %v1900 = vunpack.c.l.b16 %v972
      %v1901 = vunpack.c.l.b16 %v973
      %v1902 = vunpack.c.l.b16 %v974
      %v1903 = vunpack.c.l.b16 %v975
      %v1904 = vunpack.c.l.b16 %v976
      %v1905 = vunpack.c.l.b16 %v977
      %v1906 = vunpack.c.l.b16 %v978
      %v1907 = vunpack.c.l.b16 %v979
      %v1908 = vunpack.c.l.b16 %v980
      %v1909 = vunpack.c.l.b16 %v981
      %v1910 = vunpack.c.l.b16 %v982
      %v1911 = vunpack.c.l.b16 %v983
      %v1912 = vunpack.c.l.b16 %v984
      %v1913 = vunpack.c.l.b16 %v985
      %v1914 = vunpack.c.l.b16 %v986
      %v1915 = vunpack.c.l.b16 %v987
      %v1916 = vunpack.c.l.b16 %v988
      %v1917 = vunpack.c.l.b16 %v989
      %v1918 = vunpack.c.l.b16 %v990
      %v1919 = vunpack.c.l.b16 %v991
      %v1920 = vunpack.c.l.b16 %v992
      %v1921 = vunpack.c.l.b16 %v993
      %v1922 = vunpack.c.l.b16 %v994
      %v1923 = vunpack.c.l.b16 %v995
      %v1924 = vunpack.c.l.b16 %v996
      %v1925 = vunpack.c.l.b16 %v997
      %v1926 = vunpack.c.l.b16 %v998
      %v1927 = vunpack.c.l.b16 %v999
      %v1928 = vunpack.c.l.b16 %v1000
      %v1929 = vunpack.c.l.b16 %v1001
      %v1930 = vunpack.c.l.b16 %v1002
      %v1931 = vunpack.c.l.b16 %v1003
      %v1932 = vunpack.c.l.b16 %v1004
      %v1933 = vunpack.c.l.b16 %v1005
      %v1934 = vunpack.c.l.b16 %v1006
      %v1935 = vunpack.c.l.b16 %v1007
      %v1936 = vunpack.c.l.b16 %v1008
      %v1937 = vunpack.c.l.b16 %v1009
      %v1938 = vunpack.c.l.b16 %v1010
      %v1939 = vunpack.c.l.b16 %v1011
      %v1940 = vunpack.c.l.b16 %v1012
      %v1941 = vunpack.c.l.b16 %v1013
      %v1942 = vunpack.c.l.b16 %v1014
      %v1943 = vunpack.c.l.b16 %v1015
      %v1944 = vunpack.c.l.b16 %v1016
      %v1945 = vunpack.c.l.b16 %v1017
      %v1946 = vunpack.c.l.b16 %v1018
      %v1947 = vunpack.c.l.b16 %v1019
      %v1948 = vunpack.c.l.b16 %v1020
      %v1949 = vunpack.c.l.b16 %v1021
      %v1950 = vunpack.c.l.b16 %v1022
      %v1951 = vunpack.c.l.b16 %v1023
      %v1952 = vunpack.c.l.b16 %v1024
      %v1953 = vunpack.c.l.b16 %v1025
      %v1954 = vunpack.c.l.b16 %v1026
      %v1955 = vunpack.c.l.b16 %v1027
      %v1956 = vunpack.c.l.b16 %v1028
      %v1957 = vunpack.c.l.b16 %v1029
      %v1958 = vunpack.c.l.b16 %v1030
      %v1959 = vunpack.c.l.b16 %v1031
      %v1960 = vunpack.c.l.b16 %v1032
      %v1961 = vunpack.c.l.b16 %v1033
      %v1962 = vunpack.c.l.b16 %v1034
      %v1963 = vunpack.c.l.b16 %v1035
      %v1964 = vunpack.c.l.b16 %v1036
      %v1965 = vunpack.c.l.b16 %v1037
      %v1966 = vunpack.c.l.b16 %v1038
      %v1967 = vunpack.c.l.b16 %v1039
      %v1968 = vunpack.c.l.b16 %v1040
      %v1969 = vunpack.c.l.b16 %v1041
      %v1970 = vunpack.c.l.b16 %v1042
      %v1971 = vunpack.c.l.b16 %v1043
      %v1972 = vunpack.c.l.b16 %v1044
      %v1973 = vunpack.c.l.b16 %v1045
      %v1974 = vunpack.c.l.b16 %v1046
      %v1975 = vunpack.c.l.b16 %v1047
      %v1976 = vunpack.c.l.b16 %v1048
      %v1977 = vunpack.c.l.b16 %v1049
      %v1978 = vunpack.c.l.b16 %v1050
      %v1979 = vunpack.c.l.b16 %v1051
      %v1980 = vunpack.c.l.b16 %v1052
      %v1981 = vunpack.c.l.b16 %v1053
      %v1982 = vunpack.c.l.b16 %v1054
      %v1983 = vunpack.c.l.b16 %v1055
      %v1984 = vunpack.c.l.b16 %v1056
      %v1985 = vunpack.c.l.b16 %v1057
      %v1986 = vunpack.c.l.b16 %v1058
      %v1987 = vunpack.c.l.b16 %v1059
      %v1988 = vunpack.c.l.b16 %v1060
      %v1989 = vunpack.c.l.b16 %v1061
      %v1990 = vunpack.c.l.b16 %v1062
      %v1991 = vunpack.c.l.b16 %v1063
      %v1992 = vunpack.c.l.b16 %v1064
      %v1993 = vunpack.c.l.b16 %v1065
      %v1994 = vunpack.c.l.b16 %v1066
      %v1995 = vunpack.c.l.b16 %v1067
      %v1996 = vunpack.c.l.b16 %v1068
      %v1997 = vunpack.c.l.b16 %v1069
      %v1998 = vunpack.c.l.b16 %v1070
      %v1999 = vunpack.c.l.b16 %v1071
      %v2000 = vunpack.c.l.b16 %v1072
      %v2001 = vunpack.c.l.b16 %v1073
      %v2002 = vunpack.c.l.b16 %v1074
      %v2003 = vunpack.c.l.b16 %v1075
      %v2004 = vunpack.c.l.b16 %v1076
      %v2005 = vunpack.c.l.b16 %v1077
      %v2006 = vunpack.c.l.b16 %v1078
      %v2007 = vunpack.c.l.b16 %v1079
      %v2008 = vunpack.c.l.b16 %v1080
      %v2009 = vunpack.c.l.b16 %v1081
      %v2010 = vunpack.c.l.b16 %v1082
      %v2011 = vunpack.c.l.b16 %v1083
      %v2012 = vunpack.c.l.b16 %v1084
      %v2013 = vunpack.c.l.b16 %v1085
      %v2014 = vunpack.c.l.b16 %v1086
      %v2015 = vunpack.c.l.b16 %v1087
      %v2016 = vunpack.c.l.b16 %v1088
      %v2017 = vunpack.c.l.b16 %v1089
      %v2018 = vunpack.c.l.b16 %v1090
      %v2019 = vunpack.c.l.b16 %v1091
      %v2020 = vunpack.c.l.b16 %v1092
      %v2021 = vunpack.c.l.b16 %v1093
      %v2022 = vunpack.c.l.b16 %v1094
      %v2023 = vunpack.c.l.b16 %v1095
      %v2024 = vunpack.c.l.b16 %v1096
      %v2025 = vunpack.c.l.b16 %v1097
      %v2026 = vunpack.c.l.b16 %v1098
      %v2027 = vunpack.c.l.b16 %v1099
      %v2028 = vunpack.c.l.b16 %v1100
      %v2029 = vunpack.c.l.b16 %v1101
      %v2030 = vunpack.c.l.b16 %v1102
      %v2031 = vunpack.c.l.b16 %v1103
      %v2032 = vunpack.c.l.b16 %v1104
      %v2033 = vunpack.c.l.b16 %v1105
      %v2034 = vunpack.c.l.b16 %v1106
      %v2035 = vunpack.c.l.b16 %v1107
      %v2036 = vunpack.c.l.b16 %v1108
      %v2037 = vunpack.c.l.b16 %v1109
      %v2038 = vunpack.c.l.b16 %v1110
      %v2039 = vunpack.c.l.b16 %v1111
      %v2040 = vunpack.c.l.b16 %v1112
      %v2041 = vunpack.c.l.b16 %v1113
      %v2042 = vunpack.c.l.b16 %v1114
      %v2043 = vunpack.c.l.b16 %v1115
      %v2044 = vunpack.c.l.b16 %v1116
      %v2045 = vunpack.c.l.b16 %v1117
      %v2046 = vunpack.c.l.b16 %v1118
      %v2047 = vunpack.c.l.b16 %v1119
      %v2048 = vunpack.c.l.b16 %v1120
      %v2049 = vunpack.c.l.b16 %v1121
      %v2050 = vunpack.c.l.b16 %v1122
      %v2051 = vunpack.c.l.b16 %v1123
      %v2052 = vunpack.c.l.b16 %v1124
      %v2053 = vunpack.c.l.b16 %v1125
      %v2054 = vunpack.c.l.b16 %v1126
      %v2055 = vunpack.c.l.b16 %v1127
      %v2056 = vunpack.c.l.b16 %v1128
      %v2057 = vunpack.c.l.b16 %v1129
      %v2058 = vunpack.c.l.b16 %v1130
      %v2059 = vunpack.c.l.b16 %v1131
      %v2060 = vunpack.c.l.b16 %v1132
      %v2061 = vunpack.c.l.b16 %v1133
      %v2062 = vunpack.c.l.b16 %v1134
      %v2063 = vunpack.c.l.b16 %v1135
      %v2064 = vunpack.c.l.b16 %v1136
      %v2065 = vunpack.c.l.b16 %v1137
      %v2066 = vunpack.c.l.b16 %v1138
      %v2067 = vunpack.c.l.b16 %v1139
      %v2068 = vunpack.c.l.b16 %v1140
      %v2069 = vunpack.c.l.b16 %v1141
      %v2070 = vpack.c.b16 %v1719, %v1718
      %v2071 = vpack.c.b16 %v1721, %v1720
      %v2072 = vpack.c.b16 %v1723, %v1722
      %v2073 = vpack.c.b16 %v1725, %v1724
      %v2074 = vpack.c.b16 %v1727, %v1726
      %v2075 = vpack.c.b16 %v1729, %v1728
      %v2076 = vpack.c.b16 %v1731, %v1730
      %v2077 = vpack.c.b16 %v1733, %v1732
      %v2078 = vpack.c.b16 %v1735, %v1734
      %v2079 = vpack.c.b16 %v1737, %v1736
      %v2080 = vpack.c.b16 %v1739, %v1738
      %v2081 = vpack.c.b16 %v1741, %v1740
      %v2082 = vpack.c.b16 %v1743, %v1742
      %v2083 = vpack.c.b16 %v1745, %v1744
      %v2084 = vpack.c.b16 %v1747, %v1746
      %v2085 = vpack.c.b16 %v1749, %v1748
      %v2086 = vpack.c.b16 %v1751, %v1750
      %v2087 = vpack.c.b16 %v1753, %v1752
      %v2088 = vpack.c.b16 %v1755, %v1754
      %v2089 = vpack.c.b16 %v1757, %v1756
      %v2090 = vpack.c.b16 %v1759, %v1758
      %v2091 = vpack.c.b16 %v1761, %v1760
      %v2092 = vpack.c.b16 %v1763, %v1762
      %v2093 = vpack.c.b16 %v1765, %v1764
      %v2094 = vpack.c.b16 %v1767, %v1766
      %v2095 = vpack.c.b16 %v1769, %v1768
      %v2096 = vpack.c.b16 %v1771, %v1770
      %v2097 = vpack.c.b16 %v1773, %v1772
      %v2098 = vpack.c.b16 %v1775, %v1774
      %v2099 = vpack.c.b16 %v1777, %v1776
      %v2100 = vpack.c.b16 %v1779, %v1778
      %v2101 = vpack.c.b16 %v1781, %v1780
      %v2102 = vpack.c.b16 %v1783, %v1782
      %v2103 = vpack.c.b16 %v1785, %v1784
      %v2104 = vpack.c.b16 %v1787, %v1786
      %v2105 = vpack.c.b16 %v1789, %v1788
      %v2106 = vpack.c.b16 %v1791, %v1790
      %v2107 = vpack.c.b16 %v1793, %v1792
      %v2108 = vpack.c.b16 %v1795, %v1794
      %v2109 = vpack.c.b16 %v1797, %v1796
      %v2110 = vpack.c.b16 %v1799, %v1798
      %v2111 = vpack.c.b16 %v1801, %v1800
      %v2112 = vpack.c.b16 %v1803, %v1802
      %v2113 = vpack.c.b16 %v1805, %v1804
      %v2114 = vpack.c.b16 %v1807, %v1806
      %v2115 = vpack.c.b16 %v1809, %v1808
      %v2116 = vpack.c.b16 %v1811, %v1810
      %v2117 = vpack.c.b16 %v1813, %v1812
      %v2118 = vpack.c.b16 %v1815, %v1814
      %v2119 = vpack.c.b16 %v1817, %v1816
      %v2120 = vpack.c.b16 %v1819, %v1818
      %v2121 = vpack.c.b16 %v1821, %v1820
      %v2122 = vpack.c.b16 %v1823, %v1822
      %v2123 = vpack.c.b16 %v1825, %v1824
      %v2124 = vpack.c.b16 %v1827, %v1826
      %v2125 = vpack.c.b16 %v1829, %v1828
      %v2126 = vpack.c.b16 %v1831, %v1830
      %v2127 = vpack.c.b16 %v1833, %v1832
      %v2128 = vpack.c.b16 %v1835, %v1834
      %v2129 = vpack.c.b16 %v1837, %v1836
      %v2130 = vpack.c.b16 %v1839, %v1838
      %v2131 = vpack.c.b16 %v1841, %v1840
      %v2132 = vpack.c.b16 %v1843, %v1842
      %v2133 = vpack.c.b16 %v1845, %v1844
      %v2134 = vpack.c.b16 %v1847, %v1846
      %v2135 = vpack.c.b16 %v1849, %v1848
      %v2136 = vpack.c.b16 %v1851, %v1850
      %v2137 = vpack.c.b16 %v1853, %v1852
      %v2138 = vpack.c.b16 %v1855, %v1854
      %v2139 = vpack.c.b16 %v1857, %v1856
      %v2140 = vpack.c.b16 %v1859, %v1858
      %v2141 = vpack.c.b16 %v1861, %v1860
      %v2142 = vpack.c.b16 %v1863, %v1862
      %v2143 = vpack.c.b16 %v1865, %v1864
      %v2144 = vpack.c.b16 %v1867, %v1866
      %v2145 = vpack.c.b16 %v1869, %v1868
      %v2146 = vpack.c.b16 %v1871, %v1870
      %v2147 = vpack.c.b16 %v1873, %v1872
      %v2148 = vpack.c.b16 %v1875, %v1874
      %v2149 = vpack.c.b16 %v1877, %v1876
      %v2150 = vpack.c.b16 %v1879, %v1878
      %v2151 = vpack.c.b16 %v1881, %v1880
      %v2152 = vpack.c.b16 %v1883, %v1882
      %v2153 = vpack.c.b16 %v1885, %v1884
      %v2154 = vpack.c.b16 %v1887, %v1886
      %v2155 = vpack.c.b16 %v1889, %v1888
      %v2156 = vpack.c.b16 %v1891, %v1890
      %v2157 = vpack.c.b16 %v1893, %v1892
      %v2158 = vpack.c.b16 %v1895, %v1894
      %v2159 = vpack.c.b16 %v1897, %v1896
      %v2160 = vpack.c.b16 %v1899, %v1898
      %v2161 = vpack.c.b16 %v1901, %v1900
      %v2162 = vpack.c.b16 %v1903, %v1902
      %v2163 = vpack.c.b16 %v1905, %v1904
      %v2164 = vpack.c.b16 %v1907, %v1906
      %v2165 = vpack.c.b16 %v1909, %v1908
      %v2166 = vpack.c.b16 %v1911, %v1910
      %v2167 = vpack.c.b16 %v1913, %v1912
      %v2168 = vpack.c.b16 %v1915, %v1914
      %v2169 = vpack.c.b16 %v1917, %v1916
      %v2170 = vpack.c.b16 %v1919, %v1918
      %v2171 = vpack.c.b16 %v1921, %v1920
      %v2172 = vpack.c.b16 %v1923, %v1922
      %v2173 = vpack.c.b16 %v1925, %v1924
      %v2174 = vpack.c.b16 %v1927, %v1926
      %v2175 = vpack.c.b16 %v1929, %v1928
      %v2176 = vpack.c.b16 %v1931, %v1930
      %v2177 = vpack.c.b16 %v1933, %v1932
      %v2178 = vpack.c.b16 %v1935, %v1934
      %v2179 = vpack.c.b16 %v1937, %v1936
      %v2180 = vpack.c.b16 %v1939, %v1938
      %v2181 = vpack.c.b16 %v1941, %v1940
      %v2182 = vpack.c.b16 %v1943, %v1942
      %v2183 = vpack.c.b16 %v1945, %v1944
      %v2184 = vpack.c.b16 %v1947, %v1946
      %v2185 = vpack.c.b16 %v1949, %v1948
      %v2186 = vpack.c.b16 %v1951, %v1950
      %v2187 = vpack.c.b16 %v1953, %v1952
      %v2188 = vpack.c.b16 %v1955, %v1954
      %v2189 = vpack.c.b16 %v1957, %v1956
      %v2190 = vpack.c.b16 %v1959, %v1958
      %v2191 = vpack.c.b16 %v1961, %v1960
      %v2192 = vpack.c.b16 %v1963, %v1962
      %v2193 = vpack.c.b16 %v1965, %v1964
      %v2194 = vpack.c.b16 %v1967, %v1966
      %v2195 = vpack.c.b16 %v1969, %v1968
      %v2196 = vpack.c.b16 %v1971, %v1970
      %v2197 = vpack.c.b16 %v1973, %v1972
      %v2198 = vpack.c.b16 %v1975, %v1974
      %v2199 = vpack.c.b16 %v1977, %v1976
      %v2200 = vpack.c.b16 %v1979, %v1978
      %v2201 = vpack.c.b16 %v1981, %v1980
      %v2202 = vpack.c.b16 %v1983, %v1982
      %v2203 = vpack.c.b16 %v1985, %v1984
      %v2204 = vpack.c.b16 %v1987, %v1986
      %v2205 = vpack.c.b16 %v1989, %v1988
      %v2206 = vpack.c.b16 %v1991, %v1990
      %v2207 = vpack.c.b16 %v1993, %v1992
      %v2208 = vpack.c.b16 %v1995, %v1994
      %v2209 = vpack.c.b16 %v1997, %v1996
      %v2210 = vpack.c.b16 %v1999, %v1998
      %v2211 = vpack.c.b16 %v2001, %v2000
      %v2212 = vpack.c.b16 %v2003, %v2002
      %v2213 = vpack.c.b16 %v2005, %v2004
      %v2214 = vpack.c.b16 %v2007, %v2006
      %v2215 = vpack.c.b16 %v2009, %v2008
      %v2216 = vpack.c.b16 %v2011, %v2010
      %v2217 = vpack.c.b16 %v2013, %v2012
      %v2218 = vpack.c.b16 %v2015, %v2014
      %v2219 = vpack.c.b16 %v2017, %v2016
      %v2220 = vpack.c.b16 %v2019, %v2018
      %v2221 = vpack.c.b16 %v2021, %v2020
      %v2222 = vpack.c.b16 %v2023, %v2022
      %v2223 = vpack.c.b16 %v2025, %v2024
      %v2224 = vpack.c.b16 %v2027, %v2026
      %v2225 = vpack.c.b16 %v2029, %v2028
      %v2226 = vpack.c.b16 %v2031, %v2030
      %v2227 = vpack.c.b16 %v2033, %v2032
      %v2228 = vpack.c.b16 %v2035, %v2034
      %v2229 = vpack.c.b16 %v2037, %v2036
      %v2230 = vpack.c.b16 %v2039, %v2038
      %v2231 = vpack.c.b16 %v2041, %v2040
      %v2232 = vpack.c.b16 %v2043, %v2042
      %v2233 = vpack.c.b16 %v2045, %v2044
      %v2234 = vpack.c.b16 %v2047, %v2046
      %v2235 = vpack.c.b16 %v2049, %v2048
      %v2236 = vpack.c.b16 %v2051, %v2050
      %v2237 = vpack.c.b16 %v2053, %v2052
      %v2238 = vpack.c.b16 %v2055, %v2054
      %v2239 = vpack.c.b16 %v2057, %v2056
      %v2240 = vpack.c.b16 %v2059, %v2058
      %v2241 = vpack.c.b16 %v2061, %v2060
      %v2242 = vpack.c.b16 %v2063, %v2062
      %v2243 = vpack.c.b16 %v2065, %v2064
      %v2244 = vpack.c.b16 %v2067, %v2066
      %v2245 = vpack.c.b16 %v2069, %v2068
      %2422 = vmatpush.bf16.msra.mxu0 %v2077
      %2423 = vmatpush.bf16.msra.mxu0 %v2076
      %2424 = vmatpush.bf16.msra.mxu0 %v2075
      %2425 = vmatpush.bf16.msra.mxu0 %v2074
      %2426 = vmatpush.bf16.msra.mxu0 %v2073
      %2427 = vmatpush.bf16.msra.mxu0 %v2072
      %2428 = vmatpush.bf16.msra.mxu0 %v2071
      %2429 = vmatpush.bf16.msra.mxu0 %v2070
      %2430 = vmatmul.bf16.gmra.mxu0 %v1278
      %v2431 = vpop.f32.mrf.mxu0
      %v2432 = vadd.f32 %v1144, %v2431
      %v2433 = vpop.f32.mrf.mxu0
      %v2434 = vadd.f32 %v1144, %v2433
      %2435 = vmatmul.bf16.gmra.mxu0 %v1300
      %v2436 = vpop.f32.mrf.mxu0
      %v2437 = vadd.f32 %v1144, %v2436
      %v2438 = vpop.f32.mrf.mxu0
      %v2439 = vadd.f32 %v1144, %v2438
      %2440 = vdwg.mxu0
      %2441 = vmatpush.bf16.msra.mxu0 %v2085
      %2442 = vmatpush.bf16.msra.mxu0 %v2084
      %2443 = vmatpush.bf16.msra.mxu0 %v2083
      %2444 = vmatpush.bf16.msra.mxu0 %v2082
      %2445 = vmatpush.bf16.msra.mxu0 %v2081
      %2446 = vmatpush.bf16.msra.mxu0 %v2080
      %2447 = vmatpush.bf16.msra.mxu0 %v2079
      %2448 = vmatpush.bf16.msra.mxu0 %v2078
      %2449 = vmatmul.bf16.gmra.mxu0 %v1279
      %v2450 = vpop.f32.mrf.mxu0
      %v2451 = vadd.f32 %v2432, %v2450
      %v2452 = vpop.f32.mrf.mxu0
      %v2453 = vadd.f32 %v2434, %v2452
      %2454 = vmatmul.bf16.gmra.mxu0 %v1301
      %v2455 = vpop.f32.mrf.mxu0
      %v2456 = vadd.f32 %v2437, %v2455
      %v2457 = vpop.f32.mrf.mxu0
      %v2458 = vadd.f32 %v2439, %v2457
      %2459 = vdwg.mxu0
      %2460 = vmatpush.bf16.msra.mxu0 %v2093
      %2461 = vmatpush.bf16.msra.mxu0 %v2092
      %2462 = vmatpush.bf16.msra.mxu0 %v2091
      %2463 = vmatpush.bf16.msra.mxu0 %v2090
      %2464 = vmatpush.bf16.msra.mxu0 %v2089
      %2465 = vmatpush.bf16.msra.mxu0 %v2088
      %2466 = vmatpush.bf16.msra.mxu0 %v2087
      %2467 = vmatpush.bf16.msra.mxu0 %v2086
      %2468 = vmatmul.bf16.gmra.mxu0 %v1280
      %v2469 = vpop.f32.mrf.mxu0
      %v2470 = vadd.f32 %v2451, %v2469
      %v2471 = vpop.f32.mrf.mxu0
      %v2472 = vadd.f32 %v2453, %v2471
      %2473 = vmatmul.bf16.gmra.mxu0 %v1302
      %v2474 = vpop.f32.mrf.mxu0
      %v2475 = vadd.f32 %v2456, %v2474
      %v2476 = vpop.f32.mrf.mxu0
      %v2477 = vadd.f32 %v2458, %v2476
      %2478 = vdwg.mxu0
      %2479 = vmatpush.bf16.msra.mxu0 %v2101
      %2480 = vmatpush.bf16.msra.mxu0 %v2100
      %2481 = vmatpush.bf16.msra.mxu0 %v2099
      %2482 = vmatpush.bf16.msra.mxu0 %v2098
      %2483 = vmatpush.bf16.msra.mxu0 %v2097
      %2484 = vmatpush.bf16.msra.mxu0 %v2096
      %2485 = vmatpush.bf16.msra.mxu0 %v2095
      %2486 = vmatpush.bf16.msra.mxu0 %v2094
      %2487 = vmatmul.bf16.gmra.mxu0 %v1281
      %v2488 = vpop.f32.mrf.mxu0
      %v2489 = vadd.f32 %v2470, %v2488
      %v2490 = vpop.f32.mrf.mxu0
      %v2491 = vadd.f32 %v2472, %v2490
      %2492 = vmatmul.bf16.gmra.mxu0 %v1303
      %v2493 = vpop.f32.mrf.mxu0
      %v2494 = vadd.f32 %v2475, %v2493
      %v2495 = vpop.f32.mrf.mxu0
      %v2496 = vadd.f32 %v2477, %v2495
      %2497 = vdwg.mxu0
      %2498 = vmatpush.bf16.msra.mxu0 %v2109
      %2499 = vmatpush.bf16.msra.mxu0 %v2108
      %2500 = vmatpush.bf16.msra.mxu0 %v2107
      %2501 = vmatpush.bf16.msra.mxu0 %v2106
      %2502 = vmatpush.bf16.msra.mxu0 %v2105
      %2503 = vmatpush.bf16.msra.mxu0 %v2104
      %2504 = vmatpush.bf16.msra.mxu0 %v2103
      %2505 = vmatpush.bf16.msra.mxu0 %v2102
      %2506 = vmatmul.bf16.gmra.mxu0 %v1282
      %v2507 = vpop.f32.mrf.mxu0
      %v2508 = vadd.f32 %v2489, %v2507
      %v2509 = vpop.f32.mrf.mxu0
      %v2510 = vadd.f32 %v2491, %v2509
      %2511 = vmatmul.bf16.gmra.mxu0 %v1304
      %v2512 = vpop.f32.mrf.mxu0
      %v2513 = vadd.f32 %v2494, %v2512
      %v2514 = vpop.f32.mrf.mxu0
      %v2515 = vadd.f32 %v2496, %v2514
      %2516 = vdwg.mxu0
      %2517 = vmatpush.bf16.msra.mxu0 %v2117
      %2518 = vmatpush.bf16.msra.mxu0 %v2116
      %2519 = vmatpush.bf16.msra.mxu0 %v2115
      %2520 = vmatpush.bf16.msra.mxu0 %v2114
      %2521 = vmatpush.bf16.msra.mxu0 %v2113
      %2522 = vmatpush.bf16.msra.mxu0 %v2112
      %2523 = vmatpush.bf16.msra.mxu0 %v2111
      %2524 = vmatpush.bf16.msra.mxu0 %v2110
      %2525 = vmatmul.bf16.gmra.mxu0 %v1283
      %v2526 = vpop.f32.mrf.mxu0
      %v2527 = vadd.f32 %v2508, %v2526
      %v2528 = vpop.f32.mrf.mxu0
      %v2529 = vadd.f32 %v2510, %v2528
      %2530 = vmatmul.bf16.gmra.mxu0 %v1305
      %v2531 = vpop.f32.mrf.mxu0
      %v2532 = vadd.f32 %v2513, %v2531
      %v2533 = vpop.f32.mrf.mxu0
      %v2534 = vadd.f32 %v2515, %v2533
      %2535 = vdwg.mxu0
      %2536 = vmatpush.bf16.msra.mxu0 %v2125
      %2537 = vmatpush.bf16.msra.mxu0 %v2124
      %2538 = vmatpush.bf16.msra.mxu0 %v2123
      %2539 = vmatpush.bf16.msra.mxu0 %v2122
      %2540 = vmatpush.bf16.msra.mxu0 %v2121
      %2541 = vmatpush.bf16.msra.mxu0 %v2120
      %2542 = vmatpush.bf16.msra.mxu0 %v2119
      %2543 = vmatpush.bf16.msra.mxu0 %v2118
      %2544 = vmatmul.bf16.gmra.mxu0 %v1284
      %v2545 = vpop.f32.mrf.mxu0
      %v2546 = vadd.f32 %v2527, %v2545
      %v2547 = vpop.f32.mrf.mxu0
      %v2548 = vadd.f32 %v2529, %v2547
      %2549 = vmatmul.bf16.gmra.mxu0 %v1306
      %v2550 = vpop.f32.mrf.mxu0
      %v2551 = vadd.f32 %v2532, %v2550
      %v2552 = vpop.f32.mrf.mxu0
      %v2553 = vadd.f32 %v2534, %v2552
      %2554 = vdwg.mxu0
      %2555 = vmatpush.bf16.msra.mxu0 %v2133
      %2556 = vmatpush.bf16.msra.mxu0 %v2132
      %2557 = vmatpush.bf16.msra.mxu0 %v2131
      %2558 = vmatpush.bf16.msra.mxu0 %v2130
      %2559 = vmatpush.bf16.msra.mxu0 %v2129
      %2560 = vmatpush.bf16.msra.mxu0 %v2128
      %2561 = vmatpush.bf16.msra.mxu0 %v2127
      %2562 = vmatpush.bf16.msra.mxu0 %v2126
      %2563 = vmatmul.bf16.gmra.mxu0 %v1285
      %v2564 = vpop.f32.mrf.mxu0
      %v2565 = vadd.f32 %v2546, %v2564
      %v2566 = vpop.f32.mrf.mxu0
      %v2567 = vadd.f32 %v2548, %v2566
      %2568 = vmatmul.bf16.gmra.mxu0 %v1307
      %v2569 = vpop.f32.mrf.mxu0
      %v2570 = vadd.f32 %v2551, %v2569
      %v2571 = vpop.f32.mrf.mxu0
      %v2572 = vadd.f32 %v2553, %v2571
      %2573 = vdwg.mxu0
      %2574 = vmatpush.bf16.msra.mxu0 %v2141
      %2575 = vmatpush.bf16.msra.mxu0 %v2140
      %2576 = vmatpush.bf16.msra.mxu0 %v2139
      %2577 = vmatpush.bf16.msra.mxu0 %v2138
      %2578 = vmatpush.bf16.msra.mxu0 %v2137
      %2579 = vmatpush.bf16.msra.mxu0 %v2136
      %2580 = vmatpush.bf16.msra.mxu0 %v2135
      %2581 = vmatpush.bf16.msra.mxu0 %v2134
      %2582 = vmatmul.bf16.gmra.mxu0 %v1286
      %v2583 = vpop.f32.mrf.mxu0
      %v2584 = vadd.f32 %v2565, %v2583
      %v2585 = vpop.f32.mrf.mxu0
      %v2586 = vadd.f32 %v2567, %v2585
      %2587 = vmatmul.bf16.gmra.mxu0 %v1308
      %v2588 = vpop.f32.mrf.mxu0
      %v2589 = vadd.f32 %v2570, %v2588
      %v2590 = vpop.f32.mrf.mxu0
      %v2591 = vadd.f32 %v2572, %v2590
      %2592 = vdwg.mxu0
      %2593 = vmatpush.bf16.msra.mxu0 %v2149
      %2594 = vmatpush.bf16.msra.mxu0 %v2148
      %2595 = vmatpush.bf16.msra.mxu0 %v2147
      %2596 = vmatpush.bf16.msra.mxu0 %v2146
      %2597 = vmatpush.bf16.msra.mxu0 %v2145
      %2598 = vmatpush.bf16.msra.mxu0 %v2144
      %2599 = vmatpush.bf16.msra.mxu0 %v2143
      %2600 = vmatpush.bf16.msra.mxu0 %v2142
      %2601 = vmatmul.bf16.gmra.mxu0 %v1287
      %v2602 = vpop.f32.mrf.mxu0
      %v2603 = vadd.f32 %v2584, %v2602
      %v2604 = vpop.f32.mrf.mxu0
      %v2605 = vadd.f32 %v2586, %v2604
      %2606 = vmatmul.bf16.gmra.mxu0 %v1309
      %v2607 = vpop.f32.mrf.mxu0
      %v2608 = vadd.f32 %v2589, %v2607
      %v2609 = vpop.f32.mrf.mxu0
      %v2610 = vadd.f32 %v2591, %v2609
      %2611 = vdwg.mxu0
      %2612 = vmatpush.bf16.msra.mxu0 %v2157
      %2613 = vmatpush.bf16.msra.mxu0 %v2156
      %2614 = vmatpush.bf16.msra.mxu0 %v2155
      %2615 = vmatpush.bf16.msra.mxu0 %v2154
      %2616 = vmatpush.bf16.msra.mxu0 %v2153
      %2617 = vmatpush.bf16.msra.mxu0 %v2152
      %2618 = vmatpush.bf16.msra.mxu0 %v2151
      %2619 = vmatpush.bf16.msra.mxu0 %v2150
      %2620 = vmatmul.bf16.gmra.mxu0 %v1288
      %v2621 = vpop.f32.mrf.mxu0
      %v2622 = vadd.f32 %v2603, %v2621
      %v2623 = vpop.f32.mrf.mxu0
      %v2624 = vadd.f32 %v2605, %v2623
      %2625 = vmatmul.bf16.gmra.mxu0 %v1310
      %v2626 = vpop.f32.mrf.mxu0
      %v2627 = vadd.f32 %v2608, %v2626
      %v2628 = vpop.f32.mrf.mxu0
      %v2629 = vadd.f32 %v2610, %v2628
      %2630 = vdwg.mxu0
      %2631 = vmatpush.bf16.msra.mxu0 %v2165
      %2632 = vmatpush.bf16.msra.mxu0 %v2164
      %2633 = vmatpush.bf16.msra.mxu0 %v2163
      %2634 = vmatpush.bf16.msra.mxu0 %v2162
      %2635 = vmatpush.bf16.msra.mxu0 %v2161
      %2636 = vmatpush.bf16.msra.mxu0 %v2160
      %2637 = vmatpush.bf16.msra.mxu0 %v2159
      %2638 = vmatpush.bf16.msra.mxu0 %v2158
      %2639 = vmatmul.bf16.gmra.mxu0 %v1289
      %v2640 = vpop.f32.mrf.mxu0
      %v2641 = vadd.f32 %v2622, %v2640
      %v2642 = vpop.f32.mrf.mxu0
      %v2643 = vadd.f32 %v2624, %v2642
      %2644 = vmatmul.bf16.gmra.mxu0 %v1311
      %v2645 = vpop.f32.mrf.mxu0
      %v2646 = vadd.f32 %v2627, %v2645
      %v2647 = vpop.f32.mrf.mxu0
      %v2648 = vadd.f32 %v2629, %v2647
      %2649 = vdwg.mxu0
      %2650 = vmatpush.bf16.msra.mxu0 %v2173
      %2651 = vmatpush.bf16.msra.mxu0 %v2172
      %2652 = vmatpush.bf16.msra.mxu0 %v2171
      %2653 = vmatpush.bf16.msra.mxu0 %v2170
      %2654 = vmatpush.bf16.msra.mxu0 %v2169
      %2655 = vmatpush.bf16.msra.mxu0 %v2168
      %2656 = vmatpush.bf16.msra.mxu0 %v2167
      %2657 = vmatpush.bf16.msra.mxu0 %v2166
      %2658 = vmatmul.bf16.gmra.mxu0 %v1290
      %v2659 = vpop.f32.mrf.mxu0
      %v2660 = vadd.f32 %v2641, %v2659
      %v2661 = vpop.f32.mrf.mxu0
      %v2662 = vadd.f32 %v2643, %v2661
      %2663 = vmatmul.bf16.gmra.mxu0 %v1312
      %v2664 = vpop.f32.mrf.mxu0
      %v2665 = vadd.f32 %v2646, %v2664
      %v2666 = vpop.f32.mrf.mxu0
      %v2667 = vadd.f32 %v2648, %v2666
      %2668 = vdwg.mxu0
      %2669 = vmatpush.bf16.msra.mxu0 %v2181
      %2670 = vmatpush.bf16.msra.mxu0 %v2180
      %2671 = vmatpush.bf16.msra.mxu0 %v2179
      %2672 = vmatpush.bf16.msra.mxu0 %v2178
      %2673 = vmatpush.bf16.msra.mxu0 %v2177
      %2674 = vmatpush.bf16.msra.mxu0 %v2176
      %2675 = vmatpush.bf16.msra.mxu0 %v2175
      %2676 = vmatpush.bf16.msra.mxu0 %v2174
      %2677 = vmatmul.bf16.gmra.mxu0 %v1291
      %v2678 = vpop.f32.mrf.mxu0
      %v2679 = vadd.f32 %v2660, %v2678
      %v2680 = vpop.f32.mrf.mxu0
      %v2681 = vadd.f32 %v2662, %v2680
      %2682 = vmatmul.bf16.gmra.mxu0 %v1313
      %v2683 = vpop.f32.mrf.mxu0
      %v2684 = vadd.f32 %v2665, %v2683
      %v2685 = vpop.f32.mrf.mxu0
      %v2686 = vadd.f32 %v2667, %v2685
      %2687 = vdwg.mxu0
      %2688 = vmatpush.bf16.msra.mxu0 %v2189
      %2689 = vmatpush.bf16.msra.mxu0 %v2188
      %2690 = vmatpush.bf16.msra.mxu0 %v2187
      %2691 = vmatpush.bf16.msra.mxu0 %v2186
      %2692 = vmatpush.bf16.msra.mxu0 %v2185
      %2693 = vmatpush.bf16.msra.mxu0 %v2184
      %2694 = vmatpush.bf16.msra.mxu0 %v2183
      %2695 = vmatpush.bf16.msra.mxu0 %v2182
      %2696 = vmatmul.bf16.gmra.mxu0 %v1292
      %v2697 = vpop.f32.mrf.mxu0
      %v2698 = vadd.f32 %v2679, %v2697
      %v2699 = vpop.f32.mrf.mxu0
      %v2700 = vadd.f32 %v2681, %v2699
      %2701 = vmatmul.bf16.gmra.mxu0 %v1314
      %v2702 = vpop.f32.mrf.mxu0
      %v2703 = vadd.f32 %v2684, %v2702
      %v2704 = vpop.f32.mrf.mxu0
      %v2705 = vadd.f32 %v2686, %v2704
      %2706 = vdwg.mxu0
      %2707 = vmatpush.bf16.msra.mxu0 %v2197
      %2708 = vmatpush.bf16.msra.mxu0 %v2196
      %2709 = vmatpush.bf16.msra.mxu0 %v2195
      %2710 = vmatpush.bf16.msra.mxu0 %v2194
      %2711 = vmatpush.bf16.msra.mxu0 %v2193
      %2712 = vmatpush.bf16.msra.mxu0 %v2192
      %2713 = vmatpush.bf16.msra.mxu0 %v2191
      %2714 = vmatpush.bf16.msra.mxu0 %v2190
      %2715 = vmatmul.bf16.gmra.mxu0 %v1293
      %v2716 = vpop.f32.mrf.mxu0
      %v2717 = vadd.f32 %v2698, %v2716
      %v2718 = vpop.f32.mrf.mxu0
      %v2719 = vadd.f32 %v2700, %v2718
      %2720 = vmatmul.bf16.gmra.mxu0 %v1315
      %v2721 = vpop.f32.mrf.mxu0
      %v2722 = vadd.f32 %v2703, %v2721
      %v2723 = vpop.f32.mrf.mxu0
      %v2724 = vadd.f32 %v2705, %v2723
      %2725 = vdwg.mxu0
      %2726 = vmatpush.bf16.msra.mxu0 %v2205
      %2727 = vmatpush.bf16.msra.mxu0 %v2204
      %2728 = vmatpush.bf16.msra.mxu0 %v2203
      %2729 = vmatpush.bf16.msra.mxu0 %v2202
      %2730 = vmatpush.bf16.msra.mxu0 %v2201
      %2731 = vmatpush.bf16.msra.mxu0 %v2200
      %2732 = vmatpush.bf16.msra.mxu0 %v2199
      %2733 = vmatpush.bf16.msra.mxu0 %v2198
      %2734 = vmatmul.bf16.gmra.mxu0 %v1294
      %v2735 = vpop.f32.mrf.mxu0
      %v2736 = vadd.f32 %v2717, %v2735
      %v2737 = vpop.f32.mrf.mxu0
      %v2738 = vadd.f32 %v2719, %v2737
      %2739 = vmatmul.bf16.gmra.mxu0 %v1316
      %v2740 = vpop.f32.mrf.mxu0
      %v2741 = vadd.f32 %v2722, %v2740
      %v2742 = vpop.f32.mrf.mxu0
      %v2743 = vadd.f32 %v2724, %v2742
      %2744 = vdwg.mxu0
      %2745 = vmatpush.bf16.msra.mxu0 %v2213
      %2746 = vmatpush.bf16.msra.mxu0 %v2212
      %2747 = vmatpush.bf16.msra.mxu0 %v2211
      %2748 = vmatpush.bf16.msra.mxu0 %v2210
      %2749 = vmatpush.bf16.msra.mxu0 %v2209
      %2750 = vmatpush.bf16.msra.mxu0 %v2208
      %2751 = vmatpush.bf16.msra.mxu0 %v2207
      %2752 = vmatpush.bf16.msra.mxu0 %v2206
      %2753 = vmatmul.bf16.gmra.mxu0 %v1295
      %v2754 = vpop.f32.mrf.mxu0
      %v2755 = vadd.f32 %v2736, %v2754
      %v2756 = vpop.f32.mrf.mxu0
      %v2757 = vadd.f32 %v2738, %v2756
      %2758 = vmatmul.bf16.gmra.mxu0 %v1317
      %v2759 = vpop.f32.mrf.mxu0
      %v2760 = vadd.f32 %v2741, %v2759
      %v2761 = vpop.f32.mrf.mxu0
      %v2762 = vadd.f32 %v2743, %v2761
      %2763 = vdwg.mxu0
      %2764 = vmatpush.bf16.msra.mxu0 %v2221
      %2765 = vmatpush.bf16.msra.mxu0 %v2220
      %2766 = vmatpush.bf16.msra.mxu0 %v2219
      %2767 = vmatpush.bf16.msra.mxu0 %v2218
      %2768 = vmatpush.bf16.msra.mxu0 %v2217
      %2769 = vmatpush.bf16.msra.mxu0 %v2216
      %2770 = vmatpush.bf16.msra.mxu0 %v2215
      %2771 = vmatpush.bf16.msra.mxu0 %v2214
      %2772 = vmatmul.bf16.gmra.mxu0 %v1296
      %v2773 = vpop.f32.mrf.mxu0
      %v2774 = vadd.f32 %v2755, %v2773
      %v2775 = vpop.f32.mrf.mxu0
      %v2776 = vadd.f32 %v2757, %v2775
      %2777 = vmatmul.bf16.gmra.mxu0 %v1318
      %v2778 = vpop.f32.mrf.mxu0
      %v2779 = vadd.f32 %v2760, %v2778
      %v2780 = vpop.f32.mrf.mxu0
      %v2781 = vadd.f32 %v2762, %v2780
      %2782 = vdwg.mxu0
      %2783 = vmatpush.bf16.msra.mxu0 %v2229
      %2784 = vmatpush.bf16.msra.mxu0 %v2228
      %2785 = vmatpush.bf16.msra.mxu0 %v2227
      %2786 = vmatpush.bf16.msra.mxu0 %v2226
      %2787 = vmatpush.bf16.msra.mxu0 %v2225
      %2788 = vmatpush.bf16.msra.mxu0 %v2224
      %2789 = vmatpush.bf16.msra.mxu0 %v2223
      %2790 = vmatpush.bf16.msra.mxu0 %v2222
      %2791 = vmatmul.bf16.gmra.mxu0 %v1297
      %v2792 = vpop.f32.mrf.mxu0
      %v2793 = vadd.f32 %v2774, %v2792
      %v2794 = vpop.f32.mrf.mxu0
      %v2795 = vadd.f32 %v2776, %v2794
      %2796 = vmatmul.bf16.gmra.mxu0 %v1319
      %v2797 = vpop.f32.mrf.mxu0
      %v2798 = vadd.f32 %v2779, %v2797
      %v2799 = vpop.f32.mrf.mxu0
      %v2800 = vadd.f32 %v2781, %v2799
      %2801 = vdwg.mxu0
      %2802 = vmatpush.bf16.msra.mxu0 %v2237
      %2803 = vmatpush.bf16.msra.mxu0 %v2236
      %2804 = vmatpush.bf16.msra.mxu0 %v2235
      %2805 = vmatpush.bf16.msra.mxu0 %v2234
      %2806 = vmatpush.bf16.msra.mxu0 %v2233
      %2807 = vmatpush.bf16.msra.mxu0 %v2232
      %2808 = vmatpush.bf16.msra.mxu0 %v2231
      %2809 = vmatpush.bf16.msra.mxu0 %v2230
      %2810 = vmatmul.bf16.gmra.mxu0 %v1298
      %v2811 = vpop.f32.mrf.mxu0
      %v2812 = vadd.f32 %v2793, %v2811
      %v2813 = vpop.f32.mrf.mxu0
      %v2814 = vadd.f32 %v2795, %v2813
      %2815 = vmatmul.bf16.gmra.mxu0 %v1320
      %v2816 = vpop.f32.mrf.mxu0
      %v2817 = vadd.f32 %v2798, %v2816
      %v2818 = vpop.f32.mrf.mxu0
      %v2819 = vadd.f32 %v2800, %v2818
      %2820 = vdwg.mxu0
      %2821 = vmatpush.bf16.msra.mxu0 %v2245
      %2822 = vmatpush.bf16.msra.mxu0 %v2244
      %2823 = vmatpush.bf16.msra.mxu0 %v2243
      %2824 = vmatpush.bf16.msra.mxu0 %v2242
      %2825 = vmatpush.bf16.msra.mxu0 %v2241
      %2826 = vmatpush.bf16.msra.mxu0 %v2240
      %2827 = vmatpush.bf16.msra.mxu0 %v2239
      %2828 = vmatpush.bf16.msra.mxu0 %v2238
      %2829 = vmatmul.bf16.gmra.mxu0 %v1299
      %v2830 = vpop.f32.mrf.mxu0
      %v2831 = vadd.f32 %v2812, %v2830
      %v2832 = vpop.f32.mrf.mxu0
      %v2833 = vadd.f32 %v2814, %v2832
      %2834 = vmatmul.bf16.gmra.mxu0 %v1321
      %v2835 = vpop.f32.mrf.mxu0
      %v2836 = vadd.f32 %v2817, %v2835
      %v2837 = vpop.f32.mrf.mxu0
      %v2838 = vadd.f32 %v2819, %v2837
      %2839 = vdwg.mxu0
      %v2840 = vmax.f32 %v2831, 0.0
      %v2841 = vmax.f32 %v2833, 0.0
      %v2842 = vmax.f32 %v2836, 0.0
      %v2843 = vmax.f32 %v2838, 0.0
      %v2844 = vmul.f32 %v2840, %v742
      %v2845 = vmul.f32 %v2841, %v743
      %v2846 = vmul.f32 %v2842, %v744
      %v2847 = vmul.f32 %v2843, %v745
      %vm2852 = vcmask 1040384
      %v2853 = vrot.slane %v2844, 7
      %v2854 = vrot.slane %v2845, 7
      %v2855 = vsel %vm2852, %v2853, %v2854
      %v2856 = vrot.slane %v2846, 7
      %v2857 = vsel %vm2852, %v2854, %v2856
      %v2858 = vrot.slane %v2847, 7
      %v2859 = vsel %vm2852, %v2856, %v2858
      %v2864 = vsel %vm2852, 0.0, %v2853
      %vm2865 = vcmask 1046528
      %v2866 = vrot.slane %v2844, 1
      %v2867 = vrot.slane %v2845, 1
      %v2868 = vsel %vm2865, %v2866, %v2867
      %v2869 = vrot.slane %v2846, 1
      %v2870 = vsel %vm2865, %v2867, %v2869
      %v2871 = vrot.slane %v2847, 1
      %v2872 = vsel %vm2865, %v2869, %v2871
      %v2877 = vsel %vm2865, %v2871, 0.0
      %v2878 = vpack.c.bf16 %v2855, %v2864
      %v2879 = vpack.c.bf16 %v2845, %v2844
      %v2880 = vpack.c.bf16 %v2870, %v2868
      %v2881 = vpack.c.bf16 %v2859, %v2857
      %v2882 = vpack.c.bf16 %v2847, %v2846
      %v2883 = vpack.c.bf16 %v2877, %v2872
      %v2884 = vld [vmem:[%s3] sm:$0xf]
      %v2885 = vld [vmem:[%s3 + $0x4] sm:$0xf]
      %v2886 = vld [vmem:[%s3 + $0x8] sm:$0xf]
      %v2887 = vld [vmem:[%s3 + $0xc] sm:$0xf]
      %v2888 = vld [vmem:[%s3 + $0x10] sm:$0xf]
      %v2889 = vld [vmem:[%s3 + $0x14] sm:$0xf]
      %v2890 = vld [vmem:[%s3 + $0x18] sm:$0xf]
      %v2891 = vld [vmem:[%s3 + $0x1c] sm:$0xf]
      %v2892 = vld [vmem:[%s3 + $0x20] sm:$0xf]
      %v2893 = vld [vmem:[%s3 + $0x24] sm:$0xf]
      %v2894 = vld [vmem:[%s3 + $0x28] sm:$0xf]
      %v2895 = vld [vmem:[%s3 + $0x2c] sm:$0xf]
      %v2896 = vld [vmem:[%s3 + $0x30] sm:$0xf]
      %v2897 = vld [vmem:[%s3 + $0x34] sm:$0xf]
      %v2898 = vld [vmem:[%s3 + $0x38] sm:$0xf]
      %v2899 = vld [vmem:[%s3 + $0x3c] sm:$0xf]
      %v2900 = vld [vmem:[%s3 + $0x40] sm:$0xf]
      %v2901 = vld [vmem:[%s3 + $0x44] sm:$0xf]
      %v2902 = vld [vmem:[%s3 + $0x48] sm:$0xf]
      %v2903 = vld [vmem:[%s3 + $0x4c] sm:$0xf]
      %v2904 = vld [vmem:[%s3 + $0x50] sm:$0xf]
      %v2905 = vld [vmem:[%s3 + $0x54] sm:$0xf]
      %v2906 = vld [vmem:[%s3 + $0x58] sm:$0xf]
      %v2907 = vld [vmem:[%s3 + $0x5c] sm:$0xf]
      %v2908 = vld [vmem:[%s3 + $0x60] sm:$0xf]
      %v2909 = vld [vmem:[%s3 + $0x64] sm:$0xf]
      %v2910 = vld [vmem:[%s3 + $0x68] sm:$0xf]
      %v2911 = vld [vmem:[%s3 + $0x6c] sm:$0xf]
      %v2912 = vld [vmem:[%s3 + $0x70] sm:$0xf]
      %v2913 = vld [vmem:[%s3 + $0x74] sm:$0xf]
      %v2914 = vld [vmem:[%s3 + $0x78] sm:$0xf]
      %v2915 = vld [vmem:[%s3 + $0x7c] sm:$0xf]
      %v2916 = vld [vmem:[%s3 + $0x80] sm:$0xf]
      %v2917 = vld [vmem:[%s3 + $0x84] sm:$0xf]
      %v2918 = vld [vmem:[%s3 + $0x88] sm:$0xf]
      %v2919 = vld [vmem:[%s3 + $0x8c] sm:$0xf]
      %v2920 = vld [vmem:[%s3 + $0x90] sm:$0xf]
      %v2921 = vld [vmem:[%s3 + $0x94] sm:$0xf]
      %v2922 = vld [vmem:[%s3 + $0x98] sm:$0xf]
      %v2923 = vld [vmem:[%s3 + $0x9c] sm:$0xf]
      %v2924 = vld [vmem:[%s3 + $0xa0] sm:$0xf]
      %v2925 = vld [vmem:[%s3 + $0xa4] sm:$0xf]
      %v2926 = vld [vmem:[%s3 + $0xa8] sm:$0xf]
      %v2927 = vld [vmem:[%s3 + $0xac] sm:$0xf]
      %v2928 = vld [vmem:[%s3 + $0xb0] sm:$0xf]
      %v2929 = vld [vmem:[%s3 + $0xb4] sm:$0xf]
      %v2930 = vld [vmem:[%s3 + $0xb8] sm:$0xf]
      %v2931 = vld [vmem:[%s3 + $0xbc] sm:$0xf]
      %v2932 = vld [vmem:[%s4] sm:$0x1]
      %v2934 = vperm.slane %v2932, 0
      %v2984 = vunpack.c.l.b16 %v2884
      %v2985 = vunpack.c.l.b16 %v2885
      %v2986 = vunpack.c.l.b16 %v2886
      %v2987 = vunpack.c.l.b16 %v2887
      %v2988 = vunpack.c.l.b16 %v2888
      %v2989 = vunpack.c.l.b16 %v2889
      %v2990 = vunpack.c.l.b16 %v2890
      %v2991 = vunpack.c.l.b16 %v2891
      %v2992 = vunpack.c.l.b16 %v2892
      %v2993 = vunpack.c.l.b16 %v2893
      %v2994 = vunpack.c.l.b16 %v2894
      %v2995 = vunpack.c.l.b16 %v2895
      %v2996 = vunpack.c.l.b16 %v2896
      %v2997 = vunpack.c.l.b16 %v2897
      %v2998 = vunpack.c.l.b16 %v2898
      %v2999 = vunpack.c.l.b16 %v2899
      %v3000 = vunpack.c.l.b16 %v2900
      %v3001 = vunpack.c.l.b16 %v2901
      %v3002 = vunpack.c.l.b16 %v2902
      %v3003 = vunpack.c.l.b16 %v2903
      %v3004 = vunpack.c.l.b16 %v2904
      %v3005 = vunpack.c.l.b16 %v2905
      %v3006 = vunpack.c.l.b16 %v2906
      %v3007 = vunpack.c.l.b16 %v2907
      %v3008 = vunpack.c.l.b16 %v2908
      %v3009 = vunpack.c.l.b16 %v2909
      %v3010 = vunpack.c.l.b16 %v2910
      %v3011 = vunpack.c.l.b16 %v2911
      %v3012 = vunpack.c.l.b16 %v2912
      %v3013 = vunpack.c.l.b16 %v2913
      %v3014 = vunpack.c.l.b16 %v2914
      %v3015 = vunpack.c.l.b16 %v2915
      %v3016 = vunpack.c.l.b16 %v2916
      %v3017 = vunpack.c.l.b16 %v2917
      %v3018 = vunpack.c.l.b16 %v2918
      %v3019 = vunpack.c.l.b16 %v2919
      %v3020 = vunpack.c.l.b16 %v2920
      %v3021 = vunpack.c.l.b16 %v2921
      %v3022 = vunpack.c.l.b16 %v2922
      %v3023 = vunpack.c.l.b16 %v2923
      %v3024 = vunpack.c.l.b16 %v2924
      %v3025 = vunpack.c.l.b16 %v2925
      %v3026 = vunpack.c.l.b16 %v2926
      %v3027 = vunpack.c.l.b16 %v2927
      %v3028 = vunpack.c.l.b16 %v2928
      %v3029 = vunpack.c.l.b16 %v2929
      %v3030 = vunpack.c.l.b16 %v2930
      %v3031 = vunpack.c.l.b16 %v2931
      %v3032 = vpack.c.b16 %v2985, %v2984
      %v3033 = vpack.c.b16 %v2987, %v2986
      %v3034 = vpack.c.b16 %v2989, %v2988
      %v3035 = vpack.c.b16 %v2991, %v2990
      %v3036 = vpack.c.b16 %v2993, %v2992
      %v3037 = vpack.c.b16 %v2995, %v2994
      %v3038 = vpack.c.b16 %v2997, %v2996
      %v3039 = vpack.c.b16 %v2999, %v2998
      %v3040 = vpack.c.b16 %v3001, %v3000
      %v3041 = vpack.c.b16 %v3003, %v3002
      %v3042 = vpack.c.b16 %v3005, %v3004
      %v3043 = vpack.c.b16 %v3007, %v3006
      %v3044 = vpack.c.b16 %v3009, %v3008
      %v3045 = vpack.c.b16 %v3011, %v3010
      %v3046 = vpack.c.b16 %v3013, %v3012
      %v3047 = vpack.c.b16 %v3015, %v3014
      %v3048 = vpack.c.b16 %v3017, %v3016
      %v3049 = vpack.c.b16 %v3019, %v3018
      %v3050 = vpack.c.b16 %v3021, %v3020
      %v3051 = vpack.c.b16 %v3023, %v3022
      %v3052 = vpack.c.b16 %v3025, %v3024
      %v3053 = vpack.c.b16 %v3027, %v3026
      %v3054 = vpack.c.b16 %v3029, %v3028
      %v3055 = vpack.c.b16 %v3031, %v3030
      %3080 = vmatpush.bf16.msra.mxu0 %v3039
      %3081 = vmatpush.bf16.msra.mxu0 %v3038
      %3082 = vmatpush.bf16.msra.mxu0 %v3037
      %3083 = vmatpush.bf16.msra.mxu0 %v3036
      %3084 = vmatpush.bf16.msra.mxu0 %v3035
      %3085 = vmatpush.bf16.msra.mxu0 %v3034
      %3086 = vmatpush.bf16.msra.mxu0 %v3033
      %3087 = vmatpush.bf16.msra.mxu0 %v3032
      %3088 = vmatmul.bf16.gmra.mxu0 %v2878
      %v3089 = vpop.f32.mrf.mxu0
      %v3090 = vadd.f32 %v2934, %v3089
      %v3091 = vpop.f32.mrf.mxu0
      %v3092 = vadd.f32 %v2934, %v3091
      %3093 = vmatmul.bf16.gmra.mxu0 %v2881
      %v3094 = vpop.f32.mrf.mxu0
      %v3095 = vadd.f32 %v2934, %v3094
      %v3096 = vpop.f32.mrf.mxu0
      %v3097 = vadd.f32 %v2934, %v3096
      %3098 = vdwg.mxu0
      %3099 = vmatpush.bf16.msra.mxu0 %v3047
      %3100 = vmatpush.bf16.msra.mxu0 %v3046
      %3101 = vmatpush.bf16.msra.mxu0 %v3045
      %3102 = vmatpush.bf16.msra.mxu0 %v3044
      %3103 = vmatpush.bf16.msra.mxu0 %v3043
      %3104 = vmatpush.bf16.msra.mxu0 %v3042
      %3105 = vmatpush.bf16.msra.mxu0 %v3041
      %3106 = vmatpush.bf16.msra.mxu0 %v3040
      %3107 = vmatmul.bf16.gmra.mxu0 %v2879
      %v3108 = vpop.f32.mrf.mxu0
      %v3109 = vadd.f32 %v3090, %v3108
      %v3110 = vpop.f32.mrf.mxu0
      %v3111 = vadd.f32 %v3092, %v3110
      %3112 = vmatmul.bf16.gmra.mxu0 %v2882
      %v3113 = vpop.f32.mrf.mxu0
      %v3114 = vadd.f32 %v3095, %v3113
      %v3115 = vpop.f32.mrf.mxu0
      %v3116 = vadd.f32 %v3097, %v3115
      %3117 = vdwg.mxu0
      %3118 = vmatpush.bf16.msra.mxu0 %v3055
      %3119 = vmatpush.bf16.msra.mxu0 %v3054
      %3120 = vmatpush.bf16.msra.mxu0 %v3053
      %3121 = vmatpush.bf16.msra.mxu0 %v3052
      %3122 = vmatpush.bf16.msra.mxu0 %v3051
      %3123 = vmatpush.bf16.msra.mxu0 %v3050
      %3124 = vmatpush.bf16.msra.mxu0 %v3049
      %3125 = vmatpush.bf16.msra.mxu0 %v3048
      %3126 = vmatmul.bf16.gmra.mxu0 %v2880
      %v3127 = vpop.f32.mrf.mxu0
      %v3128 = vadd.f32 %v3109, %v3127
      %v3129 = vpop.f32.mrf.mxu0
      %v3130 = vadd.f32 %v3111, %v3129
      %3131 = vmatmul.bf16.gmra.mxu0 %v2883
      %v3132 = vpop.f32.mrf.mxu0
      %v3133 = vadd.f32 %v3114, %v3132
      %v3134 = vpop.f32.mrf.mxu0
      %v3135 = vadd.f32 %v3116, %v3134
      %3136 = vdwg.mxu0
      %v3137 = vmax.f32 %v3128, 0.0
      %v3138 = vmax.f32 %v3130, 0.0
      %v3139 = vmax.f32 %v3133, 0.0
      %v3140 = vmax.f32 %v3135, 0.0
      %v3141 = vmul.f32 %v3137, %v742
      %v3142 = vmul.f32 %v3138, %v743
      %v3143 = vmul.f32 %v3139, %v744
      %v3144 = vmul.f32 %v3140, %v745
      %v3149 = vrot.slane %v3141, 7
      %v3150 = vrot.slane %v3142, 7
      %v3151 = vsel %vm2852, %v3149, %v3150
      %v3152 = vrot.slane %v3143, 7
      %v3153 = vsel %vm2852, %v3150, %v3152
      %v3154 = vrot.slane %v3144, 7
      %v3155 = vsel %vm2852, %v3152, %v3154
      %v3160 = vsel %vm2852, 0.0, %v3149
      %v3161 = vrot.slane %v3141, 1
      %v3162 = vrot.slane %v3142, 1
      %v3163 = vsel %vm2865, %v3161, %v3162
      %v3164 = vrot.slane %v3143, 1
      %v3165 = vsel %vm2865, %v3162, %v3164
      %v3166 = vrot.slane %v3144, 1
      %v3167 = vsel %vm2865, %v3164, %v3166
      %v3172 = vsel %vm2865, %v3166, 0.0
      %v3173 = vpack.c.bf16 %v3151, %v3160
      %v3174 = vpack.c.bf16 %v3142, %v3141
      %v3175 = vpack.c.bf16 %v3165, %v3163
      %v3176 = vpack.c.bf16 %v3155, %v3153
      %v3177 = vpack.c.bf16 %v3144, %v3143
      %v3178 = vpack.c.bf16 %v3172, %v3167
      %v3179 = vld [vmem:[%s5] sm:$0xf]
      %v3180 = vld [vmem:[%s5 + $0x4] sm:$0xf]
      %v3181 = vld [vmem:[%s5 + $0x8] sm:$0xf]
      %v3182 = vld [vmem:[%s5 + $0xc] sm:$0xf]
      %v3183 = vld [vmem:[%s5 + $0x10] sm:$0xf]
      %v3184 = vld [vmem:[%s5 + $0x14] sm:$0xf]
      %v3185 = vld [vmem:[%s5 + $0x18] sm:$0xf]
      %v3186 = vld [vmem:[%s5 + $0x1c] sm:$0xf]
      %v3187 = vld [vmem:[%s5 + $0x20] sm:$0xf]
      %v3188 = vld [vmem:[%s5 + $0x24] sm:$0xf]
      %v3189 = vld [vmem:[%s5 + $0x28] sm:$0xf]
      %v3190 = vld [vmem:[%s5 + $0x2c] sm:$0xf]
      %v3191 = vld [vmem:[%s5 + $0x30] sm:$0xf]
      %v3192 = vld [vmem:[%s5 + $0x34] sm:$0xf]
      %v3193 = vld [vmem:[%s5 + $0x38] sm:$0xf]
      %v3194 = vld [vmem:[%s5 + $0x3c] sm:$0xf]
      %v3195 = vld [vmem:[%s5 + $0x40] sm:$0xf]
      %v3196 = vld [vmem:[%s5 + $0x44] sm:$0xf]
      %v3197 = vld [vmem:[%s5 + $0x48] sm:$0xf]
      %v3198 = vld [vmem:[%s5 + $0x4c] sm:$0xf]
      %v3199 = vld [vmem:[%s5 + $0x50] sm:$0xf]
      %v3200 = vld [vmem:[%s5 + $0x54] sm:$0xf]
      %v3201 = vld [vmem:[%s5 + $0x58] sm:$0xf]
      %v3202 = vld [vmem:[%s5 + $0x5c] sm:$0xf]
      %v3203 = vld [vmem:[%s5 + $0x60] sm:$0xf]
      %v3204 = vld [vmem:[%s5 + $0x64] sm:$0xf]
      %v3205 = vld [vmem:[%s5 + $0x68] sm:$0xf]
      %v3206 = vld [vmem:[%s5 + $0x6c] sm:$0xf]
      %v3207 = vld [vmem:[%s5 + $0x70] sm:$0xf]
      %v3208 = vld [vmem:[%s5 + $0x74] sm:$0xf]
      %v3209 = vld [vmem:[%s5 + $0x78] sm:$0xf]
      %v3210 = vld [vmem:[%s5 + $0x7c] sm:$0xf]
      %v3211 = vld [vmem:[%s5 + $0x80] sm:$0xf]
      %v3212 = vld [vmem:[%s5 + $0x84] sm:$0xf]
      %v3213 = vld [vmem:[%s5 + $0x88] sm:$0xf]
      %v3214 = vld [vmem:[%s5 + $0x8c] sm:$0xf]
      %v3215 = vld [vmem:[%s5 + $0x90] sm:$0xf]
      %v3216 = vld [vmem:[%s5 + $0x94] sm:$0xf]
      %v3217 = vld [vmem:[%s5 + $0x98] sm:$0xf]
      %v3218 = vld [vmem:[%s5 + $0x9c] sm:$0xf]
      %v3219 = vld [vmem:[%s5 + $0xa0] sm:$0xf]
      %v3220 = vld [vmem:[%s5 + $0xa4] sm:$0xf]
      %v3221 = vld [vmem:[%s5 + $0xa8] sm:$0xf]
      %v3222 = vld [vmem:[%s5 + $0xac] sm:$0xf]
      %v3223 = vld [vmem:[%s5 + $0xb0] sm:$0xf]
      %v3224 = vld [vmem:[%s5 + $0xb4] sm:$0xf]
      %v3225 = vld [vmem:[%s5 + $0xb8] sm:$0xf]
      %v3226 = vld [vmem:[%s5 + $0xbc] sm:$0xf]
      %v3227 = vld [vmem:[%s6] sm:$0x1]
      %v3229 = vperm.slane %v3227, 0
      %v3279 = vunpack.c.l.b16 %v3179
      %v3280 = vunpack.c.l.b16 %v3180
      %v3281 = vunpack.c.l.b16 %v3181
      %v3282 = vunpack.c.l.b16 %v3182
      %v3283 = vunpack.c.l.b16 %v3183
      %v3284 = vunpack.c.l.b16 %v3184
      %v3285 = vunpack.c.l.b16 %v3185
      %v3286 = vunpack.c.l.b16 %v3186
      %v3287 = vunpack.c.l.b16 %v3187
      %v3288 = vunpack.c.l.b16 %v3188
      %v3289 = vunpack.c.l.b16 %v3189
      %v3290 = vunpack.c.l.b16 %v3190
      %v3291 = vunpack.c.l.b16 %v3191
      %v3292 = vunpack.c.l.b16 %v3192
      %v3293 = vunpack.c.l.b16 %v3193
      %v3294 = vunpack.c.l.b16 %v3194
      %v3295 = vunpack.c.l.b16 %v3195
      %v3296 = vunpack.c.l.b16 %v3196
      %v3297 = vunpack.c.l.b16 %v3197
      %v3298 = vunpack.c.l.b16 %v3198
      %v3299 = vunpack.c.l.b16 %v3199
      %v3300 = vunpack.c.l.b16 %v3200
      %v3301 = vunpack.c.l.b16 %v3201
      %v3302 = vunpack.c.l.b16 %v3202
      %v3303 = vunpack.c.l.b16 %v3203
      %v3304 = vunpack.c.l.b16 %v3204
      %v3305 = vunpack.c.l.b16 %v3205
      %v3306 = vunpack.c.l.b16 %v3206
      %v3307 = vunpack.c.l.b16 %v3207
      %v3308 = vunpack.c.l.b16 %v3208
      %v3309 = vunpack.c.l.b16 %v3209
      %v3310 = vunpack.c.l.b16 %v3210
      %v3311 = vunpack.c.l.b16 %v3211
      %v3312 = vunpack.c.l.b16 %v3212
      %v3313 = vunpack.c.l.b16 %v3213
      %v3314 = vunpack.c.l.b16 %v3214
      %v3315 = vunpack.c.l.b16 %v3215
      %v3316 = vunpack.c.l.b16 %v3216
      %v3317 = vunpack.c.l.b16 %v3217
      %v3318 = vunpack.c.l.b16 %v3218
      %v3319 = vunpack.c.l.b16 %v3219
      %v3320 = vunpack.c.l.b16 %v3220
      %v3321 = vunpack.c.l.b16 %v3221
      %v3322 = vunpack.c.l.b16 %v3222
      %v3323 = vunpack.c.l.b16 %v3223
      %v3324 = vunpack.c.l.b16 %v3224
      %v3325 = vunpack.c.l.b16 %v3225
      %v3326 = vunpack.c.l.b16 %v3226
      %v3327 = vpack.c.b16 %v3280, %v3279
      %v3328 = vpack.c.b16 %v3282, %v3281
      %v3329 = vpack.c.b16 %v3284, %v3283
      %v3330 = vpack.c.b16 %v3286, %v3285
      %v3331 = vpack.c.b16 %v3288, %v3287
      %v3332 = vpack.c.b16 %v3290, %v3289
      %v3333 = vpack.c.b16 %v3292, %v3291
      %v3334 = vpack.c.b16 %v3294, %v3293
      %v3335 = vpack.c.b16 %v3296, %v3295
      %v3336 = vpack.c.b16 %v3298, %v3297
      %v3337 = vpack.c.b16 %v3300, %v3299
      %v3338 = vpack.c.b16 %v3302, %v3301
      %v3339 = vpack.c.b16 %v3304, %v3303
      %v3340 = vpack.c.b16 %v3306, %v3305
      %v3341 = vpack.c.b16 %v3308, %v3307
      %v3342 = vpack.c.b16 %v3310, %v3309
      %v3343 = vpack.c.b16 %v3312, %v3311
      %v3344 = vpack.c.b16 %v3314, %v3313
      %v3345 = vpack.c.b16 %v3316, %v3315
      %v3346 = vpack.c.b16 %v3318, %v3317
      %v3347 = vpack.c.b16 %v3320, %v3319
      %v3348 = vpack.c.b16 %v3322, %v3321
      %v3349 = vpack.c.b16 %v3324, %v3323
      %v3350 = vpack.c.b16 %v3326, %v3325
      %3375 = vmatpush.bf16.msra.mxu0 %v3334
      %3376 = vmatpush.bf16.msra.mxu0 %v3333
      %3377 = vmatpush.bf16.msra.mxu0 %v3332
      %3378 = vmatpush.bf16.msra.mxu0 %v3331
      %3379 = vmatpush.bf16.msra.mxu0 %v3330
      %3380 = vmatpush.bf16.msra.mxu0 %v3329
      %3381 = vmatpush.bf16.msra.mxu0 %v3328
      %3382 = vmatpush.bf16.msra.mxu0 %v3327
      %3383 = vmatmul.bf16.gmra.mxu0 %v3173
      %v3384 = vpop.f32.mrf.mxu0
      %v3385 = vadd.f32 %v3229, %v3384
      %v3386 = vpop.f32.mrf.mxu0
      %v3387 = vadd.f32 %v3229, %v3386
      %3388 = vmatmul.bf16.gmra.mxu0 %v3176
      %v3389 = vpop.f32.mrf.mxu0
      %v3390 = vadd.f32 %v3229, %v3389
      %v3391 = vpop.f32.mrf.mxu0
      %v3392 = vadd.f32 %v3229, %v3391
      %3393 = vdwg.mxu0
      %3394 = vmatpush.bf16.msra.mxu0 %v3342
      %3395 = vmatpush.bf16.msra.mxu0 %v3341
      %3396 = vmatpush.bf16.msra.mxu0 %v3340
      %3397 = vmatpush.bf16.msra.mxu0 %v3339
      %3398 = vmatpush.bf16.msra.mxu0 %v3338
      %3399 = vmatpush.bf16.msra.mxu0 %v3337
      %3400 = vmatpush.bf16.msra.mxu0 %v3336
      %3401 = vmatpush.bf16.msra.mxu0 %v3335
      %3402 = vmatmul.bf16.gmra.mxu0 %v3174
      %v3403 = vpop.f32.mrf.mxu0
      %v3404 = vadd.f32 %v3385, %v3403
      %v3405 = vpop.f32.mrf.mxu0
      %v3406 = vadd.f32 %v3387, %v3405
      %3407 = vmatmul.bf16.gmra.mxu0 %v3177
      %v3408 = vpop.f32.mrf.mxu0
      %v3409 = vadd.f32 %v3390, %v3408
      %v3410 = vpop.f32.mrf.mxu0
      %v3411 = vadd.f32 %v3392, %v3410
      %3412 = vdwg.mxu0
      %3413 = vmatpush.bf16.msra.mxu0 %v3350
      %3414 = vmatpush.bf16.msra.mxu0 %v3349
      %3415 = vmatpush.bf16.msra.mxu0 %v3348
      %3416 = vmatpush.bf16.msra.mxu0 %v3347
      %3417 = vmatpush.bf16.msra.mxu0 %v3346
      %3418 = vmatpush.bf16.msra.mxu0 %v3345
      %3419 = vmatpush.bf16.msra.mxu0 %v3344
      %3420 = vmatpush.bf16.msra.mxu0 %v3343
      %3421 = vmatmul.bf16.gmra.mxu0 %v3175
      %v3422 = vpop.f32.mrf.mxu0
      %v3423 = vadd.f32 %v3404, %v3422
      %v3424 = vpop.f32.mrf.mxu0
      %v3425 = vadd.f32 %v3406, %v3424
      %3426 = vmatmul.bf16.gmra.mxu0 %v3178
      %v3427 = vpop.f32.mrf.mxu0
      %v3428 = vadd.f32 %v3409, %v3427
      %v3429 = vpop.f32.mrf.mxu0
      %v3430 = vadd.f32 %v3411, %v3429
      %3431 = vdwg.mxu0
      %v3432 = vadd.f32 %v3423, %v2844
      %v3433 = vadd.f32 %v3425, %v2845
      %v3434 = vadd.f32 %v3428, %v2846
      %v3435 = vadd.f32 %v3430, %v2847
      %v3436 = vmax.f32 %v3432, 0.0
      %v3437 = vmax.f32 %v3433, 0.0
      %v3438 = vmax.f32 %v3434, 0.0
      %v3439 = vmax.f32 %v3435, 0.0
      %v3440 = vmul.f32 %v3436, %v742
      %v3441 = vmul.f32 %v3437, %v743
      %v3442 = vmul.f32 %v3438, %v744
      %v3443 = vmul.f32 %v3439, %v745
      %v3444 = vpack.c.bf16 %v3441, %v3440
      %v3445 = vpack.c.bf16 %v3443, %v3442
      %v3446 = vld [vmem:[%s7] sm:$0xff]
      %v3447 = vld [vmem:[%s7 + $0x8] sm:$0xff]
      %v3448 = vld [vmem:[%s7 + $0x10] sm:$0xff]
      %v3449 = vld [vmem:[%s7 + $0x18] sm:$0xff]
      %v3450 = vld [vmem:[%s7 + $0x20] sm:$0xff]
      %v3451 = vld [vmem:[%s7 + $0x28] sm:$0xff]
      %v3452 = vld [vmem:[%s7 + $0x30] sm:$0xff]
      %v3453 = vld [vmem:[%s7 + $0x38] sm:$0xff]
      %v3454 = vld [vmem:[%s7 + $0x40] sm:$0xff]
      %v3455 = vld [vmem:[%s7 + $0x48] sm:$0xff]
      %v3456 = vld [vmem:[%s7 + $0x50] sm:$0xff]
      %v3457 = vld [vmem:[%s7 + $0x58] sm:$0xff]
      %v3458 = vld [vmem:[%s7 + $0x60] sm:$0xff]
      %v3459 = vld [vmem:[%s7 + $0x68] sm:$0xff]
      %v3460 = vld [vmem:[%s7 + $0x70] sm:$0xff]
      %v3461 = vld [vmem:[%s7 + $0x78] sm:$0xff]
      %v3462 = vld [vmem:[%s8] sm:$0x3]
      %v3464 = vperm.slane %v3462, 0
      %v3465 = vperm.slane %v3462, 1
      %v3484 = vunpack.c.l.b16 %v3446
      %v3485 = vunpack.c.h.b16 %v3446
      %v3486 = vunpack.c.l.b16 %v3447
      %v3487 = vunpack.c.h.b16 %v3447
      %v3488 = vunpack.c.l.b16 %v3448
      %v3489 = vunpack.c.h.b16 %v3448
      %v3490 = vunpack.c.l.b16 %v3449
      %v3491 = vunpack.c.h.b16 %v3449
      %v3492 = vunpack.c.l.b16 %v3450
      %v3493 = vunpack.c.h.b16 %v3450
      %v3494 = vunpack.c.l.b16 %v3451
      %v3495 = vunpack.c.h.b16 %v3451
      %v3496 = vunpack.c.l.b16 %v3452
      %v3497 = vunpack.c.h.b16 %v3452
      %v3498 = vunpack.c.l.b16 %v3453
      %v3499 = vunpack.c.h.b16 %v3453
      %v3500 = vunpack.c.l.b16 %v3454
      %v3501 = vunpack.c.h.b16 %v3454
      %v3502 = vunpack.c.l.b16 %v3455
      %v3503 = vunpack.c.h.b16 %v3455
      %v3504 = vunpack.c.l.b16 %v3456
      %v3505 = vunpack.c.h.b16 %v3456
      %v3506 = vunpack.c.l.b16 %v3457
      %v3507 = vunpack.c.h.b16 %v3457
      %v3508 = vunpack.c.l.b16 %v3458
      %v3509 = vunpack.c.h.b16 %v3458
      %v3510 = vunpack.c.l.b16 %v3459
      %v3511 = vunpack.c.h.b16 %v3459
      %v3512 = vunpack.c.l.b16 %v3460
      %v3513 = vunpack.c.h.b16 %v3460
      %v3514 = vunpack.c.l.b16 %v3461
      %v3515 = vunpack.c.h.b16 %v3461
      %v3516 = vpack.c.b16 %v3486, %v3484
      %v3517 = vpack.c.b16 %v3487, %v3485
      %v3518 = vpack.c.b16 %v3490, %v3488
      %v3519 = vpack.c.b16 %v3491, %v3489
      %v3520 = vpack.c.b16 %v3494, %v3492
      %v3521 = vpack.c.b16 %v3495, %v3493
      %v3522 = vpack.c.b16 %v3498, %v3496
      %v3523 = vpack.c.b16 %v3499, %v3497
      %v3524 = vpack.c.b16 %v3502, %v3500
      %v3525 = vpack.c.b16 %v3503, %v3501
      %v3526 = vpack.c.b16 %v3506, %v3504
      %v3527 = vpack.c.b16 %v3507, %v3505
      %v3528 = vpack.c.b16 %v3510, %v3508
      %v3529 = vpack.c.b16 %v3511, %v3509
      %v3530 = vpack.c.b16 %v3514, %v3512
      %v3531 = vpack.c.b16 %v3515, %v3513
      %3548 = vmatpush.bf16.msra.mxu0 %v3530
      %3549 = vmatpush.bf16.msra.mxu0 %v3528
      %3550 = vmatpush.bf16.msra.mxu0 %v3526
      %3551 = vmatpush.bf16.msra.mxu0 %v3524
      %3552 = vmatpush.bf16.msra.mxu0 %v3522
      %3553 = vmatpush.bf16.msra.mxu0 %v3520
      %3554 = vmatpush.bf16.msra.mxu0 %v3518
      %3555 = vmatpush.bf16.msra.mxu0 %v3516
      %3556 = vmatmul.bf16.gmra.mxu0 %v3444
      %v3557 = vpop.f32.mrf.mxu0
      %v3558 = vadd.f32 %v3464, %v3557
      %v3559 = vpop.f32.mrf.mxu0
      %v3560 = vadd.f32 %v3464, %v3559
      %3561 = vmatmul.bf16.gmra.mxu0 %v3445
      %v3562 = vpop.f32.mrf.mxu0
      %v3563 = vadd.f32 %v3464, %v3562
      %v3564 = vpop.f32.mrf.mxu0
      %v3565 = vadd.f32 %v3464, %v3564
      %3566 = vdwg.mxu0
      %3567 = vmatpush.bf16.msra.mxu0 %v3531
      %3568 = vmatpush.bf16.msra.mxu0 %v3529
      %3569 = vmatpush.bf16.msra.mxu0 %v3527
      %3570 = vmatpush.bf16.msra.mxu0 %v3525
      %3571 = vmatpush.bf16.msra.mxu0 %v3523
      %3572 = vmatpush.bf16.msra.mxu0 %v3521
      %3573 = vmatpush.bf16.msra.mxu0 %v3519
      %3574 = vmatpush.bf16.msra.mxu0 %v3517
      %3575 = vmatmul.bf16.gmra.mxu0 %v3444
      %v3576 = vpop.f32.mrf.mxu0
      %v3577 = vadd.f32 %v3465, %v3576
      %v3578 = vpop.f32.mrf.mxu0
      %v3579 = vadd.f32 %v3465, %v3578
      %3580 = vmatmul.bf16.gmra.mxu0 %v3445
      %v3581 = vpop.f32.mrf.mxu0
      %v3582 = vadd.f32 %v3465, %v3581
      %v3583 = vpop.f32.mrf.mxu0
      %v3584 = vadd.f32 %v3465, %v3583
      %3585 = vdwg.mxu0
      %v3590 = vrot.slane %v3440, 7
      %v3591 = vrot.slane %v3441, 7
      %v3592 = vsel %vm2852, %v3590, %v3591
      %v3593 = vrot.slane %v3442, 7
      %v3594 = vsel %vm2852, %v3591, %v3593
      %v3595 = vrot.slane %v3443, 7
      %v3596 = vsel %vm2852, %v3593, %v3595
      %v3601 = vsel %vm2852, 0.0, %v3590
      %v3602 = vrot.slane %v3440, 1
      %v3603 = vrot.slane %v3441, 1
      %v3604 = vsel %vm2865, %v3602, %v3603
      %v3605 = vrot.slane %v3442, 1
      %v3606 = vsel %vm2865, %v3603, %v3605
      %v3607 = vrot.slane %v3443, 1
      %v3608 = vsel %vm2865, %v3605, %v3607
      %v3613 = vsel %vm2865, %v3607, 0.0
      %v3614 = vpack.c.bf16 %v3592, %v3601
      %v3615 = vpack.c.bf16 %v3606, %v3604
      %v3616 = vpack.c.bf16 %v3596, %v3594
      %v3617 = vpack.c.bf16 %v3613, %v3608
      %v3618 = vld [vmem:[%s9] sm:$0xff]
      %v3619 = vld [vmem:[%s9 + $0x8] sm:$0xff]
      %v3620 = vld [vmem:[%s9 + $0x10] sm:$0xff]
      %v3621 = vld [vmem:[%s9 + $0x18] sm:$0xff]
      %v3622 = vld [vmem:[%s9 + $0x20] sm:$0xff]
      %v3623 = vld [vmem:[%s9 + $0x28] sm:$0xff]
      %v3624 = vld [vmem:[%s9 + $0x30] sm:$0xff]
      %v3625 = vld [vmem:[%s9 + $0x38] sm:$0xff]
      %v3626 = vld [vmem:[%s9 + $0x40] sm:$0xff]
      %v3627 = vld [vmem:[%s9 + $0x48] sm:$0xff]
      %v3628 = vld [vmem:[%s9 + $0x50] sm:$0xff]
      %v3629 = vld [vmem:[%s9 + $0x58] sm:$0xff]
      %v3630 = vld [vmem:[%s9 + $0x60] sm:$0xff]
      %v3631 = vld [vmem:[%s9 + $0x68] sm:$0xff]
      %v3632 = vld [vmem:[%s9 + $0x70] sm:$0xff]
      %v3633 = vld [vmem:[%s9 + $0x78] sm:$0xff]
      %v3634 = vld [vmem:[%s9 + $0x80] sm:$0xff]
      %v3635 = vld [vmem:[%s9 + $0x88] sm:$0xff]
      %v3636 = vld [vmem:[%s9 + $0x90] sm:$0xff]
      %v3637 = vld [vmem:[%s9 + $0x98] sm:$0xff]
      %v3638 = vld [vmem:[%s9 + $0xa0] sm:$0xff]
      %v3639 = vld [vmem:[%s9 + $0xa8] sm:$0xff]
      %v3640 = vld [vmem:[%s9 + $0xb0] sm:$0xff]
      %v3641 = vld [vmem:[%s9 + $0xb8] sm:$0xff]
      %v3642 = vld [vmem:[%s9 + $0xc0] sm:$0xff]
      %v3643 = vld [vmem:[%s9 + $0xc8] sm:$0xff]
      %v3644 = vld [vmem:[%s9 + $0xd0] sm:$0xff]
      %v3645 = vld [vmem:[%s9 + $0xd8] sm:$0xff]
      %v3646 = vld [vmem:[%s9 + $0xe0] sm:$0xff]
      %v3647 = vld [vmem:[%s9 + $0xe8] sm:$0xff]
      %v3648 = vld [vmem:[%s9 + $0xf0] sm:$0xff]
      %v3649 = vld [vmem:[%s9 + $0xf8] sm:$0xff]
      %v3650 = vld [vmem:[%s9 + $0x100] sm:$0xff]
      %v3651 = vld [vmem:[%s9 + $0x108] sm:$0xff]
      %v3652 = vld [vmem:[%s9 + $0x110] sm:$0xff]
      %v3653 = vld [vmem:[%s9 + $0x118] sm:$0xff]
      %v3654 = vld [vmem:[%s9 + $0x120] sm:$0xff]
      %v3655 = vld [vmem:[%s9 + $0x128] sm:$0xff]
      %v3656 = vld [vmem:[%s9 + $0x130] sm:$0xff]
      %v3657 = vld [vmem:[%s9 + $0x138] sm:$0xff]
      %v3658 = vld [vmem:[%s9 + $0x140] sm:$0xff]
      %v3659 = vld [vmem:[%s9 + $0x148] sm:$0xff]
      %v3660 = vld [vmem:[%s9 + $0x150] sm:$0xff]
      %v3661 = vld [vmem:[%s9 + $0x158] sm:$0xff]
      %v3662 = vld [vmem:[%s9 + $0x160] sm:$0xff]
      %v3663 = vld [vmem:[%s9 + $0x168] sm:$0xff]
      %v3664 = vld [vmem:[%s9 + $0x170] sm:$0xff]
      %v3665 = vld [vmem:[%s9 + $0x178] sm:$0xff]
      %v3666 = vld [vmem:[%s10] sm:$0x3]
      %v3668 = vperm.slane %v3666, 0
      %v3669 = vperm.slane %v3666, 1
      %v3720 = vunpack.c.l.b16 %v3618
      %v3721 = vunpack.c.h.b16 %v3618
      %v3722 = vunpack.c.l.b16 %v3619
      %v3723 = vunpack.c.h.b16 %v3619
      %v3724 = vunpack.c.l.b16 %v3620
      %v3725 = vunpack.c.h.b16 %v3620
      %v3726 = vunpack.c.l.b16 %v3621
      %v3727 = vunpack.c.h.b16 %v3621
      %v3728 = vunpack.c.l.b16 %v3622
      %v3729 = vunpack.c.h.b16 %v3622
      %v3730 = vunpack.c.l.b16 %v3623
      %v3731 = vunpack.c.h.b16 %v3623
      %v3732 = vunpack.c.l.b16 %v3624
      %v3733 = vunpack.c.h.b16 %v3624
      %v3734 = vunpack.c.l.b16 %v3625
      %v3735 = vunpack.c.h.b16 %v3625
      %v3736 = vunpack.c.l.b16 %v3626
      %v3737 = vunpack.c.h.b16 %v3626
      %v3738 = vunpack.c.l.b16 %v3627
      %v3739 = vunpack.c.h.b16 %v3627
      %v3740 = vunpack.c.l.b16 %v3628
      %v3741 = vunpack.c.h.b16 %v3628
      %v3742 = vunpack.c.l.b16 %v3629
      %v3743 = vunpack.c.h.b16 %v3629
      %v3744 = vunpack.c.l.b16 %v3630
      %v3745 = vunpack.c.h.b16 %v3630
      %v3746 = vunpack.c.l.b16 %v3631
      %v3747 = vunpack.c.h.b16 %v3631
      %v3748 = vunpack.c.l.b16 %v3632
      %v3749 = vunpack.c.h.b16 %v3632
      %v3750 = vunpack.c.l.b16 %v3633
      %v3751 = vunpack.c.h.b16 %v3633
      %v3752 = vunpack.c.l.b16 %v3634
      %v3753 = vunpack.c.h.b16 %v3634
      %v3754 = vunpack.c.l.b16 %v3635
      %v3755 = vunpack.c.h.b16 %v3635
      %v3756 = vunpack.c.l.b16 %v3636
      %v3757 = vunpack.c.h.b16 %v3636
      %v3758 = vunpack.c.l.b16 %v3637
      %v3759 = vunpack.c.h.b16 %v3637
      %v3760 = vunpack.c.l.b16 %v3638
      %v3761 = vunpack.c.h.b16 %v3638
      %v3762 = vunpack.c.l.b16 %v3639
      %v3763 = vunpack.c.h.b16 %v3639
      %v3764 = vunpack.c.l.b16 %v3640
      %v3765 = vunpack.c.h.b16 %v3640
      %v3766 = vunpack.c.l.b16 %v3641
      %v3767 = vunpack.c.h.b16 %v3641
      %v3768 = vunpack.c.l.b16 %v3642
      %v3769 = vunpack.c.h.b16 %v3642
      %v3770 = vunpack.c.l.b16 %v3643
      %v3771 = vunpack.c.h.b16 %v3643
      %v3772 = vunpack.c.l.b16 %v3644
      %v3773 = vunpack.c.h.b16 %v3644
      %v3774 = vunpack.c.l.b16 %v3645
      %v3775 = vunpack.c.h.b16 %v3645
      %v3776 = vunpack.c.l.b16 %v3646
      %v3777 = vunpack.c.h.b16 %v3646
      %v3778 = vunpack.c.l.b16 %v3647
      %v3779 = vunpack.c.h.b16 %v3647
      %v3780 = vunpack.c.l.b16 %v3648
      %v3781 = vunpack.c.h.b16 %v3648
      %v3782 = vunpack.c.l.b16 %v3649
      %v3783 = vunpack.c.h.b16 %v3649
      %v3784 = vunpack.c.l.b16 %v3650
      %v3785 = vunpack.c.h.b16 %v3650
      %v3786 = vunpack.c.l.b16 %v3651
      %v3787 = vunpack.c.h.b16 %v3651
      %v3788 = vunpack.c.l.b16 %v3652
      %v3789 = vunpack.c.h.b16 %v3652
      %v3790 = vunpack.c.l.b16 %v3653
      %v3791 = vunpack.c.h.b16 %v3653
      %v3792 = vunpack.c.l.b16 %v3654
      %v3793 = vunpack.c.h.b16 %v3654
      %v3794 = vunpack.c.l.b16 %v3655
      %v3795 = vunpack.c.h.b16 %v3655
      %v3796 = vunpack.c.l.b16 %v3656
      %v3797 = vunpack.c.h.b16 %v3656
      %v3798 = vunpack.c.l.b16 %v3657
      %v3799 = vunpack.c.h.b16 %v3657
      %v3800 = vunpack.c.l.b16 %v3658
      %v3801 = vunpack.c.h.b16 %v3658
      %v3802 = vunpack.c.l.b16 %v3659
      %v3803 = vunpack.c.h.b16 %v3659
      %v3804 = vunpack.c.l.b16 %v3660
      %v3805 = vunpack.c.h.b16 %v3660
      %v3806 = vunpack.c.l.b16 %v3661
      %v3807 = vunpack.c.h.b16 %v3661
      %v3808 = vunpack.c.l.b16 %v3662
      %v3809 = vunpack.c.h.b16 %v3662
      %v3810 = vunpack.c.l.b16 %v3663
      %v3811 = vunpack.c.h.b16 %v3663
      %v3812 = vunpack.c.l.b16 %v3664
      %v3813 = vunpack.c.h.b16 %v3664
      %v3814 = vunpack.c.l.b16 %v3665
      %v3815 = vunpack.c.h.b16 %v3665
      %v3816 = vpack.c.b16 %v3722, %v3720
      %v3817 = vpack.c.b16 %v3723, %v3721
      %v3818 = vpack.c.b16 %v3726, %v3724
      %v3819 = vpack.c.b16 %v3727, %v3725
      %v3820 = vpack.c.b16 %v3730, %v3728
      %v3821 = vpack.c.b16 %v3731, %v3729
      %v3822 = vpack.c.b16 %v3734, %v3732
      %v3823 = vpack.c.b16 %v3735, %v3733
      %v3824 = vpack.c.b16 %v3738, %v3736
      %v3825 = vpack.c.b16 %v3739, %v3737
      %v3826 = vpack.c.b16 %v3742, %v3740
      %v3827 = vpack.c.b16 %v3743, %v3741
      %v3828 = vpack.c.b16 %v3746, %v3744
      %v3829 = vpack.c.b16 %v3747, %v3745
      %v3830 = vpack.c.b16 %v3750, %v3748
      %v3831 = vpack.c.b16 %v3751, %v3749
      %v3832 = vpack.c.b16 %v3754, %v3752
      %v3833 = vpack.c.b16 %v3755, %v3753
      %v3834 = vpack.c.b16 %v3758, %v3756
      %v3835 = vpack.c.b16 %v3759, %v3757
      %v3836 = vpack.c.b16 %v3762, %v3760
      %v3837 = vpack.c.b16 %v3763, %v3761
      %v3838 = vpack.c.b16 %v3766, %v3764
      %v3839 = vpack.c.b16 %v3767, %v3765
      %v3840 = vpack.c.b16 %v3770, %v3768
      %v3841 = vpack.c.b16 %v3771, %v3769
      %v3842 = vpack.c.b16 %v3774, %v3772
      %v3843 = vpack.c.b16 %v3775, %v3773
      %v3844 = vpack.c.b16 %v3778, %v3776
      %v3845 = vpack.c.b16 %v3779, %v3777
      %v3846 = vpack.c.b16 %v3782, %v3780
      %v3847 = vpack.c.b16 %v3783, %v3781
      %v3848 = vpack.c.b16 %v3786, %v3784
      %v3849 = vpack.c.b16 %v3787, %v3785
      %v3850 = vpack.c.b16 %v3790, %v3788
      %v3851 = vpack.c.b16 %v3791, %v3789
      %v3852 = vpack.c.b16 %v3794, %v3792
      %v3853 = vpack.c.b16 %v3795, %v3793
      %v3854 = vpack.c.b16 %v3798, %v3796
      %v3855 = vpack.c.b16 %v3799, %v3797
      %v3856 = vpack.c.b16 %v3802, %v3800
      %v3857 = vpack.c.b16 %v3803, %v3801
      %v3858 = vpack.c.b16 %v3806, %v3804
      %v3859 = vpack.c.b16 %v3807, %v3805
      %v3860 = vpack.c.b16 %v3810, %v3808
      %v3861 = vpack.c.b16 %v3811, %v3809
      %v3862 = vpack.c.b16 %v3814, %v3812
      %v3863 = vpack.c.b16 %v3815, %v3813
      %3912 = vmatpush.bf16.msra.mxu0 %v3830
      %3913 = vmatpush.bf16.msra.mxu0 %v3828
      %3914 = vmatpush.bf16.msra.mxu0 %v3826
      %3915 = vmatpush.bf16.msra.mxu0 %v3824
      %3916 = vmatpush.bf16.msra.mxu0 %v3822
      %3917 = vmatpush.bf16.msra.mxu0 %v3820
      %3918 = vmatpush.bf16.msra.mxu0 %v3818
      %3919 = vmatpush.bf16.msra.mxu0 %v3816
      %3920 = vmatmul.bf16.gmra.mxu0 %v3614
      %v3921 = vpop.f32.mrf.mxu0
      %v3922 = vadd.f32 %v3668, %v3921
      %v3923 = vpop.f32.mrf.mxu0
      %v3924 = vadd.f32 %v3668, %v3923
      %3925 = vmatmul.bf16.gmra.mxu0 %v3616
      %v3926 = vpop.f32.mrf.mxu0
      %v3927 = vadd.f32 %v3668, %v3926
      %v3928 = vpop.f32.mrf.mxu0
      %v3929 = vadd.f32 %v3668, %v3928
      %3930 = vdwg.mxu0
      %3931 = vmatpush.bf16.msra.mxu0 %v3846
      %3932 = vmatpush.bf16.msra.mxu0 %v3844
      %3933 = vmatpush.bf16.msra.mxu0 %v3842
      %3934 = vmatpush.bf16.msra.mxu0 %v3840
      %3935 = vmatpush.bf16.msra.mxu0 %v3838
      %3936 = vmatpush.bf16.msra.mxu0 %v3836
      %3937 = vmatpush.bf16.msra.mxu0 %v3834
      %3938 = vmatpush.bf16.msra.mxu0 %v3832
      %3939 = vmatmul.bf16.gmra.mxu0 %v3444
      %v3940 = vpop.f32.mrf.mxu0
      %v3941 = vadd.f32 %v3922, %v3940
      %v3942 = vpop.f32.mrf.mxu0
      %v3943 = vadd.f32 %v3924, %v3942
      %3944 = vmatmul.bf16.gmra.mxu0 %v3445
      %v3945 = vpop.f32.mrf.mxu0
      %v3946 = vadd.f32 %v3927, %v3945
      %v3947 = vpop.f32.mrf.mxu0
      %v3948 = vadd.f32 %v3929, %v3947
      %3949 = vdwg.mxu0
      %3950 = vmatpush.bf16.msra.mxu0 %v3862
      %3951 = vmatpush.bf16.msra.mxu0 %v3860
      %3952 = vmatpush.bf16.msra.mxu0 %v3858
      %3953 = vmatpush.bf16.msra.mxu0 %v3856
      %3954 = vmatpush.bf16.msra.mxu0 %v3854
      %3955 = vmatpush.bf16.msra.mxu0 %v3852
      %3956 = vmatpush.bf16.msra.mxu0 %v3850
      %3957 = vmatpush.bf16.msra.mxu0 %v3848
      %3958 = vmatmul.bf16.gmra.mxu0 %v3615
      %v3959 = vpop.f32.mrf.mxu0
      %v3960 = vadd.f32 %v3941, %v3959
      %v3961 = vpop.f32.mrf.mxu0
      %v3962 = vadd.f32 %v3943, %v3961
      %3963 = vmatmul.bf16.gmra.mxu0 %v3617
      %v3964 = vpop.f32.mrf.mxu0
      %v3965 = vadd.f32 %v3946, %v3964
      %v3966 = vpop.f32.mrf.mxu0
      %v3967 = vadd.f32 %v3948, %v3966
      %3968 = vdwg.mxu0
      %3969 = vmatpush.bf16.msra.mxu0 %v3831
      %3970 = vmatpush.bf16.msra.mxu0 %v3829
      %3971 = vmatpush.bf16.msra.mxu0 %v3827
      %3972 = vmatpush.bf16.msra.mxu0 %v3825
      %3973 = vmatpush.bf16.msra.mxu0 %v3823
      %3974 = vmatpush.bf16.msra.mxu0 %v3821
      %3975 = vmatpush.bf16.msra.mxu0 %v3819
      %3976 = vmatpush.bf16.msra.mxu0 %v3817
      %3977 = vmatmul.bf16.gmra.mxu0 %v3614
      %v3978 = vpop.f32.mrf.mxu0
      %v3979 = vadd.f32 %v3669, %v3978
      %v3980 = vpop.f32.mrf.mxu0
      %v3981 = vadd.f32 %v3669, %v3980
      %3982 = vmatmul.bf16.gmra.mxu0 %v3616
      %v3983 = vpop.f32.mrf.mxu0
      %v3984 = vadd.f32 %v3669, %v3983
      %v3985 = vpop.f32.mrf.mxu0
      %v3986 = vadd.f32 %v3669, %v3985
      %3987 = vdwg.mxu0
      %3988 = vmatpush.bf16.msra.mxu0 %v3847
      %3989 = vmatpush.bf16.msra.mxu0 %v3845
      %3990 = vmatpush.bf16.msra.mxu0 %v3843
      %3991 = vmatpush.bf16.msra.mxu0 %v3841
      %3992 = vmatpush.bf16.msra.mxu0 %v3839
      %3993 = vmatpush.bf16.msra.mxu0 %v3837
      %3994 = vmatpush.bf16.msra.mxu0 %v3835
      %3995 = vmatpush.bf16.msra.mxu0 %v3833
      %3996 = vmatmul.bf16.gmra.mxu0 %v3444
      %v3997 = vpop.f32.mrf.mxu0
      %v3998 = vadd.f32 %v3979, %v3997
      %v3999 = vpop.f32.mrf.mxu0
      %v4000 = vadd.f32 %v3981, %v3999
      %4001 = vmatmul.bf16.gmra.mxu0 %v3445
      %v4002 = vpop.f32.mrf.mxu0
      %v4003 = vadd.f32 %v3984, %v4002
      %v4004 = vpop.f32.mrf.mxu0
      %v4005 = vadd.f32 %v3986, %v4004
      %4006 = vdwg.mxu0
      %4007 = vmatpush.bf16.msra.mxu0 %v3863
      %4008 = vmatpush.bf16.msra.mxu0 %v3861
      %4009 = vmatpush.bf16.msra.mxu0 %v3859
      %4010 = vmatpush.bf16.msra.mxu0 %v3857
      %4011 = vmatpush.bf16.msra.mxu0 %v3855
      %4012 = vmatpush.bf16.msra.mxu0 %v3853
      %4013 = vmatpush.bf16.msra.mxu0 %v3851
      %4014 = vmatpush.bf16.msra.mxu0 %v3849
      %4015 = vmatmul.bf16.gmra.mxu0 %v3615
      %v4016 = vpop.f32.mrf.mxu0
      %v4017 = vadd.f32 %v3998, %v4016
      %v4018 = vpop.f32.mrf.mxu0
      %v4019 = vadd.f32 %v4000, %v4018
      %4020 = vmatmul.bf16.gmra.mxu0 %v3617
      %v4021 = vpop.f32.mrf.mxu0
      %v4022 = vadd.f32 %v4003, %v4021
      %v4023 = vpop.f32.mrf.mxu0
      %v4024 = vadd.f32 %v4005, %v4023
      %4025 = vdwg.mxu0
      %v4026 = vmax.f32 %v3960, 0.0
      %v4027 = vmax.f32 %v4017, 0.0
      %v4028 = vmax.f32 %v3962, 0.0
      %v4029 = vmax.f32 %v4019, 0.0
      %v4030 = vmax.f32 %v3965, 0.0
      %v4031 = vmax.f32 %v4022, 0.0
      %v4032 = vmax.f32 %v3967, 0.0
      %v4033 = vmax.f32 %v4024, 0.0
      %v4034 = vmul.f32 %v4026, %v742
      %v4035 = vmul.f32 %v4027, %v742
      %v4036 = vmul.f32 %v4028, %v743
      %v4037 = vmul.f32 %v4029, %v743
      %v4038 = vmul.f32 %v4030, %v744
      %v4039 = vmul.f32 %v4031, %v744
      %v4040 = vmul.f32 %v4032, %v745
      %v4041 = vmul.f32 %v4033, %v745
      %v4050 = vrot.slane %v4034, 7
      %v4051 = vrot.slane %v4035, 7
      %v4052 = vrot.slane %v4036, 7
      %v4053 = vsel %vm2852, %v4050, %v4052
      %v4054 = vrot.slane %v4037, 7
      %v4055 = vsel %vm2852, %v4051, %v4054
      %v4056 = vrot.slane %v4038, 7
      %v4057 = vsel %vm2852, %v4052, %v4056
      %v4058 = vrot.slane %v4039, 7
      %v4059 = vsel %vm2852, %v4054, %v4058
      %v4060 = vrot.slane %v4040, 7
      %v4061 = vsel %vm2852, %v4056, %v4060
      %v4062 = vrot.slane %v4041, 7
      %v4063 = vsel %vm2852, %v4058, %v4062
      %v4072 = vsel %vm2852, 0.0, %v4050
      %v4073 = vsel %vm2852, 0.0, %v4051
      %v4074 = vrot.slane %v4034, 1
      %v4075 = vrot.slane %v4036, 1
      %v4076 = vsel %vm2865, %v4074, %v4075
      %v4077 = vrot.slane %v4035, 1
      %v4078 = vrot.slane %v4037, 1
      %v4079 = vsel %vm2865, %v4077, %v4078
      %v4080 = vrot.slane %v4038, 1
      %v4081 = vsel %vm2865, %v4075, %v4080
      %v4082 = vrot.slane %v4039, 1
      %v4083 = vsel %vm2865, %v4078, %v4082
      %v4084 = vrot.slane %v4040, 1
      %v4085 = vsel %vm2865, %v4080, %v4084
      %v4086 = vrot.slane %v4041, 1
      %v4087 = vsel %vm2865, %v4082, %v4086
      %v4096 = vsel %vm2865, %v4084, 0.0
      %v4097 = vsel %vm2865, %v4086, 0.0
      %v4098 = vpack.c.bf16 %v4053, %v4072
      %v4099 = vpack.c.bf16 %v4055, %v4073
      %v4100 = vpack.c.bf16 %v4036, %v4034
      %v4101 = vpack.c.bf16 %v4037, %v4035
      %v4102 = vpack.c.bf16 %v4081, %v4076
      %v4103 = vpack.c.bf16 %v4083, %v4079
      %v4104 = vpack.c.bf16 %v4061, %v4057
      %v4105 = vpack.c.bf16 %v4063, %v4059
      %v4106 = vpack.c.bf16 %v4040, %v4038
      %v4107 = vpack.c.bf16 %v4041, %v4039
      %v4108 = vpack.c.bf16 %v4096, %v4085
      %v4109 = vpack.c.bf16 %v4097, %v4087
      %v4110 = vld [vmem:[%s11] sm:$0xff]
      %v4111 = vld [vmem:[%s11 + $0x8] sm:$0xff]
      %v4112 = vld [vmem:[%s11 + $0x10] sm:$0xff]
      %v4113 = vld [vmem:[%s11 + $0x18] sm:$0xff]
      %v4114 = vld [vmem:[%s11 + $0x20] sm:$0xff]
      %v4115 = vld [vmem:[%s11 + $0x28] sm:$0xff]
      %v4116 = vld [vmem:[%s11 + $0x30] sm:$0xff]
      %v4117 = vld [vmem:[%s11 + $0x38] sm:$0xff]
      %v4118 = vld [vmem:[%s11 + $0x40] sm:$0xff]
      %v4119 = vld [vmem:[%s11 + $0x48] sm:$0xff]
      %v4120 = vld [vmem:[%s11 + $0x50] sm:$0xff]
      %v4121 = vld [vmem:[%s11 + $0x58] sm:$0xff]
      %v4122 = vld [vmem:[%s11 + $0x60] sm:$0xff]
      %v4123 = vld [vmem:[%s11 + $0x68] sm:$0xff]
      %v4124 = vld [vmem:[%s11 + $0x70] sm:$0xff]
      %v4125 = vld [vmem:[%s11 + $0x78] sm:$0xff]
      %v4126 = vld [vmem:[%s11 + $0x80] sm:$0xff]
      %v4127 = vld [vmem:[%s11 + $0x88] sm:$0xff]
      %v4128 = vld [vmem:[%s11 + $0x90] sm:$0xff]
      %v4129 = vld [vmem:[%s11 + $0x98] sm:$0xff]
      %v4130 = vld [vmem:[%s11 + $0xa0] sm:$0xff]
      %v4131 = vld [vmem:[%s11 + $0xa8] sm:$0xff]
      %v4132 = vld [vmem:[%s11 + $0xb0] sm:$0xff]
      %v4133 = vld [vmem:[%s11 + $0xb8] sm:$0xff]
      %v4134 = vld [vmem:[%s11 + $0xc0] sm:$0xff]
      %v4135 = vld [vmem:[%s11 + $0xc8] sm:$0xff]
      %v4136 = vld [vmem:[%s11 + $0xd0] sm:$0xff]
      %v4137 = vld [vmem:[%s11 + $0xd8] sm:$0xff]
      %v4138 = vld [vmem:[%s11 + $0xe0] sm:$0xff]
      %v4139 = vld [vmem:[%s11 + $0xe8] sm:$0xff]
      %v4140 = vld [vmem:[%s11 + $0xf0] sm:$0xff]
      %v4141 = vld [vmem:[%s11 + $0xf8] sm:$0xff]
      %v4142 = vld [vmem:[%s11 + $0x100] sm:$0xff]
      %v4143 = vld [vmem:[%s11 + $0x108] sm:$0xff]
      %v4144 = vld [vmem:[%s11 + $0x110] sm:$0xff]
      %v4145 = vld [vmem:[%s11 + $0x118] sm:$0xff]
      %v4146 = vld [vmem:[%s11 + $0x120] sm:$0xff]
      %v4147 = vld [vmem:[%s11 + $0x128] sm:$0xff]
      %v4148 = vld [vmem:[%s11 + $0x130] sm:$0xff]
      %v4149 = vld [vmem:[%s11 + $0x138] sm:$0xff]
      %v4150 = vld [vmem:[%s11 + $0x140] sm:$0xff]
      %v4151 = vld [vmem:[%s11 + $0x148] sm:$0xff]
      %v4152 = vld [vmem:[%s11 + $0x150] sm:$0xff]
      %v4153 = vld [vmem:[%s11 + $0x158] sm:$0xff]
      %v4154 = vld [vmem:[%s11 + $0x160] sm:$0xff]
      %v4155 = vld [vmem:[%s11 + $0x168] sm:$0xff]
      %v4156 = vld [vmem:[%s11 + $0x170] sm:$0xff]
      %v4157 = vld [vmem:[%s11 + $0x178] sm:$0xff]
      %v4158 = vld [vmem:[%s11 + $0x180] sm:$0xff]
      %v4159 = vld [vmem:[%s11 + $0x188] sm:$0xff]
      %v4160 = vld [vmem:[%s11 + $0x190] sm:$0xff]
      %v4161 = vld [vmem:[%s11 + $0x198] sm:$0xff]
      %v4162 = vld [vmem:[%s11 + $0x1a0] sm:$0xff]
      %v4163 = vld [vmem:[%s11 + $0x1a8] sm:$0xff]
      %v4164 = vld [vmem:[%s11 + $0x1b0] sm:$0xff]
      %v4165 = vld [vmem:[%s11 + $0x1b8] sm:$0xff]
      %v4166 = vld [vmem:[%s11 + $0x1c0] sm:$0xff]
      %v4167 = vld [vmem:[%s11 + $0x1c8] sm:$0xff]
      %v4168 = vld [vmem:[%s11 + $0x1d0] sm:$0xff]
      %v4169 = vld [vmem:[%s11 + $0x1d8] sm:$0xff]
      %v4170 = vld [vmem:[%s11 + $0x1e0] sm:$0xff]
      %v4171 = vld [vmem:[%s11 + $0x1e8] sm:$0xff]
      %v4172 = vld [vmem:[%s11 + $0x1f0] sm:$0xff]
      %v4173 = vld [vmem:[%s11 + $0x1f8] sm:$0xff]
      %v4174 = vld [vmem:[%s11 + $0x200] sm:$0xff]
      %v4175 = vld [vmem:[%s11 + $0x208] sm:$0xff]
      %v4176 = vld [vmem:[%s11 + $0x210] sm:$0xff]
      %v4177 = vld [vmem:[%s11 + $0x218] sm:$0xff]
      %v4178 = vld [vmem:[%s11 + $0x220] sm:$0xff]
      %v4179 = vld [vmem:[%s11 + $0x228] sm:$0xff]
      %v4180 = vld [vmem:[%s11 + $0x230] sm:$0xff]
      %v4181 = vld [vmem:[%s11 + $0x238] sm:$0xff]
      %v4182 = vld [vmem:[%s11 + $0x240] sm:$0xff]
      %v4183 = vld [vmem:[%s11 + $0x248] sm:$0xff]
      %v4184 = vld [vmem:[%s11 + $0x250] sm:$0xff]
      %v4185 = vld [vmem:[%s11 + $0x258] sm:$0xff]
      %v4186 = vld [vmem:[%s11 + $0x260] sm:$0xff]
      %v4187 = vld [vmem:[%s11 + $0x268] sm:$0xff]
      %v4188 = vld [vmem:[%s11 + $0x270] sm:$0xff]
      %v4189 = vld [vmem:[%s11 + $0x278] sm:$0xff]
      %v4190 = vld [vmem:[%s11 + $0x280] sm:$0xff]
      %v4191 = vld [vmem:[%s11 + $0x288] sm:$0xff]
      %v4192 = vld [vmem:[%s11 + $0x290] sm:$0xff]
      %v4193 = vld [vmem:[%s11 + $0x298] sm:$0xff]
      %v4194 = vld [vmem:[%s11 + $0x2a0] sm:$0xff]
      %v4195 = vld [vmem:[%s11 + $0x2a8] sm:$0xff]
      %v4196 = vld [vmem:[%s11 + $0x2b0] sm:$0xff]
      %v4197 = vld [vmem:[%s11 + $0x2b8] sm:$0xff]
      %v4198 = vld [vmem:[%s11 + $0x2c0] sm:$0xff]
      %v4199 = vld [vmem:[%s11 + $0x2c8] sm:$0xff]
      %v4200 = vld [vmem:[%s11 + $0x2d0] sm:$0xff]
      %v4201 = vld [vmem:[%s11 + $0x2d8] sm:$0xff]
      %v4202 = vld [vmem:[%s11 + $0x2e0] sm:$0xff]
      %v4203 = vld [vmem:[%s11 + $0x2e8] sm:$0xff]
      %v4204 = vld [vmem:[%s11 + $0x2f0] sm:$0xff]
      %v4205 = vld [vmem:[%s11 + $0x2f8] sm:$0xff]
      %v4206 = vld [vmem:[%s12] sm:$0x3]
      %v4208 = vperm.slane %v4206, 0
      %v4209 = vperm.slane %v4206, 1
      %v4308 = vunpack.c.l.b16 %v4110
      %v4309 = vunpack.c.h.b16 %v4110
      %v4310 = vunpack.c.l.b16 %v4111
      %v4311 = vunpack.c.h.b16 %v4111
      %v4312 = vunpack.c.l.b16 %v4112
      %v4313 = vunpack.c.h.b16 %v4112
      %v4314 = vunpack.c.l.b16 %v4113
      %v4315 = vunpack.c.h.b16 %v4113
      %v4316 = vunpack.c.l.b16 %v4114
      %v4317 = vunpack.c.h.b16 %v4114
      %v4318 = vunpack.c.l.b16 %v4115
      %v4319 = vunpack.c.h.b16 %v4115
      %v4320 = vunpack.c.l.b16 %v4116
      %v4321 = vunpack.c.h.b16 %v4116
      %v4322 = vunpack.c.l.b16 %v4117
      %v4323 = vunpack.c.h.b16 %v4117
      %v4324 = vunpack.c.l.b16 %v4118
      %v4325 = vunpack.c.h.b16 %v4118
      %v4326 = vunpack.c.l.b16 %v4119
      %v4327 = vunpack.c.h.b16 %v4119
      %v4328 = vunpack.c.l.b16 %v4120
      %v4329 = vunpack.c.h.b16 %v4120
      %v4330 = vunpack.c.l.b16 %v4121
      %v4331 = vunpack.c.h.b16 %v4121
      %v4332 = vunpack.c.l.b16 %v4122
      %v4333 = vunpack.c.h.b16 %v4122
      %v4334 = vunpack.c.l.b16 %v4123
      %v4335 = vunpack.c.h.b16 %v4123
      %v4336 = vunpack.c.l.b16 %v4124
      %v4337 = vunpack.c.h.b16 %v4124
      %v4338 = vunpack.c.l.b16 %v4125
      %v4339 = vunpack.c.h.b16 %v4125
      %v4340 = vunpack.c.l.b16 %v4126
      %v4341 = vunpack.c.h.b16 %v4126
      %v4342 = vunpack.c.l.b16 %v4127
      %v4343 = vunpack.c.h.b16 %v4127
      %v4344 = vunpack.c.l.b16 %v4128
      %v4345 = vunpack.c.h.b16 %v4128
      %v4346 = vunpack.c.l.b16 %v4129
      %v4347 = vunpack.c.h.b16 %v4129
      %v4348 = vunpack.c.l.b16 %v4130
      %v4349 = vunpack.c.h.b16 %v4130
      %v4350 = vunpack.c.l.b16 %v4131
      %v4351 = vunpack.c.h.b16 %v4131
      %v4352 = vunpack.c.l.b16 %v4132
      %v4353 = vunpack.c.h.b16 %v4132
      %v4354 = vunpack.c.l.b16 %v4133
      %v4355 = vunpack.c.h.b16 %v4133
      %v4356 = vunpack.c.l.b16 %v4134
      %v4357 = vunpack.c.h.b16 %v4134
      %v4358 = vunpack.c.l.b16 %v4135
      %v4359 = vunpack.c.h.b16 %v4135
      %v4360 = vunpack.c.l.b16 %v4136
      %v4361 = vunpack.c.h.b16 %v4136
      %v4362 = vunpack.c.l.b16 %v4137
      %v4363 = vunpack.c.h.b16 %v4137
      %v4364 = vunpack.c.l.b16 %v4138
      %v4365 = vunpack.c.h.b16 %v4138
      %v4366 = vunpack.c.l.b16 %v4139
      %v4367 = vunpack.c.h.b16 %v4139
      %v4368 = vunpack.c.l.b16 %v4140
      %v4369 = vunpack.c.h.b16 %v4140
      %v4370 = vunpack.c.l.b16 %v4141
      %v4371 = vunpack.c.h.b16 %v4141
      %v4372 = vunpack.c.l.b16 %v4142
      %v4373 = vunpack.c.h.b16 %v4142
      %v4374 = vunpack.c.l.b16 %v4143
      %v4375 = vunpack.c.h.b16 %v4143
      %v4376 = vunpack.c.l.b16 %v4144
      %v4377 = vunpack.c.h.b16 %v4144
      %v4378 = vunpack.c.l.b16 %v4145
      %v4379 = vunpack.c.h.b16 %v4145
      %v4380 = vunpack.c.l.b16 %v4146
      %v4381 = vunpack.c.h.b16 %v4146
      %v4382 = vunpack.c.l.b16 %v4147
      %v4383 = vunpack.c.h.b16 %v4147
      %v4384 = vunpack.c.l.b16 %v4148
      %v4385 = vunpack.c.h.b16 %v4148
      %v4386 = vunpack.c.l.b16 %v4149
      %v4387 = vunpack.c.h.b16 %v4149
      %v4388 = vunpack.c.l.b16 %v4150
      %v4389 = vunpack.c.h.b16 %v4150
      %v4390 = vunpack.c.l.b16 %v4151
      %v4391 = vunpack.c.h.b16 %v4151
      %v4392 = vunpack.c.l.b16 %v4152
      %v4393 = vunpack.c.h.b16 %v4152
      %v4394 = vunpack.c.l.b16 %v4153
      %v4395 = vunpack.c.h.b16 %v4153
      %v4396 = vunpack.c.l.b16 %v4154
      %v4397 = vunpack.c.h.b16 %v4154
      %v4398 = vunpack.c.l.b16 %v4155
      %v4399 = vunpack.c.h.b16 %v4155
      %v4400 = vunpack.c.l.b16 %v4156
      %v4401 = vunpack.c.h.b16 %v4156
      %v4402 = vunpack.c.l.b16 %v4157
      %v4403 = vunpack.c.h.b16 %v4157
      %v4404 = vunpack.c.l.b16 %v4158
      %v4405 = vunpack.c.h.b16 %v4158
      %v4406 = vunpack.c.l.b16 %v4159
      %v4407 = vunpack.c.h.b16 %v4159
      %v4408 = vunpack.c.l.b16 %v4160
      %v4409 = vunpack.c.h.b16 %v4160
      %v4410 = vunpack.c.l.b16 %v4161
      %v4411 = vunpack.c.h.b16 %v4161
      %v4412 = vunpack.c.l.b16 %v4162
      %v4413 = vunpack.c.h.b16 %v4162
      %v4414 = vunpack.c.l.b16 %v4163
      %v4415 = vunpack.c.h.b16 %v4163
      %v4416 = vunpack.c.l.b16 %v4164
      %v4417 = vunpack.c.h.b16 %v4164
      %v4418 = vunpack.c.l.b16 %v4165
      %v4419 = vunpack.c.h.b16 %v4165
      %v4420 = vunpack.c.l.b16 %v4166
      %v4421 = vunpack.c.h.b16 %v4166
      %v4422 = vunpack.c.l.b16 %v4167
      %v4423 = vunpack.c.h.b16 %v4167
      %v4424 = vunpack.c.l.b16 %v4168
      %v4425 = vunpack.c.h.b16 %v4168
      %v4426 = vunpack.c.l.b16 %v4169
      %v4427 = vunpack.c.h.b16 %v4169
      %v4428 = vunpack.c.l.b16 %v4170
      %v4429 = vunpack.c.h.b16 %v4170
      %v4430 = vunpack.c.l.b16 %v4171
      %v4431 = vunpack.c.h.b16 %v4171
      %v4432 = vunpack.c.l.b16 %v4172
      %v4433 = vunpack.c.h.b16 %v4172
      %v4434 = vunpack.c.l.b16 %v4173
      %v4435 = vunpack.c.h.b16 %v4173
      %v4436 = vunpack.c.l.b16 %v4174
      %v4437 = vunpack.c.h.b16 %v4174
      %v4438 = vunpack.c.l.b16 %v4175
      %v4439 = vunpack.c.h.b16 %v4175
      %v4440 = vunpack.c.l.b16 %v4176
      %v4441 = vunpack.c.h.b16 %v4176
      %v4442 = vunpack.c.l.b16 %v4177
      %v4443 = vunpack.c.h.b16 %v4177
      %v4444 = vunpack.c.l.b16 %v4178
      %v4445 = vunpack.c.h.b16 %v4178
      %v4446 = vunpack.c.l.b16 %v4179
      %v4447 = vunpack.c.h.b16 %v4179
      %v4448 = vunpack.c.l.b16 %v4180
      %v4449 = vunpack.c.h.b16 %v4180
      %v4450 = vunpack.c.l.b16 %v4181
      %v4451 = vunpack.c.h.b16 %v4181
      %v4452 = vunpack.c.l.b16 %v4182
      %v4453 = vunpack.c.h.b16 %v4182
      %v4454 = vunpack.c.l.b16 %v4183
      %v4455 = vunpack.c.h.b16 %v4183
      %v4456 = vunpack.c.l.b16 %v4184
      %v4457 = vunpack.c.h.b16 %v4184
      %v4458 = vunpack.c.l.b16 %v4185
      %v4459 = vunpack.c.h.b16 %v4185
      %v4460 = vunpack.c.l.b16 %v4186
      %v4461 = vunpack.c.h.b16 %v4186
      %v4462 = vunpack.c.l.b16 %v4187
      %v4463 = vunpack.c.h.b16 %v4187
      %v4464 = vunpack.c.l.b16 %v4188
      %v4465 = vunpack.c.h.b16 %v4188
      %v4466 = vunpack.c.l.b16 %v4189
      %v4467 = vunpack.c.h.b16 %v4189
      %v4468 = vunpack.c.l.b16 %v4190
      %v4469 = vunpack.c.h.b16 %v4190
      %v4470 = vunpack.c.l.b16 %v4191
      %v4471 = vunpack.c.h.b16 %v4191
      %v4472 = vunpack.c.l.b16 %v4192
      %v4473 = vunpack.c.h.b16 %v4192
      %v4474 = vunpack.c.l.b16 %v4193
      %v4475 = vunpack.c.h.b16 %v4193
      %v4476 = vunpack.c.l.b16 %v4194
      %v4477 = vunpack.c.h.b16 %v4194
      %v4478 = vunpack.c.l.b16 %v4195
      %v4479 = vunpack.c.h.b16 %v4195
      %v4480 = vunpack.c.l.b16 %v4196
      %v4481 = vunpack.c.h.b16 %v4196
      %v4482 = vunpack.c.l.b16 %v4197
      %v4483 = vunpack.c.h.b16 %v4197
      %v4484 = vunpack.c.l.b16 %v4198
      %v4485 = vunpack.c.h.b16 %v4198
      %v4486 = vunpack.c.l.b16 %v4199
      %v4487 = vunpack.c.h.b16 %v4199
      %v4488 = vunpack.c.l.b16 %v4200
      %v4489 = vunpack.c.h.b16 %v4200
      %v4490 = vunpack.c.l.b16 %v4201
      %v4491 = vunpack.c.h.b16 %v4201
      %v4492 = vunpack.c.l.b16 %v4202
      %v4493 = vunpack.c.h.b16 %v4202
      %v4494 = vunpack.c.l.b16 %v4203
      %v4495 = vunpack.c.h.b16 %v4203
      %v4496 = vunpack.c.l.b16 %v4204
      %v4497 = vunpack.c.h.b16 %v4204
      %v4498 = vunpack.c.l.b16 %v4205
      %v4499 = vunpack.c.h.b16 %v4205
      %v4500 = vpack.c.b16 %v4310, %v4308
      %v4501 = vpack.c.b16 %v4311, %v4309
      %v4502 = vpack.c.b16 %v4314, %v4312
      %v4503 = vpack.c.b16 %v4315, %v4313
      %v4504 = vpack.c.b16 %v4318, %v4316
      %v4505 = vpack.c.b16 %v4319, %v4317
      %v4506 = vpack.c.b16 %v4322, %v4320
      %v4507 = vpack.c.b16 %v4323, %v4321
      %v4508 = vpack.c.b16 %v4326, %v4324
      %v4509 = vpack.c.b16 %v4327, %v4325
      %v4510 = vpack.c.b16 %v4330, %v4328
      %v4511 = vpack.c.b16 %v4331, %v4329
      %v4512 = vpack.c.b16 %v4334, %v4332
      %v4513 = vpack.c.b16 %v4335, %v4333
      %v4514 = vpack.c.b16 %v4338, %v4336
      %v4515 = vpack.c.b16 %v4339, %v4337
      %v4516 = vpack.c.b16 %v4342, %v4340
      %v4517 = vpack.c.b16 %v4343, %v4341
      %v4518 = vpack.c.b16 %v4346, %v4344
      %v4519 = vpack.c.b16 %v4347, %v4345
      %v4520 = vpack.c.b16 %v4350, %v4348
      %v4521 = vpack.c.b16 %v4351, %v4349
      %v4522 = vpack.c.b16 %v4354, %v4352
      %v4523 = vpack.c.b16 %v4355, %v4353
      %v4524 = vpack.c.b16 %v4358, %v4356
      %v4525 = vpack.c.b16 %v4359, %v4357
      %v4526 = vpack.c.b16 %v4362, %v4360
      %v4527 = vpack.c.b16 %v4363, %v4361
      %v4528 = vpack.c.b16 %v4366, %v4364
      %v4529 = vpack.c.b16 %v4367, %v4365
      %v4530 = vpack.c.b16 %v4370, %v4368
      %v4531 = vpack.c.b16 %v4371, %v4369
      %v4532 = vpack.c.b16 %v4374, %v4372
      %v4533 = vpack.c.b16 %v4375, %v4373
      %v4534 = vpack.c.b16 %v4378, %v4376
      %v4535 = vpack.c.b16 %v4379, %v4377
      %v4536 = vpack.c.b16 %v4382, %v4380
      %v4537 = vpack.c.b16 %v4383, %v4381
      %v4538 = vpack.c.b16 %v4386, %v4384
      %v4539 = vpack.c.b16 %v4387, %v4385
      %v4540 = vpack.c.b16 %v4390, %v4388
      %v4541 = vpack.c.b16 %v4391, %v4389
      %v4542 = vpack.c.b16 %v4394, %v4392
      %v4543 = vpack.c.b16 %v4395, %v4393
      %v4544 = vpack.c.b16 %v4398, %v4396
      %v4545 = vpack.c.b16 %v4399, %v4397
      %v4546 = vpack.c.b16 %v4402, %v4400
      %v4547 = vpack.c.b16 %v4403, %v4401
      %v4548 = vpack.c.b16 %v4406, %v4404
      %v4549 = vpack.c.b16 %v4407, %v4405
      %v4550 = vpack.c.b16 %v4410, %v4408
      %v4551 = vpack.c.b16 %v4411, %v4409
      %v4552 = vpack.c.b16 %v4414, %v4412
      %v4553 = vpack.c.b16 %v4415, %v4413
      %v4554 = vpack.c.b16 %v4418, %v4416
      %v4555 = vpack.c.b16 %v4419, %v4417
      %v4556 = vpack.c.b16 %v4422, %v4420
      %v4557 = vpack.c.b16 %v4423, %v4421
      %v4558 = vpack.c.b16 %v4426, %v4424
      %v4559 = vpack.c.b16 %v4427, %v4425
      %v4560 = vpack.c.b16 %v4430, %v4428
      %v4561 = vpack.c.b16 %v4431, %v4429
      %v4562 = vpack.c.b16 %v4434, %v4432
      %v4563 = vpack.c.b16 %v4435, %v4433
      %v4564 = vpack.c.b16 %v4438, %v4436
      %v4565 = vpack.c.b16 %v4439, %v4437
      %v4566 = vpack.c.b16 %v4442, %v4440
      %v4567 = vpack.c.b16 %v4443, %v4441
      %v4568 = vpack.c.b16 %v4446, %v4444
      %v4569 = vpack.c.b16 %v4447, %v4445
      %v4570 = vpack.c.b16 %v4450, %v4448
      %v4571 = vpack.c.b16 %v4451, %v4449
      %v4572 = vpack.c.b16 %v4454, %v4452
      %v4573 = vpack.c.b16 %v4455, %v4453
      %v4574 = vpack.c.b16 %v4458, %v4456
      %v4575 = vpack.c.b16 %v4459, %v4457
      %v4576 = vpack.c.b16 %v4462, %v4460
      %v4577 = vpack.c.b16 %v4463, %v4461
      %v4578 = vpack.c.b16 %v4466, %v4464
      %v4579 = vpack.c.b16 %v4467, %v4465
      %v4580 = vpack.c.b16 %v4470, %v4468
      %v4581 = vpack.c.b16 %v4471, %v4469
      %v4582 = vpack.c.b16 %v4474, %v4472
      %v4583 = vpack.c.b16 %v4475, %v4473
      %v4584 = vpack.c.b16 %v4478, %v4476
      %v4585 = vpack.c.b16 %v4479, %v4477
      %v4586 = vpack.c.b16 %v4482, %v4480
      %v4587 = vpack.c.b16 %v4483, %v4481
      %v4588 = vpack.c.b16 %v4486, %v4484
      %v4589 = vpack.c.b16 %v4487, %v4485
      %v4590 = vpack.c.b16 %v4490, %v4488
      %v4591 = vpack.c.b16 %v4491, %v4489
      %v4592 = vpack.c.b16 %v4494, %v4492
      %v4593 = vpack.c.b16 %v4495, %v4493
      %v4594 = vpack.c.b16 %v4498, %v4496
      %v4595 = vpack.c.b16 %v4499, %v4497
      %4692 = vmatpush.bf16.msra.mxu0 %v4514
      %4693 = vmatpush.bf16.msra.mxu0 %v4512
      %4694 = vmatpush.bf16.msra.mxu0 %v4510
      %4695 = vmatpush.bf16.msra.mxu0 %v4508
      %4696 = vmatpush.bf16.msra.mxu0 %v4506
      %4697 = vmatpush.bf16.msra.mxu0 %v4504
      %4698 = vmatpush.bf16.msra.mxu0 %v4502
      %4699 = vmatpush.bf16.msra.mxu0 %v4500
      %4700 = vmatmul.bf16.gmra.mxu0 %v4098
      %v4701 = vpop.f32.mrf.mxu0
      %v4702 = vadd.f32 %v4208, %v4701
      %v4703 = vpop.f32.mrf.mxu0
      %v4704 = vadd.f32 %v4208, %v4703
      %4705 = vmatmul.bf16.gmra.mxu0 %v4104
      %v4706 = vpop.f32.mrf.mxu0
      %v4707 = vadd.f32 %v4208, %v4706
      %v4708 = vpop.f32.mrf.mxu0
      %v4709 = vadd.f32 %v4208, %v4708
      %4710 = vdwg.mxu0
      %4711 = vmatpush.bf16.msra.mxu0 %v4530
      %4712 = vmatpush.bf16.msra.mxu0 %v4528
      %4713 = vmatpush.bf16.msra.mxu0 %v4526
      %4714 = vmatpush.bf16.msra.mxu0 %v4524
      %4715 = vmatpush.bf16.msra.mxu0 %v4522
      %4716 = vmatpush.bf16.msra.mxu0 %v4520
      %4717 = vmatpush.bf16.msra.mxu0 %v4518
      %4718 = vmatpush.bf16.msra.mxu0 %v4516
      %4719 = vmatmul.bf16.gmra.mxu0 %v4099
      %v4720 = vpop.f32.mrf.mxu0
      %v4721 = vadd.f32 %v4702, %v4720
      %v4722 = vpop.f32.mrf.mxu0
      %v4723 = vadd.f32 %v4704, %v4722
      %4724 = vmatmul.bf16.gmra.mxu0 %v4105
      %v4725 = vpop.f32.mrf.mxu0
      %v4726 = vadd.f32 %v4707, %v4725
      %v4727 = vpop.f32.mrf.mxu0
      %v4728 = vadd.f32 %v4709, %v4727
      %4729 = vdwg.mxu0
      %4730 = vmatpush.bf16.msra.mxu0 %v4546
      %4731 = vmatpush.bf16.msra.mxu0 %v4544
      %4732 = vmatpush.bf16.msra.mxu0 %v4542
      %4733 = vmatpush.bf16.msra.mxu0 %v4540
      %4734 = vmatpush.bf16.msra.mxu0 %v4538
      %4735 = vmatpush.bf16.msra.mxu0 %v4536
      %4736 = vmatpush.bf16.msra.mxu0 %v4534
      %4737 = vmatpush.bf16.msra.mxu0 %v4532
      %4738 = vmatmul.bf16.gmra.mxu0 %v4100
      %v4739 = vpop.f32.mrf.mxu0
      %v4740 = vadd.f32 %v4721, %v4739
      %v4741 = vpop.f32.mrf.mxu0
      %v4742 = vadd.f32 %v4723, %v4741
      %4743 = vmatmul.bf16.gmra.mxu0 %v4106
      %v4744 = vpop.f32.mrf.mxu0
      %v4745 = vadd.f32 %v4726, %v4744
      %v4746 = vpop.f32.mrf.mxu0
      %v4747 = vadd.f32 %v4728, %v4746
      %4748 = vdwg.mxu0
      %4749 = vmatpush.bf16.msra.mxu0 %v4562
      %4750 = vmatpush.bf16.msra.mxu0 %v4560
      %4751 = vmatpush.bf16.msra.mxu0 %v4558
      %4752 = vmatpush.bf16.msra.mxu0 %v4556
      %4753 = vmatpush.bf16.msra.mxu0 %v4554
      %4754 = vmatpush.bf16.msra.mxu0 %v4552
      %4755 = vmatpush.bf16.msra.mxu0 %v4550
      %4756 = vmatpush.bf16.msra.mxu0 %v4548
      %4757 = vmatmul.bf16.gmra.mxu0 %v4101
      %v4758 = vpop.f32.mrf.mxu0
      %v4759 = vadd.f32 %v4740, %v4758
      %v4760 = vpop.f32.mrf.mxu0
      %v4761 = vadd.f32 %v4742, %v4760
      %4762 = vmatmul.bf16.gmra.mxu0 %v4107
      %v4763 = vpop.f32.mrf.mxu0
      %v4764 = vadd.f32 %v4745, %v4763
      %v4765 = vpop.f32.mrf.mxu0
      %v4766 = vadd.f32 %v4747, %v4765
      %4767 = vdwg.mxu0
      %4768 = vmatpush.bf16.msra.mxu0 %v4578
      %4769 = vmatpush.bf16.msra.mxu0 %v4576
      %4770 = vmatpush.bf16.msra.mxu0 %v4574
      %4771 = vmatpush.bf16.msra.mxu0 %v4572
      %4772 = vmatpush.bf16.msra.mxu0 %v4570
      %4773 = vmatpush.bf16.msra.mxu0 %v4568
      %4774 = vmatpush.bf16.msra.mxu0 %v4566
      %4775 = vmatpush.bf16.msra.mxu0 %v4564
      %4776 = vmatmul.bf16.gmra.mxu0 %v4102
      %v4777 = vpop.f32.mrf.mxu0
      %v4778 = vadd.f32 %v4759, %v4777
      %v4779 = vpop.f32.mrf.mxu0
      %v4780 = vadd.f32 %v4761, %v4779
      %4781 = vmatmul.bf16.gmra.mxu0 %v4108
      %v4782 = vpop.f32.mrf.mxu0
      %v4783 = vadd.f32 %v4764, %v4782
      %v4784 = vpop.f32.mrf.mxu0
      %v4785 = vadd.f32 %v4766, %v4784
      %4786 = vdwg.mxu0
      %4787 = vmatpush.bf16.msra.mxu0 %v4594
      %4788 = vmatpush.bf16.msra.mxu0 %v4592
      %4789 = vmatpush.bf16.msra.mxu0 %v4590
      %4790 = vmatpush.bf16.msra.mxu0 %v4588
      %4791 = vmatpush.bf16.msra.mxu0 %v4586
      %4792 = vmatpush.bf16.msra.mxu0 %v4584
      %4793 = vmatpush.bf16.msra.mxu0 %v4582
      %4794 = vmatpush.bf16.msra.mxu0 %v4580
      %4795 = vmatmul.bf16.gmra.mxu0 %v4103
      %v4796 = vpop.f32.mrf.mxu0
      %v4797 = vadd.f32 %v4778, %v4796
      %v4798 = vpop.f32.mrf.mxu0
      %v4799 = vadd.f32 %v4780, %v4798
      %4800 = vmatmul.bf16.gmra.mxu0 %v4109
      %v4801 = vpop.f32.mrf.mxu0
      %v4802 = vadd.f32 %v4783, %v4801
      %v4803 = vpop.f32.mrf.mxu0
      %v4804 = vadd.f32 %v4785, %v4803
      %4805 = vdwg.mxu0
      %4806 = vmatpush.bf16.msra.mxu0 %v4515
      %4807 = vmatpush.bf16.msra.mxu0 %v4513
      %4808 = vmatpush.bf16.msra.mxu0 %v4511
      %4809 = vmatpush.bf16.msra.mxu0 %v4509
      %4810 = vmatpush.bf16.msra.mxu0 %v4507
      %4811 = vmatpush.bf16.msra.mxu0 %v4505
      %4812 = vmatpush.bf16.msra.mxu0 %v4503
      %4813 = vmatpush.bf16.msra.mxu0 %v4501
      %4814 = vmatmul.bf16.gmra.mxu0 %v4098
      %v4815 = vpop.f32.mrf.mxu0
      %v4816 = vadd.f32 %v4209, %v4815
      %v4817 = vpop.f32.mrf.mxu0
      %v4818 = vadd.f32 %v4209, %v4817
      %4819 = vmatmul.bf16.gmra.mxu0 %v4104
      %v4820 = vpop.f32.mrf.mxu0
      %v4821 = vadd.f32 %v4209, %v4820
      %v4822 = vpop.f32.mrf.mxu0
      %v4823 = vadd.f32 %v4209, %v4822
      %4824 = vdwg.mxu0
      %4825 = vmatpush.bf16.msra.mxu0 %v4531
      %4826 = vmatpush.bf16.msra.mxu0 %v4529
      %4827 = vmatpush.bf16.msra.mxu0 %v4527
      %4828 = vmatpush.bf16.msra.mxu0 %v4525
      %4829 = vmatpush.bf16.msra.mxu0 %v4523
      %4830 = vmatpush.bf16.msra.mxu0 %v4521
      %4831 = vmatpush.bf16.msra.mxu0 %v4519
      %4832 = vmatpush.bf16.msra.mxu0 %v4517
      %4833 = vmatmul.bf16.gmra.mxu0 %v4099
      %v4834 = vpop.f32.mrf.mxu0
      %v4835 = vadd.f32 %v4816, %v4834
      %v4836 = vpop.f32.mrf.mxu0
      %v4837 = vadd.f32 %v4818, %v4836
      %4838 = vmatmul.bf16.gmra.mxu0 %v4105
      %v4839 = vpop.f32.mrf.mxu0
      %v4840 = vadd.f32 %v4821, %v4839
      %v4841 = vpop.f32.mrf.mxu0
      %v4842 = vadd.f32 %v4823, %v4841
      %4843 = vdwg.mxu0
      %4844 = vmatpush.bf16.msra.mxu0 %v4547
      %4845 = vmatpush.bf16.msra.mxu0 %v4545
      %4846 = vmatpush.bf16.msra.mxu0 %v4543
      %4847 = vmatpush.bf16.msra.mxu0 %v4541
      %4848 = vmatpush.bf16.msra.mxu0 %v4539
      %4849 = vmatpush.bf16.msra.mxu0 %v4537
      %4850 = vmatpush.bf16.msra.mxu0 %v4535
      %4851 = vmatpush.bf16.msra.mxu0 %v4533
      %4852 = vmatmul.bf16.gmra.mxu0 %v4100
      %v4853 = vpop.f32.mrf.mxu0
      %v4854 = vadd.f32 %v4835, %v4853
      %v4855 = vpop.f32.mrf.mxu0
      %v4856 = vadd.f32 %v4837, %v4855
      %4857 = vmatmul.bf16.gmra.mxu0 %v4106
      %v4858 = vpop.f32.mrf.mxu0
      %v4859 = vadd.f32 %v4840, %v4858
      %v4860 = vpop.f32.mrf.mxu0
      %v4861 = vadd.f32 %v4842, %v4860
      %4862 = vdwg.mxu0
      %4863 = vmatpush.bf16.msra.mxu0 %v4563
      %4864 = vmatpush.bf16.msra.mxu0 %v4561
      %4865 = vmatpush.bf16.msra.mxu0 %v4559
      %4866 = vmatpush.bf16.msra.mxu0 %v4557
      %4867 = vmatpush.bf16.msra.mxu0 %v4555
      %4868 = vmatpush.bf16.msra.mxu0 %v4553
      %4869 = vmatpush.bf16.msra.mxu0 %v4551
      %4870 = vmatpush.bf16.msra.mxu0 %v4549
      %4871 = vmatmul.bf16.gmra.mxu0 %v4101
      %v4872 = vpop.f32.mrf.mxu0
      %v4873 = vadd.f32 %v4854, %v4872
      %v4874 = vpop.f32.mrf.mxu0
      %v4875 = vadd.f32 %v4856, %v4874
      %4876 = vmatmul.bf16.gmra.mxu0 %v4107
      %v4877 = vpop.f32.mrf.mxu0
      %v4878 = vadd.f32 %v4859, %v4877
      %v4879 = vpop.f32.mrf.mxu0
      %v4880 = vadd.f32 %v4861, %v4879
      %4881 = vdwg.mxu0
      %4882 = vmatpush.bf16.msra.mxu0 %v4579
      %4883 = vmatpush.bf16.msra.mxu0 %v4577
      %4884 = vmatpush.bf16.msra.mxu0 %v4575
      %4885 = vmatpush.bf16.msra.mxu0 %v4573
      %4886 = vmatpush.bf16.msra.mxu0 %v4571
      %4887 = vmatpush.bf16.msra.mxu0 %v4569
      %4888 = vmatpush.bf16.msra.mxu0 %v4567
      %4889 = vmatpush.bf16.msra.mxu0 %v4565
      %4890 = vmatmul.bf16.gmra.mxu0 %v4102
      %v4891 = vpop.f32.mrf.mxu0
      %v4892 = vadd.f32 %v4873, %v4891
      %v4893 = vpop.f32.mrf.mxu0
      %v4894 = vadd.f32 %v4875, %v4893
      %4895 = vmatmul.bf16.gmra.mxu0 %v4108
      %v4896 = vpop.f32.mrf.mxu0
      %v4897 = vadd.f32 %v4878, %v4896
      %v4898 = vpop.f32.mrf.mxu0
      %v4899 = vadd.f32 %v4880, %v4898
      %4900 = vdwg.mxu0
      %4901 = vmatpush.bf16.msra.mxu0 %v4595
      %4902 = vmatpush.bf16.msra.mxu0 %v4593
      %4903 = vmatpush.bf16.msra.mxu0 %v4591
      %4904 = vmatpush.bf16.msra.mxu0 %v4589
      %4905 = vmatpush.bf16.msra.mxu0 %v4587
      %4906 = vmatpush.bf16.msra.mxu0 %v4585
      %4907 = vmatpush.bf16.msra.mxu0 %v4583
      %4908 = vmatpush.bf16.msra.mxu0 %v4581
      %4909 = vmatmul.bf16.gmra.mxu0 %v4103
      %v4910 = vpop.f32.mrf.mxu0
      %v4911 = vadd.f32 %v4892, %v4910
      %v4912 = vpop.f32.mrf.mxu0
      %v4913 = vadd.f32 %v4894, %v4912
      %4914 = vmatmul.bf16.gmra.mxu0 %v4109
      %v4915 = vpop.f32.mrf.mxu0
      %v4916 = vadd.f32 %v4897, %v4915
      %v4917 = vpop.f32.mrf.mxu0
      %v4918 = vadd.f32 %v4899, %v4917
      %4919 = vdwg.mxu0
      %v4920 = vadd.f32 %v4797, %v3558
      %v4921 = vadd.f32 %v4911, %v3577
      %v4922 = vadd.f32 %v4799, %v3560
      %v4923 = vadd.f32 %v4913, %v3579
      %v4924 = vadd.f32 %v4802, %v3563
      %v4925 = vadd.f32 %v4916, %v3582
      %v4926 = vadd.f32 %v4804, %v3565
      %v4927 = vadd.f32 %v4918, %v3584
      %v4928 = vmax.f32 %v4920, 0.0
      %v4929 = vmax.f32 %v4921, 0.0
      %v4930 = vmax.f32 %v4922, 0.0
      %v4931 = vmax.f32 %v4923, 0.0
      %v4932 = vmax.f32 %v4924, 0.0
      %v4933 = vmax.f32 %v4925, 0.0
      %v4934 = vmax.f32 %v4926, 0.0
      %v4935 = vmax.f32 %v4927, 0.0
      %v4936 = vmul.f32 %v4928, %v742
      %v4937 = vmul.f32 %v4929, %v742
      %v4938 = vmul.f32 %v4930, %v743
      %v4939 = vmul.f32 %v4931, %v743
      %v4940 = vmul.f32 %v4932, %v744
      %v4941 = vmul.f32 %v4933, %v744
      %v4942 = vmul.f32 %v4934, %v745
      %v4943 = vmul.f32 %v4935, %v745
      %v4952 = vrot.slane %v4936, 7
      %v4953 = vrot.slane %v4937, 7
      %v4954 = vrot.slane %v4938, 7
      %v4955 = vsel %vm2852, %v4952, %v4954
      %v4956 = vrot.slane %v4939, 7
      %v4957 = vsel %vm2852, %v4953, %v4956
      %v4958 = vrot.slane %v4940, 7
      %v4959 = vsel %vm2852, %v4954, %v4958
      %v4960 = vrot.slane %v4941, 7
      %v4961 = vsel %vm2852, %v4956, %v4960
      %v4962 = vrot.slane %v4942, 7
      %v4963 = vsel %vm2852, %v4958, %v4962
      %v4964 = vrot.slane %v4943, 7
      %v4965 = vsel %vm2852, %v4960, %v4964
      %v4974 = vsel %vm2852, 0.0, %v4952
      %v4975 = vsel %vm2852, 0.0, %v4953
      %v4976 = vrot.slane %v4936, 1
      %v4977 = vrot.slane %v4938, 1
      %v4978 = vsel %vm2865, %v4976, %v4977
      %v4979 = vrot.slane %v4937, 1
      %v4980 = vrot.slane %v4939, 1
      %v4981 = vsel %vm2865, %v4979, %v4980
      %v4982 = vrot.slane %v4940, 1
      %v4983 = vsel %vm2865, %v4977, %v4982
      %v4984 = vrot.slane %v4941, 1
      %v4985 = vsel %vm2865, %v4980, %v4984
      %v4986 = vrot.slane %v4942, 1
      %v4987 = vsel %vm2865, %v4982, %v4986
      %v4988 = vrot.slane %v4943, 1
      %v4989 = vsel %vm2865, %v4984, %v4988
      %v4998 = vsel %vm2865, %v4986, 0.0
      %v4999 = vsel %vm2865, %v4988, 0.0
      %v5000 = vpack.c.bf16 %v4955, %v4974
      %v5001 = vpack.c.bf16 %v4957, %v4975
      %v5002 = vpack.c.bf16 %v4938, %v4936
      %v5003 = vpack.c.bf16 %v4939, %v4937
      %v5004 = vpack.c.bf16 %v4983, %v4978
      %v5005 = vpack.c.bf16 %v4985, %v4981
      %v5006 = vpack.c.bf16 %v4963, %v4959
      %v5007 = vpack.c.bf16 %v4965, %v4961
      %v5008 = vpack.c.bf16 %v4942, %v4940
      %v5009 = vpack.c.bf16 %v4943, %v4941
      %v5010 = vpack.c.bf16 %v4998, %v4987
      %v5011 = vpack.c.bf16 %v4999, %v4989
      %v5012 = vld [vmem:[%s13] sm:$0xff]
      %v5013 = vld [vmem:[%s13 + $0x8] sm:$0xff]
      %v5014 = vld [vmem:[%s13 + $0x10] sm:$0xff]
      %v5015 = vld [vmem:[%s13 + $0x18] sm:$0xff]
      %v5016 = vld [vmem:[%s13 + $0x20] sm:$0xff]
      %v5017 = vld [vmem:[%s13 + $0x28] sm:$0xff]
      %v5018 = vld [vmem:[%s13 + $0x30] sm:$0xff]
      %v5019 = vld [vmem:[%s13 + $0x38] sm:$0xff]
      %v5020 = vld [vmem:[%s13 + $0x40] sm:$0xff]
      %v5021 = vld [vmem:[%s13 + $0x48] sm:$0xff]
      %v5022 = vld [vmem:[%s13 + $0x50] sm:$0xff]
      %v5023 = vld [vmem:[%s13 + $0x58] sm:$0xff]
      %v5024 = vld [vmem:[%s13 + $0x60] sm:$0xff]
      %v5025 = vld [vmem:[%s13 + $0x68] sm:$0xff]
      %v5026 = vld [vmem:[%s13 + $0x70] sm:$0xff]
      %v5027 = vld [vmem:[%s13 + $0x78] sm:$0xff]
      %v5028 = vld [vmem:[%s13 + $0x80] sm:$0xff]
      %v5029 = vld [vmem:[%s13 + $0x88] sm:$0xff]
      %v5030 = vld [vmem:[%s13 + $0x90] sm:$0xff]
      %v5031 = vld [vmem:[%s13 + $0x98] sm:$0xff]
      %v5032 = vld [vmem:[%s13 + $0xa0] sm:$0xff]
      %v5033 = vld [vmem:[%s13 + $0xa8] sm:$0xff]
      %v5034 = vld [vmem:[%s13 + $0xb0] sm:$0xff]
      %v5035 = vld [vmem:[%s13 + $0xb8] sm:$0xff]
      %v5036 = vld [vmem:[%s13 + $0xc0] sm:$0xff]
      %v5037 = vld [vmem:[%s13 + $0xc8] sm:$0xff]
      %v5038 = vld [vmem:[%s13 + $0xd0] sm:$0xff]
      %v5039 = vld [vmem:[%s13 + $0xd8] sm:$0xff]
      %v5040 = vld [vmem:[%s13 + $0xe0] sm:$0xff]
      %v5041 = vld [vmem:[%s13 + $0xe8] sm:$0xff]
      %v5042 = vld [vmem:[%s13 + $0xf0] sm:$0xff]
      %v5043 = vld [vmem:[%s13 + $0xf8] sm:$0xff]
      %v5044 = vld [vmem:[%s13 + $0x100] sm:$0xff]
      %v5045 = vld [vmem:[%s13 + $0x108] sm:$0xff]
      %v5046 = vld [vmem:[%s13 + $0x110] sm:$0xff]
      %v5047 = vld [vmem:[%s13 + $0x118] sm:$0xff]
      %v5048 = vld [vmem:[%s13 + $0x120] sm:$0xff]
      %v5049 = vld [vmem:[%s13 + $0x128] sm:$0xff]
      %v5050 = vld [vmem:[%s13 + $0x130] sm:$0xff]
      %v5051 = vld [vmem:[%s13 + $0x138] sm:$0xff]
      %v5052 = vld [vmem:[%s13 + $0x140] sm:$0xff]
      %v5053 = vld [vmem:[%s13 + $0x148] sm:$0xff]
      %v5054 = vld [vmem:[%s13 + $0x150] sm:$0xff]
      %v5055 = vld [vmem:[%s13 + $0x158] sm:$0xff]
      %v5056 = vld [vmem:[%s13 + $0x160] sm:$0xff]
      %v5057 = vld [vmem:[%s13 + $0x168] sm:$0xff]
      %v5058 = vld [vmem:[%s13 + $0x170] sm:$0xff]
      %v5059 = vld [vmem:[%s13 + $0x178] sm:$0xff]
      %v5060 = vld [vmem:[%s13 + $0x180] sm:$0xff]
      %v5061 = vld [vmem:[%s13 + $0x188] sm:$0xff]
      %v5062 = vld [vmem:[%s13 + $0x190] sm:$0xff]
      %v5063 = vld [vmem:[%s13 + $0x198] sm:$0xff]
      %v5064 = vld [vmem:[%s13 + $0x1a0] sm:$0xff]
      %v5065 = vld [vmem:[%s13 + $0x1a8] sm:$0xff]
      %v5066 = vld [vmem:[%s13 + $0x1b0] sm:$0xff]
      %v5067 = vld [vmem:[%s13 + $0x1b8] sm:$0xff]
      %v5068 = vld [vmem:[%s13 + $0x1c0] sm:$0xff]
      %v5069 = vld [vmem:[%s13 + $0x1c8] sm:$0xff]
      %v5070 = vld [vmem:[%s13 + $0x1d0] sm:$0xff]
      %v5071 = vld [vmem:[%s13 + $0x1d8] sm:$0xff]
      %v5072 = vld [vmem:[%s13 + $0x1e0] sm:$0xff]
      %v5073 = vld [vmem:[%s13 + $0x1e8] sm:$0xff]
      %v5074 = vld [vmem:[%s13 + $0x1f0] sm:$0xff]
      %v5075 = vld [vmem:[%s13 + $0x1f8] sm:$0xff]
      %v5076 = vld [vmem:[%s13 + $0x200] sm:$0xff]
      %v5077 = vld [vmem:[%s13 + $0x208] sm:$0xff]
      %v5078 = vld [vmem:[%s13 + $0x210] sm:$0xff]
      %v5079 = vld [vmem:[%s13 + $0x218] sm:$0xff]
      %v5080 = vld [vmem:[%s13 + $0x220] sm:$0xff]
      %v5081 = vld [vmem:[%s13 + $0x228] sm:$0xff]
      %v5082 = vld [vmem:[%s13 + $0x230] sm:$0xff]
      %v5083 = vld [vmem:[%s13 + $0x238] sm:$0xff]
      %v5084 = vld [vmem:[%s13 + $0x240] sm:$0xff]
      %v5085 = vld [vmem:[%s13 + $0x248] sm:$0xff]
      %v5086 = vld [vmem:[%s13 + $0x250] sm:$0xff]
      %v5087 = vld [vmem:[%s13 + $0x258] sm:$0xff]
      %v5088 = vld [vmem:[%s13 + $0x260] sm:$0xff]
      %v5089 = vld [vmem:[%s13 + $0x268] sm:$0xff]
      %v5090 = vld [vmem:[%s13 + $0x270] sm:$0xff]
      %v5091 = vld [vmem:[%s13 + $0x278] sm:$0xff]
      %v5092 = vld [vmem:[%s13 + $0x280] sm:$0xff]
      %v5093 = vld [vmem:[%s13 + $0x288] sm:$0xff]
      %v5094 = vld [vmem:[%s13 + $0x290] sm:$0xff]
      %v5095 = vld [vmem:[%s13 + $0x298] sm:$0xff]
      %v5096 = vld [vmem:[%s13 + $0x2a0] sm:$0xff]
      %v5097 = vld [vmem:[%s13 + $0x2a8] sm:$0xff]
      %v5098 = vld [vmem:[%s13 + $0x2b0] sm:$0xff]
      %v5099 = vld [vmem:[%s13 + $0x2b8] sm:$0xff]
      %v5100 = vld [vmem:[%s13 + $0x2c0] sm:$0xff]
      %v5101 = vld [vmem:[%s13 + $0x2c8] sm:$0xff]
      %v5102 = vld [vmem:[%s13 + $0x2d0] sm:$0xff]
      %v5103 = vld [vmem:[%s13 + $0x2d8] sm:$0xff]
      %v5104 = vld [vmem:[%s13 + $0x2e0] sm:$0xff]
      %v5105 = vld [vmem:[%s13 + $0x2e8] sm:$0xff]
      %v5106 = vld [vmem:[%s13 + $0x2f0] sm:$0xff]
      %v5107 = vld [vmem:[%s13 + $0x2f8] sm:$0xff]
      %v5108 = vld [vmem:[%s14] sm:$0x3]
      %v5110 = vperm.slane %v5108, 0
      %v5111 = vperm.slane %v5108, 1
      %v5210 = vunpack.c.l.b16 %v5012
      %v5211 = vunpack.c.h.b16 %v5012
      %v5212 = vunpack.c.l.b16 %v5013
      %v5213 = vunpack.c.h.b16 %v5013
      %v5214 = vunpack.c.l.b16 %v5014
      %v5215 = vunpack.c.h.b16 %v5014
      %v5216 = vunpack.c.l.b16 %v5015
      %v5217 = vunpack.c.h.b16 %v5015
      %v5218 = vunpack.c.l.b16 %v5016
      %v5219 = vunpack.c.h.b16 %v5016
      %v5220 = vunpack.c.l.b16 %v5017
      %v5221 = vunpack.c.h.b16 %v5017
      %v5222 = vunpack.c.l.b16 %v5018
      %v5223 = vunpack.c.h.b16 %v5018
      %v5224 = vunpack.c.l.b16 %v5019
      %v5225 = vunpack.c.h.b16 %v5019
      %v5226 = vunpack.c.l.b16 %v5020
      %v5227 = vunpack.c.h.b16 %v5020
      %v5228 = vunpack.c.l.b16 %v5021
      %v5229 = vunpack.c.h.b16 %v5021
      %v5230 = vunpack.c.l.b16 %v5022
      %v5231 = vunpack.c.h.b16 %v5022
      %v5232 = vunpack.c.l.b16 %v5023
      %v5233 = vunpack.c.h.b16 %v5023
      %v5234 = vunpack.c.l.b16 %v5024
      %v5235 = vunpack.c.h.b16 %v5024
      %v5236 = vunpack.c.l.b16 %v5025
      %v5237 = vunpack.c.h.b16 %v5025
      %v5238 = vunpack.c.l.b16 %v5026
      %v5239 = vunpack.c.h.b16 %v5026
      %v5240 = vunpack.c.l.b16 %v5027
      %v5241 = vunpack.c.h.b16 %v5027
      %v5242 = vunpack.c.l.b16 %v5028
      %v5243 = vunpack.c.h.b16 %v5028
      %v5244 = vunpack.c.l.b16 %v5029
      %v5245 = vunpack.c.h.b16 %v5029
      %v5246 = vunpack.c.l.b16 %v5030
      %v5247 = vunpack.c.h.b16 %v5030
      %v5248 = vunpack.c.l.b16 %v5031
      %v5249 = vunpack.c.h.b16 %v5031
      %v5250 = vunpack.c.l.b16 %v5032
      %v5251 = vunpack.c.h.b16 %v5032
      %v5252 = vunpack.c.l.b16 %v5033
      %v5253 = vunpack.c.h.b16 %v5033
      %v5254 = vunpack.c.l.b16 %v5034
      %v5255 = vunpack.c.h.b16 %v5034
      %v5256 = vunpack.c.l.b16 %v5035
      %v5257 = vunpack.c.h.b16 %v5035
      %v5258 = vunpack.c.l.b16 %v5036
      %v5259 = vunpack.c.h.b16 %v5036
      %v5260 = vunpack.c.l.b16 %v5037
      %v5261 = vunpack.c.h.b16 %v5037
      %v5262 = vunpack.c.l.b16 %v5038
      %v5263 = vunpack.c.h.b16 %v5038
      %v5264 = vunpack.c.l.b16 %v5039
      %v5265 = vunpack.c.h.b16 %v5039
      %v5266 = vunpack.c.l.b16 %v5040
      %v5267 = vunpack.c.h.b16 %v5040
      %v5268 = vunpack.c.l.b16 %v5041
      %v5269 = vunpack.c.h.b16 %v5041
      %v5270 = vunpack.c.l.b16 %v5042
      %v5271 = vunpack.c.h.b16 %v5042
      %v5272 = vunpack.c.l.b16 %v5043
      %v5273 = vunpack.c.h.b16 %v5043
      %v5274 = vunpack.c.l.b16 %v5044
      %v5275 = vunpack.c.h.b16 %v5044
      %v5276 = vunpack.c.l.b16 %v5045
      %v5277 = vunpack.c.h.b16 %v5045
      %v5278 = vunpack.c.l.b16 %v5046
      %v5279 = vunpack.c.h.b16 %v5046
      %v5280 = vunpack.c.l.b16 %v5047
      %v5281 = vunpack.c.h.b16 %v5047
      %v5282 = vunpack.c.l.b16 %v5048
      %v5283 = vunpack.c.h.b16 %v5048
      %v5284 = vunpack.c.l.b16 %v5049
      %v5285 = vunpack.c.h.b16 %v5049
      %v5286 = vunpack.c.l.b16 %v5050
      %v5287 = vunpack.c.h.b16 %v5050
      %v5288 = vunpack.c.l.b16 %v5051
      %v5289 = vunpack.c.h.b16 %v5051
      %v5290 = vunpack.c.l.b16 %v5052
      %v5291 = vunpack.c.h.b16 %v5052
      %v5292 = vunpack.c.l.b16 %v5053
      %v5293 = vunpack.c.h.b16 %v5053
      %v5294 = vunpack.c.l.b16 %v5054
      %v5295 = vunpack.c.h.b16 %v5054
      %v5296 = vunpack.c.l.b16 %v5055
      %v5297 = vunpack.c.h.b16 %v5055
      %v5298 = vunpack.c.l.b16 %v5056
      %v5299 = vunpack.c.h.b16 %v5056
      %v5300 = vunpack.c.l.b16 %v5057
      %v5301 = vunpack.c.h.b16 %v5057
      %v5302 = vunpack.c.l.b16 %v5058
      %v5303 = vunpack.c.h.b16 %v5058
      %v5304 = vunpack.c.l.b16 %v5059
      %v5305 = vunpack.c.h.b16 %v5059
      %v5306 = vunpack.c.l.b16 %v5060
      %v5307 = vunpack.c.h.b16 %v5060
      %v5308 = vunpack.c.l.b16 %v5061
      %v5309 = vunpack.c.h.b16 %v5061
      %v5310 = vunpack.c.l.b16 %v5062
      %v5311 = vunpack.c.h.b16 %v5062
      %v5312 = vunpack.c.l.b16 %v5063
      %v5313 = vunpack.c.h.b16 %v5063
      %v5314 = vunpack.c.l.b16 %v5064
      %v5315 = vunpack.c.h.b16 %v5064
      %v5316 = vunpack.c.l.b16 %v5065
      %v5317 = vunpack.c.h.b16 %v5065
      %v5318 = vunpack.c.l.b16 %v5066
      %v5319 = vunpack.c.h.b16 %v5066
      %v5320 = vunpack.c.l.b16 %v5067
      %v5321 = vunpack.c.h.b16 %v5067
      %v5322 = vunpack.c.l.b16 %v5068
      %v5323 = vunpack.c.h.b16 %v5068
      %v5324 = vunpack.c.l.b16 %v5069
      %v5325 = vunpack.c.h.b16 %v5069
      %v5326 = vunpack.c.l.b16 %v5070
      %v5327 = vunpack.c.h.b16 %v5070
      %v5328 = vunpack.c.l.b16 %v5071
      %v5329 = vunpack.c.h.b16 %v5071
      %v5330 = vunpack.c.l.b16 %v5072
      %v5331 = vunpack.c.h.b16 %v5072
      %v5332 = vunpack.c.l.b16 %v5073
      %v5333 = vunpack.c.h.b16 %v5073
      %v5334 = vunpack.c.l.b16 %v5074
      %v5335 = vunpack.c.h.b16 %v5074
      %v5336 = vunpack.c.l.b16 %v5075
      %v5337 = vunpack.c.h.b16 %v5075
      %v5338 = vunpack.c.l.b16 %v5076
      %v5339 = vunpack.c.h.b16 %v5076
      %v5340 = vunpack.c.l.b16 %v5077
      %v5341 = vunpack.c.h.b16 %v5077
      %v5342 = vunpack.c.l.b16 %v5078
      %v5343 = vunpack.c.h.b16 %v5078
      %v5344 = vunpack.c.l.b16 %v5079
      %v5345 = vunpack.c.h.b16 %v5079
      %v5346 = vunpack.c.l.b16 %v5080
      %v5347 = vunpack.c.h.b16 %v5080
      %v5348 = vunpack.c.l.b16 %v5081
      %v5349 = vunpack.c.h.b16 %v5081
      %v5350 = vunpack.c.l.b16 %v5082
      %v5351 = vunpack.c.h.b16 %v5082
      %v5352 = vunpack.c.l.b16 %v5083
      %v5353 = vunpack.c.h.b16 %v5083
      %v5354 = vunpack.c.l.b16 %v5084
      %v5355 = vunpack.c.h.b16 %v5084
      %v5356 = vunpack.c.l.b16 %v5085
      %v5357 = vunpack.c.h.b16 %v5085
      %v5358 = vunpack.c.l.b16 %v5086
      %v5359 = vunpack.c.h.b16 %v5086
      %v5360 = vunpack.c.l.b16 %v5087
      %v5361 = vunpack.c.h.b16 %v5087
      %v5362 = vunpack.c.l.b16 %v5088
      %v5363 = vunpack.c.h.b16 %v5088
      %v5364 = vunpack.c.l.b16 %v5089
      %v5365 = vunpack.c.h.b16 %v5089
      %v5366 = vunpack.c.l.b16 %v5090
      %v5367 = vunpack.c.h.b16 %v5090
      %v5368 = vunpack.c.l.b16 %v5091
      %v5369 = vunpack.c.h.b16 %v5091
      %v5370 = vunpack.c.l.b16 %v5092
      %v5371 = vunpack.c.h.b16 %v5092
      %v5372 = vunpack.c.l.b16 %v5093
      %v5373 = vunpack.c.h.b16 %v5093
      %v5374 = vunpack.c.l.b16 %v5094
      %v5375 = vunpack.c.h.b16 %v5094
      %v5376 = vunpack.c.l.b16 %v5095
      %v5377 = vunpack.c.h.b16 %v5095
      %v5378 = vunpack.c.l.b16 %v5096
      %v5379 = vunpack.c.h.b16 %v5096
      %v5380 = vunpack.c.l.b16 %v5097
      %v5381 = vunpack.c.h.b16 %v5097
      %v5382 = vunpack.c.l.b16 %v5098
      %v5383 = vunpack.c.h.b16 %v5098
      %v5384 = vunpack.c.l.b16 %v5099
      %v5385 = vunpack.c.h.b16 %v5099
      %v5386 = vunpack.c.l.b16 %v5100
      %v5387 = vunpack.c.h.b16 %v5100
      %v5388 = vunpack.c.l.b16 %v5101
      %v5389 = vunpack.c.h.b16 %v5101
      %v5390 = vunpack.c.l.b16 %v5102
      %v5391 = vunpack.c.h.b16 %v5102
      %v5392 = vunpack.c.l.b16 %v5103
      %v5393 = vunpack.c.h.b16 %v5103
      %v5394 = vunpack.c.l.b16 %v5104
      %v5395 = vunpack.c.h.b16 %v5104
      %v5396 = vunpack.c.l.b16 %v5105
      %v5397 = vunpack.c.h.b16 %v5105
      %v5398 = vunpack.c.l.b16 %v5106
      %v5399 = vunpack.c.h.b16 %v5106
      %v5400 = vunpack.c.l.b16 %v5107
      %v5401 = vunpack.c.h.b16 %v5107
      %v5402 = vpack.c.b16 %v5212, %v5210
      %v5403 = vpack.c.b16 %v5213, %v5211
      %v5404 = vpack.c.b16 %v5216, %v5214
      %v5405 = vpack.c.b16 %v5217, %v5215
      %v5406 = vpack.c.b16 %v5220, %v5218
      %v5407 = vpack.c.b16 %v5221, %v5219
      %v5408 = vpack.c.b16 %v5224, %v5222
      %v5409 = vpack.c.b16 %v5225, %v5223
      %v5410 = vpack.c.b16 %v5228, %v5226
      %v5411 = vpack.c.b16 %v5229, %v5227
      %v5412 = vpack.c.b16 %v5232, %v5230
      %v5413 = vpack.c.b16 %v5233, %v5231
      %v5414 = vpack.c.b16 %v5236, %v5234
      %v5415 = vpack.c.b16 %v5237, %v5235
      %v5416 = vpack.c.b16 %v5240, %v5238
      %v5417 = vpack.c.b16 %v5241, %v5239
      %v5418 = vpack.c.b16 %v5244, %v5242
      %v5419 = vpack.c.b16 %v5245, %v5243
      %v5420 = vpack.c.b16 %v5248, %v5246
      %v5421 = vpack.c.b16 %v5249, %v5247
      %v5422 = vpack.c.b16 %v5252, %v5250
      %v5423 = vpack.c.b16 %v5253, %v5251
      %v5424 = vpack.c.b16 %v5256, %v5254
      %v5425 = vpack.c.b16 %v5257, %v5255
      %v5426 = vpack.c.b16 %v5260, %v5258
      %v5427 = vpack.c.b16 %v5261, %v5259
      %v5428 = vpack.c.b16 %v5264, %v5262
      %v5429 = vpack.c.b16 %v5265, %v5263
      %v5430 = vpack.c.b16 %v5268, %v5266
      %v5431 = vpack.c.b16 %v5269, %v5267
      %v5432 = vpack.c.b16 %v5272, %v5270
      %v5433 = vpack.c.b16 %v5273, %v5271
      %v5434 = vpack.c.b16 %v5276, %v5274
      %v5435 = vpack.c.b16 %v5277, %v5275
      %v5436 = vpack.c.b16 %v5280, %v5278
      %v5437 = vpack.c.b16 %v5281, %v5279
      %v5438 = vpack.c.b16 %v5284, %v5282
      %v5439 = vpack.c.b16 %v5285, %v5283
      %v5440 = vpack.c.b16 %v5288, %v5286
      %v5441 = vpack.c.b16 %v5289, %v5287
      %v5442 = vpack.c.b16 %v5292, %v5290
      %v5443 = vpack.c.b16 %v5293, %v5291
      %v5444 = vpack.c.b16 %v5296, %v5294
      %v5445 = vpack.c.b16 %v5297, %v5295
      %v5446 = vpack.c.b16 %v5300, %v5298
      %v5447 = vpack.c.b16 %v5301, %v5299
      %v5448 = vpack.c.b16 %v5304, %v5302
      %v5449 = vpack.c.b16 %v5305, %v5303
      %v5450 = vpack.c.b16 %v5308, %v5306
      %v5451 = vpack.c.b16 %v5309, %v5307
      %v5452 = vpack.c.b16 %v5312, %v5310
      %v5453 = vpack.c.b16 %v5313, %v5311
      %v5454 = vpack.c.b16 %v5316, %v5314
      %v5455 = vpack.c.b16 %v5317, %v5315
      %v5456 = vpack.c.b16 %v5320, %v5318
      %v5457 = vpack.c.b16 %v5321, %v5319
      %v5458 = vpack.c.b16 %v5324, %v5322
      %v5459 = vpack.c.b16 %v5325, %v5323
      %v5460 = vpack.c.b16 %v5328, %v5326
      %v5461 = vpack.c.b16 %v5329, %v5327
      %v5462 = vpack.c.b16 %v5332, %v5330
      %v5463 = vpack.c.b16 %v5333, %v5331
      %v5464 = vpack.c.b16 %v5336, %v5334
      %v5465 = vpack.c.b16 %v5337, %v5335
      %v5466 = vpack.c.b16 %v5340, %v5338
      %v5467 = vpack.c.b16 %v5341, %v5339
      %v5468 = vpack.c.b16 %v5344, %v5342
      %v5469 = vpack.c.b16 %v5345, %v5343
      %v5470 = vpack.c.b16 %v5348, %v5346
      %v5471 = vpack.c.b16 %v5349, %v5347
      %v5472 = vpack.c.b16 %v5352, %v5350
      %v5473 = vpack.c.b16 %v5353, %v5351
      %v5474 = vpack.c.b16 %v5356, %v5354
      %v5475 = vpack.c.b16 %v5357, %v5355
      %v5476 = vpack.c.b16 %v5360, %v5358
      %v5477 = vpack.c.b16 %v5361, %v5359
      %v5478 = vpack.c.b16 %v5364, %v5362
      %v5479 = vpack.c.b16 %v5365, %v5363
      %v5480 = vpack.c.b16 %v5368, %v5366
      %v5481 = vpack.c.b16 %v5369, %v5367
      %v5482 = vpack.c.b16 %v5372, %v5370
      %v5483 = vpack.c.b16 %v5373, %v5371
      %v5484 = vpack.c.b16 %v5376, %v5374
      %v5485 = vpack.c.b16 %v5377, %v5375
      %v5486 = vpack.c.b16 %v5380, %v5378
      %v5487 = vpack.c.b16 %v5381, %v5379
      %v5488 = vpack.c.b16 %v5384, %v5382
      %v5489 = vpack.c.b16 %v5385, %v5383
      %v5490 = vpack.c.b16 %v5388, %v5386
      %v5491 = vpack.c.b16 %v5389, %v5387
      %v5492 = vpack.c.b16 %v5392, %v5390
      %v5493 = vpack.c.b16 %v5393, %v5391
      %v5494 = vpack.c.b16 %v5396, %v5394
      %v5495 = vpack.c.b16 %v5397, %v5395
      %v5496 = vpack.c.b16 %v5400, %v5398
      %v5497 = vpack.c.b16 %v5401, %v5399
      %5594 = vmatpush.bf16.msra.mxu0 %v5416
      %5595 = vmatpush.bf16.msra.mxu0 %v5414
      %5596 = vmatpush.bf16.msra.mxu0 %v5412
      %5597 = vmatpush.bf16.msra.mxu0 %v5410
      %5598 = vmatpush.bf16.msra.mxu0 %v5408
      %5599 = vmatpush.bf16.msra.mxu0 %v5406
      %5600 = vmatpush.bf16.msra.mxu0 %v5404
      %5601 = vmatpush.bf16.msra.mxu0 %v5402
      %5602 = vmatmul.bf16.gmra.mxu0 %v5000
      %v5603 = vpop.f32.mrf.mxu0
      %v5604 = vadd.f32 %v5110, %v5603
      %v5605 = vpop.f32.mrf.mxu0
      %v5606 = vadd.f32 %v5110, %v5605
      %5607 = vmatmul.bf16.gmra.mxu0 %v5006
      %v5608 = vpop.f32.mrf.mxu0
      %v5609 = vadd.f32 %v5110, %v5608
      %v5610 = vpop.f32.mrf.mxu0
      %v5611 = vadd.f32 %v5110, %v5610
      %5612 = vdwg.mxu0
      %5613 = vmatpush.bf16.msra.mxu0 %v5432
      %5614 = vmatpush.bf16.msra.mxu0 %v5430
      %5615 = vmatpush.bf16.msra.mxu0 %v5428
      %5616 = vmatpush.bf16.msra.mxu0 %v5426
      %5617 = vmatpush.bf16.msra.mxu0 %v5424
      %5618 = vmatpush.bf16.msra.mxu0 %v5422
      %5619 = vmatpush.bf16.msra.mxu0 %v5420
      %5620 = vmatpush.bf16.msra.mxu0 %v5418
      %5621 = vmatmul.bf16.gmra.mxu0 %v5001
      %v5622 = vpop.f32.mrf.mxu0
      %v5623 = vadd.f32 %v5604, %v5622
      %v5624 = vpop.f32.mrf.mxu0
      %v5625 = vadd.f32 %v5606, %v5624
      %5626 = vmatmul.bf16.gmra.mxu0 %v5007
      %v5627 = vpop.f32.mrf.mxu0
      %v5628 = vadd.f32 %v5609, %v5627
      %v5629 = vpop.f32.mrf.mxu0
      %v5630 = vadd.f32 %v5611, %v5629
      %5631 = vdwg.mxu0
      %5632 = vmatpush.bf16.msra.mxu0 %v5448
      %5633 = vmatpush.bf16.msra.mxu0 %v5446
      %5634 = vmatpush.bf16.msra.mxu0 %v5444
      %5635 = vmatpush.bf16.msra.mxu0 %v5442
      %5636 = vmatpush.bf16.msra.mxu0 %v5440
      %5637 = vmatpush.bf16.msra.mxu0 %v5438
      %5638 = vmatpush.bf16.msra.mxu0 %v5436
      %5639 = vmatpush.bf16.msra.mxu0 %v5434
      %5640 = vmatmul.bf16.gmra.mxu0 %v5002
      %v5641 = vpop.f32.mrf.mxu0
      %v5642 = vadd.f32 %v5623, %v5641
      %v5643 = vpop.f32.mrf.mxu0
      %v5644 = vadd.f32 %v5625, %v5643
      %5645 = vmatmul.bf16.gmra.mxu0 %v5008
      %v5646 = vpop.f32.mrf.mxu0
      %v5647 = vadd.f32 %v5628, %v5646
      %v5648 = vpop.f32.mrf.mxu0
      %v5649 = vadd.f32 %v5630, %v5648
      %5650 = vdwg.mxu0
      %5651 = vmatpush.bf16.msra.mxu0 %v5464
      %5652 = vmatpush.bf16.msra.mxu0 %v5462
      %5653 = vmatpush.bf16.msra.mxu0 %v5460
      %5654 = vmatpush.bf16.msra.mxu0 %v5458
      %5655 = vmatpush.bf16.msra.mxu0 %v5456
      %5656 = vmatpush.bf16.msra.mxu0 %v5454
      %5657 = vmatpush.bf16.msra.mxu0 %v5452
      %5658 = vmatpush.bf16.msra.mxu0 %v5450
      %5659 = vmatmul.bf16.gmra.mxu0 %v5003
      %v5660 = vpop.f32.mrf.mxu0
      %v5661 = vadd.f32 %v5642, %v5660
      %v5662 = vpop.f32.mrf.mxu0
      %v5663 = vadd.f32 %v5644, %v5662
      %5664 = vmatmul.bf16.gmra.mxu0 %v5009
      %v5665 = vpop.f32.mrf.mxu0
      %v5666 = vadd.f32 %v5647, %v5665
      %v5667 = vpop.f32.mrf.mxu0
      %v5668 = vadd.f32 %v5649, %v5667
      %5669 = vdwg.mxu0
      %5670 = vmatpush.bf16.msra.mxu0 %v5480
      %5671 = vmatpush.bf16.msra.mxu0 %v5478
      %5672 = vmatpush.bf16.msra.mxu0 %v5476
      %5673 = vmatpush.bf16.msra.mxu0 %v5474
      %5674 = vmatpush.bf16.msra.mxu0 %v5472
      %5675 = vmatpush.bf16.msra.mxu0 %v5470
      %5676 = vmatpush.bf16.msra.mxu0 %v5468
      %5677 = vmatpush.bf16.msra.mxu0 %v5466
      %5678 = vmatmul.bf16.gmra.mxu0 %v5004
      %v5679 = vpop.f32.mrf.mxu0
      %v5680 = vadd.f32 %v5661, %v5679
      %v5681 = vpop.f32.mrf.mxu0
      %v5682 = vadd.f32 %v5663, %v5681
      %5683 = vmatmul.bf16.gmra.mxu0 %v5010
      %v5684 = vpop.f32.mrf.mxu0
      %v5685 = vadd.f32 %v5666, %v5684
      %v5686 = vpop.f32.mrf.mxu0
      %v5687 = vadd.f32 %v5668, %v5686
      %5688 = vdwg.mxu0
      %5689 = vmatpush.bf16.msra.mxu0 %v5496
      %5690 = vmatpush.bf16.msra.mxu0 %v5494
      %5691 = vmatpush.bf16.msra.mxu0 %v5492
      %5692 = vmatpush.bf16.msra.mxu0 %v5490
      %5693 = vmatpush.bf16.msra.mxu0 %v5488
      %5694 = vmatpush.bf16.msra.mxu0 %v5486
      %5695 = vmatpush.bf16.msra.mxu0 %v5484
      %5696 = vmatpush.bf16.msra.mxu0 %v5482
      %5697 = vmatmul.bf16.gmra.mxu0 %v5005
      %v5698 = vpop.f32.mrf.mxu0
      %v5699 = vadd.f32 %v5680, %v5698
      %v5700 = vpop.f32.mrf.mxu0
      %v5701 = vadd.f32 %v5682, %v5700
      %5702 = vmatmul.bf16.gmra.mxu0 %v5011
      %v5703 = vpop.f32.mrf.mxu0
      %v5704 = vadd.f32 %v5685, %v5703
      %v5705 = vpop.f32.mrf.mxu0
      %v5706 = vadd.f32 %v5687, %v5705
      %5707 = vdwg.mxu0
      %5708 = vmatpush.bf16.msra.mxu0 %v5417
      %5709 = vmatpush.bf16.msra.mxu0 %v5415
      %5710 = vmatpush.bf16.msra.mxu0 %v5413
      %5711 = vmatpush.bf16.msra.mxu0 %v5411
      %5712 = vmatpush.bf16.msra.mxu0 %v5409
      %5713 = vmatpush.bf16.msra.mxu0 %v5407
      %5714 = vmatpush.bf16.msra.mxu0 %v5405
      %5715 = vmatpush.bf16.msra.mxu0 %v5403
      %5716 = vmatmul.bf16.gmra.mxu0 %v5000
      %v5717 = vpop.f32.mrf.mxu0
      %v5718 = vadd.f32 %v5111, %v5717
      %v5719 = vpop.f32.mrf.mxu0
      %v5720 = vadd.f32 %v5111, %v5719
      %5721 = vmatmul.bf16.gmra.mxu0 %v5006
      %v5722 = vpop.f32.mrf.mxu0
      %v5723 = vadd.f32 %v5111, %v5722
      %v5724 = vpop.f32.mrf.mxu0
      %v5725 = vadd.f32 %v5111, %v5724
      %5726 = vdwg.mxu0
      %5727 = vmatpush.bf16.msra.mxu0 %v5433
      %5728 = vmatpush.bf16.msra.mxu0 %v5431
      %5729 = vmatpush.bf16.msra.mxu0 %v5429
      %5730 = vmatpush.bf16.msra.mxu0 %v5427
      %5731 = vmatpush.bf16.msra.mxu0 %v5425
      %5732 = vmatpush.bf16.msra.mxu0 %v5423
      %5733 = vmatpush.bf16.msra.mxu0 %v5421
      %5734 = vmatpush.bf16.msra.mxu0 %v5419
      %5735 = vmatmul.bf16.gmra.mxu0 %v5001
      %v5736 = vpop.f32.mrf.mxu0
      %v5737 = vadd.f32 %v5718, %v5736
      %v5738 = vpop.f32.mrf.mxu0
      %v5739 = vadd.f32 %v5720, %v5738
      %5740 = vmatmul.bf16.gmra.mxu0 %v5007
      %v5741 = vpop.f32.mrf.mxu0
      %v5742 = vadd.f32 %v5723, %v5741
      %v5743 = vpop.f32.mrf.mxu0
      %v5744 = vadd.f32 %v5725, %v5743
      %5745 = vdwg.mxu0
      %5746 = vmatpush.bf16.msra.mxu0 %v5449
      %5747 = vmatpush.bf16.msra.mxu0 %v5447
      %5748 = vmatpush.bf16.msra.mxu0 %v5445
      %5749 = vmatpush.bf16.msra.mxu0 %v5443
      %5750 = vmatpush.bf16.msra.mxu0 %v5441
      %5751 = vmatpush.bf16.msra.mxu0 %v5439
      %5752 = vmatpush.bf16.msra.mxu0 %v5437
      %5753 = vmatpush.bf16.msra.mxu0 %v5435
      %5754 = vmatmul.bf16.gmra.mxu0 %v5002
      %v5755 = vpop.f32.mrf.mxu0
      %v5756 = vadd.f32 %v5737, %v5755
      %v5757 = vpop.f32.mrf.mxu0
      %v5758 = vadd.f32 %v5739, %v5757
      %5759 = vmatmul.bf16.gmra.mxu0 %v5008
      %v5760 = vpop.f32.mrf.mxu0
      %v5761 = vadd.f32 %v5742, %v5760
      %v5762 = vpop.f32.mrf.mxu0
      %v5763 = vadd.f32 %v5744, %v5762
      %5764 = vdwg.mxu0
      %5765 = vmatpush.bf16.msra.mxu0 %v5465
      %5766 = vmatpush.bf16.msra.mxu0 %v5463
      %5767 = vmatpush.bf16.msra.mxu0 %v5461
      %5768 = vmatpush.bf16.msra.mxu0 %v5459
      %5769 = vmatpush.bf16.msra.mxu0 %v5457
      %5770 = vmatpush.bf16.msra.mxu0 %v5455
      %5771 = vmatpush.bf16.msra.mxu0 %v5453
      %5772 = vmatpush.bf16.msra.mxu0 %v5451
      %5773 = vmatmul.bf16.gmra.mxu0 %v5003
      %v5774 = vpop.f32.mrf.mxu0
      %v5775 = vadd.f32 %v5756, %v5774
      %v5776 = vpop.f32.mrf.mxu0
      %v5777 = vadd.f32 %v5758, %v5776
      %5778 = vmatmul.bf16.gmra.mxu0 %v5009
      %v5779 = vpop.f32.mrf.mxu0
      %v5780 = vadd.f32 %v5761, %v5779
      %v5781 = vpop.f32.mrf.mxu0
      %v5782 = vadd.f32 %v5763, %v5781
      %5783 = vdwg.mxu0
      %5784 = vmatpush.bf16.msra.mxu0 %v5481
      %5785 = vmatpush.bf16.msra.mxu0 %v5479
      %5786 = vmatpush.bf16.msra.mxu0 %v5477
      %5787 = vmatpush.bf16.msra.mxu0 %v5475
      %5788 = vmatpush.bf16.msra.mxu0 %v5473
      %5789 = vmatpush.bf16.msra.mxu0 %v5471
      %5790 = vmatpush.bf16.msra.mxu0 %v5469
      %5791 = vmatpush.bf16.msra.mxu0 %v5467
      %5792 = vmatmul.bf16.gmra.mxu0 %v5004
      %v5793 = vpop.f32.mrf.mxu0
      %v5794 = vadd.f32 %v5775, %v5793
      %v5795 = vpop.f32.mrf.mxu0
      %v5796 = vadd.f32 %v5777, %v5795
      %5797 = vmatmul.bf16.gmra.mxu0 %v5010
      %v5798 = vpop.f32.mrf.mxu0
      %v5799 = vadd.f32 %v5780, %v5798
      %v5800 = vpop.f32.mrf.mxu0
      %v5801 = vadd.f32 %v5782, %v5800
      %5802 = vdwg.mxu0
      %5803 = vmatpush.bf16.msra.mxu0 %v5497
      %5804 = vmatpush.bf16.msra.mxu0 %v5495
      %5805 = vmatpush.bf16.msra.mxu0 %v5493
      %5806 = vmatpush.bf16.msra.mxu0 %v5491
      %5807 = vmatpush.bf16.msra.mxu0 %v5489
      %5808 = vmatpush.bf16.msra.mxu0 %v5487
      %5809 = vmatpush.bf16.msra.mxu0 %v5485
      %5810 = vmatpush.bf16.msra.mxu0 %v5483
      %5811 = vmatmul.bf16.gmra.mxu0 %v5005
      %v5812 = vpop.f32.mrf.mxu0
      %v5813 = vadd.f32 %v5794, %v5812
      %v5814 = vpop.f32.mrf.mxu0
      %v5815 = vadd.f32 %v5796, %v5814
      %5816 = vmatmul.bf16.gmra.mxu0 %v5011
      %v5817 = vpop.f32.mrf.mxu0
      %v5818 = vadd.f32 %v5799, %v5817
      %v5819 = vpop.f32.mrf.mxu0
      %v5820 = vadd.f32 %v5801, %v5819
      %5821 = vdwg.mxu0
      %v5822 = vmax.f32 %v5699, 0.0
      %v5823 = vmax.f32 %v5813, 0.0
      %v5824 = vmax.f32 %v5701, 0.0
      %v5825 = vmax.f32 %v5815, 0.0
      %v5826 = vmax.f32 %v5704, 0.0
      %v5827 = vmax.f32 %v5818, 0.0
      %v5828 = vmax.f32 %v5706, 0.0
      %v5829 = vmax.f32 %v5820, 0.0
      %v5830 = vmul.f32 %v5822, %v742
      %v5831 = vmul.f32 %v5823, %v742
      %v5832 = vmul.f32 %v5824, %v743
      %v5833 = vmul.f32 %v5825, %v743
      %v5834 = vmul.f32 %v5826, %v744
      %v5835 = vmul.f32 %v5827, %v744
      %v5836 = vmul.f32 %v5828, %v745
      %v5837 = vmul.f32 %v5829, %v745
      %v5846 = vrot.slane %v5830, 7
      %v5847 = vrot.slane %v5831, 7
      %v5848 = vrot.slane %v5832, 7
      %v5849 = vsel %vm2852, %v5846, %v5848
      %v5850 = vrot.slane %v5833, 7
      %v5851 = vsel %vm2852, %v5847, %v5850
      %v5852 = vrot.slane %v5834, 7
      %v5853 = vsel %vm2852, %v5848, %v5852
      %v5854 = vrot.slane %v5835, 7
      %v5855 = vsel %vm2852, %v5850, %v5854
      %v5856 = vrot.slane %v5836, 7
      %v5857 = vsel %vm2852, %v5852, %v5856
      %v5858 = vrot.slane %v5837, 7
      %v5859 = vsel %vm2852, %v5854, %v5858
      %v5868 = vsel %vm2852, 0.0, %v5846
      %v5869 = vsel %vm2852, 0.0, %v5847
      %v5870 = vrot.slane %v5830, 1
      %v5871 = vrot.slane %v5832, 1
      %v5872 = vsel %vm2865, %v5870, %v5871
      %v5873 = vrot.slane %v5831, 1
      %v5874 = vrot.slane %v5833, 1
      %v5875 = vsel %vm2865, %v5873, %v5874
      %v5876 = vrot.slane %v5834, 1
      %v5877 = vsel %vm2865, %v5871, %v5876
      %v5878 = vrot.slane %v5835, 1
      %v5879 = vsel %vm2865, %v5874, %v5878
      %v5880 = vrot.slane %v5836, 1
      %v5881 = vsel %vm2865, %v5876, %v5880
      %v5882 = vrot.slane %v5837, 1
      %v5883 = vsel %vm2865, %v5878, %v5882
      %v5892 = vsel %vm2865, %v5880, 0.0
      %v5893 = vsel %vm2865, %v5882, 0.0
      %v5894 = vpack.c.bf16 %v5849, %v5868
      %v5895 = vpack.c.bf16 %v5851, %v5869
      %v5896 = vpack.c.bf16 %v5832, %v5830
      %v5897 = vpack.c.bf16 %v5833, %v5831
      %v5898 = vpack.c.bf16 %v5877, %v5872
      %v5899 = vpack.c.bf16 %v5879, %v5875
      %v5900 = vpack.c.bf16 %v5857, %v5853
      %v5901 = vpack.c.bf16 %v5859, %v5855
      %v5902 = vpack.c.bf16 %v5836, %v5834
      %v5903 = vpack.c.bf16 %v5837, %v5835
      %v5904 = vpack.c.bf16 %v5892, %v5881
      %v5905 = vpack.c.bf16 %v5893, %v5883
      %v5906 = vld [vmem:[%s15] sm:$0xff]
      %v5907 = vld [vmem:[%s15 + $0x8] sm:$0xff]
      %v5908 = vld [vmem:[%s15 + $0x10] sm:$0xff]
      %v5909 = vld [vmem:[%s15 + $0x18] sm:$0xff]
      %v5910 = vld [vmem:[%s15 + $0x20] sm:$0xff]
      %v5911 = vld [vmem:[%s15 + $0x28] sm:$0xff]
      %v5912 = vld [vmem:[%s15 + $0x30] sm:$0xff]
      %v5913 = vld [vmem:[%s15 + $0x38] sm:$0xff]
      %v5914 = vld [vmem:[%s15 + $0x40] sm:$0xff]
      %v5915 = vld [vmem:[%s15 + $0x48] sm:$0xff]
      %v5916 = vld [vmem:[%s15 + $0x50] sm:$0xff]
      %v5917 = vld [vmem:[%s15 + $0x58] sm:$0xff]
      %v5918 = vld [vmem:[%s15 + $0x60] sm:$0xff]
      %v5919 = vld [vmem:[%s15 + $0x68] sm:$0xff]
      %v5920 = vld [vmem:[%s15 + $0x70] sm:$0xff]
      %v5921 = vld [vmem:[%s15 + $0x78] sm:$0xff]
      %v5922 = vld [vmem:[%s15 + $0x80] sm:$0xff]
      %v5923 = vld [vmem:[%s15 + $0x88] sm:$0xff]
      %v5924 = vld [vmem:[%s15 + $0x90] sm:$0xff]
      %v5925 = vld [vmem:[%s15 + $0x98] sm:$0xff]
      %v5926 = vld [vmem:[%s15 + $0xa0] sm:$0xff]
      %v5927 = vld [vmem:[%s15 + $0xa8] sm:$0xff]
      %v5928 = vld [vmem:[%s15 + $0xb0] sm:$0xff]
      %v5929 = vld [vmem:[%s15 + $0xb8] sm:$0xff]
      %v5930 = vld [vmem:[%s15 + $0xc0] sm:$0xff]
      %v5931 = vld [vmem:[%s15 + $0xc8] sm:$0xff]
      %v5932 = vld [vmem:[%s15 + $0xd0] sm:$0xff]
      %v5933 = vld [vmem:[%s15 + $0xd8] sm:$0xff]
      %v5934 = vld [vmem:[%s15 + $0xe0] sm:$0xff]
      %v5935 = vld [vmem:[%s15 + $0xe8] sm:$0xff]
      %v5936 = vld [vmem:[%s15 + $0xf0] sm:$0xff]
      %v5937 = vld [vmem:[%s15 + $0xf8] sm:$0xff]
      %v5938 = vld [vmem:[%s15 + $0x100] sm:$0xff]
      %v5939 = vld [vmem:[%s15 + $0x108] sm:$0xff]
      %v5940 = vld [vmem:[%s15 + $0x110] sm:$0xff]
      %v5941 = vld [vmem:[%s15 + $0x118] sm:$0xff]
      %v5942 = vld [vmem:[%s15 + $0x120] sm:$0xff]
      %v5943 = vld [vmem:[%s15 + $0x128] sm:$0xff]
      %v5944 = vld [vmem:[%s15 + $0x130] sm:$0xff]
      %v5945 = vld [vmem:[%s15 + $0x138] sm:$0xff]
      %v5946 = vld [vmem:[%s15 + $0x140] sm:$0xff]
      %v5947 = vld [vmem:[%s15 + $0x148] sm:$0xff]
      %v5948 = vld [vmem:[%s15 + $0x150] sm:$0xff]
      %v5949 = vld [vmem:[%s15 + $0x158] sm:$0xff]
      %v5950 = vld [vmem:[%s15 + $0x160] sm:$0xff]
      %v5951 = vld [vmem:[%s15 + $0x168] sm:$0xff]
      %v5952 = vld [vmem:[%s15 + $0x170] sm:$0xff]
      %v5953 = vld [vmem:[%s15 + $0x178] sm:$0xff]
      %v5954 = vld [vmem:[%s15 + $0x180] sm:$0xff]
      %v5955 = vld [vmem:[%s15 + $0x188] sm:$0xff]
      %v5956 = vld [vmem:[%s15 + $0x190] sm:$0xff]
      %v5957 = vld [vmem:[%s15 + $0x198] sm:$0xff]
      %v5958 = vld [vmem:[%s15 + $0x1a0] sm:$0xff]
      %v5959 = vld [vmem:[%s15 + $0x1a8] sm:$0xff]
      %v5960 = vld [vmem:[%s15 + $0x1b0] sm:$0xff]
      %v5961 = vld [vmem:[%s15 + $0x1b8] sm:$0xff]
      %v5962 = vld [vmem:[%s15 + $0x1c0] sm:$0xff]
      %v5963 = vld [vmem:[%s15 + $0x1c8] sm:$0xff]
      %v5964 = vld [vmem:[%s15 + $0x1d0] sm:$0xff]
      %v5965 = vld [vmem:[%s15 + $0x1d8] sm:$0xff]
      %v5966 = vld [vmem:[%s15 + $0x1e0] sm:$0xff]
      %v5967 = vld [vmem:[%s15 + $0x1e8] sm:$0xff]
      %v5968 = vld [vmem:[%s15 + $0x1f0] sm:$0xff]
      %v5969 = vld [vmem:[%s15 + $0x1f8] sm:$0xff]
      %v5970 = vld [vmem:[%s15 + $0x200] sm:$0xff]
      %v5971 = vld [vmem:[%s15 + $0x208] sm:$0xff]
      %v5972 = vld [vmem:[%s15 + $0x210] sm:$0xff]
      %v5973 = vld [vmem:[%s15 + $0x218] sm:$0xff]
      %v5974 = vld [vmem:[%s15 + $0x220] sm:$0xff]
      %v5975 = vld [vmem:[%s15 + $0x228] sm:$0xff]
      %v5976 = vld [vmem:[%s15 + $0x230] sm:$0xff]
      %v5977 = vld [vmem:[%s15 + $0x238] sm:$0xff]
      %v5978 = vld [vmem:[%s15 + $0x240] sm:$0xff]
      %v5979 = vld [vmem:[%s15 + $0x248] sm:$0xff]
      %v5980 = vld [vmem:[%s15 + $0x250] sm:$0xff]
      %v5981 = vld [vmem:[%s15 + $0x258] sm:$0xff]
      %v5982 = vld [vmem:[%s15 + $0x260] sm:$0xff]
      %v5983 = vld [vmem:[%s15 + $0x268] sm:$0xff]
      %v5984 = vld [vmem:[%s15 + $0x270] sm:$0xff]
      %v5985 = vld [vmem:[%s15 + $0x278] sm:$0xff]
      %v5986 = vld [vmem:[%s15 + $0x280] sm:$0xff]
      %v5987 = vld [vmem:[%s15 + $0x288] sm:$0xff]
      %v5988 = vld [vmem:[%s15 + $0x290] sm:$0xff]
      %v5989 = vld [vmem:[%s15 + $0x298] sm:$0xff]
      %v5990 = vld [vmem:[%s15 + $0x2a0] sm:$0xff]
      %v5991 = vld [vmem:[%s15 + $0x2a8] sm:$0xff]
      %v5992 = vld [vmem:[%s15 + $0x2b0] sm:$0xff]
      %v5993 = vld [vmem:[%s15 + $0x2b8] sm:$0xff]
      %v5994 = vld [vmem:[%s15 + $0x2c0] sm:$0xff]
      %v5995 = vld [vmem:[%s15 + $0x2c8] sm:$0xff]
      %v5996 = vld [vmem:[%s15 + $0x2d0] sm:$0xff]
      %v5997 = vld [vmem:[%s15 + $0x2d8] sm:$0xff]
      %v5998 = vld [vmem:[%s15 + $0x2e0] sm:$0xff]
      %v5999 = vld [vmem:[%s15 + $0x2e8] sm:$0xff]
      %v6000 = vld [vmem:[%s15 + $0x2f0] sm:$0xff]
      %v6001 = vld [vmem:[%s15 + $0x2f8] sm:$0xff]
      %v6002 = vld [vmem:[%s16] sm:$0x3]
      %v6004 = vperm.slane %v6002, 0
      %v6005 = vperm.slane %v6002, 1
      %v6104 = vunpack.c.l.b16 %v5906
      %v6105 = vunpack.c.h.b16 %v5906
      %v6106 = vunpack.c.l.b16 %v5907
      %v6107 = vunpack.c.h.b16 %v5907
      %v6108 = vunpack.c.l.b16 %v5908
      %v6109 = vunpack.c.h.b16 %v5908
      %v6110 = vunpack.c.l.b16 %v5909
      %v6111 = vunpack.c.h.b16 %v5909
      %v6112 = vunpack.c.l.b16 %v5910
      %v6113 = vunpack.c.h.b16 %v5910
      %v6114 = vunpack.c.l.b16 %v5911
      %v6115 = vunpack.c.h.b16 %v5911
      %v6116 = vunpack.c.l.b16 %v5912
      %v6117 = vunpack.c.h.b16 %v5912
      %v6118 = vunpack.c.l.b16 %v5913
      %v6119 = vunpack.c.h.b16 %v5913
      %v6120 = vunpack.c.l.b16 %v5914
      %v6121 = vunpack.c.h.b16 %v5914
      %v6122 = vunpack.c.l.b16 %v5915
      %v6123 = vunpack.c.h.b16 %v5915
      %v6124 = vunpack.c.l.b16 %v5916
      %v6125 = vunpack.c.h.b16 %v5916
      %v6126 = vunpack.c.l.b16 %v5917
      %v6127 = vunpack.c.h.b16 %v5917
      %v6128 = vunpack.c.l.b16 %v5918
      %v6129 = vunpack.c.h.b16 %v5918
      %v6130 = vunpack.c.l.b16 %v5919
      %v6131 = vunpack.c.h.b16 %v5919
      %v6132 = vunpack.c.l.b16 %v5920
      %v6133 = vunpack.c.h.b16 %v5920
      %v6134 = vunpack.c.l.b16 %v5921
      %v6135 = vunpack.c.h.b16 %v5921
      %v6136 = vunpack.c.l.b16 %v5922
      %v6137 = vunpack.c.h.b16 %v5922
      %v6138 = vunpack.c.l.b16 %v5923
      %v6139 = vunpack.c.h.b16 %v5923
      %v6140 = vunpack.c.l.b16 %v5924
      %v6141 = vunpack.c.h.b16 %v5924
      %v6142 = vunpack.c.l.b16 %v5925
      %v6143 = vunpack.c.h.b16 %v5925
      %v6144 = vunpack.c.l.b16 %v5926
      %v6145 = vunpack.c.h.b16 %v5926
      %v6146 = vunpack.c.l.b16 %v5927
      %v6147 = vunpack.c.h.b16 %v5927
      %v6148 = vunpack.c.l.b16 %v5928
      %v6149 = vunpack.c.h.b16 %v5928
      %v6150 = vunpack.c.l.b16 %v5929
      %v6151 = vunpack.c.h.b16 %v5929
      %v6152 = vunpack.c.l.b16 %v5930
      %v6153 = vunpack.c.h.b16 %v5930
      %v6154 = vunpack.c.l.b16 %v5931
      %v6155 = vunpack.c.h.b16 %v5931
      %v6156 = vunpack.c.l.b16 %v5932
      %v6157 = vunpack.c.h.b16 %v5932
      %v6158 = vunpack.c.l.b16 %v5933
      %v6159 = vunpack.c.h.b16 %v5933
      %v6160 = vunpack.c.l.b16 %v5934
      %v6161 = vunpack.c.h.b16 %v5934
      %v6162 = vunpack.c.l.b16 %v5935
      %v6163 = vunpack.c.h.b16 %v5935
      %v6164 = vunpack.c.l.b16 %v5936
      %v6165 = vunpack.c.h.b16 %v5936
      %v6166 = vunpack.c.l.b16 %v5937
      %v6167 = vunpack.c.h.b16 %v5937
      %v6168 = vunpack.c.l.b16 %v5938
      %v6169 = vunpack.c.h.b16 %v5938
      %v6170 = vunpack.c.l.b16 %v5939
      %v6171 = vunpack.c.h.b16 %v5939
      %v6172 = vunpack.c.l.b16 %v5940
      %v6173 = vunpack.c.h.b16 %v5940
      %v6174 = vunpack.c.l.b16 %v5941
      %v6175 = vunpack.c.h.b16 %v5941
      %v6176 = vunpack.c.l.b16 %v5942
      %v6177 = vunpack.c.h.b16 %v5942
      %v6178 = vunpack.c.l.b16 %v5943
      %v6179 = vunpack.c.h.b16 %v5943
      %v6180 = vunpack.c.l.b16 %v5944
      %v6181 = vunpack.c.h.b16 %v5944
      %v6182 = vunpack.c.l.b16 %v5945
      %v6183 = vunpack.c.h.b16 %v5945
      %v6184 = vunpack.c.l.b16 %v5946
      %v6185 = vunpack.c.h.b16 %v5946
      %v6186 = vunpack.c.l.b16 %v5947
      %v6187 = vunpack.c.h.b16 %v5947
      %v6188 = vunpack.c.l.b16 %v5948
      %v6189 = vunpack.c.h.b16 %v5948
      %v6190 = vunpack.c.l.b16 %v5949
      %v6191 = vunpack.c.h.b16 %v5949
      %v6192 = vunpack.c.l.b16 %v5950
      %v6193 = vunpack.c.h.b16 %v5950
      %v6194 = vunpack.c.l.b16 %v5951
      %v6195 = vunpack.c.h.b16 %v5951
      %v6196 = vunpack.c.l.b16 %v5952
      %v6197 = vunpack.c.h.b16 %v5952
      %v6198 = vunpack.c.l.b16 %v5953
      %v6199 = vunpack.c.h.b16 %v5953
      %v6200 = vunpack.c.l.b16 %v5954
      %v6201 = vunpack.c.h.b16 %v5954
      %v6202 = vunpack.c.l.b16 %v5955
      %v6203 = vunpack.c.h.b16 %v5955
      %v6204 = vunpack.c.l.b16 %v5956
      %v6205 = vunpack.c.h.b16 %v5956
      %v6206 = vunpack.c.l.b16 %v5957
      %v6207 = vunpack.c.h.b16 %v5957
      %v6208 = vunpack.c.l.b16 %v5958
      %v6209 = vunpack.c.h.b16 %v5958
      %v6210 = vunpack.c.l.b16 %v5959
      %v6211 = vunpack.c.h.b16 %v5959
      %v6212 = vunpack.c.l.b16 %v5960
      %v6213 = vunpack.c.h.b16 %v5960
      %v6214 = vunpack.c.l.b16 %v5961
      %v6215 = vunpack.c.h.b16 %v5961
      %v6216 = vunpack.c.l.b16 %v5962
      %v6217 = vunpack.c.h.b16 %v5962
      %v6218 = vunpack.c.l.b16 %v5963
      %v6219 = vunpack.c.h.b16 %v5963
      %v6220 = vunpack.c.l.b16 %v5964
      %v6221 = vunpack.c.h.b16 %v5964
      %v6222 = vunpack.c.l.b16 %v5965
      %v6223 = vunpack.c.h.b16 %v5965
      %v6224 = vunpack.c.l.b16 %v5966
      %v6225 = vunpack.c.h.b16 %v5966
      %v6226 = vunpack.c.l.b16 %v5967
      %v6227 = vunpack.c.h.b16 %v5967
      %v6228 = vunpack.c.l.b16 %v5968
      %v6229 = vunpack.c.h.b16 %v5968
      %v6230 = vunpack.c.l.b16 %v5969
      %v6231 = vunpack.c.h.b16 %v5969
      %v6232 = vunpack.c.l.b16 %v5970
      %v6233 = vunpack.c.h.b16 %v5970
      %v6234 = vunpack.c.l.b16 %v5971
      %v6235 = vunpack.c.h.b16 %v5971
      %v6236 = vunpack.c.l.b16 %v5972
      %v6237 = vunpack.c.h.b16 %v5972
      %v6238 = vunpack.c.l.b16 %v5973
      %v6239 = vunpack.c.h.b16 %v5973
      %v6240 = vunpack.c.l.b16 %v5974
      %v6241 = vunpack.c.h.b16 %v5974
      %v6242 = vunpack.c.l.b16 %v5975
      %v6243 = vunpack.c.h.b16 %v5975
      %v6244 = vunpack.c.l.b16 %v5976
      %v6245 = vunpack.c.h.b16 %v5976
      %v6246 = vunpack.c.l.b16 %v5977
      %v6247 = vunpack.c.h.b16 %v5977
      %v6248 = vunpack.c.l.b16 %v5978
      %v6249 = vunpack.c.h.b16 %v5978
      %v6250 = vunpack.c.l.b16 %v5979
      %v6251 = vunpack.c.h.b16 %v5979
      %v6252 = vunpack.c.l.b16 %v5980
      %v6253 = vunpack.c.h.b16 %v5980
      %v6254 = vunpack.c.l.b16 %v5981
      %v6255 = vunpack.c.h.b16 %v5981
      %v6256 = vunpack.c.l.b16 %v5982
      %v6257 = vunpack.c.h.b16 %v5982
      %v6258 = vunpack.c.l.b16 %v5983
      %v6259 = vunpack.c.h.b16 %v5983
      %v6260 = vunpack.c.l.b16 %v5984
      %v6261 = vunpack.c.h.b16 %v5984
      %v6262 = vunpack.c.l.b16 %v5985
      %v6263 = vunpack.c.h.b16 %v5985
      %v6264 = vunpack.c.l.b16 %v5986
      %v6265 = vunpack.c.h.b16 %v5986
      %v6266 = vunpack.c.l.b16 %v5987
      %v6267 = vunpack.c.h.b16 %v5987
      %v6268 = vunpack.c.l.b16 %v5988
      %v6269 = vunpack.c.h.b16 %v5988
      %v6270 = vunpack.c.l.b16 %v5989
      %v6271 = vunpack.c.h.b16 %v5989
      %v6272 = vunpack.c.l.b16 %v5990
      %v6273 = vunpack.c.h.b16 %v5990
      %v6274 = vunpack.c.l.b16 %v5991
      %v6275 = vunpack.c.h.b16 %v5991
      %v6276 = vunpack.c.l.b16 %v5992
      %v6277 = vunpack.c.h.b16 %v5992
      %v6278 = vunpack.c.l.b16 %v5993
      %v6279 = vunpack.c.h.b16 %v5993
      %v6280 = vunpack.c.l.b16 %v5994
      %v6281 = vunpack.c.h.b16 %v5994
      %v6282 = vunpack.c.l.b16 %v5995
      %v6283 = vunpack.c.h.b16 %v5995
      %v6284 = vunpack.c.l.b16 %v5996
      %v6285 = vunpack.c.h.b16 %v5996
      %v6286 = vunpack.c.l.b16 %v5997
      %v6287 = vunpack.c.h.b16 %v5997
      %v6288 = vunpack.c.l.b16 %v5998
      %v6289 = vunpack.c.h.b16 %v5998
      %v6290 = vunpack.c.l.b16 %v5999
      %v6291 = vunpack.c.h.b16 %v5999
      %v6292 = vunpack.c.l.b16 %v6000
      %v6293 = vunpack.c.h.b16 %v6000
      %v6294 = vunpack.c.l.b16 %v6001
      %v6295 = vunpack.c.h.b16 %v6001
      %v6296 = vpack.c.b16 %v6106, %v6104
      %v6297 = vpack.c.b16 %v6107, %v6105
      %v6298 = vpack.c.b16 %v6110, %v6108
      %v6299 = vpack.c.b16 %v6111, %v6109
      %v6300 = vpack.c.b16 %v6114, %v6112
      %v6301 = vpack.c.b16 %v6115, %v6113
      %v6302 = vpack.c.b16 %v6118, %v6116
      %v6303 = vpack.c.b16 %v6119, %v6117
      %v6304 = vpack.c.b16 %v6122, %v6120
      %v6305 = vpack.c.b16 %v6123, %v6121
      %v6306 = vpack.c.b16 %v6126, %v6124
      %v6307 = vpack.c.b16 %v6127, %v6125
      %v6308 = vpack.c.b16 %v6130, %v6128
      %v6309 = vpack.c.b16 %v6131, %v6129
      %v6310 = vpack.c.b16 %v6134, %v6132
      %v6311 = vpack.c.b16 %v6135, %v6133
      %v6312 = vpack.c.b16 %v6138, %v6136
      %v6313 = vpack.c.b16 %v6139, %v6137
      %v6314 = vpack.c.b16 %v6142, %v6140
      %v6315 = vpack.c.b16 %v6143, %v6141
      %v6316 = vpack.c.b16 %v6146, %v6144
      %v6317 = vpack.c.b16 %v6147, %v6145
      %v6318 = vpack.c.b16 %v6150, %v6148
      %v6319 = vpack.c.b16 %v6151, %v6149
      %v6320 = vpack.c.b16 %v6154, %v6152
      %v6321 = vpack.c.b16 %v6155, %v6153
      %v6322 = vpack.c.b16 %v6158, %v6156
      %v6323 = vpack.c.b16 %v6159, %v6157
      %v6324 = vpack.c.b16 %v6162, %v6160
      %v6325 = vpack.c.b16 %v6163, %v6161
      %v6326 = vpack.c.b16 %v6166, %v6164
      %v6327 = vpack.c.b16 %v6167, %v6165
      %v6328 = vpack.c.b16 %v6170, %v6168
      %v6329 = vpack.c.b16 %v6171, %v6169
      %v6330 = vpack.c.b16 %v6174, %v6172
      %v6331 = vpack.c.b16 %v6175, %v6173
      %v6332 = vpack.c.b16 %v6178, %v6176
      %v6333 = vpack.c.b16 %v6179, %v6177
      %v6334 = vpack.c.b16 %v6182, %v6180
      %v6335 = vpack.c.b16 %v6183, %v6181
      %v6336 = vpack.c.b16 %v6186, %v6184
      %v6337 = vpack.c.b16 %v6187, %v6185
      %v6338 = vpack.c.b16 %v6190, %v6188
      %v6339 = vpack.c.b16 %v6191, %v6189
      %v6340 = vpack.c.b16 %v6194, %v6192
      %v6341 = vpack.c.b16 %v6195, %v6193
      %v6342 = vpack.c.b16 %v6198, %v6196
      %v6343 = vpack.c.b16 %v6199, %v6197
      %v6344 = vpack.c.b16 %v6202, %v6200
      %v6345 = vpack.c.b16 %v6203, %v6201
      %v6346 = vpack.c.b16 %v6206, %v6204
      %v6347 = vpack.c.b16 %v6207, %v6205
      %v6348 = vpack.c.b16 %v6210, %v6208
      %v6349 = vpack.c.b16 %v6211, %v6209
      %v6350 = vpack.c.b16 %v6214, %v6212
      %v6351 = vpack.c.b16 %v6215, %v6213
      %v6352 = vpack.c.b16 %v6218, %v6216
      %v6353 = vpack.c.b16 %v6219, %v6217
      %v6354 = vpack.c.b16 %v6222, %v6220
      %v6355 = vpack.c.b16 %v6223, %v6221
      %v6356 = vpack.c.b16 %v6226, %v6224
      %v6357 = vpack.c.b16 %v6227, %v6225
      %v6358 = vpack.c.b16 %v6230, %v6228
      %v6359 = vpack.c.b16 %v6231, %v6229
      %v6360 = vpack.c.b16 %v6234, %v6232
      %v6361 = vpack.c.b16 %v6235, %v6233
      %v6362 = vpack.c.b16 %v6238, %v6236
      %v6363 = vpack.c.b16 %v6239, %v6237
      %v6364 = vpack.c.b16 %v6242, %v6240
      %v6365 = vpack.c.b16 %v6243, %v6241
      %v6366 = vpack.c.b16 %v6246, %v6244
      %v6367 = vpack.c.b16 %v6247, %v6245
      %v6368 = vpack.c.b16 %v6250, %v6248
      %v6369 = vpack.c.b16 %v6251, %v6249
      %v6370 = vpack.c.b16 %v6254, %v6252
      %v6371 = vpack.c.b16 %v6255, %v6253
      %v6372 = vpack.c.b16 %v6258, %v6256
      %v6373 = vpack.c.b16 %v6259, %v6257
      %v6374 = vpack.c.b16 %v6262, %v6260
      %v6375 = vpack.c.b16 %v6263, %v6261
      %v6376 = vpack.c.b16 %v6266, %v6264
      %v6377 = vpack.c.b16 %v6267, %v6265
      %v6378 = vpack.c.b16 %v6270, %v6268
      %v6379 = vpack.c.b16 %v6271, %v6269
      %v6380 = vpack.c.b16 %v6274, %v6272
      %v6381 = vpack.c.b16 %v6275, %v6273
      %v6382 = vpack.c.b16 %v6278, %v6276
      %v6383 = vpack.c.b16 %v6279, %v6277
      %v6384 = vpack.c.b16 %v6282, %v6280
      %v6385 = vpack.c.b16 %v6283, %v6281
      %v6386 = vpack.c.b16 %v6286, %v6284
      %v6387 = vpack.c.b16 %v6287, %v6285
      %v6388 = vpack.c.b16 %v6290, %v6288
      %v6389 = vpack.c.b16 %v6291, %v6289
      %v6390 = vpack.c.b16 %v6294, %v6292
      %v6391 = vpack.c.b16 %v6295, %v6293
      %6488 = vmatpush.bf16.msra.mxu0 %v6310
      %6489 = vmatpush.bf16.msra.mxu0 %v6308
      %6490 = vmatpush.bf16.msra.mxu0 %v6306
      %6491 = vmatpush.bf16.msra.mxu0 %v6304
      %6492 = vmatpush.bf16.msra.mxu0 %v6302
      %6493 = vmatpush.bf16.msra.mxu0 %v6300
      %6494 = vmatpush.bf16.msra.mxu0 %v6298
      %6495 = vmatpush.bf16.msra.mxu0 %v6296
      %6496 = vmatmul.bf16.gmra.mxu0 %v5894
      %v6497 = vpop.f32.mrf.mxu0
      %v6498 = vadd.f32 %v6004, %v6497
      %v6499 = vpop.f32.mrf.mxu0
      %v6500 = vadd.f32 %v6004, %v6499
      %6501 = vmatmul.bf16.gmra.mxu0 %v5900
      %v6502 = vpop.f32.mrf.mxu0
      %v6503 = vadd.f32 %v6004, %v6502
      %v6504 = vpop.f32.mrf.mxu0
      %v6505 = vadd.f32 %v6004, %v6504
      %6506 = vdwg.mxu0
      %6507 = vmatpush.bf16.msra.mxu0 %v6326
      %6508 = vmatpush.bf16.msra.mxu0 %v6324
      %6509 = vmatpush.bf16.msra.mxu0 %v6322
      %6510 = vmatpush.bf16.msra.mxu0 %v6320
      %6511 = vmatpush.bf16.msra.mxu0 %v6318
      %6512 = vmatpush.bf16.msra.mxu0 %v6316
      %6513 = vmatpush.bf16.msra.mxu0 %v6314
      %6514 = vmatpush.bf16.msra.mxu0 %v6312
      %6515 = vmatmul.bf16.gmra.mxu0 %v5895
      %v6516 = vpop.f32.mrf.mxu0
      %v6517 = vadd.f32 %v6498, %v6516
      %v6518 = vpop.f32.mrf.mxu0
      %v6519 = vadd.f32 %v6500, %v6518
      %6520 = vmatmul.bf16.gmra.mxu0 %v5901
      %v6521 = vpop.f32.mrf.mxu0
      %v6522 = vadd.f32 %v6503, %v6521
      %v6523 = vpop.f32.mrf.mxu0
      %v6524 = vadd.f32 %v6505, %v6523
      %6525 = vdwg.mxu0
      %6526 = vmatpush.bf16.msra.mxu0 %v6342
      %6527 = vmatpush.bf16.msra.mxu0 %v6340
      %6528 = vmatpush.bf16.msra.mxu0 %v6338
      %6529 = vmatpush.bf16.msra.mxu0 %v6336
      %6530 = vmatpush.bf16.msra.mxu0 %v6334
      %6531 = vmatpush.bf16.msra.mxu0 %v6332
      %6532 = vmatpush.bf16.msra.mxu0 %v6330
      %6533 = vmatpush.bf16.msra.mxu0 %v6328
      %6534 = vmatmul.bf16.gmra.mxu0 %v5896
      %v6535 = vpop.f32.mrf.mxu0
      %v6536 = vadd.f32 %v6517, %v6535
      %v6537 = vpop.f32.mrf.mxu0
      %v6538 = vadd.f32 %v6519, %v6537
      %6539 = vmatmul.bf16.gmra.mxu0 %v5902
      %v6540 = vpop.f32.mrf.mxu0
      %v6541 = vadd.f32 %v6522, %v6540
      %v6542 = vpop.f32.mrf.mxu0
      %v6543 = vadd.f32 %v6524, %v6542
      %6544 = vdwg.mxu0
      %6545 = vmatpush.bf16.msra.mxu0 %v6358
      %6546 = vmatpush.bf16.msra.mxu0 %v6356
      %6547 = vmatpush.bf16.msra.mxu0 %v6354
      %6548 = vmatpush.bf16.msra.mxu0 %v6352
      %6549 = vmatpush.bf16.msra.mxu0 %v6350
      %6550 = vmatpush.bf16.msra.mxu0 %v6348
      %6551 = vmatpush.bf16.msra.mxu0 %v6346
      %6552 = vmatpush.bf16.msra.mxu0 %v6344
      %6553 = vmatmul.bf16.gmra.mxu0 %v5897
      %v6554 = vpop.f32.mrf.mxu0
      %v6555 = vadd.f32 %v6536, %v6554
      %v6556 = vpop.f32.mrf.mxu0
      %v6557 = vadd.f32 %v6538, %v6556
      %6558 = vmatmul.bf16.gmra.mxu0 %v5903
      %v6559 = vpop.f32.mrf.mxu0
      %v6560 = vadd.f32 %v6541, %v6559
      %v6561 = vpop.f32.mrf.mxu0
      %v6562 = vadd.f32 %v6543, %v6561
      %6563 = vdwg.mxu0
      %6564 = vmatpush.bf16.msra.mxu0 %v6374
      %6565 = vmatpush.bf16.msra.mxu0 %v6372
      %6566 = vmatpush.bf16.msra.mxu0 %v6370
      %6567 = vmatpush.bf16.msra.mxu0 %v6368
      %6568 = vmatpush.bf16.msra.mxu0 %v6366
      %6569 = vmatpush.bf16.msra.mxu0 %v6364
      %6570 = vmatpush.bf16.msra.mxu0 %v6362
      %6571 = vmatpush.bf16.msra.mxu0 %v6360
      %6572 = vmatmul.bf16.gmra.mxu0 %v5898
      %v6573 = vpop.f32.mrf.mxu0
      %v6574 = vadd.f32 %v6555, %v6573
      %v6575 = vpop.f32.mrf.mxu0
      %v6576 = vadd.f32 %v6557, %v6575
      %6577 = vmatmul.bf16.gmra.mxu0 %v5904
      %v6578 = vpop.f32.mrf.mxu0
      %v6579 = vadd.f32 %v6560, %v6578
      %v6580 = vpop.f32.mrf.mxu0
      %v6581 = vadd.f32 %v6562, %v6580
      %6582 = vdwg.mxu0
      %6583 = vmatpush.bf16.msra.mxu0 %v6390
      %6584 = vmatpush.bf16.msra.mxu0 %v6388
      %6585 = vmatpush.bf16.msra.mxu0 %v6386
      %6586 = vmatpush.bf16.msra.mxu0 %v6384
      %6587 = vmatpush.bf16.msra.mxu0 %v6382
      %6588 = vmatpush.bf16.msra.mxu0 %v6380
      %6589 = vmatpush.bf16.msra.mxu0 %v6378
      %6590 = vmatpush.bf16.msra.mxu0 %v6376
      %6591 = vmatmul.bf16.gmra.mxu0 %v5899
      %v6592 = vpop.f32.mrf.mxu0
      %v6593 = vadd.f32 %v6574, %v6592
      %v6594 = vpop.f32.mrf.mxu0
      %v6595 = vadd.f32 %v6576, %v6594
      %6596 = vmatmul.bf16.gmra.mxu0 %v5905
      %v6597 = vpop.f32.mrf.mxu0
      %v6598 = vadd.f32 %v6579, %v6597
      %v6599 = vpop.f32.mrf.mxu0
      %v6600 = vadd.f32 %v6581, %v6599
      %6601 = vdwg.mxu0
      %6602 = vmatpush.bf16.msra.mxu0 %v6311
      %6603 = vmatpush.bf16.msra.mxu0 %v6309
      %6604 = vmatpush.bf16.msra.mxu0 %v6307
      %6605 = vmatpush.bf16.msra.mxu0 %v6305
      %6606 = vmatpush.bf16.msra.mxu0 %v6303
      %6607 = vmatpush.bf16.msra.mxu0 %v6301
      %6608 = vmatpush.bf16.msra.mxu0 %v6299
      %6609 = vmatpush.bf16.msra.mxu0 %v6297
      %6610 = vmatmul.bf16.gmra.mxu0 %v5894
      %v6611 = vpop.f32.mrf.mxu0
      %v6612 = vadd.f32 %v6005, %v6611
      %v6613 = vpop.f32.mrf.mxu0
      %v6614 = vadd.f32 %v6005, %v6613
      %6615 = vmatmul.bf16.gmra.mxu0 %v5900
      %v6616 = vpop.f32.mrf.mxu0
      %v6617 = vadd.f32 %v6005, %v6616
      %v6618 = vpop.f32.mrf.mxu0
      %v6619 = vadd.f32 %v6005, %v6618
      %6620 = vdwg.mxu0
      %6621 = vmatpush.bf16.msra.mxu0 %v6327
      %6622 = vmatpush.bf16.msra.mxu0 %v6325
      %6623 = vmatpush.bf16.msra.mxu0 %v6323
      %6624 = vmatpush.bf16.msra.mxu0 %v6321
      %6625 = vmatpush.bf16.msra.mxu0 %v6319
      %6626 = vmatpush.bf16.msra.mxu0 %v6317
      %6627 = vmatpush.bf16.msra.mxu0 %v6315
      %6628 = vmatpush.bf16.msra.mxu0 %v6313
      %6629 = vmatmul.bf16.gmra.mxu0 %v5895
      %v6630 = vpop.f32.mrf.mxu0
      %v6631 = vadd.f32 %v6612, %v6630
      %v6632 = vpop.f32.mrf.mxu0
      %v6633 = vadd.f32 %v6614, %v6632
      %6634 = vmatmul.bf16.gmra.mxu0 %v5901
      %v6635 = vpop.f32.mrf.mxu0
      %v6636 = vadd.f32 %v6617, %v6635
      %v6637 = vpop.f32.mrf.mxu0
      %v6638 = vadd.f32 %v6619, %v6637
      %6639 = vdwg.mxu0
      %6640 = vmatpush.bf16.msra.mxu0 %v6343
      %6641 = vmatpush.bf16.msra.mxu0 %v6341
      %6642 = vmatpush.bf16.msra.mxu0 %v6339
      %6643 = vmatpush.bf16.msra.mxu0 %v6337
      %6644 = vmatpush.bf16.msra.mxu0 %v6335
      %6645 = vmatpush.bf16.msra.mxu0 %v6333
      %6646 = vmatpush.bf16.msra.mxu0 %v6331
      %6647 = vmatpush.bf16.msra.mxu0 %v6329
      %6648 = vmatmul.bf16.gmra.mxu0 %v5896
      %v6649 = vpop.f32.mrf.mxu0
      %v6650 = vadd.f32 %v6631, %v6649
      %v6651 = vpop.f32.mrf.mxu0
      %v6652 = vadd.f32 %v6633, %v6651
      %6653 = vmatmul.bf16.gmra.mxu0 %v5902
      %v6654 = vpop.f32.mrf.mxu0
      %v6655 = vadd.f32 %v6636, %v6654
      %v6656 = vpop.f32.mrf.mxu0
      %v6657 = vadd.f32 %v6638, %v6656
      %6658 = vdwg.mxu0
      %6659 = vmatpush.bf16.msra.mxu0 %v6359
      %6660 = vmatpush.bf16.msra.mxu0 %v6357
      %6661 = vmatpush.bf16.msra.mxu0 %v6355
      %6662 = vmatpush.bf16.msra.mxu0 %v6353
      %6663 = vmatpush.bf16.msra.mxu0 %v6351
      %6664 = vmatpush.bf16.msra.mxu0 %v6349
      %6665 = vmatpush.bf16.msra.mxu0 %v6347
      %6666 = vmatpush.bf16.msra.mxu0 %v6345
      %6667 = vmatmul.bf16.gmra.mxu0 %v5897
      %v6668 = vpop.f32.mrf.mxu0
      %v6669 = vadd.f32 %v6650, %v6668
      %v6670 = vpop.f32.mrf.mxu0
      %v6671 = vadd.f32 %v6652, %v6670
      %6672 = vmatmul.bf16.gmra.mxu0 %v5903
      %v6673 = vpop.f32.mrf.mxu0
      %v6674 = vadd.f32 %v6655, %v6673
      %v6675 = vpop.f32.mrf.mxu0
      %v6676 = vadd.f32 %v6657, %v6675
      %6677 = vdwg.mxu0
      %6678 = vmatpush.bf16.msra.mxu0 %v6375
      %6679 = vmatpush.bf16.msra.mxu0 %v6373
      %6680 = vmatpush.bf16.msra.mxu0 %v6371
      %6681 = vmatpush.bf16.msra.mxu0 %v6369
      %6682 = vmatpush.bf16.msra.mxu0 %v6367
      %6683 = vmatpush.bf16.msra.mxu0 %v6365
      %6684 = vmatpush.bf16.msra.mxu0 %v6363
      %6685 = vmatpush.bf16.msra.mxu0 %v6361
      %6686 = vmatmul.bf16.gmra.mxu0 %v5898
      %v6687 = vpop.f32.mrf.mxu0
      %v6688 = vadd.f32 %v6669, %v6687
      %v6689 = vpop.f32.mrf.mxu0
      %v6690 = vadd.f32 %v6671, %v6689
      %6691 = vmatmul.bf16.gmra.mxu0 %v5904
      %v6692 = vpop.f32.mrf.mxu0
      %v6693 = vadd.f32 %v6674, %v6692
      %v6694 = vpop.f32.mrf.mxu0
      %v6695 = vadd.f32 %v6676, %v6694
      %6696 = vdwg.mxu0
      %6697 = vmatpush.bf16.msra.mxu0 %v6391
      %6698 = vmatpush.bf16.msra.mxu0 %v6389
      %6699 = vmatpush.bf16.msra.mxu0 %v6387
      %6700 = vmatpush.bf16.msra.mxu0 %v6385
      %6701 = vmatpush.bf16.msra.mxu0 %v6383
      %6702 = vmatpush.bf16.msra.mxu0 %v6381
      %6703 = vmatpush.bf16.msra.mxu0 %v6379
      %6704 = vmatpush.bf16.msra.mxu0 %v6377
      %6705 = vmatmul.bf16.gmra.mxu0 %v5899
      %v6706 = vpop.f32.mrf.mxu0
      %v6707 = vadd.f32 %v6688, %v6706
      %v6708 = vpop.f32.mrf.mxu0
      %v6709 = vadd.f32 %v6690, %v6708
      %6710 = vmatmul.bf16.gmra.mxu0 %v5905
      %v6711 = vpop.f32.mrf.mxu0
      %v6712 = vadd.f32 %v6693, %v6711
      %v6713 = vpop.f32.mrf.mxu0
      %v6714 = vadd.f32 %v6695, %v6713
      %6715 = vdwg.mxu0
      %v6716 = vadd.f32 %v6593, %v4936
      %v6717 = vadd.f32 %v6707, %v4937
      %v6718 = vadd.f32 %v6595, %v4938
      %v6719 = vadd.f32 %v6709, %v4939
      %v6720 = vadd.f32 %v6598, %v4940
      %v6721 = vadd.f32 %v6712, %v4941
      %v6722 = vadd.f32 %v6600, %v4942
      %v6723 = vadd.f32 %v6714, %v4943
      %v6724 = vmax.f32 %v6716, 0.0
      %v6725 = vmax.f32 %v6717, 0.0
      %v6726 = vmax.f32 %v6718, 0.0
      %v6727 = vmax.f32 %v6719, 0.0
      %v6728 = vmax.f32 %v6720, 0.0
      %v6729 = vmax.f32 %v6721, 0.0
      %v6730 = vmax.f32 %v6722, 0.0
      %v6731 = vmax.f32 %v6723, 0.0
      %v6732 = vmul.f32 %v6724, %v742
      %v6733 = vmul.f32 %v6725, %v742
      %v6734 = vmul.f32 %v6726, %v743
      %v6735 = vmul.f32 %v6727, %v743
      %v6736 = vmul.f32 %v6728, %v744
      %v6737 = vmul.f32 %v6729, %v744
      %v6738 = vmul.f32 %v6730, %v745
      %v6739 = vmul.f32 %v6731, %v745
      %v6748 = vrot.slane %v6732, 1
      %v6749 = vrot.slane %v6734, 1
      %v6750 = vsel %vm2865, %v6748, %v6749
      %v6751 = vrot.slane %v6733, 1
      %v6752 = vrot.slane %v6735, 1
      %v6753 = vsel %vm2865, %v6751, %v6752
      %v6754 = vrot.slane %v6736, 1
      %v6755 = vsel %vm2865, %v6749, %v6754
      %v6756 = vrot.slane %v6737, 1
      %v6757 = vsel %vm2865, %v6752, %v6756
      %v6758 = vrot.slane %v6738, 1
      %v6759 = vsel %vm2865, %v6754, %v6758
      %v6760 = vrot.slane %v6739, 1
      %v6761 = vsel %vm2865, %v6756, %v6760
      %v6770 = vsel %vm2865, %v6758, 0.0
      %v6771 = vsel %vm2865, %v6760, 0.0
      %vm6772 = vcmask 1045504
      %v6773 = vrot.slane %v6732, 2
      %v6774 = vrot.slane %v6734, 2
      %v6775 = vsel %vm6772, %v6773, %v6774
      %v6776 = vrot.slane %v6733, 2
      %v6777 = vrot.slane %v6735, 2
      %v6778 = vsel %vm6772, %v6776, %v6777
      %v6779 = vrot.slane %v6736, 2
      %v6780 = vsel %vm6772, %v6774, %v6779
      %v6781 = vrot.slane %v6737, 2
      %v6782 = vsel %vm6772, %v6777, %v6781
      %v6783 = vrot.slane %v6738, 2
      %v6784 = vsel %vm6772, %v6779, %v6783
      %v6785 = vrot.slane %v6739, 2
      %v6786 = vsel %vm6772, %v6781, %v6785
      %v6795 = vsel %vm6772, %v6783, 0.0
      %v6796 = vsel %vm6772, %v6785, 0.0
      %v6797 = vadd.f32 %v6750, %v6775
      %v6798 = vadd.f32 %v6753, %v6778
      %v6799 = vadd.f32 %v6755, %v6780
      %v6800 = vadd.f32 %v6757, %v6782
      %v6801 = vadd.f32 %v6759, %v6784
      %v6802 = vadd.f32 %v6761, %v6786
      %v6803 = vadd.f32 %v6770, %v6795
      %v6804 = vadd.f32 %v6771, %v6796
      %vm6805 = vcmask 1044480
      %v6806 = vrot.slane %v6732, 3
      %v6807 = vrot.slane %v6734, 3
      %v6808 = vsel %vm6805, %v6806, %v6807
      %v6809 = vrot.slane %v6733, 3
      %v6810 = vrot.slane %v6735, 3
      %v6811 = vsel %vm6805, %v6809, %v6810
      %v6812 = vrot.slane %v6736, 3
      %v6813 = vsel %vm6805, %v6807, %v6812
      %v6814 = vrot.slane %v6737, 3
      %v6815 = vsel %vm6805, %v6810, %v6814
      %v6816 = vrot.slane %v6738, 3
      %v6817 = vsel %vm6805, %v6812, %v6816
      %v6818 = vrot.slane %v6739, 3
      %v6819 = vsel %vm6805, %v6814, %v6818
      %v6828 = vsel %vm6805, %v6816, 0.0
      %v6829 = vsel %vm6805, %v6818, 0.0
      %v6830 = vadd.f32 %v6797, %v6808
      %v6831 = vadd.f32 %v6798, %v6811
      %v6832 = vadd.f32 %v6799, %v6813
      %v6833 = vadd.f32 %v6800, %v6815
      %v6834 = vadd.f32 %v6801, %v6817
      %v6835 = vadd.f32 %v6802, %v6819
      %v6836 = vadd.f32 %v6803, %v6828
      %v6837 = vadd.f32 %v6804, %v6829
      %vm6838 = vcmask 1043456
      %v6839 = vrot.slane %v6732, 4
      %v6840 = vrot.slane %v6734, 4
      %v6841 = vsel %vm6838, %v6839, %v6840
      %v6842 = vrot.slane %v6733, 4
      %v6843 = vrot.slane %v6735, 4
      %v6844 = vsel %vm6838, %v6842, %v6843
      %v6845 = vrot.slane %v6736, 4
      %v6846 = vsel %vm6838, %v6840, %v6845
      %v6847 = vrot.slane %v6737, 4
      %v6848 = vsel %vm6838, %v6843, %v6847
      %v6849 = vrot.slane %v6738, 4
      %v6850 = vsel %vm6838, %v6845, %v6849
      %v6851 = vrot.slane %v6739, 4
      %v6852 = vsel %vm6838, %v6847, %v6851
      %v6861 = vsel %vm6838, %v6849, 0.0
      %v6862 = vsel %vm6838, %v6851, 0.0
      %v6863 = vadd.f32 %v6830, %v6841
      %v6864 = vadd.f32 %v6831, %v6844
      %v6865 = vadd.f32 %v6832, %v6846
      %v6866 = vadd.f32 %v6833, %v6848
      %v6867 = vadd.f32 %v6834, %v6850
      %v6868 = vadd.f32 %v6835, %v6852
      %v6869 = vadd.f32 %v6836, %v6861
      %v6870 = vadd.f32 %v6837, %v6862
      %vm6871 = vcmask 1042432
      %v6872 = vrot.slane %v6732, 5
      %v6873 = vrot.slane %v6734, 5
      %v6874 = vsel %vm6871, %v6872, %v6873
      %v6875 = vrot.slane %v6733, 5
      %v6876 = vrot.slane %v6735, 5
      %v6877 = vsel %vm6871, %v6875, %v6876
      %v6878 = vrot.slane %v6736, 5
      %v6879 = vsel %vm6871, %v6873, %v6878
      %v6880 = vrot.slane %v6737, 5
      %v6881 = vsel %vm6871, %v6876, %v6880
      %v6882 = vrot.slane %v6738, 5
      %v6883 = vsel %vm6871, %v6878, %v6882
      %v6884 = vrot.slane %v6739, 5
      %v6885 = vsel %vm6871, %v6880, %v6884
      %v6894 = vsel %vm6871, %v6882, 0.0
      %v6895 = vsel %vm6871, %v6884, 0.0
      %v6896 = vadd.f32 %v6863, %v6874
      %v6897 = vadd.f32 %v6864, %v6877
      %v6898 = vadd.f32 %v6865, %v6879
      %v6899 = vadd.f32 %v6866, %v6881
      %v6900 = vadd.f32 %v6867, %v6883
      %v6901 = vadd.f32 %v6868, %v6885
      %v6902 = vadd.f32 %v6869, %v6894
      %v6903 = vadd.f32 %v6870, %v6895
      %vm6904 = vcmask 1041408
      %v6905 = vrot.slane %v6732, 6
      %v6906 = vrot.slane %v6734, 6
      %v6907 = vsel %vm6904, %v6905, %v6906
      %v6908 = vrot.slane %v6733, 6
      %v6909 = vrot.slane %v6735, 6
      %v6910 = vsel %vm6904, %v6908, %v6909
      %v6911 = vrot.slane %v6736, 6
      %v6912 = vsel %vm6904, %v6906, %v6911
      %v6913 = vrot.slane %v6737, 6
      %v6914 = vsel %vm6904, %v6909, %v6913
      %v6915 = vrot.slane %v6738, 6
      %v6916 = vsel %vm6904, %v6911, %v6915
      %v6917 = vrot.slane %v6739, 6
      %v6918 = vsel %vm6904, %v6913, %v6917
      %v6927 = vsel %vm6904, %v6915, 0.0
      %v6928 = vsel %vm6904, %v6917, 0.0
      %v6929 = vadd.f32 %v6896, %v6907
      %v6930 = vadd.f32 %v6897, %v6910
      %v6931 = vadd.f32 %v6898, %v6912
      %v6932 = vadd.f32 %v6899, %v6914
      %v6933 = vadd.f32 %v6900, %v6916
      %v6934 = vadd.f32 %v6901, %v6918
      %v6935 = vadd.f32 %v6902, %v6927
      %v6936 = vadd.f32 %v6903, %v6928
      %v6937 = vrot.slane %v6732, 7
      %v6938 = vrot.slane %v6734, 7
      %v6939 = vsel %vm2852, %v6937, %v6938
      %v6940 = vrot.slane %v6733, 7
      %v6941 = vrot.slane %v6735, 7
      %v6942 = vsel %vm2852, %v6940, %v6941
      %v6943 = vrot.slane %v6736, 7
      %v6944 = vsel %vm2852, %v6938, %v6943
      %v6945 = vrot.slane %v6737, 7
      %v6946 = vsel %vm2852, %v6941, %v6945
      %v6947 = vrot.slane %v6738, 7
      %v6948 = vsel %vm2852, %v6943, %v6947
      %v6949 = vrot.slane %v6739, 7
      %v6950 = vsel %vm2852, %v6945, %v6949
      %v6959 = vsel %vm2852, %v6947, 0.0
      %v6960 = vsel %vm2852, %v6949, 0.0
      %v6961 = vadd.f32 %v6929, %v6939
      %v6962 = vadd.f32 %v6930, %v6942
      %v6963 = vadd.f32 %v6931, %v6944
      %v6964 = vadd.f32 %v6932, %v6946
      %v6965 = vadd.f32 %v6933, %v6948
      %v6966 = vadd.f32 %v6934, %v6950
      %v6967 = vadd.f32 %v6935, %v6959
      %v6968 = vadd.f32 %v6936, %v6960
      %v6969 = vpack.c.bf16 %v6963, %v6961
      %v6970 = vpack.c.bf16 %v6964, %v6962
      %v6971 = vpack.c.bf16 %v6967, %v6965
      %v6972 = vpack.c.bf16 %v6968, %v6966
      %v6973 = vld [vmem:[%s17] sm:$0xf]
      %v6974 = vld [vmem:[%s17 + $0x4] sm:$0xf]
      %v6975 = vld [vmem:[%s17 + $0x8] sm:$0xf]
      %v6976 = vld [vmem:[%s17 + $0xc] sm:$0xf]
      %v6977 = vld [vmem:[%s17 + $0x10] sm:$0xf]
      %v6978 = vld [vmem:[%s17 + $0x14] sm:$0xf]
      %v6979 = vld [vmem:[%s17 + $0x18] sm:$0xf]
      %v6980 = vld [vmem:[%s17 + $0x1c] sm:$0xf]
      %v6981 = vld [vmem:[%s17 + $0x20] sm:$0xf]
      %v6982 = vld [vmem:[%s17 + $0x24] sm:$0xf]
      %v6983 = vld [vmem:[%s17 + $0x28] sm:$0xf]
      %v6984 = vld [vmem:[%s17 + $0x2c] sm:$0xf]
      %v6985 = vld [vmem:[%s17 + $0x30] sm:$0xf]
      %v6986 = vld [vmem:[%s17 + $0x34] sm:$0xf]
      %v6987 = vld [vmem:[%s17 + $0x38] sm:$0xf]
      %v6988 = vld [vmem:[%s17 + $0x3c] sm:$0xf]
      %v6989 = vld [vmem:[%s17 + $0x40] sm:$0xf]
      %v6990 = vld [vmem:[%s17 + $0x44] sm:$0xf]
      %v6991 = vld [vmem:[%s17 + $0x48] sm:$0xf]
      %v6992 = vld [vmem:[%s17 + $0x4c] sm:$0xf]
      %v6993 = vld [vmem:[%s17 + $0x50] sm:$0xf]
      %v6994 = vld [vmem:[%s17 + $0x54] sm:$0xf]
      %v6995 = vld [vmem:[%s17 + $0x58] sm:$0xf]
      %v6996 = vld [vmem:[%s17 + $0x5c] sm:$0xf]
      %v6997 = vld [vmem:[%s17 + $0x60] sm:$0xf]
      %v6998 = vld [vmem:[%s17 + $0x64] sm:$0xf]
      %v6999 = vld [vmem:[%s17 + $0x68] sm:$0xf]
      %v7000 = vld [vmem:[%s17 + $0x6c] sm:$0xf]
      %v7001 = vld [vmem:[%s17 + $0x70] sm:$0xf]
      %v7002 = vld [vmem:[%s17 + $0x74] sm:$0xf]
      %v7003 = vld [vmem:[%s17 + $0x78] sm:$0xf]
      %v7004 = vld [vmem:[%s17 + $0x7c] sm:$0xf]
      %v7013 = vrot.slane %v6961, 1
      %v7014 = vrot.slane %v6963, 1
      %v7015 = vsel %vm2865, %v7013, %v7014
      %v7016 = vrot.slane %v6962, 1
      %v7017 = vrot.slane %v6964, 1
      %v7018 = vsel %vm2865, %v7016, %v7017
      %v7019 = vrot.slane %v6965, 1
      %v7020 = vsel %vm2865, %v7014, %v7019
      %v7021 = vrot.slane %v6966, 1
      %v7022 = vsel %vm2865, %v7017, %v7021
      %v7023 = vrot.slane %v6967, 1
      %v7024 = vsel %vm2865, %v7019, %v7023
      %v7025 = vrot.slane %v6968, 1
      %v7026 = vsel %vm2865, %v7021, %v7025
      %v7035 = vsel %vm2865, %v7023, 0.0
      %v7036 = vsel %vm2865, %v7025, 0.0
      %v7037 = vpack.c.bf16 %v7020, %v7015
      %v7038 = vpack.c.bf16 %v7022, %v7018
      %v7039 = vpack.c.bf16 %v7035, %v7024
      %v7040 = vpack.c.bf16 %v7036, %v7026
      %s7041 = scalar_lea.vmem %s17, 128
      %v7042 = vld [vmem:[%s7041] sm:$0xf]
      %v7043 = vld [vmem:[%s7041 + $0x4] sm:$0xf]
      %v7044 = vld [vmem:[%s7041 + $0x8] sm:$0xf]
      %v7045 = vld [vmem:[%s7041 + $0xc] sm:$0xf]
      %v7046 = vld [vmem:[%s7041 + $0x10] sm:$0xf]
      %v7047 = vld [vmem:[%s7041 + $0x14] sm:$0xf]
      %v7048 = vld [vmem:[%s7041 + $0x18] sm:$0xf]
      %v7049 = vld [vmem:[%s7041 + $0x1c] sm:$0xf]
      %v7050 = vld [vmem:[%s7041 + $0x20] sm:$0xf]
      %v7051 = vld [vmem:[%s7041 + $0x24] sm:$0xf]
      %v7052 = vld [vmem:[%s7041 + $0x28] sm:$0xf]
      %v7053 = vld [vmem:[%s7041 + $0x2c] sm:$0xf]
      %v7054 = vld [vmem:[%s7041 + $0x30] sm:$0xf]
      %v7055 = vld [vmem:[%s7041 + $0x34] sm:$0xf]
      %v7056 = vld [vmem:[%s7041 + $0x38] sm:$0xf]
      %v7057 = vld [vmem:[%s7041 + $0x3c] sm:$0xf]
      %v7058 = vld [vmem:[%s7041 + $0x40] sm:$0xf]
      %v7059 = vld [vmem:[%s7041 + $0x44] sm:$0xf]
      %v7060 = vld [vmem:[%s7041 + $0x48] sm:$0xf]
      %v7061 = vld [vmem:[%s7041 + $0x4c] sm:$0xf]
      %v7062 = vld [vmem:[%s7041 + $0x50] sm:$0xf]
      %v7063 = vld [vmem:[%s7041 + $0x54] sm:$0xf]
      %v7064 = vld [vmem:[%s7041 + $0x58] sm:$0xf]
      %v7065 = vld [vmem:[%s7041 + $0x5c] sm:$0xf]
      %v7066 = vld [vmem:[%s7041 + $0x60] sm:$0xf]
      %v7067 = vld [vmem:[%s7041 + $0x64] sm:$0xf]
      %v7068 = vld [vmem:[%s7041 + $0x68] sm:$0xf]
      %v7069 = vld [vmem:[%s7041 + $0x6c] sm:$0xf]
      %v7070 = vld [vmem:[%s7041 + $0x70] sm:$0xf]
      %v7071 = vld [vmem:[%s7041 + $0x74] sm:$0xf]
      %v7072 = vld [vmem:[%s7041 + $0x78] sm:$0xf]
      %v7073 = vld [vmem:[%s7041 + $0x7c] sm:$0xf]
      %v7106 = vunpack.c.l.b16 %v7042
      %v7107 = vunpack.c.l.b16 %v7043
      %v7108 = vunpack.c.l.b16 %v7044
      %v7109 = vunpack.c.l.b16 %v7045
      %v7110 = vunpack.c.l.b16 %v7046
      %v7111 = vunpack.c.l.b16 %v7047
      %v7112 = vunpack.c.l.b16 %v7048
      %v7113 = vunpack.c.l.b16 %v7049
      %v7114 = vunpack.c.l.b16 %v7050
      %v7115 = vunpack.c.l.b16 %v7051
      %v7116 = vunpack.c.l.b16 %v7052
      %v7117 = vunpack.c.l.b16 %v7053
      %v7118 = vunpack.c.l.b16 %v7054
      %v7119 = vunpack.c.l.b16 %v7055
      %v7120 = vunpack.c.l.b16 %v7056
      %v7121 = vunpack.c.l.b16 %v7057
      %v7122 = vunpack.c.l.b16 %v7058
      %v7123 = vunpack.c.l.b16 %v7059
      %v7124 = vunpack.c.l.b16 %v7060
      %v7125 = vunpack.c.l.b16 %v7061
      %v7126 = vunpack.c.l.b16 %v7062
      %v7127 = vunpack.c.l.b16 %v7063
      %v7128 = vunpack.c.l.b16 %v7064
      %v7129 = vunpack.c.l.b16 %v7065
      %v7130 = vunpack.c.l.b16 %v7066
      %v7131 = vunpack.c.l.b16 %v7067
      %v7132 = vunpack.c.l.b16 %v7068
      %v7133 = vunpack.c.l.b16 %v7069
      %v7134 = vunpack.c.l.b16 %v7070
      %v7135 = vunpack.c.l.b16 %v7071
      %v7136 = vunpack.c.l.b16 %v7072
      %v7137 = vunpack.c.l.b16 %v7073
      %v7138 = vpack.c.b16 %v7107, %v7106
      %v7139 = vpack.c.b16 %v7109, %v7108
      %v7140 = vpack.c.b16 %v7111, %v7110
      %v7141 = vpack.c.b16 %v7113, %v7112
      %v7142 = vpack.c.b16 %v7115, %v7114
      %v7143 = vpack.c.b16 %v7117, %v7116
      %v7144 = vpack.c.b16 %v7119, %v7118
      %v7145 = vpack.c.b16 %v7121, %v7120
      %v7146 = vpack.c.b16 %v7123, %v7122
      %v7147 = vpack.c.b16 %v7125, %v7124
      %v7148 = vpack.c.b16 %v7127, %v7126
      %v7149 = vpack.c.b16 %v7129, %v7128
      %v7150 = vpack.c.b16 %v7131, %v7130
      %v7151 = vpack.c.b16 %v7133, %v7132
      %v7152 = vpack.c.b16 %v7135, %v7134
      %v7153 = vpack.c.b16 %v7137, %v7136
      %7170 = vmatpush.bf16.msra.mxu0 %v7145
      %7171 = vmatpush.bf16.msra.mxu0 %v7144
      %7172 = vmatpush.bf16.msra.mxu0 %v7143
      %7173 = vmatpush.bf16.msra.mxu0 %v7142
      %7174 = vmatpush.bf16.msra.mxu0 %v7141
      %7175 = vmatpush.bf16.msra.mxu0 %v7140
      %7176 = vmatpush.bf16.msra.mxu0 %v7139
      %7177 = vmatpush.bf16.msra.mxu0 %v7138
      %7178 = vmatmul.bf16.gmra.mxu0 %v7037
      %v7179 = vpop.f32.mrf.mxu0
      %v7180 = vadd.f32 0.0, %v7179
      %v7181 = vpop.f32.mrf.mxu0
      %v7182 = vadd.f32 0.0, %v7181
      %7183 = vmatmul.bf16.gmra.mxu0 %v7039
      %v7184 = vpop.f32.mrf.mxu0
      %v7185 = vadd.f32 0.0, %v7184
      %v7186 = vpop.f32.mrf.mxu0
      %v7187 = vadd.f32 0.0, %v7186
      %7188 = vdwg.mxu0
      %7189 = vmatpush.bf16.msra.mxu0 %v7153
      %7190 = vmatpush.bf16.msra.mxu0 %v7152
      %7191 = vmatpush.bf16.msra.mxu0 %v7151
      %7192 = vmatpush.bf16.msra.mxu0 %v7150
      %7193 = vmatpush.bf16.msra.mxu0 %v7149
      %7194 = vmatpush.bf16.msra.mxu0 %v7148
      %7195 = vmatpush.bf16.msra.mxu0 %v7147
      %7196 = vmatpush.bf16.msra.mxu0 %v7146
      %7197 = vmatmul.bf16.gmra.mxu0 %v7038
      %v7198 = vpop.f32.mrf.mxu0
      %v7199 = vadd.f32 %v7180, %v7198
      %v7200 = vpop.f32.mrf.mxu0
      %v7201 = vadd.f32 %v7182, %v7200
      %7202 = vmatmul.bf16.gmra.mxu0 %v7040
      %v7203 = vpop.f32.mrf.mxu0
      %v7204 = vadd.f32 %v7185, %v7203
      %v7205 = vpop.f32.mrf.mxu0
      %v7206 = vadd.f32 %v7187, %v7205
      %7207 = vdwg.mxu0
      %v7240 = vunpack.c.l.b16 %v6973
      %v7241 = vunpack.c.l.b16 %v6974
      %v7242 = vunpack.c.l.b16 %v6975
      %v7243 = vunpack.c.l.b16 %v6976
      %v7244 = vunpack.c.l.b16 %v6977
      %v7245 = vunpack.c.l.b16 %v6978
      %v7246 = vunpack.c.l.b16 %v6979
      %v7247 = vunpack.c.l.b16 %v6980
      %v7248 = vunpack.c.l.b16 %v6981
      %v7249 = vunpack.c.l.b16 %v6982
      %v7250 = vunpack.c.l.b16 %v6983
      %v7251 = vunpack.c.l.b16 %v6984
      %v7252 = vunpack.c.l.b16 %v6985
      %v7253 = vunpack.c.l.b16 %v6986
      %v7254 = vunpack.c.l.b16 %v6987
      %v7255 = vunpack.c.l.b16 %v6988
      %v7256 = vunpack.c.l.b16 %v6989
      %v7257 = vunpack.c.l.b16 %v6990
      %v7258 = vunpack.c.l.b16 %v6991
      %v7259 = vunpack.c.l.b16 %v6992
      %v7260 = vunpack.c.l.b16 %v6993
      %v7261 = vunpack.c.l.b16 %v6994
      %v7262 = vunpack.c.l.b16 %v6995
      %v7263 = vunpack.c.l.b16 %v6996
      %v7264 = vunpack.c.l.b16 %v6997
      %v7265 = vunpack.c.l.b16 %v6998
      %v7266 = vunpack.c.l.b16 %v6999
      %v7267 = vunpack.c.l.b16 %v7000
      %v7268 = vunpack.c.l.b16 %v7001
      %v7269 = vunpack.c.l.b16 %v7002
      %v7270 = vunpack.c.l.b16 %v7003
      %v7271 = vunpack.c.l.b16 %v7004
      %v7272 = vpack.c.b16 %v7241, %v7240
      %v7273 = vpack.c.b16 %v7243, %v7242
      %v7274 = vpack.c.b16 %v7245, %v7244
      %v7275 = vpack.c.b16 %v7247, %v7246
      %v7276 = vpack.c.b16 %v7249, %v7248
      %v7277 = vpack.c.b16 %v7251, %v7250
      %v7278 = vpack.c.b16 %v7253, %v7252
      %v7279 = vpack.c.b16 %v7255, %v7254
      %v7280 = vpack.c.b16 %v7257, %v7256
      %v7281 = vpack.c.b16 %v7259, %v7258
      %v7282 = vpack.c.b16 %v7261, %v7260
      %v7283 = vpack.c.b16 %v7263, %v7262
      %v7284 = vpack.c.b16 %v7265, %v7264
      %v7285 = vpack.c.b16 %v7267, %v7266
      %v7286 = vpack.c.b16 %v7269, %v7268
      %v7287 = vpack.c.b16 %v7271, %v7270
      %7304 = vmatpush.bf16.msra.mxu0 %v7279
      %7305 = vmatpush.bf16.msra.mxu0 %v7278
      %7306 = vmatpush.bf16.msra.mxu0 %v7277
      %7307 = vmatpush.bf16.msra.mxu0 %v7276
      %7308 = vmatpush.bf16.msra.mxu0 %v7275
      %7309 = vmatpush.bf16.msra.mxu0 %v7274
      %7310 = vmatpush.bf16.msra.mxu0 %v7273
      %7311 = vmatpush.bf16.msra.mxu0 %v7272
      %7312 = vmatmul.bf16.gmra.mxu0 %v6969
      %v7313 = vpop.f32.mrf.mxu0
      %v7314 = vadd.f32 %v7199, %v7313
      %v7315 = vpop.f32.mrf.mxu0
      %v7316 = vadd.f32 %v7201, %v7315
      %7317 = vmatmul.bf16.gmra.mxu0 %v6971
      %v7318 = vpop.f32.mrf.mxu0
      %v7319 = vadd.f32 %v7204, %v7318
      %v7320 = vpop.f32.mrf.mxu0
      %v7321 = vadd.f32 %v7206, %v7320
      %7322 = vdwg.mxu0
      %7323 = vmatpush.bf16.msra.mxu0 %v7287
      %7324 = vmatpush.bf16.msra.mxu0 %v7286
      %7325 = vmatpush.bf16.msra.mxu0 %v7285
      %7326 = vmatpush.bf16.msra.mxu0 %v7284
      %7327 = vmatpush.bf16.msra.mxu0 %v7283
      %7328 = vmatpush.bf16.msra.mxu0 %v7282
      %7329 = vmatpush.bf16.msra.mxu0 %v7281
      %7330 = vmatpush.bf16.msra.mxu0 %v7280
      %7331 = vmatmul.bf16.gmra.mxu0 %v6970
      %v7332 = vpop.f32.mrf.mxu0
      %v7333 = vadd.f32 %v7314, %v7332
      %v7334 = vpop.f32.mrf.mxu0
      %v7335 = vadd.f32 %v7316, %v7334
      %7336 = vmatmul.bf16.gmra.mxu0 %v6972
      %v7337 = vpop.f32.mrf.mxu0
      %v7338 = vadd.f32 %v7319, %v7337
      %v7339 = vpop.f32.mrf.mxu0
      %v7340 = vadd.f32 %v7321, %v7339
      %7341 = vdwg.mxu0
      %v7342 = vrot.slane %v6961, 2
      %v7343 = vrot.slane %v6963, 2
      %v7344 = vsel %vm6772, %v7342, %v7343
      %v7345 = vrot.slane %v6962, 2
      %v7346 = vrot.slane %v6964, 2
      %v7347 = vsel %vm6772, %v7345, %v7346
      %v7348 = vrot.slane %v6965, 2
      %v7349 = vsel %vm6772, %v7343, %v7348
      %v7350 = vrot.slane %v6966, 2
      %v7351 = vsel %vm6772, %v7346, %v7350
      %v7352 = vrot.slane %v6967, 2
      %v7353 = vsel %vm6772, %v7348, %v7352
      %v7354 = vrot.slane %v6968, 2
      %v7355 = vsel %vm6772, %v7350, %v7354
      %v7364 = vsel %vm6772, %v7352, 0.0
      %v7365 = vsel %vm6772, %v7354, 0.0
      %v7366 = vpack.c.bf16 %v7349, %v7344
      %v7367 = vpack.c.bf16 %v7351, %v7347
      %v7368 = vpack.c.bf16 %v7364, %v7353
      %v7369 = vpack.c.bf16 %v7365, %v7355
      %s7370 = scalar_lea.vmem %s17, 256
      %v7371 = vld [vmem:[%s7370] sm:$0xf]
      %v7372 = vld [vmem:[%s7370 + $0x4] sm:$0xf]
      %v7373 = vld [vmem:[%s7370 + $0x8] sm:$0xf]
      %v7374 = vld [vmem:[%s7370 + $0xc] sm:$0xf]
      %v7375 = vld [vmem:[%s7370 + $0x10] sm:$0xf]
      %v7376 = vld [vmem:[%s7370 + $0x14] sm:$0xf]
      %v7377 = vld [vmem:[%s7370 + $0x18] sm:$0xf]
      %v7378 = vld [vmem:[%s7370 + $0x1c] sm:$0xf]
      %v7379 = vld [vmem:[%s7370 + $0x20] sm:$0xf]
      %v7380 = vld [vmem:[%s7370 + $0x24] sm:$0xf]
      %v7381 = vld [vmem:[%s7370 + $0x28] sm:$0xf]
      %v7382 = vld [vmem:[%s7370 + $0x2c] sm:$0xf]
      %v7383 = vld [vmem:[%s7370 + $0x30] sm:$0xf]
      %v7384 = vld [vmem:[%s7370 + $0x34] sm:$0xf]
      %v7385 = vld [vmem:[%s7370 + $0x38] sm:$0xf]
      %v7386 = vld [vmem:[%s7370 + $0x3c] sm:$0xf]
      %v7387 = vld [vmem:[%s7370 + $0x40] sm:$0xf]
      %v7388 = vld [vmem:[%s7370 + $0x44] sm:$0xf]
      %v7389 = vld [vmem:[%s7370 + $0x48] sm:$0xf]
      %v7390 = vld [vmem:[%s7370 + $0x4c] sm:$0xf]
      %v7391 = vld [vmem:[%s7370 + $0x50] sm:$0xf]
      %v7392 = vld [vmem:[%s7370 + $0x54] sm:$0xf]
      %v7393 = vld [vmem:[%s7370 + $0x58] sm:$0xf]
      %v7394 = vld [vmem:[%s7370 + $0x5c] sm:$0xf]
      %v7395 = vld [vmem:[%s7370 + $0x60] sm:$0xf]
      %v7396 = vld [vmem:[%s7370 + $0x64] sm:$0xf]
      %v7397 = vld [vmem:[%s7370 + $0x68] sm:$0xf]
      %v7398 = vld [vmem:[%s7370 + $0x6c] sm:$0xf]
      %v7399 = vld [vmem:[%s7370 + $0x70] sm:$0xf]
      %v7400 = vld [vmem:[%s7370 + $0x74] sm:$0xf]
      %v7401 = vld [vmem:[%s7370 + $0x78] sm:$0xf]
      %v7402 = vld [vmem:[%s7370 + $0x7c] sm:$0xf]
      %v7435 = vunpack.c.l.b16 %v7371
      %v7436 = vunpack.c.l.b16 %v7372
      %v7437 = vunpack.c.l.b16 %v7373
      %v7438 = vunpack.c.l.b16 %v7374
      %v7439 = vunpack.c.l.b16 %v7375
      %v7440 = vunpack.c.l.b16 %v7376
      %v7441 = vunpack.c.l.b16 %v7377
      %v7442 = vunpack.c.l.b16 %v7378
      %v7443 = vunpack.c.l.b16 %v7379
      %v7444 = vunpack.c.l.b16 %v7380
      %v7445 = vunpack.c.l.b16 %v7381
      %v7446 = vunpack.c.l.b16 %v7382
      %v7447 = vunpack.c.l.b16 %v7383
      %v7448 = vunpack.c.l.b16 %v7384
      %v7449 = vunpack.c.l.b16 %v7385
      %v7450 = vunpack.c.l.b16 %v7386
      %v7451 = vunpack.c.l.b16 %v7387
      %v7452 = vunpack.c.l.b16 %v7388
      %v7453 = vunpack.c.l.b16 %v7389
      %v7454 = vunpack.c.l.b16 %v7390
      %v7455 = vunpack.c.l.b16 %v7391
      %v7456 = vunpack.c.l.b16 %v7392
      %v7457 = vunpack.c.l.b16 %v7393
      %v7458 = vunpack.c.l.b16 %v7394
      %v7459 = vunpack.c.l.b16 %v7395
      %v7460 = vunpack.c.l.b16 %v7396
      %v7461 = vunpack.c.l.b16 %v7397
      %v7462 = vunpack.c.l.b16 %v7398
      %v7463 = vunpack.c.l.b16 %v7399
      %v7464 = vunpack.c.l.b16 %v7400
      %v7465 = vunpack.c.l.b16 %v7401
      %v7466 = vunpack.c.l.b16 %v7402
      %v7467 = vpack.c.b16 %v7436, %v7435
      %v7468 = vpack.c.b16 %v7438, %v7437
      %v7469 = vpack.c.b16 %v7440, %v7439
      %v7470 = vpack.c.b16 %v7442, %v7441
      %v7471 = vpack.c.b16 %v7444, %v7443
      %v7472 = vpack.c.b16 %v7446, %v7445
      %v7473 = vpack.c.b16 %v7448, %v7447
      %v7474 = vpack.c.b16 %v7450, %v7449
      %v7475 = vpack.c.b16 %v7452, %v7451
      %v7476 = vpack.c.b16 %v7454, %v7453
      %v7477 = vpack.c.b16 %v7456, %v7455
      %v7478 = vpack.c.b16 %v7458, %v7457
      %v7479 = vpack.c.b16 %v7460, %v7459
      %v7480 = vpack.c.b16 %v7462, %v7461
      %v7481 = vpack.c.b16 %v7464, %v7463
      %v7482 = vpack.c.b16 %v7466, %v7465
      %7499 = vmatpush.bf16.msra.mxu0 %v7474
      %7500 = vmatpush.bf16.msra.mxu0 %v7473
      %7501 = vmatpush.bf16.msra.mxu0 %v7472
      %7502 = vmatpush.bf16.msra.mxu0 %v7471
      %7503 = vmatpush.bf16.msra.mxu0 %v7470
      %7504 = vmatpush.bf16.msra.mxu0 %v7469
      %7505 = vmatpush.bf16.msra.mxu0 %v7468
      %7506 = vmatpush.bf16.msra.mxu0 %v7467
      %7507 = vmatmul.bf16.gmra.mxu0 %v7366
      %v7508 = vpop.f32.mrf.mxu0
      %v7509 = vadd.f32 0.0, %v7508
      %v7510 = vpop.f32.mrf.mxu0
      %v7511 = vadd.f32 0.0, %v7510
      %7512 = vmatmul.bf16.gmra.mxu0 %v7368
      %v7513 = vpop.f32.mrf.mxu0
      %v7514 = vadd.f32 0.0, %v7513
      %v7515 = vpop.f32.mrf.mxu0
      %v7516 = vadd.f32 0.0, %v7515
      %7517 = vdwg.mxu0
      %7518 = vmatpush.bf16.msra.mxu0 %v7482
      %7519 = vmatpush.bf16.msra.mxu0 %v7481
      %7520 = vmatpush.bf16.msra.mxu0 %v7480
      %7521 = vmatpush.bf16.msra.mxu0 %v7479
      %7522 = vmatpush.bf16.msra.mxu0 %v7478
      %7523 = vmatpush.bf16.msra.mxu0 %v7477
      %7524 = vmatpush.bf16.msra.mxu0 %v7476
      %7525 = vmatpush.bf16.msra.mxu0 %v7475
      %7526 = vmatmul.bf16.gmra.mxu0 %v7367
      %v7527 = vpop.f32.mrf.mxu0
      %v7528 = vadd.f32 %v7509, %v7527
      %v7529 = vpop.f32.mrf.mxu0
      %v7530 = vadd.f32 %v7511, %v7529
      %7531 = vmatmul.bf16.gmra.mxu0 %v7369
      %v7532 = vpop.f32.mrf.mxu0
      %v7533 = vadd.f32 %v7514, %v7532
      %v7534 = vpop.f32.mrf.mxu0
      %v7535 = vadd.f32 %v7516, %v7534
      %7536 = vdwg.mxu0
      %v7537 = vadd.f32 %v7333, %v7528
      %v7538 = vadd.f32 %v7335, %v7530
      %v7539 = vadd.f32 %v7338, %v7533
      %v7540 = vadd.f32 %v7340, %v7535
      %v7541 = vrot.slane %v6961, 3
      %v7542 = vrot.slane %v6963, 3
      %v7543 = vsel %vm6805, %v7541, %v7542
      %v7544 = vrot.slane %v6962, 3
      %v7545 = vrot.slane %v6964, 3
      %v7546 = vsel %vm6805, %v7544, %v7545
      %v7547 = vrot.slane %v6965, 3
      %v7548 = vsel %vm6805, %v7542, %v7547
      %v7549 = vrot.slane %v6966, 3
      %v7550 = vsel %vm6805, %v7545, %v7549
      %v7551 = vrot.slane %v6967, 3
      %v7552 = vsel %vm6805, %v7547, %v7551
      %v7553 = vrot.slane %v6968, 3
      %v7554 = vsel %vm6805, %v7549, %v7553
      %v7563 = vsel %vm6805, %v7551, 0.0
      %v7564 = vsel %vm6805, %v7553, 0.0
      %v7565 = vpack.c.bf16 %v7548, %v7543
      %v7566 = vpack.c.bf16 %v7550, %v7546
      %v7567 = vpack.c.bf16 %v7563, %v7552
      %v7568 = vpack.c.bf16 %v7564, %v7554
      %s7569 = scalar_lea.vmem %s17, 384
      %v7570 = vld [vmem:[%s7569] sm:$0xf]
      %v7571 = vld [vmem:[%s7569 + $0x4] sm:$0xf]
      %v7572 = vld [vmem:[%s7569 + $0x8] sm:$0xf]
      %v7573 = vld [vmem:[%s7569 + $0xc] sm:$0xf]
      %v7574 = vld [vmem:[%s7569 + $0x10] sm:$0xf]
      %v7575 = vld [vmem:[%s7569 + $0x14] sm:$0xf]
      %v7576 = vld [vmem:[%s7569 + $0x18] sm:$0xf]
      %v7577 = vld [vmem:[%s7569 + $0x1c] sm:$0xf]
      %v7578 = vld [vmem:[%s7569 + $0x20] sm:$0xf]
      %v7579 = vld [vmem:[%s7569 + $0x24] sm:$0xf]
      %v7580 = vld [vmem:[%s7569 + $0x28] sm:$0xf]
      %v7581 = vld [vmem:[%s7569 + $0x2c] sm:$0xf]
      %v7582 = vld [vmem:[%s7569 + $0x30] sm:$0xf]
      %v7583 = vld [vmem:[%s7569 + $0x34] sm:$0xf]
      %v7584 = vld [vmem:[%s7569 + $0x38] sm:$0xf]
      %v7585 = vld [vmem:[%s7569 + $0x3c] sm:$0xf]
      %v7586 = vld [vmem:[%s7569 + $0x40] sm:$0xf]
      %v7587 = vld [vmem:[%s7569 + $0x44] sm:$0xf]
      %v7588 = vld [vmem:[%s7569 + $0x48] sm:$0xf]
      %v7589 = vld [vmem:[%s7569 + $0x4c] sm:$0xf]
      %v7590 = vld [vmem:[%s7569 + $0x50] sm:$0xf]
      %v7591 = vld [vmem:[%s7569 + $0x54] sm:$0xf]
      %v7592 = vld [vmem:[%s7569 + $0x58] sm:$0xf]
      %v7593 = vld [vmem:[%s7569 + $0x5c] sm:$0xf]
      %v7594 = vld [vmem:[%s7569 + $0x60] sm:$0xf]
      %v7595 = vld [vmem:[%s7569 + $0x64] sm:$0xf]
      %v7596 = vld [vmem:[%s7569 + $0x68] sm:$0xf]
      %v7597 = vld [vmem:[%s7569 + $0x6c] sm:$0xf]
      %v7598 = vld [vmem:[%s7569 + $0x70] sm:$0xf]
      %v7599 = vld [vmem:[%s7569 + $0x74] sm:$0xf]
      %v7600 = vld [vmem:[%s7569 + $0x78] sm:$0xf]
      %v7601 = vld [vmem:[%s7569 + $0x7c] sm:$0xf]
      %v7634 = vunpack.c.l.b16 %v7570
      %v7635 = vunpack.c.l.b16 %v7571
      %v7636 = vunpack.c.l.b16 %v7572
      %v7637 = vunpack.c.l.b16 %v7573
      %v7638 = vunpack.c.l.b16 %v7574
      %v7639 = vunpack.c.l.b16 %v7575
      %v7640 = vunpack.c.l.b16 %v7576
      %v7641 = vunpack.c.l.b16 %v7577
      %v7642 = vunpack.c.l.b16 %v7578
      %v7643 = vunpack.c.l.b16 %v7579
      %v7644 = vunpack.c.l.b16 %v7580
      %v7645 = vunpack.c.l.b16 %v7581
      %v7646 = vunpack.c.l.b16 %v7582
      %v7647 = vunpack.c.l.b16 %v7583
      %v7648 = vunpack.c.l.b16 %v7584
      %v7649 = vunpack.c.l.b16 %v7585
      %v7650 = vunpack.c.l.b16 %v7586
      %v7651 = vunpack.c.l.b16 %v7587
      %v7652 = vunpack.c.l.b16 %v7588
      %v7653 = vunpack.c.l.b16 %v7589
      %v7654 = vunpack.c.l.b16 %v7590
      %v7655 = vunpack.c.l.b16 %v7591
      %v7656 = vunpack.c.l.b16 %v7592
      %v7657 = vunpack.c.l.b16 %v7593
      %v7658 = vunpack.c.l.b16 %v7594
      %v7659 = vunpack.c.l.b16 %v7595
      %v7660 = vunpack.c.l.b16 %v7596
      %v7661 = vunpack.c.l.b16 %v7597
      %v7662 = vunpack.c.l.b16 %v7598
      %v7663 = vunpack.c.l.b16 %v7599
      %v7664 = vunpack.c.l.b16 %v7600
      %v7665 = vunpack.c.l.b16 %v7601
      %v7666 = vpack.c.b16 %v7635, %v7634
      %v7667 = vpack.c.b16 %v7637, %v7636
      %v7668 = vpack.c.b16 %v7639, %v7638
      %v7669 = vpack.c.b16 %v7641, %v7640
      %v7670 = vpack.c.b16 %v7643, %v7642
      %v7671 = vpack.c.b16 %v7645, %v7644
      %v7672 = vpack.c.b16 %v7647, %v7646
      %v7673 = vpack.c.b16 %v7649, %v7648
      %v7674 = vpack.c.b16 %v7651, %v7650
      %v7675 = vpack.c.b16 %v7653, %v7652
      %v7676 = vpack.c.b16 %v7655, %v7654
      %v7677 = vpack.c.b16 %v7657, %v7656
      %v7678 = vpack.c.b16 %v7659, %v7658
      %v7679 = vpack.c.b16 %v7661, %v7660
      %v7680 = vpack.c.b16 %v7663, %v7662
      %v7681 = vpack.c.b16 %v7665, %v7664
      %7698 = vmatpush.bf16.msra.mxu0 %v7673
      %7699 = vmatpush.bf16.msra.mxu0 %v7672
      %7700 = vmatpush.bf16.msra.mxu0 %v7671
      %7701 = vmatpush.bf16.msra.mxu0 %v7670
      %7702 = vmatpush.bf16.msra.mxu0 %v7669
      %7703 = vmatpush.bf16.msra.mxu0 %v7668
      %7704 = vmatpush.bf16.msra.mxu0 %v7667
      %7705 = vmatpush.bf16.msra.mxu0 %v7666
      %7706 = vmatmul.bf16.gmra.mxu0 %v7565
      %v7707 = vpop.f32.mrf.mxu0
      %v7708 = vadd.f32 0.0, %v7707
      %v7709 = vpop.f32.mrf.mxu0
      %v7710 = vadd.f32 0.0, %v7709
      %7711 = vmatmul.bf16.gmra.mxu0 %v7567
      %v7712 = vpop.f32.mrf.mxu0
      %v7713 = vadd.f32 0.0, %v7712
      %v7714 = vpop.f32.mrf.mxu0
      %v7715 = vadd.f32 0.0, %v7714
      %7716 = vdwg.mxu0
      %7717 = vmatpush.bf16.msra.mxu0 %v7681
      %7718 = vmatpush.bf16.msra.mxu0 %v7680
      %7719 = vmatpush.bf16.msra.mxu0 %v7679
      %7720 = vmatpush.bf16.msra.mxu0 %v7678
      %7721 = vmatpush.bf16.msra.mxu0 %v7677
      %7722 = vmatpush.bf16.msra.mxu0 %v7676
      %7723 = vmatpush.bf16.msra.mxu0 %v7675
      %7724 = vmatpush.bf16.msra.mxu0 %v7674
      %7725 = vmatmul.bf16.gmra.mxu0 %v7566
      %v7726 = vpop.f32.mrf.mxu0
      %v7727 = vadd.f32 %v7708, %v7726
      %v7728 = vpop.f32.mrf.mxu0
      %v7729 = vadd.f32 %v7710, %v7728
      %7730 = vmatmul.bf16.gmra.mxu0 %v7568
      %v7731 = vpop.f32.mrf.mxu0
      %v7732 = vadd.f32 %v7713, %v7731
      %v7733 = vpop.f32.mrf.mxu0
      %v7734 = vadd.f32 %v7715, %v7733
      %7735 = vdwg.mxu0
      %v7736 = vadd.f32 %v7537, %v7727
      %v7737 = vadd.f32 %v7538, %v7729
      %v7738 = vadd.f32 %v7539, %v7732
      %v7739 = vadd.f32 %v7540, %v7734
      %v7740 = vrot.slane %v6961, 4
      %v7741 = vrot.slane %v6963, 4
      %v7742 = vsel %vm6838, %v7740, %v7741
      %v7743 = vrot.slane %v6962, 4
      %v7744 = vrot.slane %v6964, 4
      %v7745 = vsel %vm6838, %v7743, %v7744
      %v7746 = vrot.slane %v6965, 4
      %v7747 = vsel %vm6838, %v7741, %v7746
      %v7748 = vrot.slane %v6966, 4
      %v7749 = vsel %vm6838, %v7744, %v7748
      %v7750 = vrot.slane %v6967, 4
      %v7751 = vsel %vm6838, %v7746, %v7750
      %v7752 = vrot.slane %v6968, 4
      %v7753 = vsel %vm6838, %v7748, %v7752
      %v7762 = vsel %vm6838, %v7750, 0.0
      %v7763 = vsel %vm6838, %v7752, 0.0
      %v7764 = vpack.c.bf16 %v7747, %v7742
      %v7765 = vpack.c.bf16 %v7749, %v7745
      %v7766 = vpack.c.bf16 %v7762, %v7751
      %v7767 = vpack.c.bf16 %v7763, %v7753
      %s7768 = scalar_lea.vmem %s17, 512
      %v7769 = vld [vmem:[%s7768] sm:$0xf]
      %v7770 = vld [vmem:[%s7768 + $0x4] sm:$0xf]
      %v7771 = vld [vmem:[%s7768 + $0x8] sm:$0xf]
      %v7772 = vld [vmem:[%s7768 + $0xc] sm:$0xf]
      %v7773 = vld [vmem:[%s7768 + $0x10] sm:$0xf]
      %v7774 = vld [vmem:[%s7768 + $0x14] sm:$0xf]
      %v7775 = vld [vmem:[%s7768 + $0x18] sm:$0xf]
      %v7776 = vld [vmem:[%s7768 + $0x1c] sm:$0xf]
      %v7777 = vld [vmem:[%s7768 + $0x20] sm:$0xf]
      %v7778 = vld [vmem:[%s7768 + $0x24] sm:$0xf]
      %v7779 = vld [vmem:[%s7768 + $0x28] sm:$0xf]
      %v7780 = vld [vmem:[%s7768 + $0x2c] sm:$0xf]
      %v7781 = vld [vmem:[%s7768 + $0x30] sm:$0xf]
      %v7782 = vld [vmem:[%s7768 + $0x34] sm:$0xf]
      %v7783 = vld [vmem:[%s7768 + $0x38] sm:$0xf]
      %v7784 = vld [vmem:[%s7768 + $0x3c] sm:$0xf]
      %v7785 = vld [vmem:[%s7768 + $0x40] sm:$0xf]
      %v7786 = vld [vmem:[%s7768 + $0x44] sm:$0xf]
      %v7787 = vld [vmem:[%s7768 + $0x48] sm:$0xf]
      %v7788 = vld [vmem:[%s7768 + $0x4c] sm:$0xf]
      %v7789 = vld [vmem:[%s7768 + $0x50] sm:$0xf]
      %v7790 = vld [vmem:[%s7768 + $0x54] sm:$0xf]
      %v7791 = vld [vmem:[%s7768 + $0x58] sm:$0xf]
      %v7792 = vld [vmem:[%s7768 + $0x5c] sm:$0xf]
      %v7793 = vld [vmem:[%s7768 + $0x60] sm:$0xf]
      %v7794 = vld [vmem:[%s7768 + $0x64] sm:$0xf]
      %v7795 = vld [vmem:[%s7768 + $0x68] sm:$0xf]
      %v7796 = vld [vmem:[%s7768 + $0x6c] sm:$0xf]
      %v7797 = vld [vmem:[%s7768 + $0x70] sm:$0xf]
      %v7798 = vld [vmem:[%s7768 + $0x74] sm:$0xf]
      %v7799 = vld [vmem:[%s7768 + $0x78] sm:$0xf]
      %v7800 = vld [vmem:[%s7768 + $0x7c] sm:$0xf]
      %v7833 = vunpack.c.l.b16 %v7769
      %v7834 = vunpack.c.l.b16 %v7770
      %v7835 = vunpack.c.l.b16 %v7771
      %v7836 = vunpack.c.l.b16 %v7772
      %v7837 = vunpack.c.l.b16 %v7773
      %v7838 = vunpack.c.l.b16 %v7774
      %v7839 = vunpack.c.l.b16 %v7775
      %v7840 = vunpack.c.l.b16 %v7776
      %v7841 = vunpack.c.l.b16 %v7777
      %v7842 = vunpack.c.l.b16 %v7778
      %v7843 = vunpack.c.l.b16 %v7779
      %v7844 = vunpack.c.l.b16 %v7780
      %v7845 = vunpack.c.l.b16 %v7781
      %v7846 = vunpack.c.l.b16 %v7782
      %v7847 = vunpack.c.l.b16 %v7783
      %v7848 = vunpack.c.l.b16 %v7784
      %v7849 = vunpack.c.l.b16 %v7785
      %v7850 = vunpack.c.l.b16 %v7786
      %v7851 = vunpack.c.l.b16 %v7787
      %v7852 = vunpack.c.l.b16 %v7788
      %v7853 = vunpack.c.l.b16 %v7789
      %v7854 = vunpack.c.l.b16 %v7790
      %v7855 = vunpack.c.l.b16 %v7791
      %v7856 = vunpack.c.l.b16 %v7792
      %v7857 = vunpack.c.l.b16 %v7793
      %v7858 = vunpack.c.l.b16 %v7794
      %v7859 = vunpack.c.l.b16 %v7795
      %v7860 = vunpack.c.l.b16 %v7796
      %v7861 = vunpack.c.l.b16 %v7797
      %v7862 = vunpack.c.l.b16 %v7798
      %v7863 = vunpack.c.l.b16 %v7799
      %v7864 = vunpack.c.l.b16 %v7800
      %v7865 = vpack.c.b16 %v7834, %v7833
      %v7866 = vpack.c.b16 %v7836, %v7835
      %v7867 = vpack.c.b16 %v7838, %v7837
      %v7868 = vpack.c.b16 %v7840, %v7839
      %v7869 = vpack.c.b16 %v7842, %v7841
      %v7870 = vpack.c.b16 %v7844, %v7843
      %v7871 = vpack.c.b16 %v7846, %v7845
      %v7872 = vpack.c.b16 %v7848, %v7847
      %v7873 = vpack.c.b16 %v7850, %v7849
      %v7874 = vpack.c.b16 %v7852, %v7851
      %v7875 = vpack.c.b16 %v7854, %v7853
      %v7876 = vpack.c.b16 %v7856, %v7855
      %v7877 = vpack.c.b16 %v7858, %v7857
      %v7878 = vpack.c.b16 %v7860, %v7859
      %v7879 = vpack.c.b16 %v7862, %v7861
      %v7880 = vpack.c.b16 %v7864, %v7863
      %7897 = vmatpush.bf16.msra.mxu0 %v7872
      %7898 = vmatpush.bf16.msra.mxu0 %v7871
      %7899 = vmatpush.bf16.msra.mxu0 %v7870
      %7900 = vmatpush.bf16.msra.mxu0 %v7869
      %7901 = vmatpush.bf16.msra.mxu0 %v7868
      %7902 = vmatpush.bf16.msra.mxu0 %v7867
      %7903 = vmatpush.bf16.msra.mxu0 %v7866
      %7904 = vmatpush.bf16.msra.mxu0 %v7865
      %7905 = vmatmul.bf16.gmra.mxu0 %v7764
      %v7906 = vpop.f32.mrf.mxu0
      %v7907 = vadd.f32 0.0, %v7906
      %v7908 = vpop.f32.mrf.mxu0
      %v7909 = vadd.f32 0.0, %v7908
      %7910 = vmatmul.bf16.gmra.mxu0 %v7766
      %v7911 = vpop.f32.mrf.mxu0
      %v7912 = vadd.f32 0.0, %v7911
      %v7913 = vpop.f32.mrf.mxu0
      %v7914 = vadd.f32 0.0, %v7913
      %7915 = vdwg.mxu0
      %7916 = vmatpush.bf16.msra.mxu0 %v7880
      %7917 = vmatpush.bf16.msra.mxu0 %v7879
      %7918 = vmatpush.bf16.msra.mxu0 %v7878
      %7919 = vmatpush.bf16.msra.mxu0 %v7877
      %7920 = vmatpush.bf16.msra.mxu0 %v7876
      %7921 = vmatpush.bf16.msra.mxu0 %v7875
      %7922 = vmatpush.bf16.msra.mxu0 %v7874
      %7923 = vmatpush.bf16.msra.mxu0 %v7873
      %7924 = vmatmul.bf16.gmra.mxu0 %v7765
      %v7925 = vpop.f32.mrf.mxu0
      %v7926 = vadd.f32 %v7907, %v7925
      %v7927 = vpop.f32.mrf.mxu0
      %v7928 = vadd.f32 %v7909, %v7927
      %7929 = vmatmul.bf16.gmra.mxu0 %v7767
      %v7930 = vpop.f32.mrf.mxu0
      %v7931 = vadd.f32 %v7912, %v7930
      %v7932 = vpop.f32.mrf.mxu0
      %v7933 = vadd.f32 %v7914, %v7932
      %7934 = vdwg.mxu0
      %v7935 = vadd.f32 %v7736, %v7926
      %v7936 = vadd.f32 %v7737, %v7928
      %v7937 = vadd.f32 %v7738, %v7931
      %v7938 = vadd.f32 %v7739, %v7933
      %v7939 = vrot.slane %v6961, 5
      %v7940 = vrot.slane %v6963, 5
      %v7941 = vsel %vm6871, %v7939, %v7940
      %v7942 = vrot.slane %v6962, 5
      %v7943 = vrot.slane %v6964, 5
      %v7944 = vsel %vm6871, %v7942, %v7943
      %v7945 = vrot.slane %v6965, 5
      %v7946 = vsel %vm6871, %v7940, %v7945
      %v7947 = vrot.slane %v6966, 5
      %v7948 = vsel %vm6871, %v7943, %v7947
      %v7949 = vrot.slane %v6967, 5
      %v7950 = vsel %vm6871, %v7945, %v7949
      %v7951 = vrot.slane %v6968, 5
      %v7952 = vsel %vm6871, %v7947, %v7951
      %v7961 = vsel %vm6871, %v7949, 0.0
      %v7962 = vsel %vm6871, %v7951, 0.0
      %v7963 = vpack.c.bf16 %v7946, %v7941
      %v7964 = vpack.c.bf16 %v7948, %v7944
      %v7965 = vpack.c.bf16 %v7961, %v7950
      %v7966 = vpack.c.bf16 %v7962, %v7952
      %s7967 = scalar_lea.vmem %s17, 640
      %v7968 = vld [vmem:[%s7967] sm:$0xf]
      %v7969 = vld [vmem:[%s7967 + $0x4] sm:$0xf]
      %v7970 = vld [vmem:[%s7967 + $0x8] sm:$0xf]
      %v7971 = vld [vmem:[%s7967 + $0xc] sm:$0xf]
      %v7972 = vld [vmem:[%s7967 + $0x10] sm:$0xf]
      %v7973 = vld [vmem:[%s7967 + $0x14] sm:$0xf]
      %v7974 = vld [vmem:[%s7967 + $0x18] sm:$0xf]
      %v7975 = vld [vmem:[%s7967 + $0x1c] sm:$0xf]
      %v7976 = vld [vmem:[%s7967 + $0x20] sm:$0xf]
      %v7977 = vld [vmem:[%s7967 + $0x24] sm:$0xf]
      %v7978 = vld [vmem:[%s7967 + $0x28] sm:$0xf]
      %v7979 = vld [vmem:[%s7967 + $0x2c] sm:$0xf]
      %v7980 = vld [vmem:[%s7967 + $0x30] sm:$0xf]
      %v7981 = vld [vmem:[%s7967 + $0x34] sm:$0xf]
      %v7982 = vld [vmem:[%s7967 + $0x38] sm:$0xf]
      %v7983 = vld [vmem:[%s7967 + $0x3c] sm:$0xf]
      %v7984 = vld [vmem:[%s7967 + $0x40] sm:$0xf]
      %v7985 = vld [vmem:[%s7967 + $0x44] sm:$0xf]
      %v7986 = vld [vmem:[%s7967 + $0x48] sm:$0xf]
      %v7987 = vld [vmem:[%s7967 + $0x4c] sm:$0xf]
      %v7988 = vld [vmem:[%s7967 + $0x50] sm:$0xf]
      %v7989 = vld [vmem:[%s7967 + $0x54] sm:$0xf]
      %v7990 = vld [vmem:[%s7967 + $0x58] sm:$0xf]
      %v7991 = vld [vmem:[%s7967 + $0x5c] sm:$0xf]
      %v7992 = vld [vmem:[%s7967 + $0x60] sm:$0xf]
      %v7993 = vld [vmem:[%s7967 + $0x64] sm:$0xf]
      %v7994 = vld [vmem:[%s7967 + $0x68] sm:$0xf]
      %v7995 = vld [vmem:[%s7967 + $0x6c] sm:$0xf]
      %v7996 = vld [vmem:[%s7967 + $0x70] sm:$0xf]
      %v7997 = vld [vmem:[%s7967 + $0x74] sm:$0xf]
      %v7998 = vld [vmem:[%s7967 + $0x78] sm:$0xf]
      %v7999 = vld [vmem:[%s7967 + $0x7c] sm:$0xf]
      %v8032 = vunpack.c.l.b16 %v7968
      %v8033 = vunpack.c.l.b16 %v7969
      %v8034 = vunpack.c.l.b16 %v7970
      %v8035 = vunpack.c.l.b16 %v7971
      %v8036 = vunpack.c.l.b16 %v7972
      %v8037 = vunpack.c.l.b16 %v7973
      %v8038 = vunpack.c.l.b16 %v7974
      %v8039 = vunpack.c.l.b16 %v7975
      %v8040 = vunpack.c.l.b16 %v7976
      %v8041 = vunpack.c.l.b16 %v7977
      %v8042 = vunpack.c.l.b16 %v7978
      %v8043 = vunpack.c.l.b16 %v7979
      %v8044 = vunpack.c.l.b16 %v7980
      %v8045 = vunpack.c.l.b16 %v7981
      %v8046 = vunpack.c.l.b16 %v7982
      %v8047 = vunpack.c.l.b16 %v7983
      %v8048 = vunpack.c.l.b16 %v7984
      %v8049 = vunpack.c.l.b16 %v7985
      %v8050 = vunpack.c.l.b16 %v7986
      %v8051 = vunpack.c.l.b16 %v7987
      %v8052 = vunpack.c.l.b16 %v7988
      %v8053 = vunpack.c.l.b16 %v7989
      %v8054 = vunpack.c.l.b16 %v7990
      %v8055 = vunpack.c.l.b16 %v7991
      %v8056 = vunpack.c.l.b16 %v7992
      %v8057 = vunpack.c.l.b16 %v7993
      %v8058 = vunpack.c.l.b16 %v7994
      %v8059 = vunpack.c.l.b16 %v7995
      %v8060 = vunpack.c.l.b16 %v7996
      %v8061 = vunpack.c.l.b16 %v7997
      %v8062 = vunpack.c.l.b16 %v7998
      %v8063 = vunpack.c.l.b16 %v7999
      %v8064 = vpack.c.b16 %v8033, %v8032
      %v8065 = vpack.c.b16 %v8035, %v8034
      %v8066 = vpack.c.b16 %v8037, %v8036
      %v8067 = vpack.c.b16 %v8039, %v8038
      %v8068 = vpack.c.b16 %v8041, %v8040
      %v8069 = vpack.c.b16 %v8043, %v8042
      %v8070 = vpack.c.b16 %v8045, %v8044
      %v8071 = vpack.c.b16 %v8047, %v8046
      %v8072 = vpack.c.b16 %v8049, %v8048
      %v8073 = vpack.c.b16 %v8051, %v8050
      %v8074 = vpack.c.b16 %v8053, %v8052
      %v8075 = vpack.c.b16 %v8055, %v8054
      %v8076 = vpack.c.b16 %v8057, %v8056
      %v8077 = vpack.c.b16 %v8059, %v8058
      %v8078 = vpack.c.b16 %v8061, %v8060
      %v8079 = vpack.c.b16 %v8063, %v8062
      %8096 = vmatpush.bf16.msra.mxu0 %v8071
      %8097 = vmatpush.bf16.msra.mxu0 %v8070
      %8098 = vmatpush.bf16.msra.mxu0 %v8069
      %8099 = vmatpush.bf16.msra.mxu0 %v8068
      %8100 = vmatpush.bf16.msra.mxu0 %v8067
      %8101 = vmatpush.bf16.msra.mxu0 %v8066
      %8102 = vmatpush.bf16.msra.mxu0 %v8065
      %8103 = vmatpush.bf16.msra.mxu0 %v8064
      %8104 = vmatmul.bf16.gmra.mxu0 %v7963
      %v8105 = vpop.f32.mrf.mxu0
      %v8106 = vadd.f32 0.0, %v8105
      %v8107 = vpop.f32.mrf.mxu0
      %v8108 = vadd.f32 0.0, %v8107
      %8109 = vmatmul.bf16.gmra.mxu0 %v7965
      %v8110 = vpop.f32.mrf.mxu0
      %v8111 = vadd.f32 0.0, %v8110
      %v8112 = vpop.f32.mrf.mxu0
      %v8113 = vadd.f32 0.0, %v8112
      %8114 = vdwg.mxu0
      %8115 = vmatpush.bf16.msra.mxu0 %v8079
      %8116 = vmatpush.bf16.msra.mxu0 %v8078
      %8117 = vmatpush.bf16.msra.mxu0 %v8077
      %8118 = vmatpush.bf16.msra.mxu0 %v8076
      %8119 = vmatpush.bf16.msra.mxu0 %v8075
      %8120 = vmatpush.bf16.msra.mxu0 %v8074
      %8121 = vmatpush.bf16.msra.mxu0 %v8073
      %8122 = vmatpush.bf16.msra.mxu0 %v8072
      %8123 = vmatmul.bf16.gmra.mxu0 %v7964
      %v8124 = vpop.f32.mrf.mxu0
      %v8125 = vadd.f32 %v8106, %v8124
      %v8126 = vpop.f32.mrf.mxu0
      %v8127 = vadd.f32 %v8108, %v8126
      %8128 = vmatmul.bf16.gmra.mxu0 %v7966
      %v8129 = vpop.f32.mrf.mxu0
      %v8130 = vadd.f32 %v8111, %v8129
      %v8131 = vpop.f32.mrf.mxu0
      %v8132 = vadd.f32 %v8113, %v8131
      %8133 = vdwg.mxu0
      %v8134 = vadd.f32 %v7935, %v8125
      %v8135 = vadd.f32 %v7936, %v8127
      %v8136 = vadd.f32 %v7937, %v8130
      %v8137 = vadd.f32 %v7938, %v8132
      %v8138 = vrot.slane %v6961, 6
      %v8139 = vrot.slane %v6963, 6
      %v8140 = vsel %vm6904, %v8138, %v8139
      %v8141 = vrot.slane %v6962, 6
      %v8142 = vrot.slane %v6964, 6
      %v8143 = vsel %vm6904, %v8141, %v8142
      %v8144 = vrot.slane %v6965, 6
      %v8145 = vsel %vm6904, %v8139, %v8144
      %v8146 = vrot.slane %v6966, 6
      %v8147 = vsel %vm6904, %v8142, %v8146
      %v8148 = vrot.slane %v6967, 6
      %v8149 = vsel %vm6904, %v8144, %v8148
      %v8150 = vrot.slane %v6968, 6
      %v8151 = vsel %vm6904, %v8146, %v8150
      %v8160 = vsel %vm6904, %v8148, 0.0
      %v8161 = vsel %vm6904, %v8150, 0.0
      %v8162 = vpack.c.bf16 %v8145, %v8140
      %v8163 = vpack.c.bf16 %v8147, %v8143
      %v8164 = vpack.c.bf16 %v8160, %v8149
      %v8165 = vpack.c.bf16 %v8161, %v8151
      %s8166 = scalar_lea.vmem %s17, 768
      %v8167 = vld [vmem:[%s8166] sm:$0xf]
      %v8168 = vld [vmem:[%s8166 + $0x4] sm:$0xf]
      %v8169 = vld [vmem:[%s8166 + $0x8] sm:$0xf]
      %v8170 = vld [vmem:[%s8166 + $0xc] sm:$0xf]
      %v8171 = vld [vmem:[%s8166 + $0x10] sm:$0xf]
      %v8172 = vld [vmem:[%s8166 + $0x14] sm:$0xf]
      %v8173 = vld [vmem:[%s8166 + $0x18] sm:$0xf]
      %v8174 = vld [vmem:[%s8166 + $0x1c] sm:$0xf]
      %v8175 = vld [vmem:[%s8166 + $0x20] sm:$0xf]
      %v8176 = vld [vmem:[%s8166 + $0x24] sm:$0xf]
      %v8177 = vld [vmem:[%s8166 + $0x28] sm:$0xf]
      %v8178 = vld [vmem:[%s8166 + $0x2c] sm:$0xf]
      %v8179 = vld [vmem:[%s8166 + $0x30] sm:$0xf]
      %v8180 = vld [vmem:[%s8166 + $0x34] sm:$0xf]
      %v8181 = vld [vmem:[%s8166 + $0x38] sm:$0xf]
      %v8182 = vld [vmem:[%s8166 + $0x3c] sm:$0xf]
      %v8183 = vld [vmem:[%s8166 + $0x40] sm:$0xf]
      %v8184 = vld [vmem:[%s8166 + $0x44] sm:$0xf]
      %v8185 = vld [vmem:[%s8166 + $0x48] sm:$0xf]
      %v8186 = vld [vmem:[%s8166 + $0x4c] sm:$0xf]
      %v8187 = vld [vmem:[%s8166 + $0x50] sm:$0xf]
      %v8188 = vld [vmem:[%s8166 + $0x54] sm:$0xf]
      %v8189 = vld [vmem:[%s8166 + $0x58] sm:$0xf]
      %v8190 = vld [vmem:[%s8166 + $0x5c] sm:$0xf]
      %v8191 = vld [vmem:[%s8166 + $0x60] sm:$0xf]
      %v8192 = vld [vmem:[%s8166 + $0x64] sm:$0xf]
      %v8193 = vld [vmem:[%s8166 + $0x68] sm:$0xf]
      %v8194 = vld [vmem:[%s8166 + $0x6c] sm:$0xf]
      %v8195 = vld [vmem:[%s8166 + $0x70] sm:$0xf]
      %v8196 = vld [vmem:[%s8166 + $0x74] sm:$0xf]
      %v8197 = vld [vmem:[%s8166 + $0x78] sm:$0xf]
      %v8198 = vld [vmem:[%s8166 + $0x7c] sm:$0xf]
      %v8231 = vunpack.c.l.b16 %v8167
      %v8232 = vunpack.c.l.b16 %v8168
      %v8233 = vunpack.c.l.b16 %v8169
      %v8234 = vunpack.c.l.b16 %v8170
      %v8235 = vunpack.c.l.b16 %v8171
      %v8236 = vunpack.c.l.b16 %v8172
      %v8237 = vunpack.c.l.b16 %v8173
      %v8238 = vunpack.c.l.b16 %v8174
      %v8239 = vunpack.c.l.b16 %v8175
      %v8240 = vunpack.c.l.b16 %v8176
      %v8241 = vunpack.c.l.b16 %v8177
      %v8242 = vunpack.c.l.b16 %v8178
      %v8243 = vunpack.c.l.b16 %v8179
      %v8244 = vunpack.c.l.b16 %v8180
      %v8245 = vunpack.c.l.b16 %v8181
      %v8246 = vunpack.c.l.b16 %v8182
      %v8247 = vunpack.c.l.b16 %v8183
      %v8248 = vunpack.c.l.b16 %v8184
      %v8249 = vunpack.c.l.b16 %v8185
      %v8250 = vunpack.c.l.b16 %v8186
      %v8251 = vunpack.c.l.b16 %v8187
      %v8252 = vunpack.c.l.b16 %v8188
      %v8253 = vunpack.c.l.b16 %v8189
      %v8254 = vunpack.c.l.b16 %v8190
      %v8255 = vunpack.c.l.b16 %v8191
      %v8256 = vunpack.c.l.b16 %v8192
      %v8257 = vunpack.c.l.b16 %v8193
      %v8258 = vunpack.c.l.b16 %v8194
      %v8259 = vunpack.c.l.b16 %v8195
      %v8260 = vunpack.c.l.b16 %v8196
      %v8261 = vunpack.c.l.b16 %v8197
      %v8262 = vunpack.c.l.b16 %v8198
      %v8263 = vpack.c.b16 %v8232, %v8231
      %v8264 = vpack.c.b16 %v8234, %v8233
      %v8265 = vpack.c.b16 %v8236, %v8235
      %v8266 = vpack.c.b16 %v8238, %v8237
      %v8267 = vpack.c.b16 %v8240, %v8239
      %v8268 = vpack.c.b16 %v8242, %v8241
      %v8269 = vpack.c.b16 %v8244, %v8243
      %v8270 = vpack.c.b16 %v8246, %v8245
      %v8271 = vpack.c.b16 %v8248, %v8247
      %v8272 = vpack.c.b16 %v8250, %v8249
      %v8273 = vpack.c.b16 %v8252, %v8251
      %v8274 = vpack.c.b16 %v8254, %v8253
      %v8275 = vpack.c.b16 %v8256, %v8255
      %v8276 = vpack.c.b16 %v8258, %v8257
      %v8277 = vpack.c.b16 %v8260, %v8259
      %v8278 = vpack.c.b16 %v8262, %v8261
      %8295 = vmatpush.bf16.msra.mxu0 %v8270
      %8296 = vmatpush.bf16.msra.mxu0 %v8269
      %8297 = vmatpush.bf16.msra.mxu0 %v8268
      %8298 = vmatpush.bf16.msra.mxu0 %v8267
      %8299 = vmatpush.bf16.msra.mxu0 %v8266
      %8300 = vmatpush.bf16.msra.mxu0 %v8265
      %8301 = vmatpush.bf16.msra.mxu0 %v8264
      %8302 = vmatpush.bf16.msra.mxu0 %v8263
      %8303 = vmatmul.bf16.gmra.mxu0 %v8162
      %v8304 = vpop.f32.mrf.mxu0
      %v8305 = vadd.f32 0.0, %v8304
      %v8306 = vpop.f32.mrf.mxu0
      %v8307 = vadd.f32 0.0, %v8306
      %8308 = vmatmul.bf16.gmra.mxu0 %v8164
      %v8309 = vpop.f32.mrf.mxu0
      %v8310 = vadd.f32 0.0, %v8309
      %v8311 = vpop.f32.mrf.mxu0
      %v8312 = vadd.f32 0.0, %v8311
      %8313 = vdwg.mxu0
      %8314 = vmatpush.bf16.msra.mxu0 %v8278
      %8315 = vmatpush.bf16.msra.mxu0 %v8277
      %8316 = vmatpush.bf16.msra.mxu0 %v8276
      %8317 = vmatpush.bf16.msra.mxu0 %v8275
      %8318 = vmatpush.bf16.msra.mxu0 %v8274
      %8319 = vmatpush.bf16.msra.mxu0 %v8273
      %8320 = vmatpush.bf16.msra.mxu0 %v8272
      %8321 = vmatpush.bf16.msra.mxu0 %v8271
      %8322 = vmatmul.bf16.gmra.mxu0 %v8163
      %v8323 = vpop.f32.mrf.mxu0
      %v8324 = vadd.f32 %v8305, %v8323
      %v8325 = vpop.f32.mrf.mxu0
      %v8326 = vadd.f32 %v8307, %v8325
      %8327 = vmatmul.bf16.gmra.mxu0 %v8165
      %v8328 = vpop.f32.mrf.mxu0
      %v8329 = vadd.f32 %v8310, %v8328
      %v8330 = vpop.f32.mrf.mxu0
      %v8331 = vadd.f32 %v8312, %v8330
      %8332 = vdwg.mxu0
      %v8333 = vadd.f32 %v8134, %v8324
      %v8334 = vadd.f32 %v8135, %v8326
      %v8335 = vadd.f32 %v8136, %v8329
      %v8336 = vadd.f32 %v8137, %v8331
      %v8337 = vrot.slane %v6961, 7
      %v8338 = vrot.slane %v6963, 7
      %v8339 = vsel %vm2852, %v8337, %v8338
      %v8340 = vrot.slane %v6962, 7
      %v8341 = vrot.slane %v6964, 7
      %v8342 = vsel %vm2852, %v8340, %v8341
      %v8343 = vrot.slane %v6965, 7
      %v8344 = vsel %vm2852, %v8338, %v8343
      %v8345 = vrot.slane %v6966, 7
      %v8346 = vsel %vm2852, %v8341, %v8345
      %v8347 = vrot.slane %v6967, 7
      %v8348 = vsel %vm2852, %v8343, %v8347
      %v8349 = vrot.slane %v6968, 7
      %v8350 = vsel %vm2852, %v8345, %v8349
      %v8359 = vsel %vm2852, %v8347, 0.0
      %v8360 = vsel %vm2852, %v8349, 0.0
      %v8361 = vpack.c.bf16 %v8344, %v8339
      %v8362 = vpack.c.bf16 %v8346, %v8342
      %v8363 = vpack.c.bf16 %v8359, %v8348
      %v8364 = vpack.c.bf16 %v8360, %v8350
      %s8365 = scalar_lea.vmem %s17, 896
      %v8366 = vld [vmem:[%s8365] sm:$0xf]
      %v8367 = vld [vmem:[%s8365 + $0x4] sm:$0xf]
      %v8368 = vld [vmem:[%s8365 + $0x8] sm:$0xf]
      %v8369 = vld [vmem:[%s8365 + $0xc] sm:$0xf]
      %v8370 = vld [vmem:[%s8365 + $0x10] sm:$0xf]
      %v8371 = vld [vmem:[%s8365 + $0x14] sm:$0xf]
      %v8372 = vld [vmem:[%s8365 + $0x18] sm:$0xf]
      %v8373 = vld [vmem:[%s8365 + $0x1c] sm:$0xf]
      %v8374 = vld [vmem:[%s8365 + $0x20] sm:$0xf]
      %v8375 = vld [vmem:[%s8365 + $0x24] sm:$0xf]
      %v8376 = vld [vmem:[%s8365 + $0x28] sm:$0xf]
      %v8377 = vld [vmem:[%s8365 + $0x2c] sm:$0xf]
      %v8378 = vld [vmem:[%s8365 + $0x30] sm:$0xf]
      %v8379 = vld [vmem:[%s8365 + $0x34] sm:$0xf]
      %v8380 = vld [vmem:[%s8365 + $0x38] sm:$0xf]
      %v8381 = vld [vmem:[%s8365 + $0x3c] sm:$0xf]
      %v8382 = vld [vmem:[%s8365 + $0x40] sm:$0xf]
      %v8383 = vld [vmem:[%s8365 + $0x44] sm:$0xf]
      %v8384 = vld [vmem:[%s8365 + $0x48] sm:$0xf]
      %v8385 = vld [vmem:[%s8365 + $0x4c] sm:$0xf]
      %v8386 = vld [vmem:[%s8365 + $0x50] sm:$0xf]
      %v8387 = vld [vmem:[%s8365 + $0x54] sm:$0xf]
      %v8388 = vld [vmem:[%s8365 + $0x58] sm:$0xf]
      %v8389 = vld [vmem:[%s8365 + $0x5c] sm:$0xf]
      %v8390 = vld [vmem:[%s8365 + $0x60] sm:$0xf]
      %v8391 = vld [vmem:[%s8365 + $0x64] sm:$0xf]
      %v8392 = vld [vmem:[%s8365 + $0x68] sm:$0xf]
      %v8393 = vld [vmem:[%s8365 + $0x6c] sm:$0xf]
      %v8394 = vld [vmem:[%s8365 + $0x70] sm:$0xf]
      %v8395 = vld [vmem:[%s8365 + $0x74] sm:$0xf]
      %v8396 = vld [vmem:[%s8365 + $0x78] sm:$0xf]
      %v8397 = vld [vmem:[%s8365 + $0x7c] sm:$0xf]
      %v8430 = vunpack.c.l.b16 %v8366
      %v8431 = vunpack.c.l.b16 %v8367
      %v8432 = vunpack.c.l.b16 %v8368
      %v8433 = vunpack.c.l.b16 %v8369
      %v8434 = vunpack.c.l.b16 %v8370
      %v8435 = vunpack.c.l.b16 %v8371
      %v8436 = vunpack.c.l.b16 %v8372
      %v8437 = vunpack.c.l.b16 %v8373
      %v8438 = vunpack.c.l.b16 %v8374
      %v8439 = vunpack.c.l.b16 %v8375
      %v8440 = vunpack.c.l.b16 %v8376
      %v8441 = vunpack.c.l.b16 %v8377
      %v8442 = vunpack.c.l.b16 %v8378
      %v8443 = vunpack.c.l.b16 %v8379
      %v8444 = vunpack.c.l.b16 %v8380
      %v8445 = vunpack.c.l.b16 %v8381
      %v8446 = vunpack.c.l.b16 %v8382
      %v8447 = vunpack.c.l.b16 %v8383
      %v8448 = vunpack.c.l.b16 %v8384
      %v8449 = vunpack.c.l.b16 %v8385
      %v8450 = vunpack.c.l.b16 %v8386
      %v8451 = vunpack.c.l.b16 %v8387
      %v8452 = vunpack.c.l.b16 %v8388
      %v8453 = vunpack.c.l.b16 %v8389
      %v8454 = vunpack.c.l.b16 %v8390
      %v8455 = vunpack.c.l.b16 %v8391
      %v8456 = vunpack.c.l.b16 %v8392
      %v8457 = vunpack.c.l.b16 %v8393
      %v8458 = vunpack.c.l.b16 %v8394
      %v8459 = vunpack.c.l.b16 %v8395
      %v8460 = vunpack.c.l.b16 %v8396
      %v8461 = vunpack.c.l.b16 %v8397
      %v8462 = vpack.c.b16 %v8431, %v8430
      %v8463 = vpack.c.b16 %v8433, %v8432
      %v8464 = vpack.c.b16 %v8435, %v8434
      %v8465 = vpack.c.b16 %v8437, %v8436
      %v8466 = vpack.c.b16 %v8439, %v8438
      %v8467 = vpack.c.b16 %v8441, %v8440
      %v8468 = vpack.c.b16 %v8443, %v8442
      %v8469 = vpack.c.b16 %v8445, %v8444
      %v8470 = vpack.c.b16 %v8447, %v8446
      %v8471 = vpack.c.b16 %v8449, %v8448
      %v8472 = vpack.c.b16 %v8451, %v8450
      %v8473 = vpack.c.b16 %v8453, %v8452
      %v8474 = vpack.c.b16 %v8455, %v8454
      %v8475 = vpack.c.b16 %v8457, %v8456
      %v8476 = vpack.c.b16 %v8459, %v8458
      %v8477 = vpack.c.b16 %v8461, %v8460
      %8494 = vmatpush.bf16.msra.mxu0 %v8469
      %8495 = vmatpush.bf16.msra.mxu0 %v8468
      %8496 = vmatpush.bf16.msra.mxu0 %v8467
      %8497 = vmatpush.bf16.msra.mxu0 %v8466
      %8498 = vmatpush.bf16.msra.mxu0 %v8465
      %8499 = vmatpush.bf16.msra.mxu0 %v8464
      %8500 = vmatpush.bf16.msra.mxu0 %v8463
      %8501 = vmatpush.bf16.msra.mxu0 %v8462
      %8502 = vmatmul.bf16.gmra.mxu0 %v8361
      %v8503 = vpop.f32.mrf.mxu0
      %v8504 = vadd.f32 0.0, %v8503
      %v8505 = vpop.f32.mrf.mxu0
      %v8506 = vadd.f32 0.0, %v8505
      %8507 = vmatmul.bf16.gmra.mxu0 %v8363
      %v8508 = vpop.f32.mrf.mxu0
      %v8509 = vadd.f32 0.0, %v8508
      %v8510 = vpop.f32.mrf.mxu0
      %v8511 = vadd.f32 0.0, %v8510
      %8512 = vdwg.mxu0
      %8513 = vmatpush.bf16.msra.mxu0 %v8477
      %8514 = vmatpush.bf16.msra.mxu0 %v8476
      %8515 = vmatpush.bf16.msra.mxu0 %v8475
      %8516 = vmatpush.bf16.msra.mxu0 %v8474
      %8517 = vmatpush.bf16.msra.mxu0 %v8473
      %8518 = vmatpush.bf16.msra.mxu0 %v8472
      %8519 = vmatpush.bf16.msra.mxu0 %v8471
      %8520 = vmatpush.bf16.msra.mxu0 %v8470
      %8521 = vmatmul.bf16.gmra.mxu0 %v8362
      %v8522 = vpop.f32.mrf.mxu0
      %v8523 = vadd.f32 %v8504, %v8522
      %v8524 = vpop.f32.mrf.mxu0
      %v8525 = vadd.f32 %v8506, %v8524
      %8526 = vmatmul.bf16.gmra.mxu0 %v8364
      %v8527 = vpop.f32.mrf.mxu0
      %v8528 = vadd.f32 %v8509, %v8527
      %v8529 = vpop.f32.mrf.mxu0
      %v8530 = vadd.f32 %v8511, %v8529
      %8531 = vdwg.mxu0
      %v8532 = vadd.f32 %v8333, %v8523
      %v8533 = vadd.f32 %v8334, %v8525
      %v8534 = vadd.f32 %v8335, %v8528
      %v8535 = vadd.f32 %v8336, %v8530
      %v8536 = vlaneseq
      %v8537 = vand.u32 %v8536, 127
      %v8538 = vmul.u32 %v718, 16
      %vm8539 = vcmp.eq.s32.totalorder %v8537, %v8538
      %v8540 = vsel %vm8539, 1, 0
      %v8541 = vcvt.s32.f32 %v8540
      %v8542 = vunpack.c.l.bf16 %v746
      %v8543 = vunpack.c.l.bf16 %v757
      %v8544 = vunpack.c.l.bf16 %v768
      %v8545 = vunpack.c.l.bf16 %v779
      %vm8546 = vcmask 261120
      %v8548 = vsel %vm8546, %v8541, 0
      %8550 = vmatpush.msra.mxu0 0.0
      %8551 = vmatpush.msra.mxu0 0.0
      %8552 = vmatpush.msra.mxu0 0.0
      %8553 = vmatpush.msra.mxu0 0.0
      %8554 = vmatpush.msra.mxu0 0.0
      %8555 = vmatpush.msra.mxu0 0.0
      %8556 = vmatpush.msra.mxu0 0.0
      %8557 = vmatpush.msra.mxu0 0.0
      %8558 = vmatpush.msra.mxu0 0.0
      %8559 = vmatpush.msra.mxu0 0.0
      %8560 = vmatpush.msra.mxu0 0.0
      %8561 = vmatpush.msra.mxu0 0.0
      %8562 = vmatpush.msra.mxu0 %v8545
      %8563 = vmatpush.msra.mxu0 %v8544
      %8564 = vmatpush.msra.mxu0 %v8543
      %8565 = vmatpush.msra.mxu0 %v8542
      %8566 = vmatmul.f32.gmra.mxu0 %v8548
      %v8567 = vpop.f32.mrf.mxu0
      %v8568 = vadd.f32 0.0, %v8567
      %8569 = vdwg.mxu0
      %v8570 = vpack.c.bf16 %v8568, %v8568
      %v8571 = vld [vmem:[%s18] sm:$0x7]
      %vm8572 = vcmask 39936
      %v8574 = vsel %vm8572, %v8570, 0
      %v8576 = vsel %vm6904, 4294967295, 65535
      %v8577 = vsel %vm6871, %v8576, 0
      %v8579 = vand.u32 %v8571, %v8577
      %8581 = vmatpush.bf16.msra.mxu0 0
      %8582 = vmatpush.bf16.msra.mxu0 0
      %8583 = vmatpush.bf16.msra.mxu0 0
      %8584 = vmatpush.bf16.msra.mxu0 0
      %8585 = vmatpush.bf16.msra.mxu0 0
      %8586 = vmatpush.bf16.msra.mxu0 0
      %8587 = vmatpush.bf16.msra.mxu0 0
      %8588 = vmatpush.bf16.msra.mxu0 %v8579
      %8589 = vmatmul.bf16.gmra.mxu0 %v8574
      %v8590 = vpop.f32.mrf.mxu0
      %v8591 = vadd.f32 0.0, %v8590
      %v8592 = vpop.f32.mrf.mxu0
      %8593 = vdwg.mxu0
      %8594 = vmatpush.msra.mxu0 0.0
      %8595 = vmatpush.msra.mxu0 0.0
      %8596 = vmatpush.msra.mxu0 0.0
      %8597 = vmatpush.msra.mxu0 0.0
      %8598 = vmatpush.msra.mxu0 0.0
      %8599 = vmatpush.msra.mxu0 0.0
      %8600 = vmatpush.msra.mxu0 0.0
      %8601 = vmatpush.msra.mxu0 0.0
      %8602 = vmatpush.msra.mxu0 0.0
      %8603 = vmatpush.msra.mxu0 0.0
      %8604 = vmatpush.msra.mxu0 0.0
      %8605 = vmatpush.msra.mxu0 0.0
      %8606 = vmatpush.msra.mxu0 %v8535
      %8607 = vmatpush.msra.mxu0 %v8534
      %8608 = vmatpush.msra.mxu0 %v8533
      %8609 = vmatpush.msra.mxu0 %v8532
      %8610 = vmatmul.f32.gmra.mxu0 %v8548
      %v8611 = vpop.f32.mrf.mxu0
      %v8612 = vadd.f32 %v8591, %v8611
      %8613 = vdwg.mxu0
      %v8614 = vld [vmem:[%s19] sm:$0x1]
      %v8616 = vperm.slane %v8614, 0
      %v8618 = vadd.f32 %v8612, %v8616
      %v8619 = vmax.f32 %v8618, 0.0
      %v8620 = vld [vmem:[%s20] sm:$0x1]
      %v8622 = vperm.slane %v8620, 0
      %v8624 = vmul.f32 %v8619, %v8622
      %vm8625 = vcmask 517120
      %v8626 = vsel %vm8625, %v8624, 0.0
      %8627 = vadd.xlane.f32.xlu0 %v8626
      %v8628 = vpop.xlane.xlu0 %8627
      %v8629 = vld [vmem:[%s21] sm:$0x1]
      %v8631 = vperm.slane %v8629, 0
      %v8633 = vmul.f32 %v8568, %v8631
      %vm8634 = vcmask 33792
      %v8635 = vsel %vm8634, %v8633, 0.0
      %8636 = vadd.xlane.f32.xlu0 %v8635
      %v8637 = vpop.xlane.xlu0 %8636
      %v8638 = vadd.f32 %v8628, %v8637
      %v8639 = vld [vmem:[#allocation2] sm:$0x1]
      %v8641 = vperm.slane %v8639, 0
      %v8643 = vadd.f32 %v8638, %v8641
      %vm8644 = vcmask 1024
      %8645 = vst.msk [vmem:[%s715] sm:$0x3] %vm8644, %v8643
      %p8646 = scmp.lt.s32.totalorder %s36, 1
      %s8647 = scalar_select %p8646, %s36, 1
      %s8648 = smul.addr %s8647, 2
      %s8649 = scalar_lea.vmem %s23, %s8648
      // Predicated region
      $region113: #{odn_forward.1} parent=111 // pred_check
        %p8650 = pneg %p542
      $region114: #{odn_forward.1} parent=111 // pred_check_branch
        %8652 = sbr.rel (%p8650) target = $region116
      $region115: #{odn_forward.1} parent=111 // pred_region
        _
      $region116: #{odn_forward.1} parent=111 // pred_fallthru
        _
    $region112: #{odn_forward.1} parent=5 // pred_fallthru
      _
    %p8653 = scmp.le.s32.totalorder 2, %s31
    // Predicated region
    $region117: #{odn_forward.1} parent=5 // pred_check
      %p8654 = pneg %p8653
    $region118: #{odn_forward.1} parent=5 // pred_check_branch
      %8656 = sbr.rel (%p8654) target = $region120
    $region119: #{odn_forward.1} parent=5 // pred_region
      %s8657 = ssub.s32 %s31, 2
      // Predicated region
      $region121: #{odn_forward.1} parent=119 // pred_check
        %p8658 = pneg %p548
      $region122: #{odn_forward.1} parent=119 // pred_check_branch
        %8660 = sbr.rel (%p8658) target = $region124
      $region123: #{odn_forward.1} parent=119 // pred_region
        %p8661 = scmp.lt.s32.totalorder %s37, 1
        %s8662 = scalar_select %p8661, %s37, 1
        %s8663 = smul.addr %s8662, 2
        %s8664 = scalar_lea.vmem %s23, %s8663
      $region124: #{odn_forward.1} parent=119 // pred_fallthru
        _
    $region120: #{odn_forward.1} parent=5 // pred_fallthru
      _
  $region6: #{odn_forward.1} parent=0 // loop_footer
    %s35 = sadd.s32 1, %s31
  $region7: #{odn_forward.1} parent=0 // loop_footer_branch
    %30 = sbr.rel target = $region3
  $region8: #{odn_forward.1} parent=0 // loop_exit
    _

</llo_original>
